<compile_context>
chip_gen: v5e
topology: v5e:2x2
jax: 0.10.0
libtpu: 0.0.40
codegen_flags: <defaults>
</compile_context>

<pallas_src>
import jax
import jax.numpy as jnp
from jax.experimental import pallas as pl
from jax.experimental.pallas import tpu as pltpu

BN_EPS = 1e-5


def _round_up(x, m):
    return ((x + m - 1) // m) * m


# ---------------------------------------------------------------------------
# Pass 1 kernel: in-VMEM patch build + conv matmul + per-tile BN partial stats
# ---------------------------------------------------------------------------
def conv3x3x3_stats_kernel(x0_ref, x1_ref, x2_ref, w_ref, y_ref, s_ref):
    # x{kd}_ref : (1, 1, H+2, W+2, Cin)  bf16  padded-input slab at depth offset kd
    # w_ref     : (3, 9*Cin, Cpad)       bf16  per-kd weight, (kh, kw, cin)-major rows
    # y_ref     : (H*W, Cpad)            f32   pre-BN conv output tile
    # s_ref     : (1, 2, Cpad)           f32   per-tile [sum, centered M2]
    hw, cp = y_ref.shape
    h = x0_ref.shape[2] - 2
    w = x0_ref.shape[3] - 2
    cin = x0_ref.shape[4]

    acc = jnp.zeros((hw, cp), jnp.float32)
    for kd, x_ref in enumerate((x0_ref, x1_ref, x2_ref)):
        xs = x_ref[0, 0]                                  # (H+2, W+2, Cin) bf16
        cols = []
        for kh in range(3):
            for kw in range(3):
                cols.append(xs[kh:kh + h, kw:kw + w, :])  # (H, W, Cin)
        patch = jnp.concatenate(cols, axis=-1).reshape(hw, 9 * cin)   # (H*W, 9*Cin)
        acc = acc + jnp.dot(patch, w_ref[kd], preferred_element_type=jnp.float32)

    y_ref[...] = acc

    # Per-tile partial BatchNorm statistics (sum + centered second moment).
    tile_sum = jnp.sum(acc, axis=0, keepdims=True)                    # (1, Cpad)
    centered = acc - tile_sum * (1.0 / hw)
    tile_m2 = jnp.sum(centered * centered, axis=0, keepdims=True)     # (1, Cpad)
    s_ref[...] = jnp.concatenate([tile_sum, tile_m2], axis=0).reshape(1, 2, cp)


# ---------------------------------------------------------------------------
# Pass 2 kernel: fused per-channel affine (BN folded) + ReLU, tiled over rows
# ---------------------------------------------------------------------------
def bn_relu_kernel(y_ref, scale_ref, shift_ref, o_ref):
    o_ref[...] = jnp.maximum(y_ref[...] * scale_ref[...] + shift_ref[...], 0.0)


# ---------------------------------------------------------------------------
# One Conv3d(3x3x3, pad=1) + BatchNorm3d (training stats) + ReLU layer
# ---------------------------------------------------------------------------
def _conv_bn_relu_layer(x_ndhwc, w, gamma, beta):
    N, D, H, W, Cin = x_ndhwc.shape
    Cout = w.shape[0]
    Cpad = _round_up(Cout, 128)     # lane-dense MXU output / stores
    HW = H * W
    ND = N * D
    M = ND * HW
    assert HW % 8 == 0, "H*W must be a multiple of 8 for the (8,128) tiling"

    # Zero-pad spatially once (cheap, ~1x activation) and cast to bf16 for the MXU.
    xp = jnp.pad(x_ndhwc, ((0, 0), (1, 1), (1, 1), (1, 1), (0, 0))).astype(jnp.bfloat16)

    # PyTorch weight (Cout, Cin, kD, kH, kW) -> (kd, kh*kw*cin, cout), zero-padded
    # to Cpad output channels, bf16.  Row order matches the in-kernel patch concat.
    wmat = jnp.transpose(w, (2, 3, 4, 1, 0)).reshape(3, 9 * Cin, Cout)
    wmat = jnp.pad(wmat, ((0, 0), (0, 0), (0, Cpad - Cout))).astype(jnp.bfloat16)

    x_specs = [
        pl.BlockSpec((1, 1, H + 2, W + 2, Cin),
                     lambda n, d, kd=kd: (n, d + kd, 0, 0, 0))
        for kd in range(3)
    ]

    y, stats = pl.pallas_call(
        conv3x3x3_stats_kernel,
        grid=(N, D),
        in_specs=x_specs + [pl.BlockSpec((3, 9 * Cin, Cpad), lambda n, d: (0, 0, 0))],
        out_specs=(
            pl.BlockSpec((HW, Cpad), lambda n, d: (n * D + d, 0)),
            pl.BlockSpec((1, 2, Cpad), lambda n, d: (n * D + d, 0, 0)),
        ),
        out_shape=(
            jax.ShapeDtypeStruct((M, Cpad), jnp.float32),
            jax.ShapeDtypeStruct((ND, 2, Cpad), jnp.float32),
        ),
        compiler_params=pltpu.CompilerParams(
            dimension_semantics=("parallel", "parallel")),
    )(xp, xp, xp, wmat)

    # Chan-style combine of per-tile stats -> global mean / biased variance.
    cnt = float(HW)
    tile_sum = stats[:, 0, :]                                  # (ND, Cpad)
    tile_m2 = stats[:, 1, :]                                   # (ND, Cpad)
    mean = jnp.sum(tile_sum, axis=0) / M                       # (Cpad,)
    tile_mean = tile_sum / cnt
    m2 = jnp.sum(tile_m2, axis=0) + cnt * jnp.sum((tile_mean - mean[None, :]) ** 2, axis=0)
    var = jnp.maximum(m2 / M, 0.0)
    inv = jax.lax.rsqrt(var + BN_EPS)

    # Fold BN into one per-channel scale + shift (conv bias is cancelled by the
    # mean subtraction, so it is intentionally not applied).
    gamma_p = jnp.pad(gamma, (0, Cpad - Cout))
    beta_p = jnp.pad(beta, (0, Cpad - Cout))
    scale = (gamma_p * inv).reshape(1, Cpad).astype(jnp.float32)
    shift = (beta_p - mean * gamma_p * inv).reshape(1, Cpad).astype(jnp.float32)

    out = pl.pallas_call(
        bn_relu_kernel,
        grid=(ND,),
        in_specs=[
            pl.BlockSpec((HW, Cpad), lambda i: (i, 0)),
            pl.BlockSpec((1, Cpad), lambda i: (0, 0)),
            pl.BlockSpec((1, Cpad), lambda i: (0, 0)),
        ],
        out_specs=pl.BlockSpec((HW, Cpad), lambda i: (i, 0)),
        out_shape=jax.ShapeDtypeStruct((M, Cpad), jnp.float32),
        compiler_params=pltpu.CompilerParams(dimension_semantics=("parallel",)),
    )(y, scale, shift)

    return out.reshape(N, D, H, W, Cpad)[..., :Cout]


@jax.jit
def conv_block_forward(x_ncdhw, params):
    """Forward of conv_block. Input/output: NCDHW float32 (PyTorch convention).

    The conv biases (params['b1'], params['b2']) are mathematically cancelled by
    the following BatchNorm's mean subtraction, so the kernels skip them.
    """
    x = jnp.transpose(x_ncdhw, (0, 2, 3, 4, 1))                       # -> NDHWC
    x = _conv_bn_relu_layer(x, params["w1"], params["g1"], params["beta1"])
    x = _conv_bn_relu_layer(x, params["w2"], params["g2"], params["beta2"])
    return jnp.transpose(x, (0, 4, 1, 2, 3))                          # -> NCDHW
    # TODO(synk): BatchNorm3d running_mean / running_var buffer updates (a
    # training-time side effect) are not materialized; forward output is unaffected.


# ---------------------------------------------------------------------------
# Pure-JAX reference (same bf16 input/weight rounding; conv bias kept to show
# it has no effect on the forward output)
# ---------------------------------------------------------------------------
def _ref_layer(x_ncdhw, w, b, gamma, beta):
    xb = x_ncdhw.astype(jnp.bfloat16).astype(jnp.float32)
    wb = w.astype(jnp.bfloat16).astype(jnp.float32)
    y = jax.lax.conv_general_dilated(
        xb, wb, window_strides=(1, 1, 1),
        padding=((1, 1), (1, 1), (1, 1)),
        dimension_numbers=("NCDHW", "OIDHW", "NCDHW"),
        precision=jax.lax.Precision.HIGHEST)
    y = y + b.reshape(1, -1, 1, 1, 1)
    mean = jnp.mean(y, axis=(0, 2, 3, 4), keepdims=True)
    var = jnp.mean((y - mean) ** 2, axis=(0, 2, 3, 4), keepdims=True)
    y = (y - mean) * jax.lax.rsqrt(var + BN_EPS)
    y = y * gamma.reshape(1, -1, 1, 1, 1) + beta.reshape(1, -1, 1, 1, 1)
    return jnp.maximum(y, 0.0)


def conv_block_reference(x_ncdhw, params):
    y = _ref_layer(x_ncdhw, params["w1"], params["b1"], params["g1"], params["beta1"])
    y = _ref_layer(y, params["w2"], params["b2"], params["g2"], params["beta2"])
    return y


# ---------------------------------------------------------------------------
# Deterministic parameter construction (matches nn.Module shapes)
# ---------------------------------------------------------------------------
def make_params(key, ch_in, ch_out):
    ks = jax.random.split(key, 8)
    return {
        "w1": 0.1 * jax.random.normal(ks[0], (ch_out, ch_in, 3, 3, 3), jnp.float32),
        "b1": 0.1 * jax.random.normal(ks[1], (ch_out,), jnp.float32),
        "g1": 1.0 + 0.1 * jax.random.normal(ks[2], (ch_out,), jnp.float32),
        "beta1": 0.1 * jax.random.normal(ks[3], (ch_out,), jnp.float32),
        "w2": 0.1 * jax.random.normal(ks[4], (ch_out, ch_out, 3, 3, 3), jnp.float32),
        "b2": 0.1 * jax.random.normal(ks[5], (ch_out,), jnp.float32),
        "g2": 1.0 + 0.1 * jax.random.normal(ks[6], (ch_out,), jnp.float32),
        "beta2": 0.1 * jax.random.normal(ks[7], (ch_out,), jnp.float32),
    }


if __name__ == "__main__":
    key = jax.random.PRNGKey(0)
    kx, kp = jax.random.split(key)

    N, CH_IN, CH_OUT = 2, 4, 8
    D = H = W = 16
    x = jax.random.normal(kx, (N, CH_IN, D, H, W), jnp.float32)   # NCDHW like PyTorch
    params = make_params(kp, CH_IN, CH_OUT)

    out = jax.block_until_ready(conv_block_forward(x, params))
    ref = jax.block_until_ready(conv_block_reference(x, params))

    assert out.shape == (N, CH_OUT, D, H, W), out.shape
    max_err = float(jnp.max(jnp.abs(out - ref)))
    assert jnp.allclose(out, ref, rtol=1e-2, atol=1e-2), max_err

    print("KERNEL_OK")
</pallas_src>

<mosaic_0001>
module attributes {stable_mosaic.version = 11 : i64} {
  func.func @conv3x3x3_stats_kernel(%arg0: i32, %arg1: i32, %arg2: memref<1x1x18x18x4xbf16, #tpu.memory_space<vmem>>, %arg3: memref<1x1x18x18x4xbf16, #tpu.memory_space<vmem>>, %arg4: memref<1x1x18x18x4xbf16, #tpu.memory_space<vmem>>, %arg5: memref<3x36x128xbf16, #tpu.memory_space<vmem>>, %arg6: memref<256x128xf32, #tpu.memory_space<vmem>>, %arg7: memref<1x2x128xf32, #tpu.memory_space<vmem>>) attributes {dimension_semantics = [#tpu.dimension_semantics<parallel>, #tpu.dimension_semantics<parallel>], iteration_bounds = array<i64: 2, 16>, scalar_prefetch = 0 : i64, scratch_operands = 0 : i64, tpu.core_type = #tpu.core_type<tc>, window_params = [{transform_indices = @transform_0, window_bounds = array<i64: 1, 1, 18, 18, 4>}, {transform_indices = @transform_1, window_bounds = array<i64: 1, 1, 18, 18, 4>}, {transform_indices = @transform_2, window_bounds = array<i64: 1, 1, 18, 18, 4>}, {pipeline_mode = #tpu.pipeline_mode<synchronous>, transform_indices = @transform_3, window_bounds = array<i64: 3, 36, 128>}, {transform_indices = @transform_4, window_bounds = array<i64: 256, 128>}, {transform_indices = @transform_5, window_bounds = array<i64: 1, 2, 128>}]} {
    %cst = arith.constant 0.000000e+00 : f32
    %0 = vector.broadcast %cst : f32 to vector<256x128xf32>
    %c0 = arith.constant 0 : index
    %c0_0 = arith.constant 0 : index
    %c0_1 = arith.constant 0 : index
    %c0_2 = arith.constant 0 : index
    %c0_3 = arith.constant 0 : index
    %1 = vector.load %arg2[%c0, %c0_0, %c0_1, %c0_2, %c0_3] : memref<1x1x18x18x4xbf16, #tpu.memory_space<vmem>>, vector<1x1x18x18x4xbf16>
    %2 = vector.shape_cast %1 : vector<1x1x18x18x4xbf16> to vector<18x18x4xbf16>
    %3 = vector.extract_strided_slice %2 {offsets = [0, 0, 0], sizes = [16, 16, 4], strides = [1, 1, 1]} : vector<18x18x4xbf16> to vector<16x16x4xbf16>
    %4 = vector.extract_strided_slice %2 {offsets = [0, 1, 0], sizes = [16, 16, 4], strides = [1, 1, 1]} : vector<18x18x4xbf16> to vector<16x16x4xbf16>
    %5 = vector.extract_strided_slice %2 {offsets = [0, 2, 0], sizes = [16, 16, 4], strides = [1, 1, 1]} : vector<18x18x4xbf16> to vector<16x16x4xbf16>
    %6 = vector.extract_strided_slice %2 {offsets = [1, 0, 0], sizes = [16, 16, 4], strides = [1, 1, 1]} : vector<18x18x4xbf16> to vector<16x16x4xbf16>
    %7 = vector.extract_strided_slice %2 {offsets = [1, 1, 0], sizes = [16, 16, 4], strides = [1, 1, 1]} : vector<18x18x4xbf16> to vector<16x16x4xbf16>
    %8 = vector.extract_strided_slice %2 {offsets = [1, 2, 0], sizes = [16, 16, 4], strides = [1, 1, 1]} : vector<18x18x4xbf16> to vector<16x16x4xbf16>
    %9 = vector.extract_strided_slice %2 {offsets = [2, 0, 0], sizes = [16, 16, 4], strides = [1, 1, 1]} : vector<18x18x4xbf16> to vector<16x16x4xbf16>
    %10 = vector.extract_strided_slice %2 {offsets = [2, 1, 0], sizes = [16, 16, 4], strides = [1, 1, 1]} : vector<18x18x4xbf16> to vector<16x16x4xbf16>
    %11 = vector.extract_strided_slice %2 {offsets = [2, 2, 0], sizes = [16, 16, 4], strides = [1, 1, 1]} : vector<18x18x4xbf16> to vector<16x16x4xbf16>
    %12 = tpu.concatenate %3, %4, %5, %6, %7, %8, %9, %10, %11 in 2 : vector<16x16x4xbf16>, vector<16x16x4xbf16>, vector<16x16x4xbf16>, vector<16x16x4xbf16>, vector<16x16x4xbf16>, vector<16x16x4xbf16>, vector<16x16x4xbf16>, vector<16x16x4xbf16>, vector<16x16x4xbf16> -> vector<16x16x36xbf16>
    %13 = vector.shape_cast %12 : vector<16x16x36xbf16> to vector<256x36xbf16>
    %c0_4 = arith.constant 0 : index
    %c0_5 = arith.constant 0 : index
    %c0_6 = arith.constant 0 : index
    %14 = vector.load %arg5[%c0_4, %c0_5, %c0_6] : memref<3x36x128xbf16, #tpu.memory_space<vmem>>, vector<1x36x128xbf16>
    %15 = vector.shape_cast %14 : vector<1x36x128xbf16> to vector<36x128xbf16>
    %cst_7 = arith.constant dense<0.000000e+00> : vector<256x128xf32>
    %16 = tpu.matmul %13, %15, %cst_7 {dimension_numbers = #tpu.dot_dimension_numbers<[1], [0], [0], [1], [0, 0, 1, 1], [], []>} : vector<256x36xbf16>, vector<36x128xbf16>, vector<256x128xf32> -> vector<256x128xf32>
    %17 = arith.addf %0, %16 : vector<256x128xf32>
    %c0_8 = arith.constant 0 : index
    %c0_9 = arith.constant 0 : index
    %c0_10 = arith.constant 0 : index
    %c0_11 = arith.constant 0 : index
    %c0_12 = arith.constant 0 : index
    %18 = vector.load %arg3[%c0_8, %c0_9, %c0_10, %c0_11, %c0_12] : memref<1x1x18x18x4xbf16, #tpu.memory_space<vmem>>, vector<1x1x18x18x4xbf16>
    %19 = vector.shape_cast %18 : vector<1x1x18x18x4xbf16> to vector<18x18x4xbf16>
    %20 = vector.extract_strided_slice %19 {offsets = [0, 0, 0], sizes = [16, 16, 4], strides = [1, 1, 1]} : vector<18x18x4xbf16> to vector<16x16x4xbf16>
    %21 = vector.extract_strided_slice %19 {offsets = [0, 1, 0], sizes = [16, 16, 4], strides = [1, 1, 1]} : vector<18x18x4xbf16> to vector<16x16x4xbf16>
    %22 = vector.extract_strided_slice %19 {offsets = [0, 2, 0], sizes = [16, 16, 4], strides = [1, 1, 1]} : vector<18x18x4xbf16> to vector<16x16x4xbf16>
    %23 = vector.extract_strided_slice %19 {offsets = [1, 0, 0], sizes = [16, 16, 4], strides = [1, 1, 1]} : vector<18x18x4xbf16> to vector<16x16x4xbf16>
    %24 = vector.extract_strided_slice %19 {offsets = [1, 1, 0], sizes = [16, 16, 4], strides = [1, 1, 1]} : vector<18x18x4xbf16> to vector<16x16x4xbf16>
    %25 = vector.extract_strided_slice %19 {offsets = [1, 2, 0], sizes = [16, 16, 4], strides = [1, 1, 1]} : vector<18x18x4xbf16> to vector<16x16x4xbf16>
    %26 = vector.extract_strided_slice %19 {offsets = [2, 0, 0], sizes = [16, 16, 4], strides = [1, 1, 1]} : vector<18x18x4xbf16> to vector<16x16x4xbf16>
    %27 = vector.extract_strided_slice %19 {offsets = [2, 1, 0], sizes = [16, 16, 4], strides = [1, 1, 1]} : vector<18x18x4xbf16> to vector<16x16x4xbf16>
    %28 = vector.extract_strided_slice %19 {offsets = [2, 2, 0], sizes = [16, 16, 4], strides = [1, 1, 1]} : vector<18x18x4xbf16> to vector<16x16x4xbf16>
    %29 = tpu.concatenate %20, %21, %22, %23, %24, %25, %26, %27, %28 in 2 : vector<16x16x4xbf16>, vector<16x16x4xbf16>, vector<16x16x4xbf16>, vector<16x16x4xbf16>, vector<16x16x4xbf16>, vector<16x16x4xbf16>, vector<16x16x4xbf16>, vector<16x16x4xbf16>, vector<16x16x4xbf16> -> vector<16x16x36xbf16>
    %30 = vector.shape_cast %29 : vector<16x16x36xbf16> to vector<256x36xbf16>
    %c1 = arith.constant 1 : index
    %c0_13 = arith.constant 0 : index
    %c0_14 = arith.constant 0 : index
    %31 = vector.load %arg5[%c1, %c0_13, %c0_14] : memref<3x36x128xbf16, #tpu.memory_space<vmem>>, vector<1x36x128xbf16>
    %32 = vector.shape_cast %31 : vector<1x36x128xbf16> to vector<36x128xbf16>
    %cst_15 = arith.constant dense<0.000000e+00> : vector<256x128xf32>
    %33 = tpu.matmul %30, %32, %cst_15 {dimension_numbers = #tpu.dot_dimension_numbers<[1], [0], [0], [1], [0, 0, 1, 1], [], []>} : vector<256x36xbf16>, vector<36x128xbf16>, vector<256x128xf32> -> vector<256x128xf32>
    %34 = arith.addf %17, %33 : vector<256x128xf32>
    %c0_16 = arith.constant 0 : index
    %c0_17 = arith.constant 0 : index
    %c0_18 = arith.constant 0 : index
    %c0_19 = arith.constant 0 : index
    %c0_20 = arith.constant 0 : index
    %35 = vector.load %arg4[%c0_16, %c0_17, %c0_18, %c0_19, %c0_20] : memref<1x1x18x18x4xbf16, #tpu.memory_space<vmem>>, vector<1x1x18x18x4xbf16>
    %36 = vector.shape_cast %35 : vector<1x1x18x18x4xbf16> to vector<18x18x4xbf16>
    %37 = vector.extract_strided_slice %36 {offsets = [0, 0, 0], sizes = [16, 16, 4], strides = [1, 1, 1]} : vector<18x18x4xbf16> to vector<16x16x4xbf16>
    %38 = vector.extract_strided_slice %36 {offsets = [0, 1, 0], sizes = [16, 16, 4], strides = [1, 1, 1]} : vector<18x18x4xbf16> to vector<16x16x4xbf16>
    %39 = vector.extract_strided_slice %36 {offsets = [0, 2, 0], sizes = [16, 16, 4], strides = [1, 1, 1]} : vector<18x18x4xbf16> to vector<16x16x4xbf16>
    %40 = vector.extract_strided_slice %36 {offsets = [1, 0, 0], sizes = [16, 16, 4], strides = [1, 1, 1]} : vector<18x18x4xbf16> to vector<16x16x4xbf16>
    %41 = vector.extract_strided_slice %36 {offsets = [1, 1, 0], sizes = [16, 16, 4], strides = [1, 1, 1]} : vector<18x18x4xbf16> to vector<16x16x4xbf16>
    %42 = vector.extract_strided_slice %36 {offsets = [1, 2, 0], sizes = [16, 16, 4], strides = [1, 1, 1]} : vector<18x18x4xbf16> to vector<16x16x4xbf16>
    %43 = vector.extract_strided_slice %36 {offsets = [2, 0, 0], sizes = [16, 16, 4], strides = [1, 1, 1]} : vector<18x18x4xbf16> to vector<16x16x4xbf16>
    %44 = vector.extract_strided_slice %36 {offsets = [2, 1, 0], sizes = [16, 16, 4], strides = [1, 1, 1]} : vector<18x18x4xbf16> to vector<16x16x4xbf16>
    %45 = vector.extract_strided_slice %36 {offsets = [2, 2, 0], sizes = [16, 16, 4], strides = [1, 1, 1]} : vector<18x18x4xbf16> to vector<16x16x4xbf16>
    %46 = tpu.concatenate %37, %38, %39, %40, %41, %42, %43, %44, %45 in 2 : vector<16x16x4xbf16>, vector<16x16x4xbf16>, vector<16x16x4xbf16>, vector<16x16x4xbf16>, vector<16x16x4xbf16>, vector<16x16x4xbf16>, vector<16x16x4xbf16>, vector<16x16x4xbf16>, vector<16x16x4xbf16> -> vector<16x16x36xbf16>
    %47 = vector.shape_cast %46 : vector<16x16x36xbf16> to vector<256x36xbf16>
    %c2 = arith.constant 2 : index
    %c0_21 = arith.constant 0 : index
    %c0_22 = arith.constant 0 : index
    %48 = vector.load %arg5[%c2, %c0_21, %c0_22] : memref<3x36x128xbf16, #tpu.memory_space<vmem>>, vector<1x36x128xbf16>
    %49 = vector.shape_cast %48 : vector<1x36x128xbf16> to vector<36x128xbf16>
    %cst_23 = arith.constant dense<0.000000e+00> : vector<256x128xf32>
    %50 = tpu.matmul %47, %49, %cst_23 {dimension_numbers = #tpu.dot_dimension_numbers<[1], [0], [0], [1], [0, 0, 1, 1], [], []>} : vector<256x36xbf16>, vector<36x128xbf16>, vector<256x128xf32> -> vector<256x128xf32>
    %51 = arith.addf %34, %50 : vector<256x128xf32>
    %c0_24 = arith.constant 0 : index
    %c0_25 = arith.constant 0 : index
    %52 = vector.load %arg6[%c0_24, %c0_25] : memref<256x128xf32, #tpu.memory_space<vmem>>, vector<256x128xf32>
    tpu.vector_store %arg6[%c0_24, %c0_25], %51 {strides = array<i32>} : memref<256x128xf32, #tpu.memory_space<vmem>>, vector<256x128xf32>,
    %cst_26 = arith.constant dense<0.000000e+00> : vector<128xf32>
    %53 = vector.multi_reduction <add>, %51, %cst_26 [0] : vector<256x128xf32> to vector<128xf32>
    %54 = vector.shape_cast %53 : vector<128xf32> to vector<1x128xf32>
    %cst_27 = arith.constant 3.906250e-03 : f32
    %55 = vector.broadcast %cst_27 : f32 to vector<1x128xf32>
    %56 = arith.mulf %54, %55 : vector<1x128xf32>
    %57 = vector.broadcast %56 : vector<1x128xf32> to vector<256x128xf32>
    %58 = arith.subf %51, %57 : vector<256x128xf32>
    %59 = arith.mulf %58, %58 : vector<256x128xf32>
    %cst_28 = arith.constant dense<0.000000e+00> : vector<128xf32>
    %60 = vector.multi_reduction <add>, %59, %cst_28 [0] : vector<256x128xf32> to vector<128xf32>
    %61 = vector.shape_cast %60 : vector<128xf32> to vector<1x128xf32>
    %62 = tpu.concatenate %54, %61 in 0 : vector<1x128xf32>, vector<1x128xf32> -> vector<2x128xf32>
    %63 = vector.shape_cast %62 : vector<2x128xf32> to vector<1x2x128xf32>
    %c0_29 = arith.constant 0 : index
    %c0_30 = arith.constant 0 : index
    %c0_31 = arith.constant 0 : index
    %64 = vector.load %arg7[%c0_29, %c0_30, %c0_31] : memref<1x2x128xf32, #tpu.memory_space<vmem>>, vector<1x2x128xf32>
    tpu.vector_store %arg7[%c0_29, %c0_30, %c0_31], %63 {strides = array<i32>} : memref<1x2x128xf32, #tpu.memory_space<vmem>>, vector<1x2x128xf32>,
    return
  }
  func.func @transform_0(%arg0: i32, %arg1: i32) -> (i32, i32, i32, i32, i32) {
    %c0_i32 = arith.constant 0 : i32
    %0 = arith.addi %arg1, %c0_i32 : i32
    %c0_i32_0 = arith.constant 0 : i32
    %c0_i32_1 = arith.constant 0 : i32
    %c0_i32_2 = arith.constant 0 : i32
    %c0_i32_3 = arith.constant 0 : i32
    return %arg0, %0, %c0_i32_0, %c0_i32_1, %c0_i32_2 : i32, i32, i32, i32, i32
  }
  func.func @transform_1(%arg0: i32, %arg1: i32) -> (i32, i32, i32, i32, i32) {
    %c1_i32 = arith.constant 1 : i32
    %0 = arith.addi %arg1, %c1_i32 : i32
    %c0_i32 = arith.constant 0 : i32
    %c0_i32_0 = arith.constant 0 : i32
    %c0_i32_1 = arith.constant 0 : i32
    %c0_i32_2 = arith.constant 0 : i32
    return %arg0, %0, %c0_i32, %c0_i32_0, %c0_i32_1 : i32, i32, i32, i32, i32
  }
  func.func @transform_2(%arg0: i32, %arg1: i32) -> (i32, i32, i32, i32, i32) {
    %c2_i32 = arith.constant 2 : i32
    %0 = arith.addi %arg1, %c2_i32 : i32
    %c0_i32 = arith.constant 0 : i32
    %c0_i32_0 = arith.constant 0 : i32
    %c0_i32_1 = arith.constant 0 : i32
    %c0_i32_2 = arith.constant 0 : i32
    return %arg0, %0, %c0_i32, %c0_i32_0, %c0_i32_1 : i32, i32, i32, i32, i32
  }
  func.func @transform_3(%arg0: i32, %arg1: i32) -> (i32, i32, i32) {
    %c0_i32 = arith.constant 0 : i32
    %c0_i32_0 = arith.constant 0 : i32
    %c0_i32_1 = arith.constant 0 : i32
    %c0_i32_2 = arith.constant 0 : i32
    return %c0_i32, %c0_i32_0, %c0_i32_1 : i32, i32, i32
  }
  func.func @transform_4(%arg0: i32, %arg1: i32) -> (i32, i32) {
    %c16_i32 = arith.constant 16 : i32
    %0 = arith.muli %arg0, %c16_i32 : i32
    %1 = arith.addi %0, %arg1 : i32
    %c0_i32 = arith.constant 0 : i32
    %c0_i32_0 = arith.constant 0 : i32
    return %1, %c0_i32 : i32, i32
  }
  func.func @transform_5(%arg0: i32, %arg1: i32) -> (i32, i32, i32) {
    %c16_i32 = arith.constant 16 : i32
    %0 = arith.muli %arg0, %c16_i32 : i32
    %1 = arith.addi %0, %arg1 : i32
    %c0_i32 = arith.constant 0 : i32
    %c0_i32_0 = arith.constant 0 : i32
    %c0_i32_1 = arith.constant 0 : i32
    return %1, %c0_i32, %c0_i32_0 : i32, i32, i32
  }
}

module attributes {stable_mosaic.version = 11 : i64} {
  func.func @bn_relu_kernel(%arg0: i32, %arg1: memref<256x128xf32, #tpu.memory_space<vmem>>, %arg2: memref<1x128xf32, #tpu.memory_space<vmem>>, %arg3: memref<1x128xf32, #tpu.memory_space<vmem>>, %arg4: memref<256x128xf32, #tpu.memory_space<vmem>>) attributes {dimension_semantics = [#tpu.dimension_semantics<parallel>], iteration_bounds = array<i64: 32>, scalar_prefetch = 0 : i64, scratch_operands = 0 : i64, tpu.core_type = #tpu.core_type<tc>, window_params = [{transform_indices = @transform_0, window_bounds = array<i64: 256, 128>}, {pipeline_mode = #tpu.pipeline_mode<synchronous>, transform_indices = @transform_1, window_bounds = array<i64: 1, 128>}, {pipeline_mode = #tpu.pipeline_mode<synchronous>, transform_indices = @transform_2, window_bounds = array<i64: 1, 128>}, {transform_indices = @transform_3, window_bounds = array<i64: 256, 128>}]} {
    %c0 = arith.constant 0 : index
    %c0_0 = arith.constant 0 : index
    %0 = vector.load %arg1[%c0, %c0_0] : memref<256x128xf32, #tpu.memory_space<vmem>>, vector<256x128xf32>
    %c0_1 = arith.constant 0 : index
    %c0_2 = arith.constant 0 : index
    %1 = vector.load %arg2[%c0_1, %c0_2] : memref<1x128xf32, #tpu.memory_space<vmem>>, vector<1x128xf32>
    %2 = vector.broadcast %1 : vector<1x128xf32> to vector<256x128xf32>
    %3 = arith.mulf %0, %2 : vector<256x128xf32>
    %c0_3 = arith.constant 0 : index
    %c0_4 = arith.constant 0 : index
    %4 = vector.load %arg3[%c0_3, %c0_4] : memref<1x128xf32, #tpu.memory_space<vmem>>, vector<1x128xf32>
    %5 = vector.broadcast %4 : vector<1x128xf32> to vector<256x128xf32>
    %6 = arith.addf %3, %5 : vector<256x128xf32>
    %cst = arith.constant 0.000000e+00 : f32
    %7 = vector.broadcast %cst : f32 to vector<256x128xf32>
    %8 = arith.maximumf %6, %7 : vector<256x128xf32>
    %c0_5 = arith.constant 0 : index
    %c0_6 = arith.constant 0 : index
    %9 = vector.load %arg4[%c0_5, %c0_6] : memref<256x128xf32, #tpu.memory_space<vmem>>, vector<256x128xf32>
    tpu.vector_store %arg4[%c0_5, %c0_6], %8 {strides = array<i32>} : memref<256x128xf32, #tpu.memory_space<vmem>>, vector<256x128xf32>,
    return
  }
  func.func @transform_0(%arg0: i32) -> (i32, i32) {
    %c0_i32 = arith.constant 0 : i32
    %c0_i32_0 = arith.constant 0 : i32
    return %arg0, %c0_i32 : i32, i32
  }
  func.func @transform_1(%arg0: i32) -> (i32, i32) {
    %c0_i32 = arith.constant 0 : i32
    %c0_i32_0 = arith.constant 0 : i32
    %c0_i32_1 = arith.constant 0 : i32
    return %c0_i32, %c0_i32_0 : i32, i32
  }
  func.func @transform_2(%arg0: i32) -> (i32, i32) {
    %c0_i32 = arith.constant 0 : i32
    %c0_i32_0 = arith.constant 0 : i32
    %c0_i32_1 = arith.constant 0 : i32
    return %c0_i32, %c0_i32_0 : i32, i32
  }
  func.func @transform_3(%arg0: i32) -> (i32, i32) {
    %c0_i32 = arith.constant 0 : i32
    %c0_i32_0 = arith.constant 0 : i32
    return %arg0, %c0_i32 : i32, i32
  }
}

module attributes {stable_mosaic.version = 11 : i64} {
  func.func @conv3x3x3_stats_kernel(%arg0: i32, %arg1: i32, %arg2: memref<1x1x18x18x8xbf16, #tpu.memory_space<vmem>>, %arg3: memref<1x1x18x18x8xbf16, #tpu.memory_space<vmem>>, %arg4: memref<1x1x18x18x8xbf16, #tpu.memory_space<vmem>>, %arg5: memref<3x72x128xbf16, #tpu.memory_space<vmem>>, %arg6: memref<256x128xf32, #tpu.memory_space<vmem>>, %arg7: memref<1x2x128xf32, #tpu.memory_space<vmem>>) attributes {dimension_semantics = [#tpu.dimension_semantics<parallel>, #tpu.dimension_semantics<parallel>], iteration_bounds = array<i64: 2, 16>, scalar_prefetch = 0 : i64, scratch_operands = 0 : i64, tpu.core_type = #tpu.core_type<tc>, window_params = [{transform_indices = @transform_0, window_bounds = array<i64: 1, 1, 18, 18, 8>}, {transform_indices = @transform_1, window_bounds = array<i64: 1, 1, 18, 18, 8>}, {transform_indices = @transform_2, window_bounds = array<i64: 1, 1, 18, 18, 8>}, {pipeline_mode = #tpu.pipeline_mode<synchronous>, transform_indices = @transform_3, window_bounds = array<i64: 3, 72, 128>}, {transform_indices = @transform_4, window_bounds = array<i64: 256, 128>}, {transform_indices = @transform_5, window_bounds = array<i64: 1, 2, 128>}]} {
    %cst = arith.constant 0.000000e+00 : f32
    %0 = vector.broadcast %cst : f32 to vector<256x128xf32>
    %c0 = arith.constant 0 : index
    %c0_0 = arith.constant 0 : index
    %c0_1 = arith.constant 0 : index
    %c0_2 = arith.constant 0 : index
    %c0_3 = arith.constant 0 : index
    %1 = vector.load %arg2[%c0, %c0_0, %c0_1, %c0_2, %c0_3] : memref<1x1x18x18x8xbf16, #tpu.memory_space<vmem>>, vector<1x1x18x18x8xbf16>
    %2 = vector.shape_cast %1 : vector<1x1x18x18x8xbf16> to vector<18x18x8xbf16>
    %3 = vector.extract_strided_slice %2 {offsets = [0, 0, 0], sizes = [16, 16, 8], strides = [1, 1, 1]} : vector<18x18x8xbf16> to vector<16x16x8xbf16>
    %4 = vector.extract_strided_slice %2 {offsets = [0, 1, 0], sizes = [16, 16, 8], strides = [1, 1, 1]} : vector<18x18x8xbf16> to vector<16x16x8xbf16>
    %5 = vector.extract_strided_slice %2 {offsets = [0, 2, 0], sizes = [16, 16, 8], strides = [1, 1, 1]} : vector<18x18x8xbf16> to vector<16x16x8xbf16>
    %6 = vector.extract_strided_slice %2 {offsets = [1, 0, 0], sizes = [16, 16, 8], strides = [1, 1, 1]} : vector<18x18x8xbf16> to vector<16x16x8xbf16>
    %7 = vector.extract_strided_slice %2 {offsets = [1, 1, 0], sizes = [16, 16, 8], strides = [1, 1, 1]} : vector<18x18x8xbf16> to vector<16x16x8xbf16>
    %8 = vector.extract_strided_slice %2 {offsets = [1, 2, 0], sizes = [16, 16, 8], strides = [1, 1, 1]} : vector<18x18x8xbf16> to vector<16x16x8xbf16>
    %9 = vector.extract_strided_slice %2 {offsets = [2, 0, 0], sizes = [16, 16, 8], strides = [1, 1, 1]} : vector<18x18x8xbf16> to vector<16x16x8xbf16>
    %10 = vector.extract_strided_slice %2 {offsets = [2, 1, 0], sizes = [16, 16, 8], strides = [1, 1, 1]} : vector<18x18x8xbf16> to vector<16x16x8xbf16>
    %11 = vector.extract_strided_slice %2 {offsets = [2, 2, 0], sizes = [16, 16, 8], strides = [1, 1, 1]} : vector<18x18x8xbf16> to vector<16x16x8xbf16>
    %12 = tpu.concatenate %3, %4, %5, %6, %7, %8, %9, %10, %11 in 2 : vector<16x16x8xbf16>, vector<16x16x8xbf16>, vector<16x16x8xbf16>, vector<16x16x8xbf16>, vector<16x16x8xbf16>, vector<16x16x8xbf16>, vector<16x16x8xbf16>, vector<16x16x8xbf16>, vector<16x16x8xbf16> -> vector<16x16x72xbf16>
    %13 = vector.shape_cast %12 : vector<16x16x72xbf16> to vector<256x72xbf16>
    %c0_4 = arith.constant 0 : index
    %c0_5 = arith.constant 0 : index
    %c0_6 = arith.constant 0 : index
    %14 = vector.load %arg5[%c0_4, %c0_5, %c0_6] : memref<3x72x128xbf16, #tpu.memory_space<vmem>>, vector<1x72x128xbf16>
    %15 = vector.shape_cast %14 : vector<1x72x128xbf16> to vector<72x128xbf16>
    %cst_7 = arith.constant dense<0.000000e+00> : vector<256x128xf32>
    %16 = tpu.matmul %13, %15, %cst_7 {dimension_numbers = #tpu.dot_dimension_numbers<[1], [0], [0], [1], [0, 0, 1, 1], [], []>} : vector<256x72xbf16>, vector<72x128xbf16>, vector<256x128xf32> -> vector<256x128xf32>
    %17 = arith.addf %0, %16 : vector<256x128xf32>
    %c0_8 = arith.constant 0 : index
    %c0_9 = arith.constant 0 : index
    %c0_10 = arith.constant 0 : index
    %c0_11 = arith.constant 0 : index
    %c0_12 = arith.constant 0 : index
    %18 = vector.load %arg3[%c0_8, %c0_9, %c0_10, %c0_11, %c0_12] : memref<1x1x18x18x8xbf16, #tpu.memory_space<vmem>>, vector<1x1x18x18x8xbf16>
    %19 = vector.shape_cast %18 : vector<1x1x18x18x8xbf16> to vector<18x18x8xbf16>
    %20 = vector.extract_strided_slice %19 {offsets = [0, 0, 0], sizes = [16, 16, 8], strides = [1, 1, 1]} : vector<18x18x8xbf16> to vector<16x16x8xbf16>
    %21 = vector.extract_strided_slice %19 {offsets = [0, 1, 0], sizes = [16, 16, 8], strides = [1, 1, 1]} : vector<18x18x8xbf16> to vector<16x16x8xbf16>
    %22 = vector.extract_strided_slice %19 {offsets = [0, 2, 0], sizes = [16, 16, 8], strides = [1, 1, 1]} : vector<18x18x8xbf16> to vector<16x16x8xbf16>
    %23 = vector.extract_strided_slice %19 {offsets = [1, 0, 0], sizes = [16, 16, 8], strides = [1, 1, 1]} : vector<18x18x8xbf16> to vector<16x16x8xbf16>
    %24 = vector.extract_strided_slice %19 {offsets = [1, 1, 0], sizes = [16, 16, 8], strides = [1, 1, 1]} : vector<18x18x8xbf16> to vector<16x16x8xbf16>
    %25 = vector.extract_strided_slice %19 {offsets = [1, 2, 0], sizes = [16, 16, 8], strides = [1, 1, 1]} : vector<18x18x8xbf16> to vector<16x16x8xbf16>
    %26 = vector.extract_strided_slice %19 {offsets = [2, 0, 0], sizes = [16, 16, 8], strides = [1, 1, 1]} : vector<18x18x8xbf16> to vector<16x16x8xbf16>
    %27 = vector.extract_strided_slice %19 {offsets = [2, 1, 0], sizes = [16, 16, 8], strides = [1, 1, 1]} : vector<18x18x8xbf16> to vector<16x16x8xbf16>
    %28 = vector.extract_strided_slice %19 {offsets = [2, 2, 0], sizes = [16, 16, 8], strides = [1, 1, 1]} : vector<18x18x8xbf16> to vector<16x16x8xbf16>
    %29 = tpu.concatenate %20, %21, %22, %23, %24, %25, %26, %27, %28 in 2 : vector<16x16x8xbf16>, vector<16x16x8xbf16>, vector<16x16x8xbf16>, vector<16x16x8xbf16>, vector<16x16x8xbf16>, vector<16x16x8xbf16>, vector<16x16x8xbf16>, vector<16x16x8xbf16>, vector<16x16x8xbf16> -> vector<16x16x72xbf16>
    %30 = vector.shape_cast %29 : vector<16x16x72xbf16> to vector<256x72xbf16>
    %c1 = arith.constant 1 : index
    %c0_13 = arith.constant 0 : index
    %c0_14 = arith.constant 0 : index
    %31 = vector.load %arg5[%c1, %c0_13, %c0_14] : memref<3x72x128xbf16, #tpu.memory_space<vmem>>, vector<1x72x128xbf16>
    %32 = vector.shape_cast %31 : vector<1x72x128xbf16> to vector<72x128xbf16>
    %cst_15 = arith.constant dense<0.000000e+00> : vector<256x128xf32>
    %33 = tpu.matmul %30, %32, %cst_15 {dimension_numbers = #tpu.dot_dimension_numbers<[1], [0], [0], [1], [0, 0, 1, 1], [], []>} : vector<256x72xbf16>, vector<72x128xbf16>, vector<256x128xf32> -> vector<256x128xf32>
    %34 = arith.addf %17, %33 : vector<256x128xf32>
    %c0_16 = arith.constant 0 : index
    %c0_17 = arith.constant 0 : index
    %c0_18 = arith.constant 0 : index
    %c0_19 = arith.constant 0 : index
    %c0_20 = arith.constant 0 : index
    %35 = vector.load %arg4[%c0_16, %c0_17, %c0_18, %c0_19, %c0_20] : memref<1x1x18x18x8xbf16, #tpu.memory_space<vmem>>, vector<1x1x18x18x8xbf16>
    %36 = vector.shape_cast %35 : vector<1x1x18x18x8xbf16> to vector<18x18x8xbf16>
    %37 = vector.extract_strided_slice %36 {offsets = [0, 0, 0], sizes = [16, 16, 8], strides = [1, 1, 1]} : vector<18x18x8xbf16> to vector<16x16x8xbf16>
    %38 = vector.extract_strided_slice %36 {offsets = [0, 1, 0], sizes = [16, 16, 8], strides = [1, 1, 1]} : vector<18x18x8xbf16> to vector<16x16x8xbf16>
    %39 = vector.extract_strided_slice %36 {offsets = [0, 2, 0], sizes = [16, 16, 8], strides = [1, 1, 1]} : vector<18x18x8xbf16> to vector<16x16x8xbf16>
    %40 = vector.extract_strided_slice %36 {offsets = [1, 0, 0], sizes = [16, 16, 8], strides = [1, 1, 1]} : vector<18x18x8xbf16> to vector<16x16x8xbf16>
    %41 = vector.extract_strided_slice %36 {offsets = [1, 1, 0], sizes = [16, 16, 8], strides = [1, 1, 1]} : vector<18x18x8xbf16> to vector<16x16x8xbf16>
    %42 = vector.extract_strided_slice %36 {offsets = [1, 2, 0], sizes = [16, 16, 8], strides = [1, 1, 1]} : vector<18x18x8xbf16> to vector<16x16x8xbf16>
    %43 = vector.extract_strided_slice %36 {offsets = [2, 0, 0], sizes = [16, 16, 8], strides = [1, 1, 1]} : vector<18x18x8xbf16> to vector<16x16x8xbf16>
    %44 = vector.extract_strided_slice %36 {offsets = [2, 1, 0], sizes = [16, 16, 8], strides = [1, 1, 1]} : vector<18x18x8xbf16> to vector<16x16x8xbf16>
    %45 = vector.extract_strided_slice %36 {offsets = [2, 2, 0], sizes = [16, 16, 8], strides = [1, 1, 1]} : vector<18x18x8xbf16> to vector<16x16x8xbf16>
    %46 = tpu.concatenate %37, %38, %39, %40, %41, %42, %43, %44, %45 in 2 : vector<16x16x8xbf16>, vector<16x16x8xbf16>, vector<16x16x8xbf16>, vector<16x16x8xbf16>, vector<16x16x8xbf16>, vector<16x16x8xbf16>, vector<16x16x8xbf16>, vector<16x16x8xbf16>, vector<16x16x8xbf16> -> vector<16x16x72xbf16>
    %47 = vector.shape_cast %46 : vector<16x16x72xbf16> to vector<256x72xbf16>
    %c2 = arith.constant 2 : index
    %c0_21 = arith.constant 0 : index
    %c0_22 = arith.constant 0 : index
    %48 = vector.load %arg5[%c2, %c0_21, %c0_22] : memref<3x72x128xbf16, #tpu.memory_space<vmem>>, vector<1x72x128xbf16>
    %49 = vector.shape_cast %48 : vector<1x72x128xbf16> to vector<72x128xbf16>
    %cst_23 = arith.constant dense<0.000000e+00> : vector<256x128xf32>
    %50 = tpu.matmul %47, %49, %cst_23 {dimension_numbers = #tpu.dot_dimension_numbers<[1], [0], [0], [1], [0, 0, 1, 1], [], []>} : vector<256x72xbf16>, vector<72x128xbf16>, vector<256x128xf32> -> vector<256x128xf32>
    %51 = arith.addf %34, %50 : vector<256x128xf32>
    %c0_24 = arith.constant 0 : index
    %c0_25 = arith.constant 0 : index
    %52 = vector.load %arg6[%c0_24, %c0_25] : memref<256x128xf32, #tpu.memory_space<vmem>>, vector<256x128xf32>
    tpu.vector_store %arg6[%c0_24, %c0_25], %51 {strides = array<i32>} : memref<256x128xf32, #tpu.memory_space<vmem>>, vector<256x128xf32>,
    %cst_26 = arith.constant dense<0.000000e+00> : vector<128xf32>
    %53 = vector.multi_reduction <add>, %51, %cst_26 [0] : vector<256x128xf32> to vector<128xf32>
    %54 = vector.shape_cast %53 : vector<128xf32> to vector<1x128xf32>
    %cst_27 = arith.constant 3.906250e-03 : f32
    %55 = vector.broadcast %cst_27 : f32 to vector<1x128xf32>
    %56 = arith.mulf %54, %55 : vector<1x128xf32>
    %57 = vector.broadcast %56 : vector<1x128xf32> to vector<256x128xf32>
    %58 = arith.subf %51, %57 : vector<256x128xf32>
    %59 = arith.mulf %58, %58 : vector<256x128xf32>
    %cst_28 = arith.constant dense<0.000000e+00> : vector<128xf32>
    %60 = vector.multi_reduction <add>, %59, %cst_28 [0] : vector<256x128xf32> to vector<128xf32>
    %61 = vector.shape_cast %60 : vector<128xf32> to vector<1x128xf32>
    %62 = tpu.concatenate %54, %61 in 0 : vector<1x128xf32>, vector<1x128xf32> -> vector<2x128xf32>
    %63 = vector.shape_cast %62 : vector<2x128xf32> to vector<1x2x128xf32>
    %c0_29 = arith.constant 0 : index
    %c0_30 = arith.constant 0 : index
    %c0_31 = arith.constant 0 : index
    %64 = vector.load %arg7[%c0_29, %c0_30, %c0_31] : memref<1x2x128xf32, #tpu.memory_space<vmem>>, vector<1x2x128xf32>
    tpu.vector_store %arg7[%c0_29, %c0_30, %c0_31], %63 {strides = array<i32>} : memref<1x2x128xf32, #tpu.memory_space<vmem>>, vector<1x2x128xf32>,
    return
  }
  func.func @transform_0(%arg0: i32, %arg1: i32) -> (i32, i32, i32, i32, i32) {
    %c0_i32 = arith.constant 0 : i32
    %0 = arith.addi %arg1, %c0_i32 : i32
    %c0_i32_0 = arith.constant 0 : i32
    %c0_i32_1 = arith.constant 0 : i32
    %c0_i32_2 = arith.constant 0 : i32
    %c0_i32_3 = arith.constant 0 : i32
    return %arg0, %0, %c0_i32_0, %c0_i32_1, %c0_i32_2 : i32, i32, i32, i32, i32
  }
  func.func @transform_1(%arg0: i32, %arg1: i32) -> (i32, i32, i32, i32, i32) {
    %c1_i32 = arith.constant 1 : i32
    %0 = arith.addi %arg1, %c1_i32 : i32
    %c0_i32 = arith.constant 0 : i32
    %c0_i32_0 = arith.constant 0 : i32
    %c0_i32_1 = arith.constant 0 : i32
    %c0_i32_2 = arith.constant 0 : i32
    return %arg0, %0, %c0_i32, %c0_i32_0, %c0_i32_1 : i32, i32, i32, i32, i32
  }
  func.func @transform_2(%arg0: i32, %arg1: i32) -> (i32, i32, i32, i32, i32) {
    %c2_i32 = arith.constant 2 : i32
    %0 = arith.addi %arg1, %c2_i32 : i32
    %c0_i32 = arith.constant 0 : i32
    %c0_i32_0 = arith.constant 0 : i32
    %c0_i32_1 = arith.constant 0 : i32
    %c0_i32_2 = arith.constant 0 : i32
    return %arg0, %0, %c0_i32, %c0_i32_0, %c0_i32_1 : i32, i32, i32, i32, i32
  }
  func.func @transform_3(%arg0: i32, %arg1: i32) -> (i32, i32, i32) {
    %c0_i32 = arith.constant 0 : i32
    %c0_i32_0 = arith.constant 0 : i32
    %c0_i32_1 = arith.constant 0 : i32
    %c0_i32_2 = arith.constant 0 : i32
    return %c0_i32, %c0_i32_0, %c0_i32_1 : i32, i32, i32
  }
  func.func @transform_4(%arg0: i32, %arg1: i32) -> (i32, i32) {
    %c16_i32 = arith.constant 16 : i32
    %0 = arith.muli %arg0, %c16_i32 : i32
    %1 = arith.addi %0, %arg1 : i32
    %c0_i32 = arith.constant 0 : i32
    %c0_i32_0 = arith.constant 0 : i32
    return %1, %c0_i32 : i32, i32
  }
  func.func @transform_5(%arg0: i32, %arg1: i32) -> (i32, i32, i32) {
    %c16_i32 = arith.constant 16 : i32
    %0 = arith.muli %arg0, %c16_i32 : i32
    %1 = arith.addi %0, %arg1 : i32
    %c0_i32 = arith.constant 0 : i32
    %c0_i32_0 = arith.constant 0 : i32
    %c0_i32_1 = arith.constant 0 : i32
    return %1, %c0_i32, %c0_i32_0 : i32, i32, i32
  }
}

</mosaic_0001>

<llo_original>
// kernel: conv_block_forward.5
$region0: #{conv_block_forward.5}
  #allocation0 [shape = 'u32[]', space=smem, size = 0x4, offset = 0x4, fixed_abs, tag = 'smem constant byte address 0x4 - core index']
  #allocation1 [shape = 'u32[72,128]{1,0:T(1,128)}', space=vmem, size = 0x9000, scoped, tag = 'internal scratch']
  %s0 = inlined_call_operand.vmem [shape: f32[8192,128], index: 0, kind: input, shape index: {}]
  %s1 = inlined_call_operand.vmem [shape: f32[1,128], index: 1, kind: input, shape index: {}]
  %s2 = inlined_call_operand.vmem [shape: f32[1,128], index: 2, kind: input, shape index: {}]
  %s3 = inlined_call_operand.vmem [shape: f32[8192,128], index: 3, kind: output, shape index: {}]
  %s4 = sld [smem:[#allocation0]]
  $region45: #{conv_block_forward.5} parent=0
    _
  %s6 = ssub.s32 1, %s4
  %s7 = scalar_select 0, %s6, %s4
  loop: start=0, step=1, limit=34
  $region2: #{conv_block_forward.5} parent=0 // loop_pre_header
    _
  $region3: #{conv_block_forward.5} parent=0 // loop_header
    %s9 = sphi 0, %s13
    %p10 = scmp.ge.s32.totalorder %s9, 34
    %s19 = sphi 0, %s21
    %s22 = sphi 0, %s19
    %s23 = sphi 0, %s22
    %s39 = sphi 0, %s23
    %s43 = sphi 0, %s43
    %s45 = sphi 0, %s43
    %s46 = sphi 0, %s45
    %s60 = sphi 0, %s46
    %s64 = sphi 0, %s64
    %s66 = sphi 0, %s64
    %s67 = sphi 0, %s66
    %s81 = sphi 0, %s67
    %s87 = sphi 0, %s89
    %s90 = sphi 0, %s87
    %s91 = sphi 0, %s90
    %s107 = sphi 0, %s91
  $region4: #{conv_block_forward.5} parent=0 // loop_header_branch
    %12 = sbr.rel (%p10) target = $region8
  $region5: #{conv_block_forward.5} parent=0 // loop_body
    %s14 = ssub.s32 %s9, 1
    %s15 = ssub.s32 %s9, 2
    %s16 = sadd.s32 %s9, 1
    %s17 = ssub.s32 %s9, %s16
    %p18 = scmp.eq.s32.totalorder %s17, 0
    %s20 = sadd.s32 %s19, 1
    %s21 = scalar_select %p18, %s19, %s20
    %p24 = pneg %p18
    %p25 = scmp.eq.s32.totalorder %s9, 31
    %p26 = por %p24, %p25
    %p27 = scmp.ne.s32.totalorder %s19, %s22
    %p28 = scmp.eq.s32.totalorder %s9, 0
    %p29 = por %p27, %p28
    %p30 = scmp.ne.s32.totalorder %s19, %s22
    %p31 = scmp.eq.s32.totalorder %s14, 31
    %p32 = por %p30, %p31
    %p33 = scmp.ne.s32.totalorder %s22, %s23
    %p34 = scmp.eq.s32.totalorder %s14, 0
    %p35 = por %p33, %p34
    %p36 = scmp.ne.s32.totalorder %s22, %s23
    %p37 = scmp.eq.s32.totalorder %s15, 31
    %p38 = por %p36, %p37
    %p40 = scmp.ne.s32.totalorder %s23, %s39
    %p41 = scmp.eq.s32.totalorder %s15, 0
    %p42 = por %p40, %p41
    %s44 = sadd.s32 %s43, 1
    %p47 = scmp.eq.s32.totalorder %s9, 31
    %p48 = scmp.ne.s32.totalorder %s43, %s45
    %p49 = scmp.eq.s32.totalorder %s9, 0
    %p50 = por %p48, %p49
    %p51 = scmp.ne.s32.totalorder %s43, %s45
    %p52 = scmp.eq.s32.totalorder %s14, 31
    %p53 = por %p51, %p52
    %p54 = scmp.ne.s32.totalorder %s45, %s46
    %p55 = scmp.eq.s32.totalorder %s14, 0
    %p56 = por %p54, %p55
    %p57 = scmp.ne.s32.totalorder %s45, %s46
    %p58 = scmp.eq.s32.totalorder %s15, 31
    %p59 = por %p57, %p58
    %p61 = scmp.ne.s32.totalorder %s46, %s60
    %p62 = scmp.eq.s32.totalorder %s15, 0
    %p63 = por %p61, %p62
    %s65 = sadd.s32 %s64, 1
    %p68 = scmp.eq.s32.totalorder %s9, 31
    %p69 = scmp.ne.s32.totalorder %s64, %s66
    %p70 = scmp.eq.s32.totalorder %s9, 0
    %p71 = por %p69, %p70
    %p72 = scmp.ne.s32.totalorder %s64, %s66
    %p73 = scmp.eq.s32.totalorder %s14, 31
    %p74 = por %p72, %p73
    %p75 = scmp.ne.s32.totalorder %s66, %s67
    %p76 = scmp.eq.s32.totalorder %s14, 0
    %p77 = por %p75, %p76
    %p78 = scmp.ne.s32.totalorder %s66, %s67
    %p79 = scmp.eq.s32.totalorder %s15, 31
    %p80 = por %p78, %p79
    %p82 = scmp.ne.s32.totalorder %s67, %s81
    %p83 = scmp.eq.s32.totalorder %s15, 0
    %p84 = por %p82, %p83
    %s85 = ssub.s32 %s9, %s16
    %p86 = scmp.eq.s32.totalorder %s85, 0
    %s88 = sadd.s32 %s87, 1
    %s89 = scalar_select %p86, %s87, %s88
    %p92 = pneg %p86
    %p93 = scmp.eq.s32.totalorder %s9, 31
    %p94 = por %p92, %p93
    %p95 = scmp.ne.s32.totalorder %s87, %s90
    %p96 = scmp.eq.s32.totalorder %s9, 0
    %p97 = por %p95, %p96
    %p98 = scmp.ne.s32.totalorder %s87, %s90
    %p99 = scmp.eq.s32.totalorder %s14, 31
    %p100 = por %p98, %p99
    %p101 = scmp.ne.s32.totalorder %s90, %s91
    %p102 = scmp.eq.s32.totalorder %s14, 0
    %p103 = por %p101, %p102
    %p104 = scmp.ne.s32.totalorder %s90, %s91
    %p105 = scmp.eq.s32.totalorder %s15, 31
    %p106 = por %p104, %p105
    %p108 = scmp.ne.s32.totalorder %s91, %s107
    %p109 = scmp.eq.s32.totalorder %s15, 0
    %p110 = por %p108, %p109
    %p111 = scmp.le.s32.totalorder 1, %s9
    %p112 = scmp.lt.s32.totalorder %s9, 33
    %p113 = pnand %p111, %p112
    %p114 = pneg %p113
    // Predicated region
    $region9: #{conv_block_forward.5} parent=5 // pred_check
      _
    $region10: #{conv_block_forward.5} parent=5 // pred_check_branch
      %116 = sbr.rel (%p113) target = $region12
    $region11: #{conv_block_forward.5} parent=5 // pred_region
      %s117 = ssub.s32 %s9, 1
      // Predicated region
      $region13: #{conv_block_forward.5} parent=11 // pred_check
        %p118 = pneg %p56
      $region14: #{conv_block_forward.5} parent=11 // pred_check_branch
        %120 = sbr.rel (%p118) target = $region16
      $region15: #{conv_block_forward.5} parent=11 // pred_region
        _
      $region16: #{conv_block_forward.5} parent=11 // pred_fallthru
        _
      // Predicated region
      $region17: #{conv_block_forward.5} parent=11 // pred_check
        %p121 = pneg %p77
      $region18: #{conv_block_forward.5} parent=11 // pred_check_branch
        %123 = sbr.rel (%p121) target = $region20
      $region19: #{conv_block_forward.5} parent=11 // pred_region
        _
      $region20: #{conv_block_forward.5} parent=11 // pred_fallthru
        _
    $region12: #{conv_block_forward.5} parent=5 // pred_fallthru
      _
    %p124 = scmp.lt.s32.totalorder %s9, 32
    // Predicated region
    $region21: #{conv_block_forward.5} parent=5 // pred_check
      %p125 = pneg %p124
    $region22: #{conv_block_forward.5} parent=5 // pred_check_branch
      %127 = sbr.rel (%p125) target = $region24
    $region23: #{conv_block_forward.5} parent=5 // pred_region
      // Predicated region
      $region25: #{conv_block_forward.5} parent=23 // pred_check
        %p128 = pneg %p29
      $region26: #{conv_block_forward.5} parent=23 // pred_check_branch
        %130 = sbr.rel (%p128) target = $region28
      $region27: #{conv_block_forward.5} parent=23 // pred_region
        %s131 = smul.u32 32, %s9
        %p132 = scmp.lt.s32.totalorder %s131, 1023
        %s133 = scalar_select %p132, %s131, 1023
        %s134 = smul.addr %s133, 8
        %s135 = scalar_lea.vmem %s0, %s134
        %s136 = smul.u32 32, %s9
      $region28: #{conv_block_forward.5} parent=23 // pred_fallthru
        _
    $region24: #{conv_block_forward.5} parent=5 // pred_fallthru
      _
    %p137 = scmp.le.s32.totalorder 1, %s9
    %p138 = scmp.lt.s32.totalorder %s9, 33
    %p139 = pnand %p137, %p138
    %p140 = pneg %p139
    // Predicated region
    $region29: #{conv_block_forward.5} parent=5 // pred_check
      _
    $region30: #{conv_block_forward.5} parent=5 // pred_check_branch
      %142 = sbr.rel (%p139) target = $region32
    $region31: #{conv_block_forward.5} parent=5 // pred_region
      %s143 = ssub.s32 %s9, 1
      %s144 = smul.u32 32, %s14
      %p145 = scmp.lt.s32.totalorder %s144, 1023
      %s146 = scalar_select %p145, %s144, 1023
      %s147 = smul.addr %s146, 8
      %s148 = scalar_lea.vmem %s0, %s147
      %p149 = pneg %p35
      %p150 = pneg %p32
      %p151 = pneg %p56
      %p152 = pneg %p53
      %p153 = pneg %p77
      %p154 = pneg %p74
      %p155 = pneg %p103
      %p156 = pneg %p100
      %s157 = smul.u32 32, %s14
      %p158 = scmp.lt.s32.totalorder %s157, 1023
      %s159 = scalar_select %p158, %s157, 1023
      %s160 = smul.addr %s159, 8
      %s161 = scalar_lea.vmem %s3, %s160
      %s162 = smul.u32 32, %s14
      %p163 = scmp.lt.s32.totalorder %s162, 1023
      %s164 = scalar_select %p163, %s162, 1023
      %s165 = smul.addr %s164, 8
      %s166 = scalar_lea.vmem %s0, %s165
      %s167 = smul.u32 32, %s14
      %s168 = smul.u32 32, %s14
      %p169 = scmp.lt.s32.totalorder %s168, 1023
      %s170 = scalar_select %p169, %s168, 1023
      %s171 = smul.addr %s170, 8
      %s172 = scalar_lea.vmem %s3, %s171
      %s173 = smul.u32 32, %s14
      %v174 = vld [vmem:[%s166] sm:$0xff]
      %v175 = vld [vmem:[%s166 + $0x8] sm:$0xff]
      %v176 = vld [vmem:[%s166 + $0x10] sm:$0xff]
      %v177 = vld [vmem:[%s166 + $0x18] sm:$0xff]
      %v178 = vld [vmem:[%s166 + $0x20] sm:$0xff]
      %v179 = vld [vmem:[%s166 + $0x28] sm:$0xff]
      %v180 = vld [vmem:[%s166 + $0x30] sm:$0xff]
      %v181 = vld [vmem:[%s166 + $0x38] sm:$0xff]
      %v182 = vld [vmem:[%s166 + $0x40] sm:$0xff]
      %v183 = vld [vmem:[%s166 + $0x48] sm:$0xff]
      %v184 = vld [vmem:[%s166 + $0x50] sm:$0xff]
      %v185 = vld [vmem:[%s166 + $0x58] sm:$0xff]
      %v186 = vld [vmem:[%s166 + $0x60] sm:$0xff]
      %v187 = vld [vmem:[%s166 + $0x68] sm:$0xff]
      %v188 = vld [vmem:[%s166 + $0x70] sm:$0xff]
      %v189 = vld [vmem:[%s166 + $0x78] sm:$0xff]
      %v190 = vld [vmem:[%s166 + $0x80] sm:$0xff]
      %v191 = vld [vmem:[%s166 + $0x88] sm:$0xff]
      %v192 = vld [vmem:[%s166 + $0x90] sm:$0xff]
      %v193 = vld [vmem:[%s166 + $0x98] sm:$0xff]
      %v194 = vld [vmem:[%s166 + $0xa0] sm:$0xff]
      %v195 = vld [vmem:[%s166 + $0xa8] sm:$0xff]
      %v196 = vld [vmem:[%s166 + $0xb0] sm:$0xff]
      %v197 = vld [vmem:[%s166 + $0xb8] sm:$0xff]
      %v198 = vld [vmem:[%s166 + $0xc0] sm:$0xff]
      %v199 = vld [vmem:[%s166 + $0xc8] sm:$0xff]
      %v200 = vld [vmem:[%s166 + $0xd0] sm:$0xff]
      %v201 = vld [vmem:[%s166 + $0xd8] sm:$0xff]
      %v202 = vld [vmem:[%s166 + $0xe0] sm:$0xff]
      %v203 = vld [vmem:[%s166 + $0xe8] sm:$0xff]
      %v204 = vld [vmem:[%s166 + $0xf0] sm:$0xff]
      %v205 = vld [vmem:[%s166 + $0xf8] sm:$0xff]
      %v206 = vld [vmem:[%s1] sm:$0x1]
      %v208 = vperm.slane %v206, 0
      %v210 = vmul.f32 %v174, %v208
      %v211 = vmul.f32 %v175, %v208
      %v212 = vmul.f32 %v176, %v208
      %v213 = vmul.f32 %v177, %v208
      %v214 = vmul.f32 %v178, %v208
      %v215 = vmul.f32 %v179, %v208
      %v216 = vmul.f32 %v180, %v208
      %v217 = vmul.f32 %v181, %v208
      %v218 = vmul.f32 %v182, %v208
      %v219 = vmul.f32 %v183, %v208
      %v220 = vmul.f32 %v184, %v208
      %v221 = vmul.f32 %v185, %v208
      %v222 = vmul.f32 %v186, %v208
      %v223 = vmul.f32 %v187, %v208
      %v224 = vmul.f32 %v188, %v208
      %v225 = vmul.f32 %v189, %v208
      %v226 = vmul.f32 %v190, %v208
      %v227 = vmul.f32 %v191, %v208
      %v228 = vmul.f32 %v192, %v208
      %v229 = vmul.f32 %v193, %v208
      %v230 = vmul.f32 %v194, %v208
      %v231 = vmul.f32 %v195, %v208
      %v232 = vmul.f32 %v196, %v208
      %v233 = vmul.f32 %v197, %v208
      %v234 = vmul.f32 %v198, %v208
      %v235 = vmul.f32 %v199, %v208
      %v236 = vmul.f32 %v200, %v208
      %v237 = vmul.f32 %v201, %v208
      %v238 = vmul.f32 %v202, %v208
      %v239 = vmul.f32 %v203, %v208
      %v240 = vmul.f32 %v204, %v208
      %v241 = vmul.f32 %v205, %v208
      %v242 = vld [vmem:[%s2] sm:$0x1]
      %v244 = vperm.slane %v242, 0
      %v246 = vadd.f32 %v210, %v244
      %v247 = vadd.f32 %v211, %v244
      %v248 = vadd.f32 %v212, %v244
      %v249 = vadd.f32 %v213, %v244
      %v250 = vadd.f32 %v214, %v244
      %v251 = vadd.f32 %v215, %v244
      %v252 = vadd.f32 %v216, %v244
      %v253 = vadd.f32 %v217, %v244
      %v254 = vadd.f32 %v218, %v244
      %v255 = vadd.f32 %v219, %v244
      %v256 = vadd.f32 %v220, %v244
      %v257 = vadd.f32 %v221, %v244
      %v258 = vadd.f32 %v222, %v244
      %v259 = vadd.f32 %v223, %v244
      %v260 = vadd.f32 %v224, %v244
      %v261 = vadd.f32 %v225, %v244
      %v262 = vadd.f32 %v226, %v244
      %v263 = vadd.f32 %v227, %v244
      %v264 = vadd.f32 %v228, %v244
      %v265 = vadd.f32 %v229, %v244
      %v266 = vadd.f32 %v230, %v244
      %v267 = vadd.f32 %v231, %v244
      %v268 = vadd.f32 %v232, %v244
      %v269 = vadd.f32 %v233, %v244
      %v270 = vadd.f32 %v234, %v244
      %v271 = vadd.f32 %v235, %v244
      %v272 = vadd.f32 %v236, %v244
      %v273 = vadd.f32 %v237, %v244
      %v274 = vadd.f32 %v238, %v244
      %v275 = vadd.f32 %v239, %v244
      %v276 = vadd.f32 %v240, %v244
      %v277 = vadd.f32 %v241, %v244
      %v278 = vmax.f32 %v246, 0.0
      %v279 = vmax.f32 %v247, 0.0
      %v280 = vmax.f32 %v248, 0.0
      %v281 = vmax.f32 %v249, 0.0
      %v282 = vmax.f32 %v250, 0.0
      %v283 = vmax.f32 %v251, 0.0
      %v284 = vmax.f32 %v252, 0.0
      %v285 = vmax.f32 %v253, 0.0
      %v286 = vmax.f32 %v254, 0.0
      %v287 = vmax.f32 %v255, 0.0
      %v288 = vmax.f32 %v256, 0.0
      %v289 = vmax.f32 %v257, 0.0
      %v290 = vmax.f32 %v258, 0.0
      %v291 = vmax.f32 %v259, 0.0
      %v292 = vmax.f32 %v260, 0.0
      %v293 = vmax.f32 %v261, 0.0
      %v294 = vmax.f32 %v262, 0.0
      %v295 = vmax.f32 %v263, 0.0
      %v296 = vmax.f32 %v264, 0.0
      %v297 = vmax.f32 %v265, 0.0
      %v298 = vmax.f32 %v266, 0.0
      %v299 = vmax.f32 %v267, 0.0
      %v300 = vmax.f32 %v268, 0.0
      %v301 = vmax.f32 %v269, 0.0
      %v302 = vmax.f32 %v270, 0.0
      %v303 = vmax.f32 %v271, 0.0
      %v304 = vmax.f32 %v272, 0.0
      %v305 = vmax.f32 %v273, 0.0
      %v306 = vmax.f32 %v274, 0.0
      %v307 = vmax.f32 %v275, 0.0
      %v308 = vmax.f32 %v276, 0.0
      %v309 = vmax.f32 %v277, 0.0
      %310 = vst [vmem:[%s172] sm:$0xff] %v278
      %311 = vst [vmem:[%s172 + $0x8] sm:$0xff] %v279
      %312 = vst [vmem:[%s172 + $0x10] sm:$0xff] %v280
      %313 = vst [vmem:[%s172 + $0x18] sm:$0xff] %v281
      %314 = vst [vmem:[%s172 + $0x20] sm:$0xff] %v282
      %315 = vst [vmem:[%s172 + $0x28] sm:$0xff] %v283
      %316 = vst [vmem:[%s172 + $0x30] sm:$0xff] %v284
      %317 = vst [vmem:[%s172 + $0x38] sm:$0xff] %v285
      %318 = vst [vmem:[%s172 + $0x40] sm:$0xff] %v286
      %319 = vst [vmem:[%s172 + $0x48] sm:$0xff] %v287
      %320 = vst [vmem:[%s172 + $0x50] sm:$0xff] %v288
      %321 = vst [vmem:[%s172 + $0x58] sm:$0xff] %v289
      %322 = vst [vmem:[%s172 + $0x60] sm:$0xff] %v290
      %323 = vst [vmem:[%s172 + $0x68] sm:$0xff] %v291
      %324 = vst [vmem:[%s172 + $0x70] sm:$0xff] %v292
      %325 = vst [vmem:[%s172 + $0x78] sm:$0xff] %v293
      %326 = vst [vmem:[%s172 + $0x80] sm:$0xff] %v294
      %327 = vst [vmem:[%s172 + $0x88] sm:$0xff] %v295
      %328 = vst [vmem:[%s172 + $0x90] sm:$0xff] %v296
      %329 = vst [vmem:[%s172 + $0x98] sm:$0xff] %v297
      %330 = vst [vmem:[%s172 + $0xa0] sm:$0xff] %v298
      %331 = vst [vmem:[%s172 + $0xa8] sm:$0xff] %v299
      %332 = vst [vmem:[%s172 + $0xb0] sm:$0xff] %v300
      %333 = vst [vmem:[%s172 + $0xb8] sm:$0xff] %v301
      %334 = vst [vmem:[%s172 + $0xc0] sm:$0xff] %v302
      %335 = vst [vmem:[%s172 + $0xc8] sm:$0xff] %v303
      %336 = vst [vmem:[%s172 + $0xd0] sm:$0xff] %v304
      %337 = vst [vmem:[%s172 + $0xd8] sm:$0xff] %v305
      %338 = vst [vmem:[%s172 + $0xe0] sm:$0xff] %v306
      %339 = vst [vmem:[%s172 + $0xe8] sm:$0xff] %v307
      %340 = vst [vmem:[%s172 + $0xf0] sm:$0xff] %v308
      %341 = vst [vmem:[%s172 + $0xf8] sm:$0xff] %v309
      %s342 = smul.u32 32, %s14
      %p343 = scmp.lt.s32.totalorder %s342, 1023
      %s344 = scalar_select %p343, %s342, 1023
      %s345 = smul.addr %s344, 8
      %s346 = scalar_lea.vmem %s3, %s345
      // Predicated region
      $region33: #{conv_block_forward.5} parent=31 // pred_check
        %p347 = pneg %p100
      $region34: #{conv_block_forward.5} parent=31 // pred_check_branch
        %349 = sbr.rel (%p347) target = $region36
      $region35: #{conv_block_forward.5} parent=31 // pred_region
        %s350 = smul.u32 32, %s14
      $region36: #{conv_block_forward.5} parent=31 // pred_fallthru
        _
    $region32: #{conv_block_forward.5} parent=5 // pred_fallthru
      _
    %p351 = scmp.le.s32.totalorder 2, %s9
    // Predicated region
    $region37: #{conv_block_forward.5} parent=5 // pred_check
      %p352 = pneg %p351
    $region38: #{conv_block_forward.5} parent=5 // pred_check_branch
      %354 = sbr.rel (%p352) target = $region40
    $region39: #{conv_block_forward.5} parent=5 // pred_region
      %s355 = ssub.s32 %s9, 2
      // Predicated region
      $region41: #{conv_block_forward.5} parent=39 // pred_check
        %p356 = pneg %p106
      $region42: #{conv_block_forward.5} parent=39 // pred_check_branch
        %358 = sbr.rel (%p356) target = $region44
      $region43: #{conv_block_forward.5} parent=39 // pred_region
        %s359 = smul.u32 32, %s15
        %p360 = scmp.lt.s32.totalorder %s359, 1023
        %s361 = scalar_select %p360, %s359, 1023
        %s362 = smul.addr %s361, 8
        %s363 = scalar_lea.vmem %s3, %s362
      $region44: #{conv_block_forward.5} parent=39 // pred_fallthru
        _
    $region40: #{conv_block_forward.5} parent=5 // pred_fallthru
      _
  $region6: #{conv_block_forward.5} parent=0 // loop_footer
    %s13 = sadd.s32 1, %s9
  $region7: #{conv_block_forward.5} parent=0 // loop_footer_branch
    %8 = sbr.rel target = $region3
  $region8: #{conv_block_forward.5} parent=0 // loop_exit
    _

// kernel: conv_block_forward.4
$region0: #{conv_block_forward.4}
  #allocation0 [shape = 'u32[]', space=smem, size = 0x4, offset = 0x4, fixed_abs, tag = 'smem constant byte address 0x4 - core index']
  #allocation1 [shape = 'u32[72,128]{1,0:T(1,128)}', space=vmem, size = 0x9000, scoped, tag = 'internal scratch']
  %s0 = inlined_call_operand.vmem [shape: bf16[2,18,18,18,4], index: 0, kind: input, shape index: {}, may-alias: {0,1,2}]
  %s1 = inlined_call_operand.vmem [shape: bf16[2,18,18,18,4], index: 1, kind: input, shape index: {}, may-alias: {0,1,2}]
  %s2 = inlined_call_operand.vmem [shape: bf16[2,18,18,18,4], index: 2, kind: input, shape index: {}, may-alias: {0,1,2}]
  %s3 = inlined_call_operand.vmem [shape: bf16[3,36,128], index: 3, kind: input, shape index: {}]
  %s4 = inlined_call_operand.vmem [shape: f32[8192,128], index: 4, kind: output, shape index: {0}]
  %s5 = inlined_call_operand.vmem [shape: f32[32,2,128], index: 5, kind: output, shape index: {1}]
  %6 = xla_tuple %s4, %s5
  %s7 = sld [smem:[#allocation0]]
  $region57: #{conv_block_forward.4} parent=0
    _
  %s9 = ssub.s32 1, %s7
  %s10 = scalar_select 0, %s9, %s7
  loop: start=0, step=1, limit=34
  $region2: #{conv_block_forward.4} parent=0 // loop_pre_header
    _
  $region3: #{conv_block_forward.4} parent=0 // loop_header
    %s12 = sphi 0, %s16
    %p13 = scmp.ge.s32.totalorder %s12, 34
    %s19 = sphi 0, %s31
    %s20 = sphi 0, %s27
    %s21 = sphi 0, %s19
    %s22 = sphi 0, %s20
    %s23 = sphi 0, %s21
    %s24 = sphi 0, %s22
    %s36 = sphi 0, %s38
    %s39 = sphi 0, %s36
    %s40 = sphi 0, %s39
    %s56 = sphi 0, %s40
    %s66 = sphi 0, %s68
    %s69 = sphi 0, %s66
    %s70 = sphi 0, %s69
    %s86 = sphi 0, %s70
    %s96 = sphi 0, %s98
    %s99 = sphi 0, %s96
    %s100 = sphi 0, %s99
    %s116 = sphi 0, %s100
    %s120 = sphi 0, %s120
    %s122 = sphi 0, %s120
    %s123 = sphi 0, %s122
    %s137 = sphi 0, %s123
    %s147 = sphi 0, %s149
    %s150 = sphi 0, %s147
    %s151 = sphi 0, %s150
    %s167 = sphi 0, %s151
    %s177 = sphi 0, %s179
    %s180 = sphi 0, %s177
    %s181 = sphi 0, %s180
    %s197 = sphi 0, %s181
  $region4: #{conv_block_forward.4} parent=0 // loop_header_branch
    %15 = sbr.rel (%p13) target = $region8
  $region5: #{conv_block_forward.4} parent=0 // loop_body
    %s17 = ssub.s32 %s12, 1
    %s18 = ssub.s32 %s12, 2
    %s25 = sadd.s32 1, %s20
    %p26 = scmp.ge.s32.totalorder %s25, 16
    %s27 = scalar_select %p26, 0, %s25
    %s28 = sadd.s32 1, %s19
    %s29 = scalar_select %p26, %s28, %s19
    %p30 = scmp.ge.s32.totalorder %s29, 2
    %s31 = scalar_select %p30, 0, %s29
    %s32 = ssub.s32 %s19, %s31
    %s33 = ssub.s32 %s20, %s27
    %s34 = sor.u32 %s32, %s33
    %p35 = scmp.eq.s32.totalorder %s34, 0
    %s37 = sadd.s32 %s36, 1
    %s38 = scalar_select %p35, %s36, %s37
    %p41 = pneg %p35
    %p42 = scmp.eq.s32.totalorder %s12, 31
    %p43 = por %p41, %p42
    %p44 = scmp.ne.s32.totalorder %s36, %s39
    %p45 = scmp.eq.s32.totalorder %s12, 0
    %p46 = por %p44, %p45
    %p47 = scmp.ne.s32.totalorder %s36, %s39
    %p48 = scmp.eq.s32.totalorder %s17, 31
    %p49 = por %p47, %p48
    %p50 = scmp.ne.s32.totalorder %s39, %s40
    %p51 = scmp.eq.s32.totalorder %s17, 0
    %p52 = por %p50, %p51
    %p53 = scmp.ne.s32.totalorder %s39, %s40
    %p54 = scmp.eq.s32.totalorder %s18, 31
    %p55 = por %p53, %p54
    %p57 = scmp.ne.s32.totalorder %s40, %s56
    %p58 = scmp.eq.s32.totalorder %s18, 0
    %p59 = por %p57, %p58
    %s60 = sadd.s32 %s20, 1
    %s61 = sadd.s32 %s27, 1
    %s62 = ssub.s32 %s19, %s31
    %s63 = ssub.s32 %s60, %s61
    %s64 = sor.u32 %s62, %s63
    %p65 = scmp.eq.s32.totalorder %s64, 0
    %s67 = sadd.s32 %s66, 1
    %s68 = scalar_select %p65, %s66, %s67
    %p71 = pneg %p65
    %p72 = scmp.eq.s32.totalorder %s12, 31
    %p73 = por %p71, %p72
    %p74 = scmp.ne.s32.totalorder %s66, %s69
    %p75 = scmp.eq.s32.totalorder %s12, 0
    %p76 = por %p74, %p75
    %p77 = scmp.ne.s32.totalorder %s66, %s69
    %p78 = scmp.eq.s32.totalorder %s17, 31
    %p79 = por %p77, %p78
    %p80 = scmp.ne.s32.totalorder %s69, %s70
    %p81 = scmp.eq.s32.totalorder %s17, 0
    %p82 = por %p80, %p81
    %p83 = scmp.ne.s32.totalorder %s69, %s70
    %p84 = scmp.eq.s32.totalorder %s18, 31
    %p85 = por %p83, %p84
    %p87 = scmp.ne.s32.totalorder %s70, %s86
    %p88 = scmp.eq.s32.totalorder %s18, 0
    %p89 = por %p87, %p88
    %s90 = sadd.s32 %s20, 2
    %s91 = sadd.s32 %s27, 2
    %s92 = ssub.s32 %s19, %s31
    %s93 = ssub.s32 %s90, %s91
    %s94 = sor.u32 %s92, %s93
    %p95 = scmp.eq.s32.totalorder %s94, 0
    %s97 = sadd.s32 %s96, 1
    %s98 = scalar_select %p95, %s96, %s97
    %p101 = pneg %p95
    %p102 = scmp.eq.s32.totalorder %s12, 31
    %p103 = por %p101, %p102
    %p104 = scmp.ne.s32.totalorder %s96, %s99
    %p105 = scmp.eq.s32.totalorder %s12, 0
    %p106 = por %p104, %p105
    %p107 = scmp.ne.s32.totalorder %s96, %s99
    %p108 = scmp.eq.s32.totalorder %s17, 31
    %p109 = por %p107, %p108
    %p110 = scmp.ne.s32.totalorder %s99, %s100
    %p111 = scmp.eq.s32.totalorder %s17, 0
    %p112 = por %p110, %p111
    %p113 = scmp.ne.s32.totalorder %s99, %s100
    %p114 = scmp.eq.s32.totalorder %s18, 31
    %p115 = por %p113, %p114
    %p117 = scmp.ne.s32.totalorder %s100, %s116
    %p118 = scmp.eq.s32.totalorder %s18, 0
    %p119 = por %p117, %p118
    %s121 = sadd.s32 %s120, 1
    %p124 = scmp.eq.s32.totalorder %s12, 31
    %p125 = scmp.ne.s32.totalorder %s120, %s122
    %p126 = scmp.eq.s32.totalorder %s12, 0
    %p127 = por %p125, %p126
    %p128 = scmp.ne.s32.totalorder %s120, %s122
    %p129 = scmp.eq.s32.totalorder %s17, 31
    %p130 = por %p128, %p129
    %p131 = scmp.ne.s32.totalorder %s122, %s123
    %p132 = scmp.eq.s32.totalorder %s17, 0
    %p133 = por %p131, %p132
    %p134 = scmp.ne.s32.totalorder %s122, %s123
    %p135 = scmp.eq.s32.totalorder %s18, 31
    %p136 = por %p134, %p135
    %p138 = scmp.ne.s32.totalorder %s123, %s137
    %p139 = scmp.eq.s32.totalorder %s18, 0
    %p140 = por %p138, %p139
    %s141 = smul.u32 %s19, 16
    %s142 = sadd.s32 %s141, %s20
    %s143 = smul.u32 %s31, 16
    %s144 = sadd.s32 %s143, %s27
    %s145 = ssub.s32 %s142, %s144
    %p146 = scmp.eq.s32.totalorder %s145, 0
    %s148 = sadd.s32 %s147, 1
    %s149 = scalar_select %p146, %s147, %s148
    %p152 = pneg %p146
    %p153 = scmp.eq.s32.totalorder %s12, 31
    %p154 = por %p152, %p153
    %p155 = scmp.ne.s32.totalorder %s147, %s150
    %p156 = scmp.eq.s32.totalorder %s12, 0
    %p157 = por %p155, %p156
    %p158 = scmp.ne.s32.totalorder %s147, %s150
    %p159 = scmp.eq.s32.totalorder %s17, 31
    %p160 = por %p158, %p159
    %p161 = scmp.ne.s32.totalorder %s150, %s151
    %p162 = scmp.eq.s32.totalorder %s17, 0
    %p163 = por %p161, %p162
    %p164 = scmp.ne.s32.totalorder %s150, %s151
    %p165 = scmp.eq.s32.totalorder %s18, 31
    %p166 = por %p164, %p165
    %p168 = scmp.ne.s32.totalorder %s151, %s167
    %p169 = scmp.eq.s32.totalorder %s18, 0
    %p170 = por %p168, %p169
    %s171 = smul.u32 %s19, 16
    %s172 = sadd.s32 %s171, %s20
    %s173 = smul.u32 %s31, 16
    %s174 = sadd.s32 %s173, %s27
    %s175 = ssub.s32 %s172, %s174
    %p176 = scmp.eq.s32.totalorder %s175, 0
    %s178 = sadd.s32 %s177, 1
    %s179 = scalar_select %p176, %s177, %s178
    %p182 = pneg %p176
    %p183 = scmp.eq.s32.totalorder %s12, 31
    %p184 = por %p182, %p183
    %p185 = scmp.ne.s32.totalorder %s177, %s180
    %p186 = scmp.eq.s32.totalorder %s12, 0
    %p187 = por %p185, %p186
    %p188 = scmp.ne.s32.totalorder %s177, %s180
    %p189 = scmp.eq.s32.totalorder %s17, 31
    %p190 = por %p188, %p189
    %p191 = scmp.ne.s32.totalorder %s180, %s181
    %p192 = scmp.eq.s32.totalorder %s17, 0
    %p193 = por %p191, %p192
    %p194 = scmp.ne.s32.totalorder %s180, %s181
    %p195 = scmp.eq.s32.totalorder %s18, 31
    %p196 = por %p194, %p195
    %p198 = scmp.ne.s32.totalorder %s181, %s197
    %p199 = scmp.eq.s32.totalorder %s18, 0
    %p200 = por %p198, %p199
    %p201 = scmp.le.s32.totalorder 1, %s12
    %p202 = scmp.lt.s32.totalorder %s12, 33
    %p203 = pnand %p201, %p202
    %p204 = pneg %p203
    // Predicated region
    $region9: #{conv_block_forward.4} parent=5 // pred_check
      _
    $region10: #{conv_block_forward.4} parent=5 // pred_check_branch
      %206 = sbr.rel (%p203) target = $region12
    $region11: #{conv_block_forward.4} parent=5 // pred_region
      %s207 = ssub.s32 %s12, 1
      // Predicated region
      $region13: #{conv_block_forward.4} parent=11 // pred_check
        %p208 = pneg %p133
      $region14: #{conv_block_forward.4} parent=11 // pred_check_branch
        %210 = sbr.rel (%p208) target = $region16
      $region15: #{conv_block_forward.4} parent=11 // pred_region
        _
      $region16: #{conv_block_forward.4} parent=11 // pred_fallthru
        _
    $region12: #{conv_block_forward.4} parent=5 // pred_fallthru
      _
    %p211 = scmp.lt.s32.totalorder %s12, 32
    // Predicated region
    $region17: #{conv_block_forward.4} parent=5 // pred_check
      %p212 = pneg %p211
    $region18: #{conv_block_forward.4} parent=5 // pred_check_branch
      %214 = sbr.rel (%p212) target = $region20
    $region19: #{conv_block_forward.4} parent=5 // pred_region
      // Predicated region
      $region21: #{conv_block_forward.4} parent=19 // pred_check
        %p215 = pneg %p46
      $region22: #{conv_block_forward.4} parent=19 // pred_check_branch
        %217 = sbr.rel (%p215) target = $region24
      $region23: #{conv_block_forward.4} parent=19 // pred_region
        %p218 = scmp.lt.s32.totalorder %s19, 1
        %s219 = scalar_select %p218, %s19, 1
        %p220 = scmp.lt.s32.totalorder %s20, 17
        %s221 = scalar_select %p220, %s20, 17
        %s222 = smul.addr %s221, 54
        %s223 = smul.addr %s219, 972
        %s224 = sadd.s32 %s222, %s223
        %s225 = smul.addr %s224, 4
        %s226 = scalar_lea.vmem %s0, %s225
      $region24: #{conv_block_forward.4} parent=19 // pred_fallthru
        _
      // Predicated region
      $region25: #{conv_block_forward.4} parent=19 // pred_check
        %p227 = pneg %p76
      $region26: #{conv_block_forward.4} parent=19 // pred_check_branch
        %229 = sbr.rel (%p227) target = $region28
      $region27: #{conv_block_forward.4} parent=19 // pred_region
        %s230 = sadd.s32 %s20, 1
        %p231 = scmp.lt.s32.totalorder %s19, 1
        %s232 = scalar_select %p231, %s19, 1
        %p233 = scmp.lt.s32.totalorder %s230, 17
        %s234 = scalar_select %p233, %s230, 17
        %s235 = smul.addr %s234, 54
        %s236 = smul.addr %s232, 972
        %s237 = sadd.s32 %s235, %s236
        %s238 = smul.addr %s237, 4
        %s239 = scalar_lea.vmem %s1, %s238
        %s240 = sadd.s32 %s20, 1
      $region28: #{conv_block_forward.4} parent=19 // pred_fallthru
        _
      // Predicated region
      $region29: #{conv_block_forward.4} parent=19 // pred_check
        %p241 = pneg %p106
      $region30: #{conv_block_forward.4} parent=19 // pred_check_branch
        %243 = sbr.rel (%p241) target = $region32
      $region31: #{conv_block_forward.4} parent=19 // pred_region
        %s244 = sadd.s32 %s20, 2
        %p245 = scmp.lt.s32.totalorder %s19, 1
        %s246 = scalar_select %p245, %s19, 1
        %p247 = scmp.lt.s32.totalorder %s244, 17
        %s248 = scalar_select %p247, %s244, 17
        %s249 = smul.addr %s248, 54
        %s250 = smul.addr %s246, 972
        %s251 = sadd.s32 %s249, %s250
        %s252 = smul.addr %s251, 4
        %s253 = scalar_lea.vmem %s2, %s252
        %s254 = sadd.s32 %s20, 2
      $region32: #{conv_block_forward.4} parent=19 // pred_fallthru
        _
    $region20: #{conv_block_forward.4} parent=5 // pred_fallthru
      _
    %p255 = scmp.le.s32.totalorder 1, %s12
    %p256 = scmp.lt.s32.totalorder %s12, 33
    %p257 = pnand %p255, %p256
    %p258 = pneg %p257
    // Predicated region
    $region33: #{conv_block_forward.4} parent=5 // pred_check
      _
    $region34: #{conv_block_forward.4} parent=5 // pred_check_branch
      %260 = sbr.rel (%p257) target = $region36
    $region35: #{conv_block_forward.4} parent=5 // pred_region
      %s261 = ssub.s32 %s12, 1
      %p262 = scmp.lt.s32.totalorder %s21, 1
      %s263 = scalar_select %p262, %s21, 1
      %p264 = scmp.lt.s32.totalorder %s22, 17
      %s265 = scalar_select %p264, %s22, 17
      %s266 = smul.addr %s265, 54
      %s267 = smul.addr %s263, 972
      %s268 = sadd.s32 %s266, %s267
      %s269 = smul.addr %s268, 4
      %s270 = scalar_lea.vmem %s0, %s269
      %p271 = pneg %p52
      %p272 = pneg %p49
      %s273 = sadd.s32 %s22, 1
      %p274 = scmp.lt.s32.totalorder %s21, 1
      %s275 = scalar_select %p274, %s21, 1
      %p276 = scmp.lt.s32.totalorder %s273, 17
      %s277 = scalar_select %p276, %s273, 17
      %s278 = smul.addr %s277, 54
      %s279 = smul.addr %s275, 972
      %s280 = sadd.s32 %s278, %s279
      %s281 = smul.addr %s280, 4
      %s282 = scalar_lea.vmem %s1, %s281
      %p283 = pneg %p82
      %p284 = pneg %p79
      %s285 = sadd.s32 %s22, 2
      %p286 = scmp.lt.s32.totalorder %s21, 1
      %s287 = scalar_select %p286, %s21, 1
      %p288 = scmp.lt.s32.totalorder %s285, 17
      %s289 = scalar_select %p288, %s285, 17
      %s290 = smul.addr %s289, 54
      %s291 = smul.addr %s287, 972
      %s292 = sadd.s32 %s290, %s291
      %s293 = smul.addr %s292, 4
      %s294 = scalar_lea.vmem %s2, %s293
      %p295 = pneg %p112
      %p296 = pneg %p109
      %p297 = pneg %p133
      %p298 = pneg %p130
      %p299 = pneg %p163
      %p300 = pneg %p160
      %s301 = smul.u32 %s21, 16
      %s302 = sadd.s32 %s301, %s22
      %s303 = smul.u32 32, %s302
      %p304 = scmp.lt.s32.totalorder %s303, 1023
      %s305 = scalar_select %p304, %s303, 1023
      %s306 = smul.addr %s305, 8
      %s307 = scalar_lea.vmem %s4, %s306
      %p308 = pneg %p193
      %p309 = pneg %p190
      %s310 = smul.u32 %s21, 16
      %s311 = sadd.s32 %s310, %s22
      %p312 = scmp.lt.s32.totalorder %s311, 31
      %s313 = scalar_select %p312, %s311, 31
      %s314 = smul.addr %s313, 2
      %s315 = scalar_lea.vmem %s5, %s314
      %p316 = scmp.lt.s32.totalorder %s21, 1
      %s317 = scalar_select %p316, %s21, 1
      %p318 = scmp.lt.s32.totalorder %s22, 17
      %s319 = scalar_select %p318, %s22, 17
      %s320 = smul.addr %s319, 54
      %s321 = smul.addr %s317, 972
      %s322 = sadd.s32 %s320, %s321
      %s323 = smul.addr %s322, 4
      %s324 = scalar_lea.vmem %s0, %s323
      %s325 = sadd.s32 %s22, 1
      %p326 = scmp.lt.s32.totalorder %s21, 1
      %s327 = scalar_select %p326, %s21, 1
      %p328 = scmp.lt.s32.totalorder %s325, 17
      %s329 = scalar_select %p328, %s325, 17
      %s330 = smul.addr %s329, 54
      %s331 = smul.addr %s327, 972
      %s332 = sadd.s32 %s330, %s331
      %s333 = smul.addr %s332, 4
      %s334 = scalar_lea.vmem %s1, %s333
      %s335 = sadd.s32 %s22, 1
      %s336 = sadd.s32 %s22, 2
      %p337 = scmp.lt.s32.totalorder %s21, 1
      %s338 = scalar_select %p337, %s21, 1
      %p339 = scmp.lt.s32.totalorder %s336, 17
      %s340 = scalar_select %p339, %s336, 17
      %s341 = smul.addr %s340, 54
      %s342 = smul.addr %s338, 972
      %s343 = sadd.s32 %s341, %s342
      %s344 = smul.addr %s343, 4
      %s345 = scalar_lea.vmem %s2, %s344
      %s346 = sadd.s32 %s22, 2
      %s347 = smul.u32 %s21, 16
      %s348 = sadd.s32 %s347, %s22
      %s349 = smul.u32 32, %s348
      %p350 = scmp.lt.s32.totalorder %s349, 1023
      %s351 = scalar_select %p350, %s349, 1023
      %s352 = smul.addr %s351, 8
      %s353 = scalar_lea.vmem %s4, %s352
      %s354 = smul.u32 %s21, 16
      %s355 = sadd.s32 %s354, %s22
      %s356 = smul.u32 32, %s355
      %s357 = smul.u32 %s21, 16
      %s358 = sadd.s32 %s357, %s22
      %p359 = scmp.lt.s32.totalorder %s358, 31
      %s360 = scalar_select %p359, %s358, 31
      %s361 = smul.addr %s360, 2
      %s362 = scalar_lea.vmem %s5, %s361
      %s363 = smul.u32 %s21, 16
      %s364 = sadd.s32 %s363, %s22
      %v366 = vld [vmem:[%s324] sm:$0xf]
      %v367 = vld [vmem:[%s324 + $0x4] sm:$0xf]
      %v368 = vld [vmem:[%s324 + $0x8] sm:$0x1]
      %v369 = vld [vmem:[%s324 + $0xc] sm:$0xf]
      %v370 = vld [vmem:[%s324 + $0x10] sm:$0xf]
      %v371 = vld [vmem:[%s324 + $0x14] sm:$0x1]
      %v372 = vld [vmem:[%s324 + $0x18] sm:$0xf]
      %v373 = vld [vmem:[%s324 + $0x1c] sm:$0xf]
      %v374 = vld [vmem:[%s324 + $0x20] sm:$0x1]
      %v375 = vld [vmem:[%s324 + $0x24] sm:$0xf]
      %v376 = vld [vmem:[%s324 + $0x28] sm:$0xf]
      %v377 = vld [vmem:[%s324 + $0x2c] sm:$0x1]
      %v378 = vld [vmem:[%s324 + $0x30] sm:$0xf]
      %v379 = vld [vmem:[%s324 + $0x34] sm:$0xf]
      %v380 = vld [vmem:[%s324 + $0x38] sm:$0x1]
      %v381 = vld [vmem:[%s324 + $0x3c] sm:$0xf]
      %v382 = vld [vmem:[%s324 + $0x40] sm:$0xf]
      %v383 = vld [vmem:[%s324 + $0x44] sm:$0x1]
      %v384 = vld [vmem:[%s324 + $0x48] sm:$0xf]
      %v385 = vld [vmem:[%s324 + $0x4c] sm:$0xf]
      %v386 = vld [vmem:[%s324 + $0x50] sm:$0x1]
      %v387 = vld [vmem:[%s324 + $0x54] sm:$0xf]
      %v388 = vld [vmem:[%s324 + $0x58] sm:$0xf]
      %v389 = vld [vmem:[%s324 + $0x5c] sm:$0x1]
      %v390 = vld [vmem:[%s324 + $0x60] sm:$0xf]
      %v391 = vld [vmem:[%s324 + $0x64] sm:$0xf]
      %v392 = vld [vmem:[%s324 + $0x68] sm:$0x1]
      %v393 = vld [vmem:[%s324 + $0x6c] sm:$0xf]
      %v394 = vld [vmem:[%s324 + $0x70] sm:$0xf]
      %v395 = vld [vmem:[%s324 + $0x74] sm:$0x1]
      %v396 = vld [vmem:[%s324 + $0x78] sm:$0xf]
      %v397 = vld [vmem:[%s324 + $0x7c] sm:$0xf]
      %v398 = vld [vmem:[%s324 + $0x80] sm:$0x1]
      %v399 = vld [vmem:[%s324 + $0x84] sm:$0xf]
      %v400 = vld [vmem:[%s324 + $0x88] sm:$0xf]
      %v401 = vld [vmem:[%s324 + $0x8c] sm:$0x1]
      %v402 = vld [vmem:[%s324 + $0x90] sm:$0xf]
      %v403 = vld [vmem:[%s324 + $0x94] sm:$0xf]
      %v404 = vld [vmem:[%s324 + $0x98] sm:$0x1]
      %v405 = vld [vmem:[%s324 + $0x9c] sm:$0xf]
      %v406 = vld [vmem:[%s324 + $0xa0] sm:$0xf]
      %v407 = vld [vmem:[%s324 + $0xa4] sm:$0x1]
      %v408 = vld [vmem:[%s324 + $0xa8] sm:$0xf]
      %v409 = vld [vmem:[%s324 + $0xac] sm:$0xf]
      %v410 = vld [vmem:[%s324 + $0xb0] sm:$0x1]
      %v411 = vld [vmem:[%s324 + $0xb4] sm:$0xf]
      %v412 = vld [vmem:[%s324 + $0xb8] sm:$0xf]
      %v413 = vld [vmem:[%s324 + $0xbc] sm:$0x1]
      %v414 = vld [vmem:[%s324 + $0xc0] sm:$0xf]
      %v415 = vld [vmem:[%s324 + $0xc4] sm:$0xf]
      %v416 = vld [vmem:[%s324 + $0xc8] sm:$0x1]
      %v417 = vld [vmem:[%s324 + $0xcc] sm:$0xf]
      %v418 = vld [vmem:[%s324 + $0xd0] sm:$0xf]
      %v419 = vld [vmem:[%s324 + $0xd4] sm:$0x1]
      %v452 = vunpack.c.l.b16 %v366
      %v453 = vunpack.c.l.b16 %v367
      %v454 = vunpack.c.l.b16 %v369
      %v455 = vunpack.c.l.b16 %v370
      %v456 = vunpack.c.l.b16 %v372
      %v457 = vunpack.c.l.b16 %v373
      %v458 = vunpack.c.l.b16 %v375
      %v459 = vunpack.c.l.b16 %v376
      %v460 = vunpack.c.l.b16 %v378
      %v461 = vunpack.c.l.b16 %v379
      %v462 = vunpack.c.l.b16 %v381
      %v463 = vunpack.c.l.b16 %v382
      %v464 = vunpack.c.l.b16 %v384
      %v465 = vunpack.c.l.b16 %v385
      %v466 = vunpack.c.l.b16 %v387
      %v467 = vunpack.c.l.b16 %v388
      %v468 = vunpack.c.l.b16 %v390
      %v469 = vunpack.c.l.b16 %v391
      %v470 = vunpack.c.l.b16 %v393
      %v471 = vunpack.c.l.b16 %v394
      %v472 = vunpack.c.l.b16 %v396
      %v473 = vunpack.c.l.b16 %v397
      %v474 = vunpack.c.l.b16 %v399
      %v475 = vunpack.c.l.b16 %v400
      %v476 = vunpack.c.l.b16 %v402
      %v477 = vunpack.c.l.b16 %v403
      %v478 = vunpack.c.l.b16 %v405
      %v479 = vunpack.c.l.b16 %v406
      %v480 = vunpack.c.l.b16 %v408
      %v481 = vunpack.c.l.b16 %v409
      %v482 = vunpack.c.l.b16 %v411
      %v483 = vunpack.c.l.b16 %v412
      %v484 = vpack.c.b16 %v453, %v452
      %v485 = vpack.c.b16 %v455, %v454
      %v486 = vpack.c.b16 %v457, %v456
      %v487 = vpack.c.b16 %v459, %v458
      %v488 = vpack.c.b16 %v461, %v460
      %v489 = vpack.c.b16 %v463, %v462
      %v490 = vpack.c.b16 %v465, %v464
      %v491 = vpack.c.b16 %v467, %v466
      %v492 = vpack.c.b16 %v469, %v468
      %v493 = vpack.c.b16 %v471, %v470
      %v494 = vpack.c.b16 %v473, %v472
      %v495 = vpack.c.b16 %v475, %v474
      %v496 = vpack.c.b16 %v477, %v476
      %v497 = vpack.c.b16 %v479, %v478
      %v498 = vpack.c.b16 %v481, %v480
      %v499 = vpack.c.b16 %v483, %v482
      %v516 = vunpack.c.l.b16 %v368
      %v517 = vunpack.c.l.b16 %v371
      %v518 = vunpack.c.l.b16 %v374
      %v519 = vunpack.c.l.b16 %v377
      %v520 = vunpack.c.l.b16 %v380
      %v521 = vunpack.c.l.b16 %v383
      %v522 = vunpack.c.l.b16 %v386
      %v523 = vunpack.c.l.b16 %v389
      %v524 = vunpack.c.l.b16 %v392
      %v525 = vunpack.c.l.b16 %v395
      %v526 = vunpack.c.l.b16 %v398
      %v527 = vunpack.c.l.b16 %v401
      %v528 = vunpack.c.l.b16 %v404
      %v529 = vunpack.c.l.b16 %v407
      %v530 = vunpack.c.l.b16 %v410
      %v531 = vunpack.c.l.b16 %v413
      %v532 = vpack.c.b16 %v516, %v516
      %v533 = vpack.c.b16 %v517, %v517
      %v534 = vpack.c.b16 %v518, %v518
      %v535 = vpack.c.b16 %v519, %v519
      %v536 = vpack.c.b16 %v520, %v520
      %v537 = vpack.c.b16 %v521, %v521
      %v538 = vpack.c.b16 %v522, %v522
      %v539 = vpack.c.b16 %v523, %v523
      %v540 = vpack.c.b16 %v524, %v524
      %v541 = vpack.c.b16 %v525, %v525
      %v542 = vpack.c.b16 %v526, %v526
      %v543 = vpack.c.b16 %v527, %v527
      %v544 = vpack.c.b16 %v528, %v528
      %v545 = vpack.c.b16 %v529, %v529
      %v546 = vpack.c.b16 %v530, %v530
      %v547 = vpack.c.b16 %v531, %v531
      %vm548 = vsmask.f32 7424
      %v550 = vshrl.u32 %v484, 16
      %v552 = vshll.u32 %v484, 16
      %v554 = vrot.slane %v552, 1
      %v555 = vor.u32 %v550, %v554
      %v557 = vshll.u32 %v532, 16
      %v559 = vrot.slane %v557, 1
      %v560 = vsel %vm548, %v555, %v559
      %v562 = vshrl.u32 %v485, 16
      %v564 = vshll.u32 %v485, 16
      %v566 = vrot.slane %v564, 1
      %v567 = vor.u32 %v562, %v566
      %v569 = vshll.u32 %v533, 16
      %v571 = vrot.slane %v569, 1
      %v572 = vsel %vm548, %v567, %v571
      %v574 = vshrl.u32 %v486, 16
      %v576 = vshll.u32 %v486, 16
      %v578 = vrot.slane %v576, 1
      %v579 = vor.u32 %v574, %v578
      %v581 = vshll.u32 %v534, 16
      %v583 = vrot.slane %v581, 1
      %v584 = vsel %vm548, %v579, %v583
      %v586 = vshrl.u32 %v487, 16
      %v588 = vshll.u32 %v487, 16
      %v590 = vrot.slane %v588, 1
      %v591 = vor.u32 %v586, %v590
      %v593 = vshll.u32 %v535, 16
      %v595 = vrot.slane %v593, 1
      %v596 = vsel %vm548, %v591, %v595
      %v598 = vshrl.u32 %v488, 16
      %v600 = vshll.u32 %v488, 16
      %v602 = vrot.slane %v600, 1
      %v603 = vor.u32 %v598, %v602
      %v605 = vshll.u32 %v536, 16
      %v607 = vrot.slane %v605, 1
      %v608 = vsel %vm548, %v603, %v607
      %v610 = vshrl.u32 %v489, 16
      %v612 = vshll.u32 %v489, 16
      %v614 = vrot.slane %v612, 1
      %v615 = vor.u32 %v610, %v614
      %v617 = vshll.u32 %v537, 16
      %v619 = vrot.slane %v617, 1
      %v620 = vsel %vm548, %v615, %v619
      %v622 = vshrl.u32 %v490, 16
      %v624 = vshll.u32 %v490, 16
      %v626 = vrot.slane %v624, 1
      %v627 = vor.u32 %v622, %v626
      %v629 = vshll.u32 %v538, 16
      %v631 = vrot.slane %v629, 1
      %v632 = vsel %vm548, %v627, %v631
      %v634 = vshrl.u32 %v491, 16
      %v636 = vshll.u32 %v491, 16
      %v638 = vrot.slane %v636, 1
      %v639 = vor.u32 %v634, %v638
      %v641 = vshll.u32 %v539, 16
      %v643 = vrot.slane %v641, 1
      %v644 = vsel %vm548, %v639, %v643
      %v646 = vshrl.u32 %v492, 16
      %v648 = vshll.u32 %v492, 16
      %v650 = vrot.slane %v648, 1
      %v651 = vor.u32 %v646, %v650
      %v653 = vshll.u32 %v540, 16
      %v655 = vrot.slane %v653, 1
      %v656 = vsel %vm548, %v651, %v655
      %v658 = vshrl.u32 %v493, 16
      %v660 = vshll.u32 %v493, 16
      %v662 = vrot.slane %v660, 1
      %v663 = vor.u32 %v658, %v662
      %v665 = vshll.u32 %v541, 16
      %v667 = vrot.slane %v665, 1
      %v668 = vsel %vm548, %v663, %v667
      %v670 = vshrl.u32 %v494, 16
      %v672 = vshll.u32 %v494, 16
      %v674 = vrot.slane %v672, 1
      %v675 = vor.u32 %v670, %v674
      %v677 = vshll.u32 %v542, 16
      %v679 = vrot.slane %v677, 1
      %v680 = vsel %vm548, %v675, %v679
      %v682 = vshrl.u32 %v495, 16
      %v684 = vshll.u32 %v495, 16
      %v686 = vrot.slane %v684, 1
      %v687 = vor.u32 %v682, %v686
      %v689 = vshll.u32 %v543, 16
      %v691 = vrot.slane %v689, 1
      %v692 = vsel %vm548, %v687, %v691
      %v694 = vshrl.u32 %v496, 16
      %v696 = vshll.u32 %v496, 16
      %v698 = vrot.slane %v696, 1
      %v699 = vor.u32 %v694, %v698
      %v701 = vshll.u32 %v544, 16
      %v703 = vrot.slane %v701, 1
      %v704 = vsel %vm548, %v699, %v703
      %v706 = vshrl.u32 %v497, 16
      %v708 = vshll.u32 %v497, 16
      %v710 = vrot.slane %v708, 1
      %v711 = vor.u32 %v706, %v710
      %v713 = vshll.u32 %v545, 16
      %v715 = vrot.slane %v713, 1
      %v716 = vsel %vm548, %v711, %v715
      %v718 = vshrl.u32 %v498, 16
      %v720 = vshll.u32 %v498, 16
      %v722 = vrot.slane %v720, 1
      %v723 = vor.u32 %v718, %v722
      %v725 = vshll.u32 %v546, 16
      %v727 = vrot.slane %v725, 1
      %v728 = vsel %vm548, %v723, %v727
      %v730 = vshrl.u32 %v499, 16
      %v732 = vshll.u32 %v499, 16
      %v734 = vrot.slane %v732, 1
      %v735 = vor.u32 %v730, %v734
      %v737 = vshll.u32 %v547, 16
      %v739 = vrot.slane %v737, 1
      %v740 = vsel %vm548, %v735, %v739
      %741 = vrot.lane.b32.xlu0 %v560, 4
      %v742 = vpop.permute.xlu0 %741
      %743 = vrot.lane.b32.xlu0 %v572, 4
      %v744 = vpop.permute.xlu0 %743
      %745 = vrot.lane.b32.xlu0 %v584, 4
      %v746 = vpop.permute.xlu0 %745
      %747 = vrot.lane.b32.xlu0 %v596, 4
      %v748 = vpop.permute.xlu0 %747
      %749 = vrot.lane.b32.xlu0 %v608, 4
      %v750 = vpop.permute.xlu0 %749
      %751 = vrot.lane.b32.xlu0 %v620, 4
      %v752 = vpop.permute.xlu0 %751
      %753 = vrot.lane.b32.xlu0 %v632, 4
      %v754 = vpop.permute.xlu0 %753
      %755 = vrot.lane.b32.xlu0 %v644, 4
      %v756 = vpop.permute.xlu0 %755
      %757 = vrot.lane.b32.xlu0 %v656, 4
      %v758 = vpop.permute.xlu0 %757
      %759 = vrot.lane.b32.xlu0 %v668, 4
      %v760 = vpop.permute.xlu0 %759
      %761 = vrot.lane.b32.xlu0 %v680, 4
      %v762 = vpop.permute.xlu0 %761
      %763 = vrot.lane.b32.xlu0 %v692, 4
      %v764 = vpop.permute.xlu0 %763
      %765 = vrot.lane.b32.xlu0 %v704, 4
      %v766 = vpop.permute.xlu0 %765
      %767 = vrot.lane.b32.xlu0 %v716, 4
      %v768 = vpop.permute.xlu0 %767
      %769 = vrot.lane.b32.xlu0 %v728, 4
      %v770 = vpop.permute.xlu0 %769
      %771 = vrot.lane.b32.xlu0 %v740, 4
      %v772 = vpop.permute.xlu0 %771
      %vm773 = vcmask 1046528
      %v774 = vrot.slane %v484, 1
      %v775 = vrot.slane %v532, 1
      %v776 = vsel %vm773, %v774, %v775
      %v777 = vrot.slane %v485, 1
      %v778 = vrot.slane %v533, 1
      %v779 = vsel %vm773, %v777, %v778
      %v780 = vrot.slane %v486, 1
      %v781 = vrot.slane %v534, 1
      %v782 = vsel %vm773, %v780, %v781
      %v783 = vrot.slane %v487, 1
      %v784 = vrot.slane %v535, 1
      %v785 = vsel %vm773, %v783, %v784
      %v786 = vrot.slane %v488, 1
      %v787 = vrot.slane %v536, 1
      %v788 = vsel %vm773, %v786, %v787
      %v789 = vrot.slane %v489, 1
      %v790 = vrot.slane %v537, 1
      %v791 = vsel %vm773, %v789, %v790
      %v792 = vrot.slane %v490, 1
      %v793 = vrot.slane %v538, 1
      %v794 = vsel %vm773, %v792, %v793
      %v795 = vrot.slane %v491, 1
      %v796 = vrot.slane %v539, 1
      %v797 = vsel %vm773, %v795, %v796
      %v798 = vrot.slane %v492, 1
      %v799 = vrot.slane %v540, 1
      %v800 = vsel %vm773, %v798, %v799
      %v801 = vrot.slane %v493, 1
      %v802 = vrot.slane %v541, 1
      %v803 = vsel %vm773, %v801, %v802
      %v804 = vrot.slane %v494, 1
      %v805 = vrot.slane %v542, 1
      %v806 = vsel %vm773, %v804, %v805
      %v807 = vrot.slane %v495, 1
      %v808 = vrot.slane %v543, 1
      %v809 = vsel %vm773, %v807, %v808
      %v810 = vrot.slane %v496, 1
      %v811 = vrot.slane %v544, 1
      %v812 = vsel %vm773, %v810, %v811
      %v813 = vrot.slane %v497, 1
      %v814 = vrot.slane %v545, 1
      %v815 = vsel %vm773, %v813, %v814
      %v816 = vrot.slane %v498, 1
      %v817 = vrot.slane %v546, 1
      %v818 = vsel %vm773, %v816, %v817
      %v819 = vrot.slane %v499, 1
      %v820 = vrot.slane %v547, 1
      %v821 = vsel %vm773, %v819, %v820
      %822 = vrot.lane.b32.xlu0 %v776, 8
      %v823 = vpop.permute.xlu0 %822
      %824 = vrot.lane.b32.xlu0 %v779, 8
      %v825 = vpop.permute.xlu0 %824
      %826 = vrot.lane.b32.xlu0 %v782, 8
      %v827 = vpop.permute.xlu0 %826
      %828 = vrot.lane.b32.xlu0 %v785, 8
      %v829 = vpop.permute.xlu0 %828
      %830 = vrot.lane.b32.xlu0 %v788, 8
      %v831 = vpop.permute.xlu0 %830
      %832 = vrot.lane.b32.xlu0 %v791, 8
      %v833 = vpop.permute.xlu0 %832
      %834 = vrot.lane.b32.xlu0 %v794, 8
      %v835 = vpop.permute.xlu0 %834
      %836 = vrot.lane.b32.xlu0 %v797, 8
      %v837 = vpop.permute.xlu0 %836
      %838 = vrot.lane.b32.xlu0 %v800, 8
      %v839 = vpop.permute.xlu0 %838
      %840 = vrot.lane.b32.xlu0 %v803, 8
      %v841 = vpop.permute.xlu0 %840
      %842 = vrot.lane.b32.xlu0 %v806, 8
      %v843 = vpop.permute.xlu0 %842
      %844 = vrot.lane.b32.xlu0 %v809, 8
      %v845 = vpop.permute.xlu0 %844
      %846 = vrot.lane.b32.xlu0 %v812, 8
      %v847 = vpop.permute.xlu0 %846
      %848 = vrot.lane.b32.xlu0 %v815, 8
      %v849 = vpop.permute.xlu0 %848
      %850 = vrot.lane.b32.xlu0 %v818, 8
      %v851 = vpop.permute.xlu0 %850
      %852 = vrot.lane.b32.xlu0 %v821, 8
      %v853 = vpop.permute.xlu0 %852
      %v856 = vunpack.c.l.b16 %v414
      %v857 = vunpack.c.l.b16 %v415
      %v858 = vpack.c.b16 %v857, %v856
      %859 = vrot.lane.b32.xlu0 %v485, 12
      %v860 = vpop.permute.xlu0 %859
      %861 = vrot.lane.b32.xlu0 %v486, 12
      %v862 = vpop.permute.xlu0 %861
      %863 = vrot.lane.b32.xlu0 %v487, 12
      %v864 = vpop.permute.xlu0 %863
      %865 = vrot.lane.b32.xlu0 %v488, 12
      %v866 = vpop.permute.xlu0 %865
      %867 = vrot.lane.b32.xlu0 %v489, 12
      %v868 = vpop.permute.xlu0 %867
      %869 = vrot.lane.b32.xlu0 %v490, 12
      %v870 = vpop.permute.xlu0 %869
      %871 = vrot.lane.b32.xlu0 %v491, 12
      %v872 = vpop.permute.xlu0 %871
      %873 = vrot.lane.b32.xlu0 %v492, 12
      %v874 = vpop.permute.xlu0 %873
      %875 = vrot.lane.b32.xlu0 %v493, 12
      %v876 = vpop.permute.xlu0 %875
      %877 = vrot.lane.b32.xlu0 %v494, 12
      %v878 = vpop.permute.xlu0 %877
      %879 = vrot.lane.b32.xlu0 %v495, 12
      %v880 = vpop.permute.xlu0 %879
      %881 = vrot.lane.b32.xlu0 %v496, 12
      %v882 = vpop.permute.xlu0 %881
      %883 = vrot.lane.b32.xlu0 %v497, 12
      %v884 = vpop.permute.xlu0 %883
      %885 = vrot.lane.b32.xlu0 %v498, 12
      %v886 = vpop.permute.xlu0 %885
      %887 = vrot.lane.b32.xlu0 %v499, 12
      %v888 = vpop.permute.xlu0 %887
      %889 = vrot.lane.b32.xlu0 %v858, 12
      %v890 = vpop.permute.xlu0 %889
      %v892 = vunpack.c.l.b16 %v416
      %v893 = vpack.c.b16 %v892, %v892
      %v895 = vshrl.u32 %v858, 16
      %v897 = vshll.u32 %v858, 16
      %v899 = vrot.slane %v897, 1
      %v900 = vor.u32 %v895, %v899
      %v902 = vshll.u32 %v893, 16
      %v904 = vrot.slane %v902, 1
      %v905 = vsel %vm548, %v900, %v904
      %906 = vrot.lane.b32.xlu0 %v572, 16
      %v907 = vpop.permute.xlu0 %906
      %908 = vrot.lane.b32.xlu0 %v584, 16
      %v909 = vpop.permute.xlu0 %908
      %910 = vrot.lane.b32.xlu0 %v596, 16
      %v911 = vpop.permute.xlu0 %910
      %912 = vrot.lane.b32.xlu0 %v608, 16
      %v913 = vpop.permute.xlu0 %912
      %914 = vrot.lane.b32.xlu0 %v620, 16
      %v915 = vpop.permute.xlu0 %914
      %916 = vrot.lane.b32.xlu0 %v632, 16
      %v917 = vpop.permute.xlu0 %916
      %918 = vrot.lane.b32.xlu0 %v644, 16
      %v919 = vpop.permute.xlu0 %918
      %920 = vrot.lane.b32.xlu0 %v656, 16
      %v921 = vpop.permute.xlu0 %920
      %922 = vrot.lane.b32.xlu0 %v668, 16
      %v923 = vpop.permute.xlu0 %922
      %924 = vrot.lane.b32.xlu0 %v680, 16
      %v925 = vpop.permute.xlu0 %924
      %926 = vrot.lane.b32.xlu0 %v692, 16
      %v927 = vpop.permute.xlu0 %926
      %928 = vrot.lane.b32.xlu0 %v704, 16
      %v929 = vpop.permute.xlu0 %928
      %930 = vrot.lane.b32.xlu0 %v716, 16
      %v931 = vpop.permute.xlu0 %930
      %932 = vrot.lane.b32.xlu0 %v728, 16
      %v933 = vpop.permute.xlu0 %932
      %934 = vrot.lane.b32.xlu0 %v740, 16
      %v935 = vpop.permute.xlu0 %934
      %936 = vrot.lane.b32.xlu0 %v905, 16
      %v937 = vpop.permute.xlu0 %936
      %v938 = vrot.slane %v858, 1
      %v939 = vrot.slane %v893, 1
      %v940 = vsel %vm773, %v938, %v939
      %941 = vrot.lane.b32.xlu0 %v779, 20
      %v942 = vpop.permute.xlu0 %941
      %943 = vrot.lane.b32.xlu0 %v782, 20
      %v944 = vpop.permute.xlu0 %943
      %945 = vrot.lane.b32.xlu0 %v785, 20
      %v946 = vpop.permute.xlu0 %945
      %947 = vrot.lane.b32.xlu0 %v788, 20
      %v948 = vpop.permute.xlu0 %947
      %949 = vrot.lane.b32.xlu0 %v791, 20
      %v950 = vpop.permute.xlu0 %949
      %951 = vrot.lane.b32.xlu0 %v794, 20
      %v952 = vpop.permute.xlu0 %951
      %953 = vrot.lane.b32.xlu0 %v797, 20
      %v954 = vpop.permute.xlu0 %953
      %955 = vrot.lane.b32.xlu0 %v800, 20
      %v956 = vpop.permute.xlu0 %955
      %957 = vrot.lane.b32.xlu0 %v803, 20
      %v958 = vpop.permute.xlu0 %957
      %959 = vrot.lane.b32.xlu0 %v806, 20
      %v960 = vpop.permute.xlu0 %959
      %961 = vrot.lane.b32.xlu0 %v809, 20
      %v962 = vpop.permute.xlu0 %961
      %963 = vrot.lane.b32.xlu0 %v812, 20
      %v964 = vpop.permute.xlu0 %963
      %965 = vrot.lane.b32.xlu0 %v815, 20
      %v966 = vpop.permute.xlu0 %965
      %967 = vrot.lane.b32.xlu0 %v818, 20
      %v968 = vpop.permute.xlu0 %967
      %969 = vrot.lane.b32.xlu0 %v821, 20
      %v970 = vpop.permute.xlu0 %969
      %971 = vrot.lane.b32.xlu0 %v940, 20
      %v972 = vpop.permute.xlu0 %971
      %v975 = vunpack.c.l.b16 %v417
      %v976 = vunpack.c.l.b16 %v418
      %v977 = vpack.c.b16 %v976, %v975
      %978 = vrot.lane.b32.xlu0 %v486, 24
      %v979 = vpop.permute.xlu0 %978
      %980 = vrot.lane.b32.xlu0 %v487, 24
      %v981 = vpop.permute.xlu0 %980
      %982 = vrot.lane.b32.xlu0 %v488, 24
      %v983 = vpop.permute.xlu0 %982
      %984 = vrot.lane.b32.xlu0 %v489, 24
      %v985 = vpop.permute.xlu0 %984
      %986 = vrot.lane.b32.xlu0 %v490, 24
      %v987 = vpop.permute.xlu0 %986
      %988 = vrot.lane.b32.xlu0 %v491, 24
      %v989 = vpop.permute.xlu0 %988
      %990 = vrot.lane.b32.xlu0 %v492, 24
      %v991 = vpop.permute.xlu0 %990
      %992 = vrot.lane.b32.xlu0 %v493, 24
      %v993 = vpop.permute.xlu0 %992
      %994 = vrot.lane.b32.xlu0 %v494, 24
      %v995 = vpop.permute.xlu0 %994
      %996 = vrot.lane.b32.xlu0 %v495, 24
      %v997 = vpop.permute.xlu0 %996
      %998 = vrot.lane.b32.xlu0 %v496, 24
      %v999 = vpop.permute.xlu0 %998
      %1000 = vrot.lane.b32.xlu0 %v497, 24
      %v1001 = vpop.permute.xlu0 %1000
      %1002 = vrot.lane.b32.xlu0 %v498, 24
      %v1003 = vpop.permute.xlu0 %1002
      %1004 = vrot.lane.b32.xlu0 %v499, 24
      %v1005 = vpop.permute.xlu0 %1004
      %1006 = vrot.lane.b32.xlu0 %v858, 24
      %v1007 = vpop.permute.xlu0 %1006
      %1008 = vrot.lane.b32.xlu0 %v977, 24
      %v1009 = vpop.permute.xlu0 %1008
      %v1011 = vunpack.c.l.b16 %v419
      %v1012 = vpack.c.b16 %v1011, %v1011
      %v1014 = vshrl.u32 %v977, 16
      %v1016 = vshll.u32 %v977, 16
      %v1018 = vrot.slane %v1016, 1
      %v1019 = vor.u32 %v1014, %v1018
      %v1021 = vshll.u32 %v1012, 16
      %v1023 = vrot.slane %v1021, 1
      %v1024 = vsel %vm548, %v1019, %v1023
      %1025 = vrot.lane.b32.xlu0 %v584, 28
      %v1026 = vpop.permute.xlu0 %1025
      %1027 = vrot.lane.b32.xlu0 %v596, 28
      %v1028 = vpop.permute.xlu0 %1027
      %1029 = vrot.lane.b32.xlu0 %v608, 28
      %v1030 = vpop.permute.xlu0 %1029
      %1031 = vrot.lane.b32.xlu0 %v620, 28
      %v1032 = vpop.permute.xlu0 %1031
      %1033 = vrot.lane.b32.xlu0 %v632, 28
      %v1034 = vpop.permute.xlu0 %1033
      %1035 = vrot.lane.b32.xlu0 %v644, 28
      %v1036 = vpop.permute.xlu0 %1035
      %1037 = vrot.lane.b32.xlu0 %v656, 28
      %v1038 = vpop.permute.xlu0 %1037
      %1039 = vrot.lane.b32.xlu0 %v668, 28
      %v1040 = vpop.permute.xlu0 %1039
      %1041 = vrot.lane.b32.xlu0 %v680, 28
      %v1042 = vpop.permute.xlu0 %1041
      %1043 = vrot.lane.b32.xlu0 %v692, 28
      %v1044 = vpop.permute.xlu0 %1043
      %1045 = vrot.lane.b32.xlu0 %v704, 28
      %v1046 = vpop.permute.xlu0 %1045
      %1047 = vrot.lane.b32.xlu0 %v716, 28
      %v1048 = vpop.permute.xlu0 %1047
      %1049 = vrot.lane.b32.xlu0 %v728, 28
      %v1050 = vpop.permute.xlu0 %1049
      %1051 = vrot.lane.b32.xlu0 %v740, 28
      %v1052 = vpop.permute.xlu0 %1051
      %1053 = vrot.lane.b32.xlu0 %v905, 28
      %v1054 = vpop.permute.xlu0 %1053
      %1055 = vrot.lane.b32.xlu0 %v1024, 28
      %v1056 = vpop.permute.xlu0 %1055
      %v1057 = vrot.slane %v977, 1
      %v1058 = vrot.slane %v1012, 1
      %v1059 = vsel %vm773, %v1057, %v1058
      %1060 = vrot.lane.b32.xlu0 %v782, 32
      %v1061 = vpop.permute.xlu0 %1060
      %1062 = vrot.lane.b32.xlu0 %v785, 32
      %v1063 = vpop.permute.xlu0 %1062
      %1064 = vrot.lane.b32.xlu0 %v788, 32
      %v1065 = vpop.permute.xlu0 %1064
      %1066 = vrot.lane.b32.xlu0 %v791, 32
      %v1067 = vpop.permute.xlu0 %1066
      %1068 = vrot.lane.b32.xlu0 %v794, 32
      %v1069 = vpop.permute.xlu0 %1068
      %1070 = vrot.lane.b32.xlu0 %v797, 32
      %v1071 = vpop.permute.xlu0 %1070
      %1072 = vrot.lane.b32.xlu0 %v800, 32
      %v1073 = vpop.permute.xlu0 %1072
      %1074 = vrot.lane.b32.xlu0 %v803, 32
      %v1075 = vpop.permute.xlu0 %1074
      %1076 = vrot.lane.b32.xlu0 %v806, 32
      %v1077 = vpop.permute.xlu0 %1076
      %1078 = vrot.lane.b32.xlu0 %v809, 32
      %v1079 = vpop.permute.xlu0 %1078
      %1080 = vrot.lane.b32.xlu0 %v812, 32
      %v1081 = vpop.permute.xlu0 %1080
      %1082 = vrot.lane.b32.xlu0 %v815, 32
      %v1083 = vpop.permute.xlu0 %1082
      %1084 = vrot.lane.b32.xlu0 %v818, 32
      %v1085 = vpop.permute.xlu0 %1084
      %1086 = vrot.lane.b32.xlu0 %v821, 32
      %v1087 = vpop.permute.xlu0 %1086
      %1088 = vrot.lane.b32.xlu0 %v940, 32
      %v1089 = vpop.permute.xlu0 %1088
      %1090 = vrot.lane.b32.xlu0 %v1059, 32
      %v1091 = vpop.permute.xlu0 %1090
      %vm1092 = vcmask 31744
      %v1094 = vsel %vm1092, %v484, %v742
      %v1096 = vsel %vm1092, %v485, %v744
      %v1098 = vsel %vm1092, %v486, %v746
      %v1100 = vsel %vm1092, %v487, %v748
      %v1102 = vsel %vm1092, %v488, %v750
      %v1104 = vsel %vm1092, %v489, %v752
      %v1106 = vsel %vm1092, %v490, %v754
      %v1108 = vsel %vm1092, %v491, %v756
      %v1110 = vsel %vm1092, %v492, %v758
      %v1112 = vsel %vm1092, %v493, %v760
      %v1114 = vsel %vm1092, %v494, %v762
      %v1116 = vsel %vm1092, %v495, %v764
      %v1118 = vsel %vm1092, %v496, %v766
      %v1120 = vsel %vm1092, %v497, %v768
      %v1122 = vsel %vm1092, %v498, %v770
      %v1124 = vsel %vm1092, %v499, %v772
      %vm1125 = vcmask 64512
      %v1127 = vsel %vm1125, %v1094, %v823
      %v1129 = vsel %vm1125, %v1096, %v825
      %v1131 = vsel %vm1125, %v1098, %v827
      %v1133 = vsel %vm1125, %v1100, %v829
      %v1135 = vsel %vm1125, %v1102, %v831
      %v1137 = vsel %vm1125, %v1104, %v833
      %v1139 = vsel %vm1125, %v1106, %v835
      %v1141 = vsel %vm1125, %v1108, %v837
      %v1143 = vsel %vm1125, %v1110, %v839
      %v1145 = vsel %vm1125, %v1112, %v841
      %v1147 = vsel %vm1125, %v1114, %v843
      %v1149 = vsel %vm1125, %v1116, %v845
      %v1151 = vsel %vm1125, %v1118, %v847
      %v1153 = vsel %vm1125, %v1120, %v849
      %v1155 = vsel %vm1125, %v1122, %v851
      %v1157 = vsel %vm1125, %v1124, %v853
      %vm1158 = vcmask 97280
      %v1160 = vsel %vm1158, %v1127, %v860
      %v1162 = vsel %vm1158, %v1129, %v862
      %v1164 = vsel %vm1158, %v1131, %v864
      %v1166 = vsel %vm1158, %v1133, %v866
      %v1168 = vsel %vm1158, %v1135, %v868
      %v1170 = vsel %vm1158, %v1137, %v870
      %v1172 = vsel %vm1158, %v1139, %v872
      %v1174 = vsel %vm1158, %v1141, %v874
      %v1176 = vsel %vm1158, %v1143, %v876
      %v1178 = vsel %vm1158, %v1145, %v878
      %v1180 = vsel %vm1158, %v1147, %v880
      %v1182 = vsel %vm1158, %v1149, %v882
      %v1184 = vsel %vm1158, %v1151, %v884
      %v1186 = vsel %vm1158, %v1153, %v886
      %v1188 = vsel %vm1158, %v1155, %v888
      %v1190 = vsel %vm1158, %v1157, %v890
      %vm1191 = vcmask 130048
      %v1193 = vsel %vm1191, %v1160, %v907
      %v1195 = vsel %vm1191, %v1162, %v909
      %v1197 = vsel %vm1191, %v1164, %v911
      %v1199 = vsel %vm1191, %v1166, %v913
      %v1201 = vsel %vm1191, %v1168, %v915
      %v1203 = vsel %vm1191, %v1170, %v917
      %v1205 = vsel %vm1191, %v1172, %v919
      %v1207 = vsel %vm1191, %v1174, %v921
      %v1209 = vsel %vm1191, %v1176, %v923
      %v1211 = vsel %vm1191, %v1178, %v925
      %v1213 = vsel %vm1191, %v1180, %v927
      %v1215 = vsel %vm1191, %v1182, %v929
      %v1217 = vsel %vm1191, %v1184, %v931
      %v1219 = vsel %vm1191, %v1186, %v933
      %v1221 = vsel %vm1191, %v1188, %v935
      %v1223 = vsel %vm1191, %v1190, %v937
      %vm1224 = vcmask 162816
      %v1226 = vsel %vm1224, %v1193, %v942
      %v1228 = vsel %vm1224, %v1195, %v944
      %v1230 = vsel %vm1224, %v1197, %v946
      %v1232 = vsel %vm1224, %v1199, %v948
      %v1234 = vsel %vm1224, %v1201, %v950
      %v1236 = vsel %vm1224, %v1203, %v952
      %v1238 = vsel %vm1224, %v1205, %v954
      %v1240 = vsel %vm1224, %v1207, %v956
      %v1242 = vsel %vm1224, %v1209, %v958
      %v1244 = vsel %vm1224, %v1211, %v960
      %v1246 = vsel %vm1224, %v1213, %v962
      %v1248 = vsel %vm1224, %v1215, %v964
      %v1250 = vsel %vm1224, %v1217, %v966
      %v1252 = vsel %vm1224, %v1219, %v968
      %v1254 = vsel %vm1224, %v1221, %v970
      %v1256 = vsel %vm1224, %v1223, %v972
      %vm1257 = vcmask 195584
      %v1259 = vsel %vm1257, %v1226, %v979
      %v1261 = vsel %vm1257, %v1228, %v981
      %v1263 = vsel %vm1257, %v1230, %v983
      %v1265 = vsel %vm1257, %v1232, %v985
      %v1267 = vsel %vm1257, %v1234, %v987
      %v1269 = vsel %vm1257, %v1236, %v989
      %v1271 = vsel %vm1257, %v1238, %v991
      %v1273 = vsel %vm1257, %v1240, %v993
      %v1275 = vsel %vm1257, %v1242, %v995
      %v1277 = vsel %vm1257, %v1244, %v997
      %v1279 = vsel %vm1257, %v1246, %v999
      %v1281 = vsel %vm1257, %v1248, %v1001
      %v1283 = vsel %vm1257, %v1250, %v1003
      %v1285 = vsel %vm1257, %v1252, %v1005
      %v1287 = vsel %vm1257, %v1254, %v1007
      %v1289 = vsel %vm1257, %v1256, %v1009
      %vm1290 = vcmask 228352
      %v1292 = vsel %vm1290, %v1259, %v1026
      %v1294 = vsel %vm1290, %v1261, %v1028
      %v1296 = vsel %vm1290, %v1263, %v1030
      %v1298 = vsel %vm1290, %v1265, %v1032
      %v1300 = vsel %vm1290, %v1267, %v1034
      %v1302 = vsel %vm1290, %v1269, %v1036
      %v1304 = vsel %vm1290, %v1271, %v1038
      %v1306 = vsel %vm1290, %v1273, %v1040
      %v1308 = vsel %vm1290, %v1275, %v1042
      %v1310 = vsel %vm1290, %v1277, %v1044
      %v1312 = vsel %vm1290, %v1279, %v1046
      %v1314 = vsel %vm1290, %v1281, %v1048
      %v1316 = vsel %vm1290, %v1283, %v1050
      %v1318 = vsel %vm1290, %v1285, %v1052
      %v1320 = vsel %vm1290, %v1287, %v1054
      %v1322 = vsel %vm1290, %v1289, %v1056
      %vm1323 = vcmask 261120
      %v1325 = vsel %vm1323, %v1292, %v1061
      %v1327 = vsel %vm1323, %v1294, %v1063
      %v1329 = vsel %vm1323, %v1296, %v1065
      %v1331 = vsel %vm1323, %v1298, %v1067
      %v1333 = vsel %vm1323, %v1300, %v1069
      %v1335 = vsel %vm1323, %v1302, %v1071
      %v1337 = vsel %vm1323, %v1304, %v1073
      %v1339 = vsel %vm1323, %v1306, %v1075
      %v1341 = vsel %vm1323, %v1308, %v1077
      %v1343 = vsel %vm1323, %v1310, %v1079
      %v1345 = vsel %vm1323, %v1312, %v1081
      %v1347 = vsel %vm1323, %v1314, %v1083
      %v1349 = vsel %vm1323, %v1316, %v1085
      %v1351 = vsel %vm1323, %v1318, %v1087
      %v1353 = vsel %vm1323, %v1320, %v1089
      %v1355 = vsel %vm1323, %v1322, %v1091
      %v1356 = vld [vmem:[%s3] sm:$0xf]
      %v1357 = vld [vmem:[%s3 + $0x4] sm:$0xf]
      %v1358 = vld [vmem:[%s3 + $0x8] sm:$0xf]
      %v1359 = vld [vmem:[%s3 + $0xc] sm:$0xf]
      %v1360 = vld [vmem:[%s3 + $0x10] sm:$0x3]
      %v1361 = vld [vmem:[%s334] sm:$0xf]
      %v1362 = vld [vmem:[%s334 + $0x4] sm:$0xf]
      %v1363 = vld [vmem:[%s334 + $0x8] sm:$0x1]
      %v1364 = vld [vmem:[%s334 + $0xc] sm:$0xf]
      %v1365 = vld [vmem:[%s334 + $0x10] sm:$0xf]
      %v1366 = vld [vmem:[%s334 + $0x14] sm:$0x1]
      %v1367 = vld [vmem:[%s334 + $0x18] sm:$0xf]
      %v1368 = vld [vmem:[%s334 + $0x1c] sm:$0xf]
      %v1369 = vld [vmem:[%s334 + $0x20] sm:$0x1]
      %v1370 = vld [vmem:[%s334 + $0x24] sm:$0xf]
      %v1371 = vld [vmem:[%s334 + $0x28] sm:$0xf]
      %v1372 = vld [vmem:[%s334 + $0x2c] sm:$0x1]
      %v1373 = vld [vmem:[%s334 + $0x30] sm:$0xf]
      %v1374 = vld [vmem:[%s334 + $0x34] sm:$0xf]
      %v1375 = vld [vmem:[%s334 + $0x38] sm:$0x1]
      %v1376 = vld [vmem:[%s334 + $0x3c] sm:$0xf]
      %v1377 = vld [vmem:[%s334 + $0x40] sm:$0xf]
      %v1378 = vld [vmem:[%s334 + $0x44] sm:$0x1]
      %v1379 = vld [vmem:[%s334 + $0x48] sm:$0xf]
      %v1380 = vld [vmem:[%s334 + $0x4c] sm:$0xf]
      %v1381 = vld [vmem:[%s334 + $0x50] sm:$0x1]
      %v1382 = vld [vmem:[%s334 + $0x54] sm:$0xf]
      %v1383 = vld [vmem:[%s334 + $0x58] sm:$0xf]
      %v1384 = vld [vmem:[%s334 + $0x5c] sm:$0x1]
      %v1385 = vld [vmem:[%s334 + $0x60] sm:$0xf]
      %v1386 = vld [vmem:[%s334 + $0x64] sm:$0xf]
      %v1387 = vld [vmem:[%s334 + $0x68] sm:$0x1]
      %v1388 = vld [vmem:[%s334 + $0x6c] sm:$0xf]
      %v1389 = vld [vmem:[%s334 + $0x70] sm:$0xf]
      %v1390 = vld [vmem:[%s334 + $0x74] sm:$0x1]
      %v1391 = vld [vmem:[%s334 + $0x78] sm:$0xf]
      %v1392 = vld [vmem:[%s334 + $0x7c] sm:$0xf]
      %v1393 = vld [vmem:[%s334 + $0x80] sm:$0x1]
      %v1394 = vld [vmem:[%s334 + $0x84] sm:$0xf]
      %v1395 = vld [vmem:[%s334 + $0x88] sm:$0xf]
      %v1396 = vld [vmem:[%s334 + $0x8c] sm:$0x1]
      %v1397 = vld [vmem:[%s334 + $0x90] sm:$0xf]
      %v1398 = vld [vmem:[%s334 + $0x94] sm:$0xf]
      %v1399 = vld [vmem:[%s334 + $0x98] sm:$0x1]
      %v1400 = vld [vmem:[%s334 + $0x9c] sm:$0xf]
      %v1401 = vld [vmem:[%s334 + $0xa0] sm:$0xf]
      %v1402 = vld [vmem:[%s334 + $0xa4] sm:$0x1]
      %v1403 = vld [vmem:[%s334 + $0xa8] sm:$0xf]
      %v1404 = vld [vmem:[%s334 + $0xac] sm:$0xf]
      %v1405 = vld [vmem:[%s334 + $0xb0] sm:$0x1]
      %v1406 = vld [vmem:[%s334 + $0xb4] sm:$0xf]
      %v1407 = vld [vmem:[%s334 + $0xb8] sm:$0xf]
      %v1408 = vld [vmem:[%s334 + $0xbc] sm:$0x1]
      %v1409 = vld [vmem:[%s334 + $0xc0] sm:$0xf]
      %v1410 = vld [vmem:[%s334 + $0xc4] sm:$0xf]
      %v1411 = vld [vmem:[%s334 + $0xc8] sm:$0x1]
      %v1412 = vld [vmem:[%s334 + $0xcc] sm:$0xf]
      %v1413 = vld [vmem:[%s334 + $0xd0] sm:$0xf]
      %v1414 = vld [vmem:[%s334 + $0xd4] sm:$0x1]
      %v1447 = vunpack.c.l.b16 %v1361
      %v1448 = vunpack.c.l.b16 %v1362
      %v1449 = vunpack.c.l.b16 %v1364
      %v1450 = vunpack.c.l.b16 %v1365
      %v1451 = vunpack.c.l.b16 %v1367
      %v1452 = vunpack.c.l.b16 %v1368
      %v1453 = vunpack.c.l.b16 %v1370
      %v1454 = vunpack.c.l.b16 %v1371
      %v1455 = vunpack.c.l.b16 %v1373
      %v1456 = vunpack.c.l.b16 %v1374
      %v1457 = vunpack.c.l.b16 %v1376
      %v1458 = vunpack.c.l.b16 %v1377
      %v1459 = vunpack.c.l.b16 %v1379
      %v1460 = vunpack.c.l.b16 %v1380
      %v1461 = vunpack.c.l.b16 %v1382
      %v1462 = vunpack.c.l.b16 %v1383
      %v1463 = vunpack.c.l.b16 %v1385
      %v1464 = vunpack.c.l.b16 %v1386
      %v1465 = vunpack.c.l.b16 %v1388
      %v1466 = vunpack.c.l.b16 %v1389
      %v1467 = vunpack.c.l.b16 %v1391
      %v1468 = vunpack.c.l.b16 %v1392
      %v1469 = vunpack.c.l.b16 %v1394
      %v1470 = vunpack.c.l.b16 %v1395
      %v1471 = vunpack.c.l.b16 %v1397
      %v1472 = vunpack.c.l.b16 %v1398
      %v1473 = vunpack.c.l.b16 %v1400
      %v1474 = vunpack.c.l.b16 %v1401
      %v1475 = vunpack.c.l.b16 %v1403
      %v1476 = vunpack.c.l.b16 %v1404
      %v1477 = vunpack.c.l.b16 %v1406
      %v1478 = vunpack.c.l.b16 %v1407
      %v1479 = vpack.c.b16 %v1448, %v1447
      %v1480 = vpack.c.b16 %v1450, %v1449
      %v1481 = vpack.c.b16 %v1452, %v1451
      %v1482 = vpack.c.b16 %v1454, %v1453
      %v1483 = vpack.c.b16 %v1456, %v1455
      %v1484 = vpack.c.b16 %v1458, %v1457
      %v1485 = vpack.c.b16 %v1460, %v1459
      %v1486 = vpack.c.b16 %v1462, %v1461
      %v1487 = vpack.c.b16 %v1464, %v1463
      %v1488 = vpack.c.b16 %v1466, %v1465
      %v1489 = vpack.c.b16 %v1468, %v1467
      %v1490 = vpack.c.b16 %v1470, %v1469
      %v1491 = vpack.c.b16 %v1472, %v1471
      %v1492 = vpack.c.b16 %v1474, %v1473
      %v1493 = vpack.c.b16 %v1476, %v1475
      %v1494 = vpack.c.b16 %v1478, %v1477
      %v1511 = vunpack.c.l.b16 %v1363
      %v1512 = vunpack.c.l.b16 %v1366
      %v1513 = vunpack.c.l.b16 %v1369
      %v1514 = vunpack.c.l.b16 %v1372
      %v1515 = vunpack.c.l.b16 %v1375
      %v1516 = vunpack.c.l.b16 %v1378
      %v1517 = vunpack.c.l.b16 %v1381
      %v1518 = vunpack.c.l.b16 %v1384
      %v1519 = vunpack.c.l.b16 %v1387
      %v1520 = vunpack.c.l.b16 %v1390
      %v1521 = vunpack.c.l.b16 %v1393
      %v1522 = vunpack.c.l.b16 %v1396
      %v1523 = vunpack.c.l.b16 %v1399
      %v1524 = vunpack.c.l.b16 %v1402
      %v1525 = vunpack.c.l.b16 %v1405
      %v1526 = vunpack.c.l.b16 %v1408
      %v1527 = vpack.c.b16 %v1511, %v1511
      %v1528 = vpack.c.b16 %v1512, %v1512
      %v1529 = vpack.c.b16 %v1513, %v1513
      %v1530 = vpack.c.b16 %v1514, %v1514
      %v1531 = vpack.c.b16 %v1515, %v1515
      %v1532 = vpack.c.b16 %v1516, %v1516
      %v1533 = vpack.c.b16 %v1517, %v1517
      %v1534 = vpack.c.b16 %v1518, %v1518
      %v1535 = vpack.c.b16 %v1519, %v1519
      %v1536 = vpack.c.b16 %v1520, %v1520
      %v1537 = vpack.c.b16 %v1521, %v1521
      %v1538 = vpack.c.b16 %v1522, %v1522
      %v1539 = vpack.c.b16 %v1523, %v1523
      %v1540 = vpack.c.b16 %v1524, %v1524
      %v1541 = vpack.c.b16 %v1525, %v1525
      %v1542 = vpack.c.b16 %v1526, %v1526
      %v1544 = vshrl.u32 %v1479, 16
      %v1546 = vshll.u32 %v1479, 16
      %v1548 = vrot.slane %v1546, 1
      %v1549 = vor.u32 %v1544, %v1548
      %v1551 = vshll.u32 %v1527, 16
      %v1553 = vrot.slane %v1551, 1
      %v1554 = vsel %vm548, %v1549, %v1553
      %v1556 = vshrl.u32 %v1480, 16
      %v1558 = vshll.u32 %v1480, 16
      %v1560 = vrot.slane %v1558, 1
      %v1561 = vor.u32 %v1556, %v1560
      %v1563 = vshll.u32 %v1528, 16
      %v1565 = vrot.slane %v1563, 1
      %v1566 = vsel %vm548, %v1561, %v1565
      %v1568 = vshrl.u32 %v1481, 16
      %v1570 = vshll.u32 %v1481, 16
      %v1572 = vrot.slane %v1570, 1
      %v1573 = vor.u32 %v1568, %v1572
      %v1575 = vshll.u32 %v1529, 16
      %v1577 = vrot.slane %v1575, 1
      %v1578 = vsel %vm548, %v1573, %v1577
      %v1580 = vshrl.u32 %v1482, 16
      %v1582 = vshll.u32 %v1482, 16
      %v1584 = vrot.slane %v1582, 1
      %v1585 = vor.u32 %v1580, %v1584
      %v1587 = vshll.u32 %v1530, 16
      %v1589 = vrot.slane %v1587, 1
      %v1590 = vsel %vm548, %v1585, %v1589
      %v1592 = vshrl.u32 %v1483, 16
      %v1594 = vshll.u32 %v1483, 16
      %v1596 = vrot.slane %v1594, 1
      %v1597 = vor.u32 %v1592, %v1596
      %v1599 = vshll.u32 %v1531, 16
      %v1601 = vrot.slane %v1599, 1
      %v1602 = vsel %vm548, %v1597, %v1601
      %v1604 = vshrl.u32 %v1484, 16
      %v1606 = vshll.u32 %v1484, 16
      %v1608 = vrot.slane %v1606, 1
      %v1609 = vor.u32 %v1604, %v1608
      %v1611 = vshll.u32 %v1532, 16
      %v1613 = vrot.slane %v1611, 1
      %v1614 = vsel %vm548, %v1609, %v1613
      %v1616 = vshrl.u32 %v1485, 16
      %v1618 = vshll.u32 %v1485, 16
      %v1620 = vrot.slane %v1618, 1
      %v1621 = vor.u32 %v1616, %v1620
      %v1623 = vshll.u32 %v1533, 16
      %v1625 = vrot.slane %v1623, 1
      %v1626 = vsel %vm548, %v1621, %v1625
      %v1628 = vshrl.u32 %v1486, 16
      %v1630 = vshll.u32 %v1486, 16
      %v1632 = vrot.slane %v1630, 1
      %v1633 = vor.u32 %v1628, %v1632
      %v1635 = vshll.u32 %v1534, 16
      %v1637 = vrot.slane %v1635, 1
      %v1638 = vsel %vm548, %v1633, %v1637
      %v1640 = vshrl.u32 %v1487, 16
      %v1642 = vshll.u32 %v1487, 16
      %v1644 = vrot.slane %v1642, 1
      %v1645 = vor.u32 %v1640, %v1644
      %v1647 = vshll.u32 %v1535, 16
      %v1649 = vrot.slane %v1647, 1
      %v1650 = vsel %vm548, %v1645, %v1649
      %v1652 = vshrl.u32 %v1488, 16
      %v1654 = vshll.u32 %v1488, 16
      %v1656 = vrot.slane %v1654, 1
      %v1657 = vor.u32 %v1652, %v1656
      %v1659 = vshll.u32 %v1536, 16
      %v1661 = vrot.slane %v1659, 1
      %v1662 = vsel %vm548, %v1657, %v1661
      %v1664 = vshrl.u32 %v1489, 16
      %v1666 = vshll.u32 %v1489, 16
      %v1668 = vrot.slane %v1666, 1
      %v1669 = vor.u32 %v1664, %v1668
      %v1671 = vshll.u32 %v1537, 16
      %v1673 = vrot.slane %v1671, 1
      %v1674 = vsel %vm548, %v1669, %v1673
      %v1676 = vshrl.u32 %v1490, 16
      %v1678 = vshll.u32 %v1490, 16
      %v1680 = vrot.slane %v1678, 1
      %v1681 = vor.u32 %v1676, %v1680
      %v1683 = vshll.u32 %v1538, 16
      %v1685 = vrot.slane %v1683, 1
      %v1686 = vsel %vm548, %v1681, %v1685
      %v1688 = vshrl.u32 %v1491, 16
      %v1690 = vshll.u32 %v1491, 16
      %v1692 = vrot.slane %v1690, 1
      %v1693 = vor.u32 %v1688, %v1692
      %v1695 = vshll.u32 %v1539, 16
      %v1697 = vrot.slane %v1695, 1
      %v1698 = vsel %vm548, %v1693, %v1697
      %v1700 = vshrl.u32 %v1492, 16
      %v1702 = vshll.u32 %v1492, 16
      %v1704 = vrot.slane %v1702, 1
      %v1705 = vor.u32 %v1700, %v1704
      %v1707 = vshll.u32 %v1540, 16
      %v1709 = vrot.slane %v1707, 1
      %v1710 = vsel %vm548, %v1705, %v1709
      %v1712 = vshrl.u32 %v1493, 16
      %v1714 = vshll.u32 %v1493, 16
      %v1716 = vrot.slane %v1714, 1
      %v1717 = vor.u32 %v1712, %v1716
      %v1719 = vshll.u32 %v1541, 16
      %v1721 = vrot.slane %v1719, 1
      %v1722 = vsel %vm548, %v1717, %v1721
      %v1724 = vshrl.u32 %v1494, 16
      %v1726 = vshll.u32 %v1494, 16
      %v1728 = vrot.slane %v1726, 1
      %v1729 = vor.u32 %v1724, %v1728
      %v1731 = vshll.u32 %v1542, 16
      %v1733 = vrot.slane %v1731, 1
      %v1734 = vsel %vm548, %v1729, %v1733
      %1735 = vrot.lane.b32.xlu0 %v1554, 4
      %v1736 = vpop.permute.xlu0 %1735
      %1737 = vrot.lane.b32.xlu0 %v1566, 4
      %v1738 = vpop.permute.xlu0 %1737
      %1739 = vrot.lane.b32.xlu0 %v1578, 4
      %v1740 = vpop.permute.xlu0 %1739
      %1741 = vrot.lane.b32.xlu0 %v1590, 4
      %v1742 = vpop.permute.xlu0 %1741
      %1743 = vrot.lane.b32.xlu0 %v1602, 4
      %v1744 = vpop.permute.xlu0 %1743
      %1745 = vrot.lane.b32.xlu0 %v1614, 4
      %v1746 = vpop.permute.xlu0 %1745
      %1747 = vrot.lane.b32.xlu0 %v1626, 4
      %v1748 = vpop.permute.xlu0 %1747
      %1749 = vrot.lane.b32.xlu0 %v1638, 4
      %v1750 = vpop.permute.xlu0 %1749
      %1751 = vrot.lane.b32.xlu0 %v1650, 4
      %v1752 = vpop.permute.xlu0 %1751
      %1753 = vrot.lane.b32.xlu0 %v1662, 4
      %v1754 = vpop.permute.xlu0 %1753
      %1755 = vrot.lane.b32.xlu0 %v1674, 4
      %v1756 = vpop.permute.xlu0 %1755
      %1757 = vrot.lane.b32.xlu0 %v1686, 4
      %v1758 = vpop.permute.xlu0 %1757
      %1759 = vrot.lane.b32.xlu0 %v1698, 4
      %v1760 = vpop.permute.xlu0 %1759
      %1761 = vrot.lane.b32.xlu0 %v1710, 4
      %v1762 = vpop.permute.xlu0 %1761
      %1763 = vrot.lane.b32.xlu0 %v1722, 4
      %v1764 = vpop.permute.xlu0 %1763
      %1765 = vrot.lane.b32.xlu0 %v1734, 4
      %v1766 = vpop.permute.xlu0 %1765
      %v1767 = vrot.slane %v1479, 1
      %v1768 = vrot.slane %v1527, 1
      %v1769 = vsel %vm773, %v1767, %v1768
      %v1770 = vrot.slane %v1480, 1
      %v1771 = vrot.slane %v1528, 1
      %v1772 = vsel %vm773, %v1770, %v1771
      %v1773 = vrot.slane %v1481, 1
      %v1774 = vrot.slane %v1529, 1
      %v1775 = vsel %vm773, %v1773, %v1774
      %v1776 = vrot.slane %v1482, 1
      %v1777 = vrot.slane %v1530, 1
      %v1778 = vsel %vm773, %v1776, %v1777
      %v1779 = vrot.slane %v1483, 1
      %v1780 = vrot.slane %v1531, 1
      %v1781 = vsel %vm773, %v1779, %v1780
      %v1782 = vrot.slane %v1484, 1
      %v1783 = vrot.slane %v1532, 1
      %v1784 = vsel %vm773, %v1782, %v1783
      %v1785 = vrot.slane %v1485, 1
      %v1786 = vrot.slane %v1533, 1
      %v1787 = vsel %vm773, %v1785, %v1786
      %v1788 = vrot.slane %v1486, 1
      %v1789 = vrot.slane %v1534, 1
      %v1790 = vsel %vm773, %v1788, %v1789
      %v1791 = vrot.slane %v1487, 1
      %v1792 = vrot.slane %v1535, 1
      %v1793 = vsel %vm773, %v1791, %v1792
      %v1794 = vrot.slane %v1488, 1
      %v1795 = vrot.slane %v1536, 1
      %v1796 = vsel %vm773, %v1794, %v1795
      %v1797 = vrot.slane %v1489, 1
      %v1798 = vrot.slane %v1537, 1
      %v1799 = vsel %vm773, %v1797, %v1798
      %v1800 = vrot.slane %v1490, 1
      %v1801 = vrot.slane %v1538, 1
      %v1802 = vsel %vm773, %v1800, %v1801
      %v1803 = vrot.slane %v1491, 1
      %v1804 = vrot.slane %v1539, 1
      %v1805 = vsel %vm773, %v1803, %v1804
      %v1806 = vrot.slane %v1492, 1
      %v1807 = vrot.slane %v1540, 1
      %v1808 = vsel %vm773, %v1806, %v1807
      %v1809 = vrot.slane %v1493, 1
      %v1810 = vrot.slane %v1541, 1
      %v1811 = vsel %vm773, %v1809, %v1810
      %v1812 = vrot.slane %v1494, 1
      %v1813 = vrot.slane %v1542, 1
      %v1814 = vsel %vm773, %v1812, %v1813
      %1815 = vrot.lane.b32.xlu0 %v1769, 8
      %v1816 = vpop.permute.xlu0 %1815
      %1817 = vrot.lane.b32.xlu0 %v1772, 8
      %v1818 = vpop.permute.xlu0 %1817
      %1819 = vrot.lane.b32.xlu0 %v1775, 8
      %v1820 = vpop.permute.xlu0 %1819
      %1821 = vrot.lane.b32.xlu0 %v1778, 8
      %v1822 = vpop.permute.xlu0 %1821
      %1823 = vrot.lane.b32.xlu0 %v1781, 8
      %v1824 = vpop.permute.xlu0 %1823
      %1825 = vrot.lane.b32.xlu0 %v1784, 8
      %v1826 = vpop.permute.xlu0 %1825
      %1827 = vrot.lane.b32.xlu0 %v1787, 8
      %v1828 = vpop.permute.xlu0 %1827
      %1829 = vrot.lane.b32.xlu0 %v1790, 8
      %v1830 = vpop.permute.xlu0 %1829
      %1831 = vrot.lane.b32.xlu0 %v1793, 8
      %v1832 = vpop.permute.xlu0 %1831
      %1833 = vrot.lane.b32.xlu0 %v1796, 8
      %v1834 = vpop.permute.xlu0 %1833
      %1835 = vrot.lane.b32.xlu0 %v1799, 8
      %v1836 = vpop.permute.xlu0 %1835
      %1837 = vrot.lane.b32.xlu0 %v1802, 8
      %v1838 = vpop.permute.xlu0 %1837
      %1839 = vrot.lane.b32.xlu0 %v1805, 8
      %v1840 = vpop.permute.xlu0 %1839
      %1841 = vrot.lane.b32.xlu0 %v1808, 8
      %v1842 = vpop.permute.xlu0 %1841
      %1843 = vrot.lane.b32.xlu0 %v1811, 8
      %v1844 = vpop.permute.xlu0 %1843
      %1845 = vrot.lane.b32.xlu0 %v1814, 8
      %v1846 = vpop.permute.xlu0 %1845
      %v1849 = vunpack.c.l.b16 %v1409
      %v1850 = vunpack.c.l.b16 %v1410
      %v1851 = vpack.c.b16 %v1850, %v1849
      %1852 = vrot.lane.b32.xlu0 %v1480, 12
      %v1853 = vpop.permute.xlu0 %1852
      %1854 = vrot.lane.b32.xlu0 %v1481, 12
      %v1855 = vpop.permute.xlu0 %1854
      %1856 = vrot.lane.b32.xlu0 %v1482, 12
      %v1857 = vpop.permute.xlu0 %1856
      %1858 = vrot.lane.b32.xlu0 %v1483, 12
      %v1859 = vpop.permute.xlu0 %1858
      %1860 = vrot.lane.b32.xlu0 %v1484, 12
      %v1861 = vpop.permute.xlu0 %1860
      %1862 = vrot.lane.b32.xlu0 %v1485, 12
      %v1863 = vpop.permute.xlu0 %1862
      %1864 = vrot.lane.b32.xlu0 %v1486, 12
      %v1865 = vpop.permute.xlu0 %1864
      %1866 = vrot.lane.b32.xlu0 %v1487, 12
      %v1867 = vpop.permute.xlu0 %1866
      %1868 = vrot.lane.b32.xlu0 %v1488, 12
      %v1869 = vpop.permute.xlu0 %1868
      %1870 = vrot.lane.b32.xlu0 %v1489, 12
      %v1871 = vpop.permute.xlu0 %1870
      %1872 = vrot.lane.b32.xlu0 %v1490, 12
      %v1873 = vpop.permute.xlu0 %1872
      %1874 = vrot.lane.b32.xlu0 %v1491, 12
      %v1875 = vpop.permute.xlu0 %1874
      %1876 = vrot.lane.b32.xlu0 %v1492, 12
      %v1877 = vpop.permute.xlu0 %1876
      %1878 = vrot.lane.b32.xlu0 %v1493, 12
      %v1879 = vpop.permute.xlu0 %1878
      %1880 = vrot.lane.b32.xlu0 %v1494, 12
      %v1881 = vpop.permute.xlu0 %1880
      %1882 = vrot.lane.b32.xlu0 %v1851, 12
      %v1883 = vpop.permute.xlu0 %1882
      %v1885 = vunpack.c.l.b16 %v1411
      %v1886 = vpack.c.b16 %v1885, %v1885
      %v1888 = vshrl.u32 %v1851, 16
      %v1890 = vshll.u32 %v1851, 16
      %v1892 = vrot.slane %v1890, 1
      %v1893 = vor.u32 %v1888, %v1892
      %v1895 = vshll.u32 %v1886, 16
      %v1897 = vrot.slane %v1895, 1
      %v1898 = vsel %vm548, %v1893, %v1897
      %1899 = vrot.lane.b32.xlu0 %v1566, 16
      %v1900 = vpop.permute.xlu0 %1899
      %1901 = vrot.lane.b32.xlu0 %v1578, 16
      %v1902 = vpop.permute.xlu0 %1901
      %1903 = vrot.lane.b32.xlu0 %v1590, 16
      %v1904 = vpop.permute.xlu0 %1903
      %1905 = vrot.lane.b32.xlu0 %v1602, 16
      %v1906 = vpop.permute.xlu0 %1905
      %1907 = vrot.lane.b32.xlu0 %v1614, 16
      %v1908 = vpop.permute.xlu0 %1907
      %1909 = vrot.lane.b32.xlu0 %v1626, 16
      %v1910 = vpop.permute.xlu0 %1909
      %1911 = vrot.lane.b32.xlu0 %v1638, 16
      %v1912 = vpop.permute.xlu0 %1911
      %1913 = vrot.lane.b32.xlu0 %v1650, 16
      %v1914 = vpop.permute.xlu0 %1913
      %1915 = vrot.lane.b32.xlu0 %v1662, 16
      %v1916 = vpop.permute.xlu0 %1915
      %1917 = vrot.lane.b32.xlu0 %v1674, 16
      %v1918 = vpop.permute.xlu0 %1917
      %1919 = vrot.lane.b32.xlu0 %v1686, 16
      %v1920 = vpop.permute.xlu0 %1919
      %1921 = vrot.lane.b32.xlu0 %v1698, 16
      %v1922 = vpop.permute.xlu0 %1921
      %1923 = vrot.lane.b32.xlu0 %v1710, 16
      %v1924 = vpop.permute.xlu0 %1923
      %1925 = vrot.lane.b32.xlu0 %v1722, 16
      %v1926 = vpop.permute.xlu0 %1925
      %1927 = vrot.lane.b32.xlu0 %v1734, 16
      %v1928 = vpop.permute.xlu0 %1927
      %1929 = vrot.lane.b32.xlu0 %v1898, 16
      %v1930 = vpop.permute.xlu0 %1929
      %v1931 = vrot.slane %v1851, 1
      %v1932 = vrot.slane %v1886, 1
      %v1933 = vsel %vm773, %v1931, %v1932
      %1934 = vrot.lane.b32.xlu0 %v1772, 20
      %v1935 = vpop.permute.xlu0 %1934
      %1936 = vrot.lane.b32.xlu0 %v1775, 20
      %v1937 = vpop.permute.xlu0 %1936
      %1938 = vrot.lane.b32.xlu0 %v1778, 20
      %v1939 = vpop.permute.xlu0 %1938
      %1940 = vrot.lane.b32.xlu0 %v1781, 20
      %v1941 = vpop.permute.xlu0 %1940
      %1942 = vrot.lane.b32.xlu0 %v1784, 20
      %v1943 = vpop.permute.xlu0 %1942
      %1944 = vrot.lane.b32.xlu0 %v1787, 20
      %v1945 = vpop.permute.xlu0 %1944
      %1946 = vrot.lane.b32.xlu0 %v1790, 20
      %v1947 = vpop.permute.xlu0 %1946
      %1948 = vrot.lane.b32.xlu0 %v1793, 20
      %v1949 = vpop.permute.xlu0 %1948
      %1950 = vrot.lane.b32.xlu0 %v1796, 20
      %v1951 = vpop.permute.xlu0 %1950
      %1952 = vrot.lane.b32.xlu0 %v1799, 20
      %v1953 = vpop.permute.xlu0 %1952
      %1954 = vrot.lane.b32.xlu0 %v1802, 20
      %v1955 = vpop.permute.xlu0 %1954
      %1956 = vrot.lane.b32.xlu0 %v1805, 20
      %v1957 = vpop.permute.xlu0 %1956
      %1958 = vrot.lane.b32.xlu0 %v1808, 20
      %v1959 = vpop.permute.xlu0 %1958
      %1960 = vrot.lane.b32.xlu0 %v1811, 20
      %v1961 = vpop.permute.xlu0 %1960
      %1962 = vrot.lane.b32.xlu0 %v1814, 20
      %v1963 = vpop.permute.xlu0 %1962
      %1964 = vrot.lane.b32.xlu0 %v1933, 20
      %v1965 = vpop.permute.xlu0 %1964
      %v1968 = vunpack.c.l.b16 %v1412
      %v1969 = vunpack.c.l.b16 %v1413
      %v1970 = vpack.c.b16 %v1969, %v1968
      %1971 = vrot.lane.b32.xlu0 %v1481, 24
      %v1972 = vpop.permute.xlu0 %1971
      %1973 = vrot.lane.b32.xlu0 %v1482, 24
      %v1974 = vpop.permute.xlu0 %1973
      %1975 = vrot.lane.b32.xlu0 %v1483, 24
      %v1976 = vpop.permute.xlu0 %1975
      %1977 = vrot.lane.b32.xlu0 %v1484, 24
      %v1978 = vpop.permute.xlu0 %1977
      %1979 = vrot.lane.b32.xlu0 %v1485, 24
      %v1980 = vpop.permute.xlu0 %1979
      %1981 = vrot.lane.b32.xlu0 %v1486, 24
      %v1982 = vpop.permute.xlu0 %1981
      %1983 = vrot.lane.b32.xlu0 %v1487, 24
      %v1984 = vpop.permute.xlu0 %1983
      %1985 = vrot.lane.b32.xlu0 %v1488, 24
      %v1986 = vpop.permute.xlu0 %1985
      %1987 = vrot.lane.b32.xlu0 %v1489, 24
      %v1988 = vpop.permute.xlu0 %1987
      %1989 = vrot.lane.b32.xlu0 %v1490, 24
      %v1990 = vpop.permute.xlu0 %1989
      %1991 = vrot.lane.b32.xlu0 %v1491, 24
      %v1992 = vpop.permute.xlu0 %1991
      %1993 = vrot.lane.b32.xlu0 %v1492, 24
      %v1994 = vpop.permute.xlu0 %1993
      %1995 = vrot.lane.b32.xlu0 %v1493, 24
      %v1996 = vpop.permute.xlu0 %1995
      %1997 = vrot.lane.b32.xlu0 %v1494, 24
      %v1998 = vpop.permute.xlu0 %1997
      %1999 = vrot.lane.b32.xlu0 %v1851, 24
      %v2000 = vpop.permute.xlu0 %1999
      %2001 = vrot.lane.b32.xlu0 %v1970, 24
      %v2002 = vpop.permute.xlu0 %2001
      %v2004 = vunpack.c.l.b16 %v1414
      %v2005 = vpack.c.b16 %v2004, %v2004
      %v2007 = vshrl.u32 %v1970, 16
      %v2009 = vshll.u32 %v1970, 16
      %v2011 = vrot.slane %v2009, 1
      %v2012 = vor.u32 %v2007, %v2011
      %v2014 = vshll.u32 %v2005, 16
      %v2016 = vrot.slane %v2014, 1
      %v2017 = vsel %vm548, %v2012, %v2016
      %2018 = vrot.lane.b32.xlu0 %v1578, 28
      %v2019 = vpop.permute.xlu0 %2018
      %2020 = vrot.lane.b32.xlu0 %v1590, 28
      %v2021 = vpop.permute.xlu0 %2020
      %2022 = vrot.lane.b32.xlu0 %v1602, 28
      %v2023 = vpop.permute.xlu0 %2022
      %2024 = vrot.lane.b32.xlu0 %v1614, 28
      %v2025 = vpop.permute.xlu0 %2024
      %2026 = vrot.lane.b32.xlu0 %v1626, 28
      %v2027 = vpop.permute.xlu0 %2026
      %2028 = vrot.lane.b32.xlu0 %v1638, 28
      %v2029 = vpop.permute.xlu0 %2028
      %2030 = vrot.lane.b32.xlu0 %v1650, 28
      %v2031 = vpop.permute.xlu0 %2030
      %2032 = vrot.lane.b32.xlu0 %v1662, 28
      %v2033 = vpop.permute.xlu0 %2032
      %2034 = vrot.lane.b32.xlu0 %v1674, 28
      %v2035 = vpop.permute.xlu0 %2034
      %2036 = vrot.lane.b32.xlu0 %v1686, 28
      %v2037 = vpop.permute.xlu0 %2036
      %2038 = vrot.lane.b32.xlu0 %v1698, 28
      %v2039 = vpop.permute.xlu0 %2038
      %2040 = vrot.lane.b32.xlu0 %v1710, 28
      %v2041 = vpop.permute.xlu0 %2040
      %2042 = vrot.lane.b32.xlu0 %v1722, 28
      %v2043 = vpop.permute.xlu0 %2042
      %2044 = vrot.lane.b32.xlu0 %v1734, 28
      %v2045 = vpop.permute.xlu0 %2044
      %2046 = vrot.lane.b32.xlu0 %v1898, 28
      %v2047 = vpop.permute.xlu0 %2046
      %2048 = vrot.lane.b32.xlu0 %v2017, 28
      %v2049 = vpop.permute.xlu0 %2048
      %v2050 = vrot.slane %v1970, 1
      %v2051 = vrot.slane %v2005, 1
      %v2052 = vsel %vm773, %v2050, %v2051
      %2053 = vrot.lane.b32.xlu0 %v1775, 32
      %v2054 = vpop.permute.xlu0 %2053
      %2055 = vrot.lane.b32.xlu0 %v1778, 32
      %v2056 = vpop.permute.xlu0 %2055
      %2057 = vrot.lane.b32.xlu0 %v1781, 32
      %v2058 = vpop.permute.xlu0 %2057
      %2059 = vrot.lane.b32.xlu0 %v1784, 32
      %v2060 = vpop.permute.xlu0 %2059
      %2061 = vrot.lane.b32.xlu0 %v1787, 32
      %v2062 = vpop.permute.xlu0 %2061
      %2063 = vrot.lane.b32.xlu0 %v1790, 32
      %v2064 = vpop.permute.xlu0 %2063
      %2065 = vrot.lane.b32.xlu0 %v1793, 32
      %v2066 = vpop.permute.xlu0 %2065
      %2067 = vrot.lane.b32.xlu0 %v1796, 32
      %v2068 = vpop.permute.xlu0 %2067
      %2069 = vrot.lane.b32.xlu0 %v1799, 32
      %v2070 = vpop.permute.xlu0 %2069
      %2071 = vrot.lane.b32.xlu0 %v1802, 32
      %v2072 = vpop.permute.xlu0 %2071
      %2073 = vrot.lane.b32.xlu0 %v1805, 32
      %v2074 = vpop.permute.xlu0 %2073
      %2075 = vrot.lane.b32.xlu0 %v1808, 32
      %v2076 = vpop.permute.xlu0 %2075
      %2077 = vrot.lane.b32.xlu0 %v1811, 32
      %v2078 = vpop.permute.xlu0 %2077
      %2079 = vrot.lane.b32.xlu0 %v1814, 32
      %v2080 = vpop.permute.xlu0 %2079
      %2081 = vrot.lane.b32.xlu0 %v1933, 32
      %v2082 = vpop.permute.xlu0 %2081
      %2083 = vrot.lane.b32.xlu0 %v2052, 32
      %v2084 = vpop.permute.xlu0 %2083
      %v2086 = vsel %vm1092, %v1479, %v1736
      %v2088 = vsel %vm1092, %v1480, %v1738
      %v2090 = vsel %vm1092, %v1481, %v1740
      %v2092 = vsel %vm1092, %v1482, %v1742
      %v2094 = vsel %vm1092, %v1483, %v1744
      %v2096 = vsel %vm1092, %v1484, %v1746
      %v2098 = vsel %vm1092, %v1485, %v1748
      %v2100 = vsel %vm1092, %v1486, %v1750
      %v2102 = vsel %vm1092, %v1487, %v1752
      %v2104 = vsel %vm1092, %v1488, %v1754
      %v2106 = vsel %vm1092, %v1489, %v1756
      %v2108 = vsel %vm1092, %v1490, %v1758
      %v2110 = vsel %vm1092, %v1491, %v1760
      %v2112 = vsel %vm1092, %v1492, %v1762
      %v2114 = vsel %vm1092, %v1493, %v1764
      %v2116 = vsel %vm1092, %v1494, %v1766
      %v2118 = vsel %vm1125, %v2086, %v1816
      %v2120 = vsel %vm1125, %v2088, %v1818
      %v2122 = vsel %vm1125, %v2090, %v1820
      %v2124 = vsel %vm1125, %v2092, %v1822
      %v2126 = vsel %vm1125, %v2094, %v1824
      %v2128 = vsel %vm1125, %v2096, %v1826
      %v2130 = vsel %vm1125, %v2098, %v1828
      %v2132 = vsel %vm1125, %v2100, %v1830
      %v2134 = vsel %vm1125, %v2102, %v1832
      %v2136 = vsel %vm1125, %v2104, %v1834
      %v2138 = vsel %vm1125, %v2106, %v1836
      %v2140 = vsel %vm1125, %v2108, %v1838
      %v2142 = vsel %vm1125, %v2110, %v1840
      %v2144 = vsel %vm1125, %v2112, %v1842
      %v2146 = vsel %vm1125, %v2114, %v1844
      %v2148 = vsel %vm1125, %v2116, %v1846
      %v2150 = vsel %vm1158, %v2118, %v1853
      %v2152 = vsel %vm1158, %v2120, %v1855
      %v2154 = vsel %vm1158, %v2122, %v1857
      %v2156 = vsel %vm1158, %v2124, %v1859
      %v2158 = vsel %vm1158, %v2126, %v1861
      %v2160 = vsel %vm1158, %v2128, %v1863
      %v2162 = vsel %vm1158, %v2130, %v1865
      %v2164 = vsel %vm1158, %v2132, %v1867
      %v2166 = vsel %vm1158, %v2134, %v1869
      %v2168 = vsel %vm1158, %v2136, %v1871
      %v2170 = vsel %vm1158, %v2138, %v1873
      %v2172 = vsel %vm1158, %v2140, %v1875
      %v2174 = vsel %vm1158, %v2142, %v1877
      %v2176 = vsel %vm1158, %v2144, %v1879
      %v2178 = vsel %vm1158, %v2146, %v1881
      %v2180 = vsel %vm1158, %v2148, %v1883
      %v2182 = vsel %vm1191, %v2150, %v1900
      %v2184 = vsel %vm1191, %v2152, %v1902
      %v2186 = vsel %vm1191, %v2154, %v1904
      %v2188 = vsel %vm1191, %v2156, %v1906
      %v2190 = vsel %vm1191, %v2158, %v1908
      %v2192 = vsel %vm1191, %v2160, %v1910
      %v2194 = vsel %vm1191, %v2162, %v1912
      %v2196 = vsel %vm1191, %v2164, %v1914
      %v2198 = vsel %vm1191, %v2166, %v1916
      %v2200 = vsel %vm1191, %v2168, %v1918
      %v2202 = vsel %vm1191, %v2170, %v1920
      %v2204 = vsel %vm1191, %v2172, %v1922
      %v2206 = vsel %vm1191, %v2174, %v1924
      %v2208 = vsel %vm1191, %v2176, %v1926
      %v2210 = vsel %vm1191, %v2178, %v1928
      %v2212 = vsel %vm1191, %v2180, %v1930
      %v2214 = vsel %vm1224, %v2182, %v1935
      %v2216 = vsel %vm1224, %v2184, %v1937
      %v2218 = vsel %vm1224, %v2186, %v1939
      %v2220 = vsel %vm1224, %v2188, %v1941
      %v2222 = vsel %vm1224, %v2190, %v1943
      %v2224 = vsel %vm1224, %v2192, %v1945
      %v2226 = vsel %vm1224, %v2194, %v1947
      %v2228 = vsel %vm1224, %v2196, %v1949
      %v2230 = vsel %vm1224, %v2198, %v1951
      %v2232 = vsel %vm1224, %v2200, %v1953
      %v2234 = vsel %vm1224, %v2202, %v1955
      %v2236 = vsel %vm1224, %v2204, %v1957
      %v2238 = vsel %vm1224, %v2206, %v1959
      %v2240 = vsel %vm1224, %v2208, %v1961
      %v2242 = vsel %vm1224, %v2210, %v1963
      %v2244 = vsel %vm1224, %v2212, %v1965
      %v2246 = vsel %vm1257, %v2214, %v1972
      %v2248 = vsel %vm1257, %v2216, %v1974
      %v2250 = vsel %vm1257, %v2218, %v1976
      %v2252 = vsel %vm1257, %v2220, %v1978
      %v2254 = vsel %vm1257, %v2222, %v1980
      %v2256 = vsel %vm1257, %v2224, %v1982
      %v2258 = vsel %vm1257, %v2226, %v1984
      %v2260 = vsel %vm1257, %v2228, %v1986
      %v2262 = vsel %vm1257, %v2230, %v1988
      %v2264 = vsel %vm1257, %v2232, %v1990
      %v2266 = vsel %vm1257, %v2234, %v1992
      %v2268 = vsel %vm1257, %v2236, %v1994
      %v2270 = vsel %vm1257, %v2238, %v1996
      %v2272 = vsel %vm1257, %v2240, %v1998
      %v2274 = vsel %vm1257, %v2242, %v2000
      %v2276 = vsel %vm1257, %v2244, %v2002
      %v2278 = vsel %vm1290, %v2246, %v2019
      %v2280 = vsel %vm1290, %v2248, %v2021
      %v2282 = vsel %vm1290, %v2250, %v2023
      %v2284 = vsel %vm1290, %v2252, %v2025
      %v2286 = vsel %vm1290, %v2254, %v2027
      %v2288 = vsel %vm1290, %v2256, %v2029
      %v2290 = vsel %vm1290, %v2258, %v2031
      %v2292 = vsel %vm1290, %v2260, %v2033
      %v2294 = vsel %vm1290, %v2262, %v2035
      %v2296 = vsel %vm1290, %v2264, %v2037
      %v2298 = vsel %vm1290, %v2266, %v2039
      %v2300 = vsel %vm1290, %v2268, %v2041
      %v2302 = vsel %vm1290, %v2270, %v2043
      %v2304 = vsel %vm1290, %v2272, %v2045
      %v2306 = vsel %vm1290, %v2274, %v2047
      %v2308 = vsel %vm1290, %v2276, %v2049
      %v2310 = vsel %vm1323, %v2278, %v2054
      %v2312 = vsel %vm1323, %v2280, %v2056
      %v2314 = vsel %vm1323, %v2282, %v2058
      %v2316 = vsel %vm1323, %v2284, %v2060
      %v2318 = vsel %vm1323, %v2286, %v2062
      %v2320 = vsel %vm1323, %v2288, %v2064
      %v2322 = vsel %vm1323, %v2290, %v2066
      %v2324 = vsel %vm1323, %v2292, %v2068
      %v2326 = vsel %vm1323, %v2294, %v2070
      %v2328 = vsel %vm1323, %v2296, %v2072
      %v2330 = vsel %vm1323, %v2298, %v2074
      %v2332 = vsel %vm1323, %v2300, %v2076
      %v2334 = vsel %vm1323, %v2302, %v2078
      %v2336 = vsel %vm1323, %v2304, %v2080
      %v2338 = vsel %vm1323, %v2306, %v2082
      %v2340 = vsel %vm1323, %v2308, %v2084
      %s2341 = scalar_lea.vmem %s3, 20
      %v2342 = vld [vmem:[%s2341] sm:$0xf]
      %v2343 = vld [vmem:[%s2341 + $0x4] sm:$0xf]
      %v2344 = vld [vmem:[%s2341 + $0x8] sm:$0xf]
      %v2345 = vld [vmem:[%s2341 + $0xc] sm:$0xf]
      %v2346 = vld [vmem:[%s2341 + $0x10] sm:$0x3]
      %v2352 = vunpack.c.l.b16 %v2342
      %v2353 = vunpack.c.l.b16 %v2343
      %v2354 = vunpack.c.l.b16 %v2344
      %v2355 = vunpack.c.l.b16 %v2345
      %v2356 = vunpack.c.l.b16 %v2346
      %v2357 = vpack.c.b16 %v2353, %v2352
      %v2358 = vpack.c.b16 %v2355, %v2354
      %v2359 = vpack.c.b16 %v2356, %v2356
      %vm2362 = vcmask 293888
      %v2363 = vsel %vm2362, %v2310, 0
      %v2365 = vsel %vm2362, %v2312, 0
      %v2367 = vsel %vm2362, %v2314, 0
      %v2369 = vsel %vm2362, %v2316, 0
      %v2371 = vsel %vm2362, %v2318, 0
      %v2373 = vsel %vm2362, %v2320, 0
      %v2375 = vsel %vm2362, %v2322, 0
      %v2377 = vsel %vm2362, %v2324, 0
      %v2379 = vsel %vm2362, %v2326, 0
      %v2381 = vsel %vm2362, %v2328, 0
      %v2383 = vsel %vm2362, %v2330, 0
      %v2385 = vsel %vm2362, %v2332, 0
      %v2387 = vsel %vm2362, %v2334, 0
      %v2389 = vsel %vm2362, %v2336, 0
      %v2391 = vsel %vm2362, %v2338, 0
      %v2393 = vsel %vm2362, %v2340, 0
      %vm2395 = vcmask 1041408
      %v2397 = vsel %vm2395, %v2359, 0
      %2399 = vmatpush.bf16.msra.mxu0 0
      %2400 = vmatpush.bf16.msra.mxu0 0
      %2401 = vmatpush.bf16.msra.mxu0 0
      %2402 = vmatpush.bf16.msra.mxu0 0
      %2403 = vmatpush.bf16.msra.mxu0 0
      %2404 = vmatpush.bf16.msra.mxu0 %v2397
      %2405 = vmatpush.bf16.msra.mxu0 %v2358
      %2406 = vmatpush.bf16.msra.mxu0 %v2357
      %2407 = vmatmul.bf16.gmra.mxu0 %v2363
      %v2408 = vpop.f32.mrf.mxu0
      %v2409 = vadd.f32 0.0, %v2408
      %v2410 = vpop.f32.mrf.mxu0
      %v2411 = vadd.f32 0.0, %v2410
      %2412 = vmatmul.bf16.gmra.mxu0 %v2365
      %v2413 = vpop.f32.mrf.mxu0
      %v2414 = vadd.f32 0.0, %v2413
      %v2415 = vpop.f32.mrf.mxu0
      %v2416 = vadd.f32 0.0, %v2415
      %2417 = vmatmul.bf16.gmra.mxu0 %v2367
      %v2418 = vpop.f32.mrf.mxu0
      %v2419 = vadd.f32 0.0, %v2418
      %v2420 = vpop.f32.mrf.mxu0
      %v2421 = vadd.f32 0.0, %v2420
      %2422 = vmatmul.bf16.gmra.mxu0 %v2369
      %v2423 = vpop.f32.mrf.mxu0
      %v2424 = vadd.f32 0.0, %v2423
      %v2425 = vpop.f32.mrf.mxu0
      %v2426 = vadd.f32 0.0, %v2425
      %2427 = vmatmul.bf16.gmra.mxu0 %v2371
      %v2428 = vpop.f32.mrf.mxu0
      %v2429 = vadd.f32 0.0, %v2428
      %v2430 = vpop.f32.mrf.mxu0
      %v2431 = vadd.f32 0.0, %v2430
      %2432 = vmatmul.bf16.gmra.mxu0 %v2373
      %v2433 = vpop.f32.mrf.mxu0
      %v2434 = vadd.f32 0.0, %v2433
      %v2435 = vpop.f32.mrf.mxu0
      %v2436 = vadd.f32 0.0, %v2435
      %2437 = vmatmul.bf16.gmra.mxu0 %v2375
      %v2438 = vpop.f32.mrf.mxu0
      %v2439 = vadd.f32 0.0, %v2438
      %v2440 = vpop.f32.mrf.mxu0
      %v2441 = vadd.f32 0.0, %v2440
      %2442 = vmatmul.bf16.gmra.mxu0 %v2377
      %v2443 = vpop.f32.mrf.mxu0
      %v2444 = vadd.f32 0.0, %v2443
      %v2445 = vpop.f32.mrf.mxu0
      %v2446 = vadd.f32 0.0, %v2445
      %2447 = vmatmul.bf16.gmra.mxu0 %v2379
      %v2448 = vpop.f32.mrf.mxu0
      %v2449 = vadd.f32 0.0, %v2448
      %v2450 = vpop.f32.mrf.mxu0
      %v2451 = vadd.f32 0.0, %v2450
      %2452 = vmatmul.bf16.gmra.mxu0 %v2381
      %v2453 = vpop.f32.mrf.mxu0
      %v2454 = vadd.f32 0.0, %v2453
      %v2455 = vpop.f32.mrf.mxu0
      %v2456 = vadd.f32 0.0, %v2455
      %2457 = vmatmul.bf16.gmra.mxu0 %v2383
      %v2458 = vpop.f32.mrf.mxu0
      %v2459 = vadd.f32 0.0, %v2458
      %v2460 = vpop.f32.mrf.mxu0
      %v2461 = vadd.f32 0.0, %v2460
      %2462 = vmatmul.bf16.gmra.mxu0 %v2385
      %v2463 = vpop.f32.mrf.mxu0
      %v2464 = vadd.f32 0.0, %v2463
      %v2465 = vpop.f32.mrf.mxu0
      %v2466 = vadd.f32 0.0, %v2465
      %2467 = vmatmul.bf16.gmra.mxu0 %v2387
      %v2468 = vpop.f32.mrf.mxu0
      %v2469 = vadd.f32 0.0, %v2468
      %v2470 = vpop.f32.mrf.mxu0
      %v2471 = vadd.f32 0.0, %v2470
      %2472 = vmatmul.bf16.gmra.mxu0 %v2389
      %v2473 = vpop.f32.mrf.mxu0
      %v2474 = vadd.f32 0.0, %v2473
      %v2475 = vpop.f32.mrf.mxu0
      %v2476 = vadd.f32 0.0, %v2475
      %2477 = vmatmul.bf16.gmra.mxu0 %v2391
      %v2478 = vpop.f32.mrf.mxu0
      %v2479 = vadd.f32 0.0, %v2478
      %v2480 = vpop.f32.mrf.mxu0
      %v2481 = vadd.f32 0.0, %v2480
      %2482 = vmatmul.bf16.gmra.mxu0 %v2393
      %v2483 = vpop.f32.mrf.mxu0
      %v2484 = vadd.f32 0.0, %v2483
      %v2485 = vpop.f32.mrf.mxu0
      %v2486 = vadd.f32 0.0, %v2485
      %2487 = vdwg.mxu0
      %v2493 = vunpack.c.l.b16 %v1356
      %v2494 = vunpack.c.l.b16 %v1357
      %v2495 = vunpack.c.l.b16 %v1358
      %v2496 = vunpack.c.l.b16 %v1359
      %v2497 = vunpack.c.l.b16 %v1360
      %v2498 = vpack.c.b16 %v2494, %v2493
      %v2499 = vpack.c.b16 %v2496, %v2495
      %v2500 = vpack.c.b16 %v2497, %v2497
      %v2503 = vsel %vm2362, %v1325, 0
      %v2505 = vsel %vm2362, %v1327, 0
      %v2507 = vsel %vm2362, %v1329, 0
      %v2509 = vsel %vm2362, %v1331, 0
      %v2511 = vsel %vm2362, %v1333, 0
      %v2513 = vsel %vm2362, %v1335, 0
      %v2515 = vsel %vm2362, %v1337, 0
      %v2517 = vsel %vm2362, %v1339, 0
      %v2519 = vsel %vm2362, %v1341, 0
      %v2521 = vsel %vm2362, %v1343, 0
      %v2523 = vsel %vm2362, %v1345, 0
      %v2525 = vsel %vm2362, %v1347, 0
      %v2527 = vsel %vm2362, %v1349, 0
      %v2529 = vsel %vm2362, %v1351, 0
      %v2531 = vsel %vm2362, %v1353, 0
      %v2533 = vsel %vm2362, %v1355, 0
      %v2536 = vsel %vm2395, %v2500, 0
      %2538 = vmatpush.bf16.msra.mxu0 0
      %2539 = vmatpush.bf16.msra.mxu0 0
      %2540 = vmatpush.bf16.msra.mxu0 0
      %2541 = vmatpush.bf16.msra.mxu0 0
      %2542 = vmatpush.bf16.msra.mxu0 0
      %2543 = vmatpush.bf16.msra.mxu0 %v2536
      %2544 = vmatpush.bf16.msra.mxu0 %v2499
      %2545 = vmatpush.bf16.msra.mxu0 %v2498
      %2546 = vmatmul.bf16.gmra.mxu0 %v2503
      %v2547 = vpop.f32.mrf.mxu0
      %v2548 = vadd.f32 %v2409, %v2547
      %v2549 = vpop.f32.mrf.mxu0
      %v2550 = vadd.f32 %v2411, %v2549
      %2551 = vmatmul.bf16.gmra.mxu0 %v2505
      %v2552 = vpop.f32.mrf.mxu0
      %v2553 = vadd.f32 %v2414, %v2552
      %v2554 = vpop.f32.mrf.mxu0
      %v2555 = vadd.f32 %v2416, %v2554
      %2556 = vmatmul.bf16.gmra.mxu0 %v2507
      %v2557 = vpop.f32.mrf.mxu0
      %v2558 = vadd.f32 %v2419, %v2557
      %v2559 = vpop.f32.mrf.mxu0
      %v2560 = vadd.f32 %v2421, %v2559
      %2561 = vmatmul.bf16.gmra.mxu0 %v2509
      %v2562 = vpop.f32.mrf.mxu0
      %v2563 = vadd.f32 %v2424, %v2562
      %v2564 = vpop.f32.mrf.mxu0
      %v2565 = vadd.f32 %v2426, %v2564
      %2566 = vmatmul.bf16.gmra.mxu0 %v2511
      %v2567 = vpop.f32.mrf.mxu0
      %v2568 = vadd.f32 %v2429, %v2567
      %v2569 = vpop.f32.mrf.mxu0
      %v2570 = vadd.f32 %v2431, %v2569
      %2571 = vmatmul.bf16.gmra.mxu0 %v2513
      %v2572 = vpop.f32.mrf.mxu0
      %v2573 = vadd.f32 %v2434, %v2572
      %v2574 = vpop.f32.mrf.mxu0
      %v2575 = vadd.f32 %v2436, %v2574
      %2576 = vmatmul.bf16.gmra.mxu0 %v2515
      %v2577 = vpop.f32.mrf.mxu0
      %v2578 = vadd.f32 %v2439, %v2577
      %v2579 = vpop.f32.mrf.mxu0
      %v2580 = vadd.f32 %v2441, %v2579
      %2581 = vmatmul.bf16.gmra.mxu0 %v2517
      %v2582 = vpop.f32.mrf.mxu0
      %v2583 = vadd.f32 %v2444, %v2582
      %v2584 = vpop.f32.mrf.mxu0
      %v2585 = vadd.f32 %v2446, %v2584
      %2586 = vmatmul.bf16.gmra.mxu0 %v2519
      %v2587 = vpop.f32.mrf.mxu0
      %v2588 = vadd.f32 %v2449, %v2587
      %v2589 = vpop.f32.mrf.mxu0
      %v2590 = vadd.f32 %v2451, %v2589
      %2591 = vmatmul.bf16.gmra.mxu0 %v2521
      %v2592 = vpop.f32.mrf.mxu0
      %v2593 = vadd.f32 %v2454, %v2592
      %v2594 = vpop.f32.mrf.mxu0
      %v2595 = vadd.f32 %v2456, %v2594
      %2596 = vmatmul.bf16.gmra.mxu0 %v2523
      %v2597 = vpop.f32.mrf.mxu0
      %v2598 = vadd.f32 %v2459, %v2597
      %v2599 = vpop.f32.mrf.mxu0
      %v2600 = vadd.f32 %v2461, %v2599
      %2601 = vmatmul.bf16.gmra.mxu0 %v2525
      %v2602 = vpop.f32.mrf.mxu0
      %v2603 = vadd.f32 %v2464, %v2602
      %v2604 = vpop.f32.mrf.mxu0
      %v2605 = vadd.f32 %v2466, %v2604
      %2606 = vmatmul.bf16.gmra.mxu0 %v2527
      %v2607 = vpop.f32.mrf.mxu0
      %v2608 = vadd.f32 %v2469, %v2607
      %v2609 = vpop.f32.mrf.mxu0
      %v2610 = vadd.f32 %v2471, %v2609
      %2611 = vmatmul.bf16.gmra.mxu0 %v2529
      %v2612 = vpop.f32.mrf.mxu0
      %v2613 = vadd.f32 %v2474, %v2612
      %v2614 = vpop.f32.mrf.mxu0
      %v2615 = vadd.f32 %v2476, %v2614
      %2616 = vmatmul.bf16.gmra.mxu0 %v2531
      %v2617 = vpop.f32.mrf.mxu0
      %v2618 = vadd.f32 %v2479, %v2617
      %v2619 = vpop.f32.mrf.mxu0
      %v2620 = vadd.f32 %v2481, %v2619
      %2621 = vmatmul.bf16.gmra.mxu0 %v2533
      %v2622 = vpop.f32.mrf.mxu0
      %v2623 = vadd.f32 %v2484, %v2622
      %v2624 = vpop.f32.mrf.mxu0
      %v2625 = vadd.f32 %v2486, %v2624
      %2626 = vdwg.mxu0
      %v2627 = vld [vmem:[%s345] sm:$0xf]
      %v2628 = vld [vmem:[%s345 + $0x4] sm:$0xf]
      %v2629 = vld [vmem:[%s345 + $0x8] sm:$0x1]
      %v2630 = vld [vmem:[%s345 + $0xc] sm:$0xf]
      %v2631 = vld [vmem:[%s345 + $0x10] sm:$0xf]
      %v2632 = vld [vmem:[%s345 + $0x14] sm:$0x1]
      %v2633 = vld [vmem:[%s345 + $0x18] sm:$0xf]
      %v2634 = vld [vmem:[%s345 + $0x1c] sm:$0xf]
      %v2635 = vld [vmem:[%s345 + $0x20] sm:$0x1]
      %v2636 = vld [vmem:[%s345 + $0x24] sm:$0xf]
      %v2637 = vld [vmem:[%s345 + $0x28] sm:$0xf]
      %v2638 = vld [vmem:[%s345 + $0x2c] sm:$0x1]
      %v2639 = vld [vmem:[%s345 + $0x30] sm:$0xf]
      %v2640 = vld [vmem:[%s345 + $0x34] sm:$0xf]
      %v2641 = vld [vmem:[%s345 + $0x38] sm:$0x1]
      %v2642 = vld [vmem:[%s345 + $0x3c] sm:$0xf]
      %v2643 = vld [vmem:[%s345 + $0x40] sm:$0xf]
      %v2644 = vld [vmem:[%s345 + $0x44] sm:$0x1]
      %v2645 = vld [vmem:[%s345 + $0x48] sm:$0xf]
      %v2646 = vld [vmem:[%s345 + $0x4c] sm:$0xf]
      %v2647 = vld [vmem:[%s345 + $0x50] sm:$0x1]
      %v2648 = vld [vmem:[%s345 + $0x54] sm:$0xf]
      %v2649 = vld [vmem:[%s345 + $0x58] sm:$0xf]
      %v2650 = vld [vmem:[%s345 + $0x5c] sm:$0x1]
      %v2651 = vld [vmem:[%s345 + $0x60] sm:$0xf]
      %v2652 = vld [vmem:[%s345 + $0x64] sm:$0xf]
      %v2653 = vld [vmem:[%s345 + $0x68] sm:$0x1]
      %v2654 = vld [vmem:[%s345 + $0x6c] sm:$0xf]
      %v2655 = vld [vmem:[%s345 + $0x70] sm:$0xf]
      %v2656 = vld [vmem:[%s345 + $0x74] sm:$0x1]
      %v2657 = vld [vmem:[%s345 + $0x78] sm:$0xf]
      %v2658 = vld [vmem:[%s345 + $0x7c] sm:$0xf]
      %v2659 = vld [vmem:[%s345 + $0x80] sm:$0x1]
      %v2660 = vld [vmem:[%s345 + $0x84] sm:$0xf]
      %v2661 = vld [vmem:[%s345 + $0x88] sm:$0xf]
      %v2662 = vld [vmem:[%s345 + $0x8c] sm:$0x1]
      %v2663 = vld [vmem:[%s345 + $0x90] sm:$0xf]
      %v2664 = vld [vmem:[%s345 + $0x94] sm:$0xf]
      %v2665 = vld [vmem:[%s345 + $0x98] sm:$0x1]
      %v2666 = vld [vmem:[%s345 + $0x9c] sm:$0xf]
      %v2667 = vld [vmem:[%s345 + $0xa0] sm:$0xf]
      %v2668 = vld [vmem:[%s345 + $0xa4] sm:$0x1]
      %v2669 = vld [vmem:[%s345 + $0xa8] sm:$0xf]
      %v2670 = vld [vmem:[%s345 + $0xac] sm:$0xf]
      %v2671 = vld [vmem:[%s345 + $0xb0] sm:$0x1]
      %v2672 = vld [vmem:[%s345 + $0xb4] sm:$0xf]
      %v2673 = vld [vmem:[%s345 + $0xb8] sm:$0xf]
      %v2674 = vld [vmem:[%s345 + $0xbc] sm:$0x1]
      %v2675 = vld [vmem:[%s345 + $0xc0] sm:$0xf]
      %v2676 = vld [vmem:[%s345 + $0xc4] sm:$0xf]
      %v2677 = vld [vmem:[%s345 + $0xc8] sm:$0x1]
      %v2678 = vld [vmem:[%s345 + $0xcc] sm:$0xf]
      %v2679 = vld [vmem:[%s345 + $0xd0] sm:$0xf]
      %v2680 = vld [vmem:[%s345 + $0xd4] sm:$0x1]
      %v2713 = vunpack.c.l.b16 %v2627
      %v2714 = vunpack.c.l.b16 %v2628
      %v2715 = vunpack.c.l.b16 %v2630
      %v2716 = vunpack.c.l.b16 %v2631
      %v2717 = vunpack.c.l.b16 %v2633
      %v2718 = vunpack.c.l.b16 %v2634
      %v2719 = vunpack.c.l.b16 %v2636
      %v2720 = vunpack.c.l.b16 %v2637
      %v2721 = vunpack.c.l.b16 %v2639
      %v2722 = vunpack.c.l.b16 %v2640
      %v2723 = vunpack.c.l.b16 %v2642
      %v2724 = vunpack.c.l.b16 %v2643
      %v2725 = vunpack.c.l.b16 %v2645
      %v2726 = vunpack.c.l.b16 %v2646
      %v2727 = vunpack.c.l.b16 %v2648
      %v2728 = vunpack.c.l.b16 %v2649
      %v2729 = vunpack.c.l.b16 %v2651
      %v2730 = vunpack.c.l.b16 %v2652
      %v2731 = vunpack.c.l.b16 %v2654
      %v2732 = vunpack.c.l.b16 %v2655
      %v2733 = vunpack.c.l.b16 %v2657
      %v2734 = vunpack.c.l.b16 %v2658
      %v2735 = vunpack.c.l.b16 %v2660
      %v2736 = vunpack.c.l.b16 %v2661
      %v2737 = vunpack.c.l.b16 %v2663
      %v2738 = vunpack.c.l.b16 %v2664
      %v2739 = vunpack.c.l.b16 %v2666
      %v2740 = vunpack.c.l.b16 %v2667
      %v2741 = vunpack.c.l.b16 %v2669
      %v2742 = vunpack.c.l.b16 %v2670
      %v2743 = vunpack.c.l.b16 %v2672
      %v2744 = vunpack.c.l.b16 %v2673
      %v2745 = vpack.c.b16 %v2714, %v2713
      %v2746 = vpack.c.b16 %v2716, %v2715
      %v2747 = vpack.c.b16 %v2718, %v2717
      %v2748 = vpack.c.b16 %v2720, %v2719
      %v2749 = vpack.c.b16 %v2722, %v2721
      %v2750 = vpack.c.b16 %v2724, %v2723
      %v2751 = vpack.c.b16 %v2726, %v2725
      %v2752 = vpack.c.b16 %v2728, %v2727
      %v2753 = vpack.c.b16 %v2730, %v2729
      %v2754 = vpack.c.b16 %v2732, %v2731
      %v2755 = vpack.c.b16 %v2734, %v2733
      %v2756 = vpack.c.b16 %v2736, %v2735
      %v2757 = vpack.c.b16 %v2738, %v2737
      %v2758 = vpack.c.b16 %v2740, %v2739
      %v2759 = vpack.c.b16 %v2742, %v2741
      %v2760 = vpack.c.b16 %v2744, %v2743
      %v2777 = vunpack.c.l.b16 %v2629
      %v2778 = vunpack.c.l.b16 %v2632
      %v2779 = vunpack.c.l.b16 %v2635
      %v2780 = vunpack.c.l.b16 %v2638
      %v2781 = vunpack.c.l.b16 %v2641
      %v2782 = vunpack.c.l.b16 %v2644
      %v2783 = vunpack.c.l.b16 %v2647
      %v2784 = vunpack.c.l.b16 %v2650
      %v2785 = vunpack.c.l.b16 %v2653
      %v2786 = vunpack.c.l.b16 %v2656
      %v2787 = vunpack.c.l.b16 %v2659
      %v2788 = vunpack.c.l.b16 %v2662
      %v2789 = vunpack.c.l.b16 %v2665
      %v2790 = vunpack.c.l.b16 %v2668
      %v2791 = vunpack.c.l.b16 %v2671
      %v2792 = vunpack.c.l.b16 %v2674
      %v2793 = vpack.c.b16 %v2777, %v2777
      %v2794 = vpack.c.b16 %v2778, %v2778
      %v2795 = vpack.c.b16 %v2779, %v2779
      %v2796 = vpack.c.b16 %v2780, %v2780
      %v2797 = vpack.c.b16 %v2781, %v2781
      %v2798 = vpack.c.b16 %v2782, %v2782
      %v2799 = vpack.c.b16 %v2783, %v2783
      %v2800 = vpack.c.b16 %v2784, %v2784
      %v2801 = vpack.c.b16 %v2785, %v2785
      %v2802 = vpack.c.b16 %v2786, %v2786
      %v2803 = vpack.c.b16 %v2787, %v2787
      %v2804 = vpack.c.b16 %v2788, %v2788
      %v2805 = vpack.c.b16 %v2789, %v2789
      %v2806 = vpack.c.b16 %v2790, %v2790
      %v2807 = vpack.c.b16 %v2791, %v2791
      %v2808 = vpack.c.b16 %v2792, %v2792
      %v2810 = vshrl.u32 %v2745, 16
      %v2812 = vshll.u32 %v2745, 16
      %v2814 = vrot.slane %v2812, 1
      %v2815 = vor.u32 %v2810, %v2814
      %v2817 = vshll.u32 %v2793, 16
      %v2819 = vrot.slane %v2817, 1
      %v2820 = vsel %vm548, %v2815, %v2819
      %v2822 = vshrl.u32 %v2746, 16
      %v2824 = vshll.u32 %v2746, 16
      %v2826 = vrot.slane %v2824, 1
      %v2827 = vor.u32 %v2822, %v2826
      %v2829 = vshll.u32 %v2794, 16
      %v2831 = vrot.slane %v2829, 1
      %v2832 = vsel %vm548, %v2827, %v2831
      %v2834 = vshrl.u32 %v2747, 16
      %v2836 = vshll.u32 %v2747, 16
      %v2838 = vrot.slane %v2836, 1
      %v2839 = vor.u32 %v2834, %v2838
      %v2841 = vshll.u32 %v2795, 16
      %v2843 = vrot.slane %v2841, 1
      %v2844 = vsel %vm548, %v2839, %v2843
      %v2846 = vshrl.u32 %v2748, 16
      %v2848 = vshll.u32 %v2748, 16
      %v2850 = vrot.slane %v2848, 1
      %v2851 = vor.u32 %v2846, %v2850
      %v2853 = vshll.u32 %v2796, 16
      %v2855 = vrot.slane %v2853, 1
      %v2856 = vsel %vm548, %v2851, %v2855
      %v2858 = vshrl.u32 %v2749, 16
      %v2860 = vshll.u32 %v2749, 16
      %v2862 = vrot.slane %v2860, 1
      %v2863 = vor.u32 %v2858, %v2862
      %v2865 = vshll.u32 %v2797, 16
      %v2867 = vrot.slane %v2865, 1
      %v2868 = vsel %vm548, %v2863, %v2867
      %v2870 = vshrl.u32 %v2750, 16
      %v2872 = vshll.u32 %v2750, 16
      %v2874 = vrot.slane %v2872, 1
      %v2875 = vor.u32 %v2870, %v2874
      %v2877 = vshll.u32 %v2798, 16
      %v2879 = vrot.slane %v2877, 1
      %v2880 = vsel %vm548, %v2875, %v2879
      %v2882 = vshrl.u32 %v2751, 16
      %v2884 = vshll.u32 %v2751, 16
      %v2886 = vrot.slane %v2884, 1
      %v2887 = vor.u32 %v2882, %v2886
      %v2889 = vshll.u32 %v2799, 16
      %v2891 = vrot.slane %v2889, 1
      %v2892 = vsel %vm548, %v2887, %v2891
      %v2894 = vshrl.u32 %v2752, 16
      %v2896 = vshll.u32 %v2752, 16
      %v2898 = vrot.slane %v2896, 1
      %v2899 = vor.u32 %v2894, %v2898
      %v2901 = vshll.u32 %v2800, 16
      %v2903 = vrot.slane %v2901, 1
      %v2904 = vsel %vm548, %v2899, %v2903
      %v2906 = vshrl.u32 %v2753, 16
      %v2908 = vshll.u32 %v2753, 16
      %v2910 = vrot.slane %v2908, 1
      %v2911 = vor.u32 %v2906, %v2910
      %v2913 = vshll.u32 %v2801, 16
      %v2915 = vrot.slane %v2913, 1
      %v2916 = vsel %vm548, %v2911, %v2915
      %v2918 = vshrl.u32 %v2754, 16
      %v2920 = vshll.u32 %v2754, 16
      %v2922 = vrot.slane %v2920, 1
      %v2923 = vor.u32 %v2918, %v2922
      %v2925 = vshll.u32 %v2802, 16
      %v2927 = vrot.slane %v2925, 1
      %v2928 = vsel %vm548, %v2923, %v2927
      %v2930 = vshrl.u32 %v2755, 16
      %v2932 = vshll.u32 %v2755, 16
      %v2934 = vrot.slane %v2932, 1
      %v2935 = vor.u32 %v2930, %v2934
      %v2937 = vshll.u32 %v2803, 16
      %v2939 = vrot.slane %v2937, 1
      %v2940 = vsel %vm548, %v2935, %v2939
      %v2942 = vshrl.u32 %v2756, 16
      %v2944 = vshll.u32 %v2756, 16
      %v2946 = vrot.slane %v2944, 1
      %v2947 = vor.u32 %v2942, %v2946
      %v2949 = vshll.u32 %v2804, 16
      %v2951 = vrot.slane %v2949, 1
      %v2952 = vsel %vm548, %v2947, %v2951
      %v2954 = vshrl.u32 %v2757, 16
      %v2956 = vshll.u32 %v2757, 16
      %v2958 = vrot.slane %v2956, 1
      %v2959 = vor.u32 %v2954, %v2958
      %v2961 = vshll.u32 %v2805, 16
      %v2963 = vrot.slane %v2961, 1
      %v2964 = vsel %vm548, %v2959, %v2963
      %v2966 = vshrl.u32 %v2758, 16
      %v2968 = vshll.u32 %v2758, 16
      %v2970 = vrot.slane %v2968, 1
      %v2971 = vor.u32 %v2966, %v2970
      %v2973 = vshll.u32 %v2806, 16
      %v2975 = vrot.slane %v2973, 1
      %v2976 = vsel %vm548, %v2971, %v2975
      %v2978 = vshrl.u32 %v2759, 16
      %v2980 = vshll.u32 %v2759, 16
      %v2982 = vrot.slane %v2980, 1
      %v2983 = vor.u32 %v2978, %v2982
      %v2985 = vshll.u32 %v2807, 16
      %v2987 = vrot.slane %v2985, 1
      %v2988 = vsel %vm548, %v2983, %v2987
      %v2990 = vshrl.u32 %v2760, 16
      %v2992 = vshll.u32 %v2760, 16
      %v2994 = vrot.slane %v2992, 1
      %v2995 = vor.u32 %v2990, %v2994
      %v2997 = vshll.u32 %v2808, 16
      %v2999 = vrot.slane %v2997, 1
      %v3000 = vsel %vm548, %v2995, %v2999
      %3001 = vrot.lane.b32.xlu0 %v2820, 4
      %v3002 = vpop.permute.xlu0 %3001
      %3003 = vrot.lane.b32.xlu0 %v2832, 4
      %v3004 = vpop.permute.xlu0 %3003
      %3005 = vrot.lane.b32.xlu0 %v2844, 4
      %v3006 = vpop.permute.xlu0 %3005
      %3007 = vrot.lane.b32.xlu0 %v2856, 4
      %v3008 = vpop.permute.xlu0 %3007
      %3009 = vrot.lane.b32.xlu0 %v2868, 4
      %v3010 = vpop.permute.xlu0 %3009
      %3011 = vrot.lane.b32.xlu0 %v2880, 4
      %v3012 = vpop.permute.xlu0 %3011
      %3013 = vrot.lane.b32.xlu0 %v2892, 4
      %v3014 = vpop.permute.xlu0 %3013
      %3015 = vrot.lane.b32.xlu0 %v2904, 4
      %v3016 = vpop.permute.xlu0 %3015
      %3017 = vrot.lane.b32.xlu0 %v2916, 4
      %v3018 = vpop.permute.xlu0 %3017
      %3019 = vrot.lane.b32.xlu0 %v2928, 4
      %v3020 = vpop.permute.xlu0 %3019
      %3021 = vrot.lane.b32.xlu0 %v2940, 4
      %v3022 = vpop.permute.xlu0 %3021
      %3023 = vrot.lane.b32.xlu0 %v2952, 4
      %v3024 = vpop.permute.xlu0 %3023
      %3025 = vrot.lane.b32.xlu0 %v2964, 4
      %v3026 = vpop.permute.xlu0 %3025
      %3027 = vrot.lane.b32.xlu0 %v2976, 4
      %v3028 = vpop.permute.xlu0 %3027
      %3029 = vrot.lane.b32.xlu0 %v2988, 4
      %v3030 = vpop.permute.xlu0 %3029
      %3031 = vrot.lane.b32.xlu0 %v3000, 4
      %v3032 = vpop.permute.xlu0 %3031
      %v3033 = vrot.slane %v2745, 1
      %v3034 = vrot.slane %v2793, 1
      %v3035 = vsel %vm773, %v3033, %v3034
      %v3036 = vrot.slane %v2746, 1
      %v3037 = vrot.slane %v2794, 1
      %v3038 = vsel %vm773, %v3036, %v3037
      %v3039 = vrot.slane %v2747, 1
      %v3040 = vrot.slane %v2795, 1
      %v3041 = vsel %vm773, %v3039, %v3040
      %v3042 = vrot.slane %v2748, 1
      %v3043 = vrot.slane %v2796, 1
      %v3044 = vsel %vm773, %v3042, %v3043
      %v3045 = vrot.slane %v2749, 1
      %v3046 = vrot.slane %v2797, 1
      %v3047 = vsel %vm773, %v3045, %v3046
      %v3048 = vrot.slane %v2750, 1
      %v3049 = vrot.slane %v2798, 1
      %v3050 = vsel %vm773, %v3048, %v3049
      %v3051 = vrot.slane %v2751, 1
      %v3052 = vrot.slane %v2799, 1
      %v3053 = vsel %vm773, %v3051, %v3052
      %v3054 = vrot.slane %v2752, 1
      %v3055 = vrot.slane %v2800, 1
      %v3056 = vsel %vm773, %v3054, %v3055
      %v3057 = vrot.slane %v2753, 1
      %v3058 = vrot.slane %v2801, 1
      %v3059 = vsel %vm773, %v3057, %v3058
      %v3060 = vrot.slane %v2754, 1
      %v3061 = vrot.slane %v2802, 1
      %v3062 = vsel %vm773, %v3060, %v3061
      %v3063 = vrot.slane %v2755, 1
      %v3064 = vrot.slane %v2803, 1
      %v3065 = vsel %vm773, %v3063, %v3064
      %v3066 = vrot.slane %v2756, 1
      %v3067 = vrot.slane %v2804, 1
      %v3068 = vsel %vm773, %v3066, %v3067
      %v3069 = vrot.slane %v2757, 1
      %v3070 = vrot.slane %v2805, 1
      %v3071 = vsel %vm773, %v3069, %v3070
      %v3072 = vrot.slane %v2758, 1
      %v3073 = vrot.slane %v2806, 1
      %v3074 = vsel %vm773, %v3072, %v3073
      %v3075 = vrot.slane %v2759, 1
      %v3076 = vrot.slane %v2807, 1
      %v3077 = vsel %vm773, %v3075, %v3076
      %v3078 = vrot.slane %v2760, 1
      %v3079 = vrot.slane %v2808, 1
      %v3080 = vsel %vm773, %v3078, %v3079
      %3081 = vrot.lane.b32.xlu0 %v3035, 8
      %v3082 = vpop.permute.xlu0 %3081
      %3083 = vrot.lane.b32.xlu0 %v3038, 8
      %v3084 = vpop.permute.xlu0 %3083
      %3085 = vrot.lane.b32.xlu0 %v3041, 8
      %v3086 = vpop.permute.xlu0 %3085
      %3087 = vrot.lane.b32.xlu0 %v3044, 8
      %v3088 = vpop.permute.xlu0 %3087
      %3089 = vrot.lane.b32.xlu0 %v3047, 8
      %v3090 = vpop.permute.xlu0 %3089
      %3091 = vrot.lane.b32.xlu0 %v3050, 8
      %v3092 = vpop.permute.xlu0 %3091
      %3093 = vrot.lane.b32.xlu0 %v3053, 8
      %v3094 = vpop.permute.xlu0 %3093
      %3095 = vrot.lane.b32.xlu0 %v3056, 8
      %v3096 = vpop.permute.xlu0 %3095
      %3097 = vrot.lane.b32.xlu0 %v3059, 8
      %v3098 = vpop.permute.xlu0 %3097
      %3099 = vrot.lane.b32.xlu0 %v3062, 8
      %v3100 = vpop.permute.xlu0 %3099
      %3101 = vrot.lane.b32.xlu0 %v3065, 8
      %v3102 = vpop.permute.xlu0 %3101
      %3103 = vrot.lane.b32.xlu0 %v3068, 8
      %v3104 = vpop.permute.xlu0 %3103
      %3105 = vrot.lane.b32.xlu0 %v3071, 8
      %v3106 = vpop.permute.xlu0 %3105
      %3107 = vrot.lane.b32.xlu0 %v3074, 8
      %v3108 = vpop.permute.xlu0 %3107
      %3109 = vrot.lane.b32.xlu0 %v3077, 8
      %v3110 = vpop.permute.xlu0 %3109
      %3111 = vrot.lane.b32.xlu0 %v3080, 8
      %v3112 = vpop.permute.xlu0 %3111
      %v3115 = vunpack.c.l.b16 %v2675
      %v3116 = vunpack.c.l.b16 %v2676
      %v3117 = vpack.c.b16 %v3116, %v3115
      %3118 = vrot.lane.b32.xlu0 %v2746, 12
      %v3119 = vpop.permute.xlu0 %3118
      %3120 = vrot.lane.b32.xlu0 %v2747, 12
      %v3121 = vpop.permute.xlu0 %3120
      %3122 = vrot.lane.b32.xlu0 %v2748, 12
      %v3123 = vpop.permute.xlu0 %3122
      %3124 = vrot.lane.b32.xlu0 %v2749, 12
      %v3125 = vpop.permute.xlu0 %3124
      %3126 = vrot.lane.b32.xlu0 %v2750, 12
      %v3127 = vpop.permute.xlu0 %3126
      %3128 = vrot.lane.b32.xlu0 %v2751, 12
      %v3129 = vpop.permute.xlu0 %3128
      %3130 = vrot.lane.b32.xlu0 %v2752, 12
      %v3131 = vpop.permute.xlu0 %3130
      %3132 = vrot.lane.b32.xlu0 %v2753, 12
      %v3133 = vpop.permute.xlu0 %3132
      %3134 = vrot.lane.b32.xlu0 %v2754, 12
      %v3135 = vpop.permute.xlu0 %3134
      %3136 = vrot.lane.b32.xlu0 %v2755, 12
      %v3137 = vpop.permute.xlu0 %3136
      %3138 = vrot.lane.b32.xlu0 %v2756, 12
      %v3139 = vpop.permute.xlu0 %3138
      %3140 = vrot.lane.b32.xlu0 %v2757, 12
      %v3141 = vpop.permute.xlu0 %3140
      %3142 = vrot.lane.b32.xlu0 %v2758, 12
      %v3143 = vpop.permute.xlu0 %3142
      %3144 = vrot.lane.b32.xlu0 %v2759, 12
      %v3145 = vpop.permute.xlu0 %3144
      %3146 = vrot.lane.b32.xlu0 %v2760, 12
      %v3147 = vpop.permute.xlu0 %3146
      %3148 = vrot.lane.b32.xlu0 %v3117, 12
      %v3149 = vpop.permute.xlu0 %3148
      %v3151 = vunpack.c.l.b16 %v2677
      %v3152 = vpack.c.b16 %v3151, %v3151
      %v3154 = vshrl.u32 %v3117, 16
      %v3156 = vshll.u32 %v3117, 16
      %v3158 = vrot.slane %v3156, 1
      %v3159 = vor.u32 %v3154, %v3158
      %v3161 = vshll.u32 %v3152, 16
      %v3163 = vrot.slane %v3161, 1
      %v3164 = vsel %vm548, %v3159, %v3163
      %3165 = vrot.lane.b32.xlu0 %v2832, 16
      %v3166 = vpop.permute.xlu0 %3165
      %3167 = vrot.lane.b32.xlu0 %v2844, 16
      %v3168 = vpop.permute.xlu0 %3167
      %3169 = vrot.lane.b32.xlu0 %v2856, 16
      %v3170 = vpop.permute.xlu0 %3169
      %3171 = vrot.lane.b32.xlu0 %v2868, 16
      %v3172 = vpop.permute.xlu0 %3171
      %3173 = vrot.lane.b32.xlu0 %v2880, 16
      %v3174 = vpop.permute.xlu0 %3173
      %3175 = vrot.lane.b32.xlu0 %v2892, 16
      %v3176 = vpop.permute.xlu0 %3175
      %3177 = vrot.lane.b32.xlu0 %v2904, 16
      %v3178 = vpop.permute.xlu0 %3177
      %3179 = vrot.lane.b32.xlu0 %v2916, 16
      %v3180 = vpop.permute.xlu0 %3179
      %3181 = vrot.lane.b32.xlu0 %v2928, 16
      %v3182 = vpop.permute.xlu0 %3181
      %3183 = vrot.lane.b32.xlu0 %v2940, 16
      %v3184 = vpop.permute.xlu0 %3183
      %3185 = vrot.lane.b32.xlu0 %v2952, 16
      %v3186 = vpop.permute.xlu0 %3185
      %3187 = vrot.lane.b32.xlu0 %v2964, 16
      %v3188 = vpop.permute.xlu0 %3187
      %3189 = vrot.lane.b32.xlu0 %v2976, 16
      %v3190 = vpop.permute.xlu0 %3189
      %3191 = vrot.lane.b32.xlu0 %v2988, 16
      %v3192 = vpop.permute.xlu0 %3191
      %3193 = vrot.lane.b32.xlu0 %v3000, 16
      %v3194 = vpop.permute.xlu0 %3193
      %3195 = vrot.lane.b32.xlu0 %v3164, 16
      %v3196 = vpop.permute.xlu0 %3195
      %v3197 = vrot.slane %v3117, 1
      %v3198 = vrot.slane %v3152, 1
      %v3199 = vsel %vm773, %v3197, %v3198
      %3200 = vrot.lane.b32.xlu0 %v3038, 20
      %v3201 = vpop.permute.xlu0 %3200
      %3202 = vrot.lane.b32.xlu0 %v3041, 20
      %v3203 = vpop.permute.xlu0 %3202
      %3204 = vrot.lane.b32.xlu0 %v3044, 20
      %v3205 = vpop.permute.xlu0 %3204
      %3206 = vrot.lane.b32.xlu0 %v3047, 20
      %v3207 = vpop.permute.xlu0 %3206
      %3208 = vrot.lane.b32.xlu0 %v3050, 20
      %v3209 = vpop.permute.xlu0 %3208
      %3210 = vrot.lane.b32.xlu0 %v3053, 20
      %v3211 = vpop.permute.xlu0 %3210
      %3212 = vrot.lane.b32.xlu0 %v3056, 20
      %v3213 = vpop.permute.xlu0 %3212
      %3214 = vrot.lane.b32.xlu0 %v3059, 20
      %v3215 = vpop.permute.xlu0 %3214
      %3216 = vrot.lane.b32.xlu0 %v3062, 20
      %v3217 = vpop.permute.xlu0 %3216
      %3218 = vrot.lane.b32.xlu0 %v3065, 20
      %v3219 = vpop.permute.xlu0 %3218
      %3220 = vrot.lane.b32.xlu0 %v3068, 20
      %v3221 = vpop.permute.xlu0 %3220
      %3222 = vrot.lane.b32.xlu0 %v3071, 20
      %v3223 = vpop.permute.xlu0 %3222
      %3224 = vrot.lane.b32.xlu0 %v3074, 20
      %v3225 = vpop.permute.xlu0 %3224
      %3226 = vrot.lane.b32.xlu0 %v3077, 20
      %v3227 = vpop.permute.xlu0 %3226
      %3228 = vrot.lane.b32.xlu0 %v3080, 20
      %v3229 = vpop.permute.xlu0 %3228
      %3230 = vrot.lane.b32.xlu0 %v3199, 20
      %v3231 = vpop.permute.xlu0 %3230
      %v3234 = vunpack.c.l.b16 %v2678
      %v3235 = vunpack.c.l.b16 %v2679
      %v3236 = vpack.c.b16 %v3235, %v3234
      %3237 = vrot.lane.b32.xlu0 %v2747, 24
      %v3238 = vpop.permute.xlu0 %3237
      %3239 = vrot.lane.b32.xlu0 %v2748, 24
      %v3240 = vpop.permute.xlu0 %3239
      %3241 = vrot.lane.b32.xlu0 %v2749, 24
      %v3242 = vpop.permute.xlu0 %3241
      %3243 = vrot.lane.b32.xlu0 %v2750, 24
      %v3244 = vpop.permute.xlu0 %3243
      %3245 = vrot.lane.b32.xlu0 %v2751, 24
      %v3246 = vpop.permute.xlu0 %3245
      %3247 = vrot.lane.b32.xlu0 %v2752, 24
      %v3248 = vpop.permute.xlu0 %3247
      %3249 = vrot.lane.b32.xlu0 %v2753, 24
      %v3250 = vpop.permute.xlu0 %3249
      %3251 = vrot.lane.b32.xlu0 %v2754, 24
      %v3252 = vpop.permute.xlu0 %3251
      %3253 = vrot.lane.b32.xlu0 %v2755, 24
      %v3254 = vpop.permute.xlu0 %3253
      %3255 = vrot.lane.b32.xlu0 %v2756, 24
      %v3256 = vpop.permute.xlu0 %3255
      %3257 = vrot.lane.b32.xlu0 %v2757, 24
      %v3258 = vpop.permute.xlu0 %3257
      %3259 = vrot.lane.b32.xlu0 %v2758, 24
      %v3260 = vpop.permute.xlu0 %3259
      %3261 = vrot.lane.b32.xlu0 %v2759, 24
      %v3262 = vpop.permute.xlu0 %3261
      %3263 = vrot.lane.b32.xlu0 %v2760, 24
      %v3264 = vpop.permute.xlu0 %3263
      %3265 = vrot.lane.b32.xlu0 %v3117, 24
      %v3266 = vpop.permute.xlu0 %3265
      %3267 = vrot.lane.b32.xlu0 %v3236, 24
      %v3268 = vpop.permute.xlu0 %3267
      %v3270 = vunpack.c.l.b16 %v2680
      %v3271 = vpack.c.b16 %v3270, %v3270
      %v3273 = vshrl.u32 %v3236, 16
      %v3275 = vshll.u32 %v3236, 16
      %v3277 = vrot.slane %v3275, 1
      %v3278 = vor.u32 %v3273, %v3277
      %v3280 = vshll.u32 %v3271, 16
      %v3282 = vrot.slane %v3280, 1
      %v3283 = vsel %vm548, %v3278, %v3282
      %3284 = vrot.lane.b32.xlu0 %v2844, 28
      %v3285 = vpop.permute.xlu0 %3284
      %3286 = vrot.lane.b32.xlu0 %v2856, 28
      %v3287 = vpop.permute.xlu0 %3286
      %3288 = vrot.lane.b32.xlu0 %v2868, 28
      %v3289 = vpop.permute.xlu0 %3288
      %3290 = vrot.lane.b32.xlu0 %v2880, 28
      %v3291 = vpop.permute.xlu0 %3290
      %3292 = vrot.lane.b32.xlu0 %v2892, 28
      %v3293 = vpop.permute.xlu0 %3292
      %3294 = vrot.lane.b32.xlu0 %v2904, 28
      %v3295 = vpop.permute.xlu0 %3294
      %3296 = vrot.lane.b32.xlu0 %v2916, 28
      %v3297 = vpop.permute.xlu0 %3296
      %3298 = vrot.lane.b32.xlu0 %v2928, 28
      %v3299 = vpop.permute.xlu0 %3298
      %3300 = vrot.lane.b32.xlu0 %v2940, 28
      %v3301 = vpop.permute.xlu0 %3300
      %3302 = vrot.lane.b32.xlu0 %v2952, 28
      %v3303 = vpop.permute.xlu0 %3302
      %3304 = vrot.lane.b32.xlu0 %v2964, 28
      %v3305 = vpop.permute.xlu0 %3304
      %3306 = vrot.lane.b32.xlu0 %v2976, 28
      %v3307 = vpop.permute.xlu0 %3306
      %3308 = vrot.lane.b32.xlu0 %v2988, 28
      %v3309 = vpop.permute.xlu0 %3308
      %3310 = vrot.lane.b32.xlu0 %v3000, 28
      %v3311 = vpop.permute.xlu0 %3310
      %3312 = vrot.lane.b32.xlu0 %v3164, 28
      %v3313 = vpop.permute.xlu0 %3312
      %3314 = vrot.lane.b32.xlu0 %v3283, 28
      %v3315 = vpop.permute.xlu0 %3314
      %v3316 = vrot.slane %v3236, 1
      %v3317 = vrot.slane %v3271, 1
      %v3318 = vsel %vm773, %v3316, %v3317
      %3319 = vrot.lane.b32.xlu0 %v3041, 32
      %v3320 = vpop.permute.xlu0 %3319
      %3321 = vrot.lane.b32.xlu0 %v3044, 32
      %v3322 = vpop.permute.xlu0 %3321
      %3323 = vrot.lane.b32.xlu0 %v3047, 32
      %v3324 = vpop.permute.xlu0 %3323
      %3325 = vrot.lane.b32.xlu0 %v3050, 32
      %v3326 = vpop.permute.xlu0 %3325
      %3327 = vrot.lane.b32.xlu0 %v3053, 32
      %v3328 = vpop.permute.xlu0 %3327
      %3329 = vrot.lane.b32.xlu0 %v3056, 32
      %v3330 = vpop.permute.xlu0 %3329
      %3331 = vrot.lane.b32.xlu0 %v3059, 32
      %v3332 = vpop.permute.xlu0 %3331
      %3333 = vrot.lane.b32.xlu0 %v3062, 32
      %v3334 = vpop.permute.xlu0 %3333
      %3335 = vrot.lane.b32.xlu0 %v3065, 32
      %v3336 = vpop.permute.xlu0 %3335
      %3337 = vrot.lane.b32.xlu0 %v3068, 32
      %v3338 = vpop.permute.xlu0 %3337
      %3339 = vrot.lane.b32.xlu0 %v3071, 32
      %v3340 = vpop.permute.xlu0 %3339
      %3341 = vrot.lane.b32.xlu0 %v3074, 32
      %v3342 = vpop.permute.xlu0 %3341
      %3343 = vrot.lane.b32.xlu0 %v3077, 32
      %v3344 = vpop.permute.xlu0 %3343
      %3345 = vrot.lane.b32.xlu0 %v3080, 32
      %v3346 = vpop.permute.xlu0 %3345
      %3347 = vrot.lane.b32.xlu0 %v3199, 32
      %v3348 = vpop.permute.xlu0 %3347
      %3349 = vrot.lane.b32.xlu0 %v3318, 32
      %v3350 = vpop.permute.xlu0 %3349
      %v3352 = vsel %vm1092, %v2745, %v3002
      %v3354 = vsel %vm1092, %v2746, %v3004
      %v3356 = vsel %vm1092, %v2747, %v3006
      %v3358 = vsel %vm1092, %v2748, %v3008
      %v3360 = vsel %vm1092, %v2749, %v3010
      %v3362 = vsel %vm1092, %v2750, %v3012
      %v3364 = vsel %vm1092, %v2751, %v3014
      %v3366 = vsel %vm1092, %v2752, %v3016
      %v3368 = vsel %vm1092, %v2753, %v3018
      %v3370 = vsel %vm1092, %v2754, %v3020
      %v3372 = vsel %vm1092, %v2755, %v3022
      %v3374 = vsel %vm1092, %v2756, %v3024
      %v3376 = vsel %vm1092, %v2757, %v3026
      %v3378 = vsel %vm1092, %v2758, %v3028
      %v3380 = vsel %vm1092, %v2759, %v3030
      %v3382 = vsel %vm1092, %v2760, %v3032
      %v3384 = vsel %vm1125, %v3352, %v3082
      %v3386 = vsel %vm1125, %v3354, %v3084
      %v3388 = vsel %vm1125, %v3356, %v3086
      %v3390 = vsel %vm1125, %v3358, %v3088
      %v3392 = vsel %vm1125, %v3360, %v3090
      %v3394 = vsel %vm1125, %v3362, %v3092
      %v3396 = vsel %vm1125, %v3364, %v3094
      %v3398 = vsel %vm1125, %v3366, %v3096
      %v3400 = vsel %vm1125, %v3368, %v3098
      %v3402 = vsel %vm1125, %v3370, %v3100
      %v3404 = vsel %vm1125, %v3372, %v3102
      %v3406 = vsel %vm1125, %v3374, %v3104
      %v3408 = vsel %vm1125, %v3376, %v3106
      %v3410 = vsel %vm1125, %v3378, %v3108
      %v3412 = vsel %vm1125, %v3380, %v3110
      %v3414 = vsel %vm1125, %v3382, %v3112
      %v3416 = vsel %vm1158, %v3384, %v3119
      %v3418 = vsel %vm1158, %v3386, %v3121
      %v3420 = vsel %vm1158, %v3388, %v3123
      %v3422 = vsel %vm1158, %v3390, %v3125
      %v3424 = vsel %vm1158, %v3392, %v3127
      %v3426 = vsel %vm1158, %v3394, %v3129
      %v3428 = vsel %vm1158, %v3396, %v3131
      %v3430 = vsel %vm1158, %v3398, %v3133
      %v3432 = vsel %vm1158, %v3400, %v3135
      %v3434 = vsel %vm1158, %v3402, %v3137
      %v3436 = vsel %vm1158, %v3404, %v3139
      %v3438 = vsel %vm1158, %v3406, %v3141
      %v3440 = vsel %vm1158, %v3408, %v3143
      %v3442 = vsel %vm1158, %v3410, %v3145
      %v3444 = vsel %vm1158, %v3412, %v3147
      %v3446 = vsel %vm1158, %v3414, %v3149
      %v3448 = vsel %vm1191, %v3416, %v3166
      %v3450 = vsel %vm1191, %v3418, %v3168
      %v3452 = vsel %vm1191, %v3420, %v3170
      %v3454 = vsel %vm1191, %v3422, %v3172
      %v3456 = vsel %vm1191, %v3424, %v3174
      %v3458 = vsel %vm1191, %v3426, %v3176
      %v3460 = vsel %vm1191, %v3428, %v3178
      %v3462 = vsel %vm1191, %v3430, %v3180
      %v3464 = vsel %vm1191, %v3432, %v3182
      %v3466 = vsel %vm1191, %v3434, %v3184
      %v3468 = vsel %vm1191, %v3436, %v3186
      %v3470 = vsel %vm1191, %v3438, %v3188
      %v3472 = vsel %vm1191, %v3440, %v3190
      %v3474 = vsel %vm1191, %v3442, %v3192
      %v3476 = vsel %vm1191, %v3444, %v3194
      %v3478 = vsel %vm1191, %v3446, %v3196
      %v3480 = vsel %vm1224, %v3448, %v3201
      %v3482 = vsel %vm1224, %v3450, %v3203
      %v3484 = vsel %vm1224, %v3452, %v3205
      %v3486 = vsel %vm1224, %v3454, %v3207
      %v3488 = vsel %vm1224, %v3456, %v3209
      %v3490 = vsel %vm1224, %v3458, %v3211
      %v3492 = vsel %vm1224, %v3460, %v3213
      %v3494 = vsel %vm1224, %v3462, %v3215
      %v3496 = vsel %vm1224, %v3464, %v3217
      %v3498 = vsel %vm1224, %v3466, %v3219
      %v3500 = vsel %vm1224, %v3468, %v3221
      %v3502 = vsel %vm1224, %v3470, %v3223
      %v3504 = vsel %vm1224, %v3472, %v3225
      %v3506 = vsel %vm1224, %v3474, %v3227
      %v3508 = vsel %vm1224, %v3476, %v3229
      %v3510 = vsel %vm1224, %v3478, %v3231
      %v3512 = vsel %vm1257, %v3480, %v3238
      %v3514 = vsel %vm1257, %v3482, %v3240
      %v3516 = vsel %vm1257, %v3484, %v3242
      %v3518 = vsel %vm1257, %v3486, %v3244
      %v3520 = vsel %vm1257, %v3488, %v3246
      %v3522 = vsel %vm1257, %v3490, %v3248
      %v3524 = vsel %vm1257, %v3492, %v3250
      %v3526 = vsel %vm1257, %v3494, %v3252
      %v3528 = vsel %vm1257, %v3496, %v3254
      %v3530 = vsel %vm1257, %v3498, %v3256
      %v3532 = vsel %vm1257, %v3500, %v3258
      %v3534 = vsel %vm1257, %v3502, %v3260
      %v3536 = vsel %vm1257, %v3504, %v3262
      %v3538 = vsel %vm1257, %v3506, %v3264
      %v3540 = vsel %vm1257, %v3508, %v3266
      %v3542 = vsel %vm1257, %v3510, %v3268
      %v3544 = vsel %vm1290, %v3512, %v3285
      %v3546 = vsel %vm1290, %v3514, %v3287
      %v3548 = vsel %vm1290, %v3516, %v3289
      %v3550 = vsel %vm1290, %v3518, %v3291
      %v3552 = vsel %vm1290, %v3520, %v3293
      %v3554 = vsel %vm1290, %v3522, %v3295
      %v3556 = vsel %vm1290, %v3524, %v3297
      %v3558 = vsel %vm1290, %v3526, %v3299
      %v3560 = vsel %vm1290, %v3528, %v3301
      %v3562 = vsel %vm1290, %v3530, %v3303
      %v3564 = vsel %vm1290, %v3532, %v3305
      %v3566 = vsel %vm1290, %v3534, %v3307
      %v3568 = vsel %vm1290, %v3536, %v3309
      %v3570 = vsel %vm1290, %v3538, %v3311
      %v3572 = vsel %vm1290, %v3540, %v3313
      %v3574 = vsel %vm1290, %v3542, %v3315
      %v3576 = vsel %vm1323, %v3544, %v3320
      %v3578 = vsel %vm1323, %v3546, %v3322
      %v3580 = vsel %vm1323, %v3548, %v3324
      %v3582 = vsel %vm1323, %v3550, %v3326
      %v3584 = vsel %vm1323, %v3552, %v3328
      %v3586 = vsel %vm1323, %v3554, %v3330
      %v3588 = vsel %vm1323, %v3556, %v3332
      %v3590 = vsel %vm1323, %v3558, %v3334
      %v3592 = vsel %vm1323, %v3560, %v3336
      %v3594 = vsel %vm1323, %v3562, %v3338
      %v3596 = vsel %vm1323, %v3564, %v3340
      %v3598 = vsel %vm1323, %v3566, %v3342
      %v3600 = vsel %vm1323, %v3568, %v3344
      %v3602 = vsel %vm1323, %v3570, %v3346
      %v3604 = vsel %vm1323, %v3572, %v3348
      %v3606 = vsel %vm1323, %v3574, %v3350
      %s3607 = scalar_lea.vmem %s3, 40
      %v3608 = vld [vmem:[%s3607] sm:$0xf]
      %v3609 = vld [vmem:[%s3607 + $0x4] sm:$0xf]
      %v3610 = vld [vmem:[%s3607 + $0x8] sm:$0xf]
      %v3611 = vld [vmem:[%s3607 + $0xc] sm:$0xf]
      %v3612 = vld [vmem:[%s3607 + $0x10] sm:$0x3]
      %v3618 = vunpack.c.l.b16 %v3608
      %v3619 = vunpack.c.l.b16 %v3609
      %v3620 = vunpack.c.l.b16 %v3610
      %v3621 = vunpack.c.l.b16 %v3611
      %v3622 = vunpack.c.l.b16 %v3612
      %v3623 = vpack.c.b16 %v3619, %v3618
      %v3624 = vpack.c.b16 %v3621, %v3620
      %v3625 = vpack.c.b16 %v3622, %v3622
      %v3628 = vsel %vm2362, %v3576, 0
      %v3630 = vsel %vm2362, %v3578, 0
      %v3632 = vsel %vm2362, %v3580, 0
      %v3634 = vsel %vm2362, %v3582, 0
      %v3636 = vsel %vm2362, %v3584, 0
      %v3638 = vsel %vm2362, %v3586, 0
      %v3640 = vsel %vm2362, %v3588, 0
      %v3642 = vsel %vm2362, %v3590, 0
      %v3644 = vsel %vm2362, %v3592, 0
      %v3646 = vsel %vm2362, %v3594, 0
      %v3648 = vsel %vm2362, %v3596, 0
      %v3650 = vsel %vm2362, %v3598, 0
      %v3652 = vsel %vm2362, %v3600, 0
      %v3654 = vsel %vm2362, %v3602, 0
      %v3656 = vsel %vm2362, %v3604, 0
      %v3658 = vsel %vm2362, %v3606, 0
      %v3661 = vsel %vm2395, %v3625, 0
      %3663 = vmatpush.bf16.msra.mxu0 0
      %3664 = vmatpush.bf16.msra.mxu0 0
      %3665 = vmatpush.bf16.msra.mxu0 0
      %3666 = vmatpush.bf16.msra.mxu0 0
      %3667 = vmatpush.bf16.msra.mxu0 0
      %3668 = vmatpush.bf16.msra.mxu0 %v3661
      %3669 = vmatpush.bf16.msra.mxu0 %v3624
      %3670 = vmatpush.bf16.msra.mxu0 %v3623
      %3671 = vmatmul.bf16.gmra.mxu0 %v3628
      %v3672 = vpop.f32.mrf.mxu0
      %v3673 = vadd.f32 0.0, %v3672
      %v3674 = vpop.f32.mrf.mxu0
      %v3675 = vadd.f32 0.0, %v3674
      %3676 = vmatmul.bf16.gmra.mxu0 %v3630
      %v3677 = vpop.f32.mrf.mxu0
      %v3678 = vadd.f32 0.0, %v3677
      %v3679 = vpop.f32.mrf.mxu0
      %v3680 = vadd.f32 0.0, %v3679
      %3681 = vmatmul.bf16.gmra.mxu0 %v3632
      %v3682 = vpop.f32.mrf.mxu0
      %v3683 = vadd.f32 0.0, %v3682
      %v3684 = vpop.f32.mrf.mxu0
      %v3685 = vadd.f32 0.0, %v3684
      %3686 = vmatmul.bf16.gmra.mxu0 %v3634
      %v3687 = vpop.f32.mrf.mxu0
      %v3688 = vadd.f32 0.0, %v3687
      %v3689 = vpop.f32.mrf.mxu0
      %v3690 = vadd.f32 0.0, %v3689
      %3691 = vmatmul.bf16.gmra.mxu0 %v3636
      %v3692 = vpop.f32.mrf.mxu0
      %v3693 = vadd.f32 0.0, %v3692
      %v3694 = vpop.f32.mrf.mxu0
      %v3695 = vadd.f32 0.0, %v3694
      %3696 = vmatmul.bf16.gmra.mxu0 %v3638
      %v3697 = vpop.f32.mrf.mxu0
      %v3698 = vadd.f32 0.0, %v3697
      %v3699 = vpop.f32.mrf.mxu0
      %v3700 = vadd.f32 0.0, %v3699
      %3701 = vmatmul.bf16.gmra.mxu0 %v3640
      %v3702 = vpop.f32.mrf.mxu0
      %v3703 = vadd.f32 0.0, %v3702
      %v3704 = vpop.f32.mrf.mxu0
      %v3705 = vadd.f32 0.0, %v3704
      %3706 = vmatmul.bf16.gmra.mxu0 %v3642
      %v3707 = vpop.f32.mrf.mxu0
      %v3708 = vadd.f32 0.0, %v3707
      %v3709 = vpop.f32.mrf.mxu0
      %v3710 = vadd.f32 0.0, %v3709
      %3711 = vmatmul.bf16.gmra.mxu0 %v3644
      %v3712 = vpop.f32.mrf.mxu0
      %v3713 = vadd.f32 0.0, %v3712
      %v3714 = vpop.f32.mrf.mxu0
      %v3715 = vadd.f32 0.0, %v3714
      %3716 = vmatmul.bf16.gmra.mxu0 %v3646
      %v3717 = vpop.f32.mrf.mxu0
      %v3718 = vadd.f32 0.0, %v3717
      %v3719 = vpop.f32.mrf.mxu0
      %v3720 = vadd.f32 0.0, %v3719
      %3721 = vmatmul.bf16.gmra.mxu0 %v3648
      %v3722 = vpop.f32.mrf.mxu0
      %v3723 = vadd.f32 0.0, %v3722
      %v3724 = vpop.f32.mrf.mxu0
      %v3725 = vadd.f32 0.0, %v3724
      %3726 = vmatmul.bf16.gmra.mxu0 %v3650
      %v3727 = vpop.f32.mrf.mxu0
      %v3728 = vadd.f32 0.0, %v3727
      %v3729 = vpop.f32.mrf.mxu0
      %v3730 = vadd.f32 0.0, %v3729
      %3731 = vmatmul.bf16.gmra.mxu0 %v3652
      %v3732 = vpop.f32.mrf.mxu0
      %v3733 = vadd.f32 0.0, %v3732
      %v3734 = vpop.f32.mrf.mxu0
      %v3735 = vadd.f32 0.0, %v3734
      %3736 = vmatmul.bf16.gmra.mxu0 %v3654
      %v3737 = vpop.f32.mrf.mxu0
      %v3738 = vadd.f32 0.0, %v3737
      %v3739 = vpop.f32.mrf.mxu0
      %v3740 = vadd.f32 0.0, %v3739
      %3741 = vmatmul.bf16.gmra.mxu0 %v3656
      %v3742 = vpop.f32.mrf.mxu0
      %v3743 = vadd.f32 0.0, %v3742
      %v3744 = vpop.f32.mrf.mxu0
      %v3745 = vadd.f32 0.0, %v3744
      %3746 = vmatmul.bf16.gmra.mxu0 %v3658
      %v3747 = vpop.f32.mrf.mxu0
      %v3748 = vadd.f32 0.0, %v3747
      %v3749 = vpop.f32.mrf.mxu0
      %v3750 = vadd.f32 0.0, %v3749
      %3751 = vdwg.mxu0
      %v3752 = vadd.f32 %v2548, %v3673
      %v3753 = vadd.f32 %v2550, %v3675
      %v3754 = vadd.f32 %v2553, %v3678
      %v3755 = vadd.f32 %v2555, %v3680
      %v3756 = vadd.f32 %v2558, %v3683
      %v3757 = vadd.f32 %v2560, %v3685
      %v3758 = vadd.f32 %v2563, %v3688
      %v3759 = vadd.f32 %v2565, %v3690
      %v3760 = vadd.f32 %v2568, %v3693
      %v3761 = vadd.f32 %v2570, %v3695
      %v3762 = vadd.f32 %v2573, %v3698
      %v3763 = vadd.f32 %v2575, %v3700
      %v3764 = vadd.f32 %v2578, %v3703
      %v3765 = vadd.f32 %v2580, %v3705
      %v3766 = vadd.f32 %v2583, %v3708
      %v3767 = vadd.f32 %v2585, %v3710
      %v3768 = vadd.f32 %v2588, %v3713
      %v3769 = vadd.f32 %v2590, %v3715
      %v3770 = vadd.f32 %v2593, %v3718
      %v3771 = vadd.f32 %v2595, %v3720
      %v3772 = vadd.f32 %v2598, %v3723
      %v3773 = vadd.f32 %v2600, %v3725
      %v3774 = vadd.f32 %v2603, %v3728
      %v3775 = vadd.f32 %v2605, %v3730
      %v3776 = vadd.f32 %v2608, %v3733
      %v3777 = vadd.f32 %v2610, %v3735
      %v3778 = vadd.f32 %v2613, %v3738
      %v3779 = vadd.f32 %v2615, %v3740
      %v3780 = vadd.f32 %v2618, %v3743
      %v3781 = vadd.f32 %v2620, %v3745
      %v3782 = vadd.f32 %v2623, %v3748
      %v3783 = vadd.f32 %v2625, %v3750
      %3784 = vst [vmem:[%s353] sm:$0xff] %v3752
      %3785 = vst [vmem:[%s353 + $0x8] sm:$0xff] %v3753
      %3786 = vst [vmem:[%s353 + $0x10] sm:$0xff] %v3754
      %3787 = vst [vmem:[%s353 + $0x18] sm:$0xff] %v3755
      %3788 = vst [vmem:[%s353 + $0x20] sm:$0xff] %v3756
      %3789 = vst [vmem:[%s353 + $0x28] sm:$0xff] %v3757
      %3790 = vst [vmem:[%s353 + $0x30] sm:$0xff] %v3758
      %3791 = vst [vmem:[%s353 + $0x38] sm:$0xff] %v3759
      %3792 = vst [vmem:[%s353 + $0x40] sm:$0xff] %v3760
      %3793 = vst [vmem:[%s353 + $0x48] sm:$0xff] %v3761
      %3794 = vst [vmem:[%s353 + $0x50] sm:$0xff] %v3762
      %3795 = vst [vmem:[%s353 + $0x58] sm:$0xff] %v3763
      %3796 = vst [vmem:[%s353 + $0x60] sm:$0xff] %v3764
      %3797 = vst [vmem:[%s353 + $0x68] sm:$0xff] %v3765
      %3798 = vst [vmem:[%s353 + $0x70] sm:$0xff] %v3766
      %3799 = vst [vmem:[%s353 + $0x78] sm:$0xff] %v3767
      %3800 = vst [vmem:[%s353 + $0x80] sm:$0xff] %v3768
      %3801 = vst [vmem:[%s353 + $0x88] sm:$0xff] %v3769
      %3802 = vst [vmem:[%s353 + $0x90] sm:$0xff] %v3770
      %3803 = vst [vmem:[%s353 + $0x98] sm:$0xff] %v3771
      %3804 = vst [vmem:[%s353 + $0xa0] sm:$0xff] %v3772
      %3805 = vst [vmem:[%s353 + $0xa8] sm:$0xff] %v3773
      %3806 = vst [vmem:[%s353 + $0xb0] sm:$0xff] %v3774
      %3807 = vst [vmem:[%s353 + $0xb8] sm:$0xff] %v3775
      %3808 = vst [vmem:[%s353 + $0xc0] sm:$0xff] %v3776
      %3809 = vst [vmem:[%s353 + $0xc8] sm:$0xff] %v3777
      %3810 = vst [vmem:[%s353 + $0xd0] sm:$0xff] %v3778
      %3811 = vst [vmem:[%s353 + $0xd8] sm:$0xff] %v3779
      %3812 = vst [vmem:[%s353 + $0xe0] sm:$0xff] %v3780
      %3813 = vst [vmem:[%s353 + $0xe8] sm:$0xff] %v3781
      %3814 = vst [vmem:[%s353 + $0xf0] sm:$0xff] %v3782
      %3815 = vst [vmem:[%s353 + $0xf8] sm:$0xff] %v3783
      %v3816 = vadd.f32 %v3752, %v3753
      %v3817 = vadd.f32 %v3816, %v3754
      %v3818 = vadd.f32 %v3817, %v3755
      %v3819 = vadd.f32 %v3818, %v3756
      %v3820 = vadd.f32 %v3819, %v3757
      %v3821 = vadd.f32 %v3820, %v3758
      %v3822 = vadd.f32 %v3821, %v3759
      %v3823 = vadd.f32 %v3822, %v3760
      %v3824 = vadd.f32 %v3823, %v3761
      %v3825 = vadd.f32 %v3824, %v3762
      %v3826 = vadd.f32 %v3825, %v3763
      %v3827 = vadd.f32 %v3826, %v3764
      %v3828 = vadd.f32 %v3827, %v3765
      %v3829 = vadd.f32 %v3828, %v3766
      %v3830 = vadd.f32 %v3829, %v3767
      %v3831 = vadd.f32 %v3830, %v3768
      %v3832 = vadd.f32 %v3831, %v3769
      %v3833 = vadd.f32 %v3832, %v3770
      %v3834 = vadd.f32 %v3833, %v3771
      %v3835 = vadd.f32 %v3834, %v3772
      %v3836 = vadd.f32 %v3835, %v3773
      %v3837 = vadd.f32 %v3836, %v3774
      %v3838 = vadd.f32 %v3837, %v3775
      %v3839 = vadd.f32 %v3838, %v3776
      %v3840 = vadd.f32 %v3839, %v3777
      %v3841 = vadd.f32 %v3840, %v3778
      %v3842 = vadd.f32 %v3841, %v3779
      %v3843 = vadd.f32 %v3842, %v3780
      %v3844 = vadd.f32 %v3843, %v3781
      %v3845 = vadd.f32 %v3844, %v3782
      %v3846 = vadd.f32 %v3845, %v3783
      %v3847 = vrot.slane %v3846, 4
      %v3848 = vadd.f32 %v3846, %v3847
      %v3849 = vrot.slane %v3848, 2
      %v3850 = vadd.f32 %v3848, %v3849
      %v3851 = vrot.slane %v3850, 1
      %v3852 = vadd.f32 %v3850, %v3851
      %v3853 = vmul.f32 %v3852, 0.00390625
      %v3854 = vsub.f32 %v3752, %v3853
      %v3855 = vsub.f32 %v3753, %v3853
      %v3856 = vsub.f32 %v3754, %v3853
      %v3857 = vsub.f32 %v3755, %v3853
      %v3858 = vsub.f32 %v3756, %v3853
      %v3859 = vsub.f32 %v3757, %v3853
      %v3860 = vsub.f32 %v3758, %v3853
      %v3861 = vsub.f32 %v3759, %v3853
      %v3862 = vsub.f32 %v3760, %v3853
      %v3863 = vsub.f32 %v3761, %v3853
      %v3864 = vsub.f32 %v3762, %v3853
      %v3865 = vsub.f32 %v3763, %v3853
      %v3866 = vsub.f32 %v3764, %v3853
      %v3867 = vsub.f32 %v3765, %v3853
      %v3868 = vsub.f32 %v3766, %v3853
      %v3869 = vsub.f32 %v3767, %v3853
      %v3870 = vsub.f32 %v3768, %v3853
      %v3871 = vsub.f32 %v3769, %v3853
      %v3872 = vsub.f32 %v3770, %v3853
      %v3873 = vsub.f32 %v3771, %v3853
      %v3874 = vsub.f32 %v3772, %v3853
      %v3875 = vsub.f32 %v3773, %v3853
      %v3876 = vsub.f32 %v3774, %v3853
      %v3877 = vsub.f32 %v3775, %v3853
      %v3878 = vsub.f32 %v3776, %v3853
      %v3879 = vsub.f32 %v3777, %v3853
      %v3880 = vsub.f32 %v3778, %v3853
      %v3881 = vsub.f32 %v3779, %v3853
      %v3882 = vsub.f32 %v3780, %v3853
      %v3883 = vsub.f32 %v3781, %v3853
      %v3884 = vsub.f32 %v3782, %v3853
      %v3885 = vsub.f32 %v3783, %v3853
      %v3886 = vmul.f32 %v3854, %v3854
      %v3887 = vmul.f32 %v3855, %v3855
      %v3888 = vmul.f32 %v3856, %v3856
      %v3889 = vmul.f32 %v3857, %v3857
      %v3890 = vmul.f32 %v3858, %v3858
      %v3891 = vmul.f32 %v3859, %v3859
      %v3892 = vmul.f32 %v3860, %v3860
      %v3893 = vmul.f32 %v3861, %v3861
      %v3894 = vmul.f32 %v3862, %v3862
      %v3895 = vmul.f32 %v3863, %v3863
      %v3896 = vmul.f32 %v3864, %v3864
      %v3897 = vmul.f32 %v3865, %v3865
      %v3898 = vmul.f32 %v3866, %v3866
      %v3899 = vmul.f32 %v3867, %v3867
      %v3900 = vmul.f32 %v3868, %v3868
      %v3901 = vmul.f32 %v3869, %v3869
      %v3902 = vmul.f32 %v3870, %v3870
      %v3903 = vmul.f32 %v3871, %v3871
      %v3904 = vmul.f32 %v3872, %v3872
      %v3905 = vmul.f32 %v3873, %v3873
      %v3906 = vmul.f32 %v3874, %v3874
      %v3907 = vmul.f32 %v3875, %v3875
      %v3908 = vmul.f32 %v3876, %v3876
      %v3909 = vmul.f32 %v3877, %v3877
      %v3910 = vmul.f32 %v3878, %v3878
      %v3911 = vmul.f32 %v3879, %v3879
      %v3912 = vmul.f32 %v3880, %v3880
      %v3913 = vmul.f32 %v3881, %v3881
      %v3914 = vmul.f32 %v3882, %v3882
      %v3915 = vmul.f32 %v3883, %v3883
      %v3916 = vmul.f32 %v3884, %v3884
      %v3917 = vmul.f32 %v3885, %v3885
      %v3918 = vadd.f32 %v3886, %v3887
      %v3919 = vadd.f32 %v3918, %v3888
      %v3920 = vadd.f32 %v3919, %v3889
      %v3921 = vadd.f32 %v3920, %v3890
      %v3922 = vadd.f32 %v3921, %v3891
      %v3923 = vadd.f32 %v3922, %v3892
      %v3924 = vadd.f32 %v3923, %v3893
      %v3925 = vadd.f32 %v3924, %v3894
      %v3926 = vadd.f32 %v3925, %v3895
      %v3927 = vadd.f32 %v3926, %v3896
      %v3928 = vadd.f32 %v3927, %v3897
      %v3929 = vadd.f32 %v3928, %v3898
      %v3930 = vadd.f32 %v3929, %v3899
      %v3931 = vadd.f32 %v3930, %v3900
      %v3932 = vadd.f32 %v3931, %v3901
      %v3933 = vadd.f32 %v3932, %v3902
      %v3934 = vadd.f32 %v3933, %v3903
      %v3935 = vadd.f32 %v3934, %v3904
      %v3936 = vadd.f32 %v3935, %v3905
      %v3937 = vadd.f32 %v3936, %v3906
      %v3938 = vadd.f32 %v3937, %v3907
      %v3939 = vadd.f32 %v3938, %v3908
      %v3940 = vadd.f32 %v3939, %v3909
      %v3941 = vadd.f32 %v3940, %v3910
      %v3942 = vadd.f32 %v3941, %v3911
      %v3943 = vadd.f32 %v3942, %v3912
      %v3944 = vadd.f32 %v3943, %v3913
      %v3945 = vadd.f32 %v3944, %v3914
      %v3946 = vadd.f32 %v3945, %v3915
      %v3947 = vadd.f32 %v3946, %v3916
      %v3948 = vadd.f32 %v3947, %v3917
      %v3949 = vrot.slane %v3948, 4
      %v3950 = vadd.f32 %v3948, %v3949
      %v3951 = vrot.slane %v3950, 2
      %v3952 = vadd.f32 %v3950, %v3951
      %v3953 = vrot.slane %v3952, 1
      %v3954 = vadd.f32 %v3952, %v3953
      %vm3955 = vcmask 1040384
      %v3956 = vsel %vm3955, %v3852, %v3954
      %3957 = vst [vmem:[%s362] sm:$0x3] %v3956
      %s3958 = smul.u32 %s21, 16
      %s3959 = sadd.s32 %s3958, %s22
      %s3960 = smul.u32 32, %s3959
      %p3961 = scmp.lt.s32.totalorder %s3960, 1023
      %s3962 = scalar_select %p3961, %s3960, 1023
      %s3963 = smul.addr %s3962, 8
      %s3964 = scalar_lea.vmem %s4, %s3963
      %s3965 = smul.u32 %s21, 16
      %s3966 = sadd.s32 %s3965, %s22
      %p3967 = scmp.lt.s32.totalorder %s3966, 31
      %s3968 = scalar_select %p3967, %s3966, 31
      %s3969 = smul.addr %s3968, 2
      %s3970 = scalar_lea.vmem %s5, %s3969
      // Predicated region
      $region37: #{conv_block_forward.4} parent=35 // pred_check
        %p3971 = pneg %p160
      $region38: #{conv_block_forward.4} parent=35 // pred_check_branch
        %3973 = sbr.rel (%p3971) target = $region40
      $region39: #{conv_block_forward.4} parent=35 // pred_region
        %s3974 = smul.u32 %s21, 16
        %s3975 = sadd.s32 %s3974, %s22
        %s3976 = smul.u32 32, %s3975
      $region40: #{conv_block_forward.4} parent=35 // pred_fallthru
        _
      // Predicated region
      $region41: #{conv_block_forward.4} parent=35 // pred_check
        %p3977 = pneg %p190
      $region42: #{conv_block_forward.4} parent=35 // pred_check_branch
        %3979 = sbr.rel (%p3977) target = $region44
      $region43: #{conv_block_forward.4} parent=35 // pred_region
        %s3980 = smul.u32 %s21, 16
        %s3981 = sadd.s32 %s3980, %s22
      $region44: #{conv_block_forward.4} parent=35 // pred_fallthru
        _
    $region36: #{conv_block_forward.4} parent=5 // pred_fallthru
      _
    %p3982 = scmp.le.s32.totalorder 2, %s12
    // Predicated region
    $region45: #{conv_block_forward.4} parent=5 // pred_check
      %p3983 = pneg %p3982
    $region46: #{conv_block_forward.4} parent=5 // pred_check_branch
      %3985 = sbr.rel (%p3983) target = $region48
    $region47: #{conv_block_forward.4} parent=5 // pred_region
      %s3986 = ssub.s32 %s12, 2
      // Predicated region
      $region49: #{conv_block_forward.4} parent=47 // pred_check
        %p3987 = pneg %p166
      $region50: #{conv_block_forward.4} parent=47 // pred_check_branch
        %3989 = sbr.rel (%p3987) target = $region52
      $region51: #{conv_block_forward.4} parent=47 // pred_region
        %s3990 = smul.u32 %s23, 16
        %s3991 = sadd.s32 %s3990, %s24
        %s3992 = smul.u32 32, %s3991
        %p3993 = scmp.lt.s32.totalorder %s3992, 1023
        %s3994 = scalar_select %p3993, %s3992, 1023
        %s3995 = smul.addr %s3994, 8
        %s3996 = scalar_lea.vmem %s4, %s3995
      $region52: #{conv_block_forward.4} parent=47 // pred_fallthru
        _
      // Predicated region
      $region53: #{conv_block_forward.4} parent=47 // pred_check
        %p3997 = pneg %p196
      $region54: #{conv_block_forward.4} parent=47 // pred_check_branch
        %3999 = sbr.rel (%p3997) target = $region56
      $region55: #{conv_block_forward.4} parent=47 // pred_region
        %s4000 = smul.u32 %s23, 16
        %s4001 = sadd.s32 %s4000, %s24
        %p4002 = scmp.lt.s32.totalorder %s4001, 31
        %s4003 = scalar_select %p4002, %s4001, 31
        %s4004 = smul.addr %s4003, 2
        %s4005 = scalar_lea.vmem %s5, %s4004
      $region56: #{conv_block_forward.4} parent=47 // pred_fallthru
        _
    $region48: #{conv_block_forward.4} parent=5 // pred_fallthru
      _
  $region6: #{conv_block_forward.4} parent=0 // loop_footer
    %s16 = sadd.s32 1, %s12
  $region7: #{conv_block_forward.4} parent=0 // loop_footer_branch
    %11 = sbr.rel target = $region3
  $region8: #{conv_block_forward.4} parent=0 // loop_exit
    _

// kernel: conv_block_forward.6
$region0: #{conv_block_forward.6}
  #allocation0 [shape = 'u32[]', space=smem, size = 0x4, offset = 0x4, fixed_abs, tag = 'smem constant byte address 0x4 - core index']
  #allocation1 [shape = 'u32[72,128]{1,0:T(1,128)}', space=vmem, size = 0x9000, scoped, tag = 'internal scratch']
  %s0 = inlined_call_operand.vmem [shape: bf16[2,18,18,18,8], index: 0, kind: input, shape index: {}, may-alias: {0,1,2}]
  %s1 = inlined_call_operand.vmem [shape: bf16[2,18,18,18,8], index: 1, kind: input, shape index: {}, may-alias: {0,1,2}]
  %s2 = inlined_call_operand.vmem [shape: bf16[2,18,18,18,8], index: 2, kind: input, shape index: {}, may-alias: {0,1,2}]
  %s3 = inlined_call_operand.vmem [shape: bf16[3,72,128], index: 3, kind: input, shape index: {}]
  %s4 = inlined_call_operand.vmem [shape: f32[8192,128], index: 4, kind: output, shape index: {0}]
  %s5 = inlined_call_operand.vmem [shape: f32[32,2,128], index: 5, kind: output, shape index: {1}]
  %6 = xla_tuple %s4, %s5
  %s7 = sld [smem:[#allocation0]]
  $region57: #{conv_block_forward.6} parent=0
    _
  %s9 = ssub.s32 1, %s7
  %s10 = scalar_select 0, %s9, %s7
  loop: start=0, step=1, limit=34
  $region2: #{conv_block_forward.6} parent=0 // loop_pre_header
    _
  $region3: #{conv_block_forward.6} parent=0 // loop_header
    %s12 = sphi 0, %s16
    %p13 = scmp.ge.s32.totalorder %s12, 34
    %s19 = sphi 0, %s31
    %s20 = sphi 0, %s27
    %s21 = sphi 0, %s19
    %s22 = sphi 0, %s20
    %s23 = sphi 0, %s21
    %s24 = sphi 0, %s22
    %s36 = sphi 0, %s38
    %s39 = sphi 0, %s36
    %s40 = sphi 0, %s39
    %s56 = sphi 0, %s40
    %s66 = sphi 0, %s68
    %s69 = sphi 0, %s66
    %s70 = sphi 0, %s69
    %s86 = sphi 0, %s70
    %s96 = sphi 0, %s98
    %s99 = sphi 0, %s96
    %s100 = sphi 0, %s99
    %s116 = sphi 0, %s100
    %s120 = sphi 0, %s120
    %s122 = sphi 0, %s120
    %s123 = sphi 0, %s122
    %s137 = sphi 0, %s123
    %s147 = sphi 0, %s149
    %s150 = sphi 0, %s147
    %s151 = sphi 0, %s150
    %s167 = sphi 0, %s151
    %s177 = sphi 0, %s179
    %s180 = sphi 0, %s177
    %s181 = sphi 0, %s180
    %s197 = sphi 0, %s181
  $region4: #{conv_block_forward.6} parent=0 // loop_header_branch
    %15 = sbr.rel (%p13) target = $region8
  $region5: #{conv_block_forward.6} parent=0 // loop_body
    %s17 = ssub.s32 %s12, 1
    %s18 = ssub.s32 %s12, 2
    %s25 = sadd.s32 1, %s20
    %p26 = scmp.ge.s32.totalorder %s25, 16
    %s27 = scalar_select %p26, 0, %s25
    %s28 = sadd.s32 1, %s19
    %s29 = scalar_select %p26, %s28, %s19
    %p30 = scmp.ge.s32.totalorder %s29, 2
    %s31 = scalar_select %p30, 0, %s29
    %s32 = ssub.s32 %s19, %s31
    %s33 = ssub.s32 %s20, %s27
    %s34 = sor.u32 %s32, %s33
    %p35 = scmp.eq.s32.totalorder %s34, 0
    %s37 = sadd.s32 %s36, 1
    %s38 = scalar_select %p35, %s36, %s37
    %p41 = pneg %p35
    %p42 = scmp.eq.s32.totalorder %s12, 31
    %p43 = por %p41, %p42
    %p44 = scmp.ne.s32.totalorder %s36, %s39
    %p45 = scmp.eq.s32.totalorder %s12, 0
    %p46 = por %p44, %p45
    %p47 = scmp.ne.s32.totalorder %s36, %s39
    %p48 = scmp.eq.s32.totalorder %s17, 31
    %p49 = por %p47, %p48
    %p50 = scmp.ne.s32.totalorder %s39, %s40
    %p51 = scmp.eq.s32.totalorder %s17, 0
    %p52 = por %p50, %p51
    %p53 = scmp.ne.s32.totalorder %s39, %s40
    %p54 = scmp.eq.s32.totalorder %s18, 31
    %p55 = por %p53, %p54
    %p57 = scmp.ne.s32.totalorder %s40, %s56
    %p58 = scmp.eq.s32.totalorder %s18, 0
    %p59 = por %p57, %p58
    %s60 = sadd.s32 %s20, 1
    %s61 = sadd.s32 %s27, 1
    %s62 = ssub.s32 %s19, %s31
    %s63 = ssub.s32 %s60, %s61
    %s64 = sor.u32 %s62, %s63
    %p65 = scmp.eq.s32.totalorder %s64, 0
    %s67 = sadd.s32 %s66, 1
    %s68 = scalar_select %p65, %s66, %s67
    %p71 = pneg %p65
    %p72 = scmp.eq.s32.totalorder %s12, 31
    %p73 = por %p71, %p72
    %p74 = scmp.ne.s32.totalorder %s66, %s69
    %p75 = scmp.eq.s32.totalorder %s12, 0
    %p76 = por %p74, %p75
    %p77 = scmp.ne.s32.totalorder %s66, %s69
    %p78 = scmp.eq.s32.totalorder %s17, 31
    %p79 = por %p77, %p78
    %p80 = scmp.ne.s32.totalorder %s69, %s70
    %p81 = scmp.eq.s32.totalorder %s17, 0
    %p82 = por %p80, %p81
    %p83 = scmp.ne.s32.totalorder %s69, %s70
    %p84 = scmp.eq.s32.totalorder %s18, 31
    %p85 = por %p83, %p84
    %p87 = scmp.ne.s32.totalorder %s70, %s86
    %p88 = scmp.eq.s32.totalorder %s18, 0
    %p89 = por %p87, %p88
    %s90 = sadd.s32 %s20, 2
    %s91 = sadd.s32 %s27, 2
    %s92 = ssub.s32 %s19, %s31
    %s93 = ssub.s32 %s90, %s91
    %s94 = sor.u32 %s92, %s93
    %p95 = scmp.eq.s32.totalorder %s94, 0
    %s97 = sadd.s32 %s96, 1
    %s98 = scalar_select %p95, %s96, %s97
    %p101 = pneg %p95
    %p102 = scmp.eq.s32.totalorder %s12, 31
    %p103 = por %p101, %p102
    %p104 = scmp.ne.s32.totalorder %s96, %s99
    %p105 = scmp.eq.s32.totalorder %s12, 0
    %p106 = por %p104, %p105
    %p107 = scmp.ne.s32.totalorder %s96, %s99
    %p108 = scmp.eq.s32.totalorder %s17, 31
    %p109 = por %p107, %p108
    %p110 = scmp.ne.s32.totalorder %s99, %s100
    %p111 = scmp.eq.s32.totalorder %s17, 0
    %p112 = por %p110, %p111
    %p113 = scmp.ne.s32.totalorder %s99, %s100
    %p114 = scmp.eq.s32.totalorder %s18, 31
    %p115 = por %p113, %p114
    %p117 = scmp.ne.s32.totalorder %s100, %s116
    %p118 = scmp.eq.s32.totalorder %s18, 0
    %p119 = por %p117, %p118
    %s121 = sadd.s32 %s120, 1
    %p124 = scmp.eq.s32.totalorder %s12, 31
    %p125 = scmp.ne.s32.totalorder %s120, %s122
    %p126 = scmp.eq.s32.totalorder %s12, 0
    %p127 = por %p125, %p126
    %p128 = scmp.ne.s32.totalorder %s120, %s122
    %p129 = scmp.eq.s32.totalorder %s17, 31
    %p130 = por %p128, %p129
    %p131 = scmp.ne.s32.totalorder %s122, %s123
    %p132 = scmp.eq.s32.totalorder %s17, 0
    %p133 = por %p131, %p132
    %p134 = scmp.ne.s32.totalorder %s122, %s123
    %p135 = scmp.eq.s32.totalorder %s18, 31
    %p136 = por %p134, %p135
    %p138 = scmp.ne.s32.totalorder %s123, %s137
    %p139 = scmp.eq.s32.totalorder %s18, 0
    %p140 = por %p138, %p139
    %s141 = smul.u32 %s19, 16
    %s142 = sadd.s32 %s141, %s20
    %s143 = smul.u32 %s31, 16
    %s144 = sadd.s32 %s143, %s27
    %s145 = ssub.s32 %s142, %s144
    %p146 = scmp.eq.s32.totalorder %s145, 0
    %s148 = sadd.s32 %s147, 1
    %s149 = scalar_select %p146, %s147, %s148
    %p152 = pneg %p146
    %p153 = scmp.eq.s32.totalorder %s12, 31
    %p154 = por %p152, %p153
    %p155 = scmp.ne.s32.totalorder %s147, %s150
    %p156 = scmp.eq.s32.totalorder %s12, 0
    %p157 = por %p155, %p156
    %p158 = scmp.ne.s32.totalorder %s147, %s150
    %p159 = scmp.eq.s32.totalorder %s17, 31
    %p160 = por %p158, %p159
    %p161 = scmp.ne.s32.totalorder %s150, %s151
    %p162 = scmp.eq.s32.totalorder %s17, 0
    %p163 = por %p161, %p162
    %p164 = scmp.ne.s32.totalorder %s150, %s151
    %p165 = scmp.eq.s32.totalorder %s18, 31
    %p166 = por %p164, %p165
    %p168 = scmp.ne.s32.totalorder %s151, %s167
    %p169 = scmp.eq.s32.totalorder %s18, 0
    %p170 = por %p168, %p169
    %s171 = smul.u32 %s19, 16
    %s172 = sadd.s32 %s171, %s20
    %s173 = smul.u32 %s31, 16
    %s174 = sadd.s32 %s173, %s27
    %s175 = ssub.s32 %s172, %s174
    %p176 = scmp.eq.s32.totalorder %s175, 0
    %s178 = sadd.s32 %s177, 1
    %s179 = scalar_select %p176, %s177, %s178
    %p182 = pneg %p176
    %p183 = scmp.eq.s32.totalorder %s12, 31
    %p184 = por %p182, %p183
    %p185 = scmp.ne.s32.totalorder %s177, %s180
    %p186 = scmp.eq.s32.totalorder %s12, 0
    %p187 = por %p185, %p186
    %p188 = scmp.ne.s32.totalorder %s177, %s180
    %p189 = scmp.eq.s32.totalorder %s17, 31
    %p190 = por %p188, %p189
    %p191 = scmp.ne.s32.totalorder %s180, %s181
    %p192 = scmp.eq.s32.totalorder %s17, 0
    %p193 = por %p191, %p192
    %p194 = scmp.ne.s32.totalorder %s180, %s181
    %p195 = scmp.eq.s32.totalorder %s18, 31
    %p196 = por %p194, %p195
    %p198 = scmp.ne.s32.totalorder %s181, %s197
    %p199 = scmp.eq.s32.totalorder %s18, 0
    %p200 = por %p198, %p199
    %p201 = scmp.le.s32.totalorder 1, %s12
    %p202 = scmp.lt.s32.totalorder %s12, 33
    %p203 = pnand %p201, %p202
    %p204 = pneg %p203
    // Predicated region
    $region9: #{conv_block_forward.6} parent=5 // pred_check
      _
    $region10: #{conv_block_forward.6} parent=5 // pred_check_branch
      %206 = sbr.rel (%p203) target = $region12
    $region11: #{conv_block_forward.6} parent=5 // pred_region
      %s207 = ssub.s32 %s12, 1
      // Predicated region
      $region13: #{conv_block_forward.6} parent=11 // pred_check
        %p208 = pneg %p133
      $region14: #{conv_block_forward.6} parent=11 // pred_check_branch
        %210 = sbr.rel (%p208) target = $region16
      $region15: #{conv_block_forward.6} parent=11 // pred_region
        _
      $region16: #{conv_block_forward.6} parent=11 // pred_fallthru
        _
    $region12: #{conv_block_forward.6} parent=5 // pred_fallthru
      _
    %p211 = scmp.lt.s32.totalorder %s12, 32
    // Predicated region
    $region17: #{conv_block_forward.6} parent=5 // pred_check
      %p212 = pneg %p211
    $region18: #{conv_block_forward.6} parent=5 // pred_check_branch
      %214 = sbr.rel (%p212) target = $region20
    $region19: #{conv_block_forward.6} parent=5 // pred_region
      // Predicated region
      $region21: #{conv_block_forward.6} parent=19 // pred_check
        %p215 = pneg %p46
      $region22: #{conv_block_forward.6} parent=19 // pred_check_branch
        %217 = sbr.rel (%p215) target = $region24
      $region23: #{conv_block_forward.6} parent=19 // pred_region
        %p218 = scmp.lt.s32.totalorder %s19, 1
        %s219 = scalar_select %p218, %s19, 1
        %p220 = scmp.lt.s32.totalorder %s20, 17
        %s221 = scalar_select %p220, %s20, 17
        %s222 = smul.addr %s221, 54
        %s223 = smul.addr %s219, 972
        %s224 = sadd.s32 %s222, %s223
        %s225 = smul.addr %s224, 4
        %s226 = scalar_lea.vmem %s0, %s225
      $region24: #{conv_block_forward.6} parent=19 // pred_fallthru
        _
      // Predicated region
      $region25: #{conv_block_forward.6} parent=19 // pred_check
        %p227 = pneg %p76
      $region26: #{conv_block_forward.6} parent=19 // pred_check_branch
        %229 = sbr.rel (%p227) target = $region28
      $region27: #{conv_block_forward.6} parent=19 // pred_region
        %s230 = sadd.s32 %s20, 1
        %p231 = scmp.lt.s32.totalorder %s19, 1
        %s232 = scalar_select %p231, %s19, 1
        %p233 = scmp.lt.s32.totalorder %s230, 17
        %s234 = scalar_select %p233, %s230, 17
        %s235 = smul.addr %s234, 54
        %s236 = smul.addr %s232, 972
        %s237 = sadd.s32 %s235, %s236
        %s238 = smul.addr %s237, 4
        %s239 = scalar_lea.vmem %s1, %s238
        %s240 = sadd.s32 %s20, 1
      $region28: #{conv_block_forward.6} parent=19 // pred_fallthru
        _
      // Predicated region
      $region29: #{conv_block_forward.6} parent=19 // pred_check
        %p241 = pneg %p106
      $region30: #{conv_block_forward.6} parent=19 // pred_check_branch
        %243 = sbr.rel (%p241) target = $region32
      $region31: #{conv_block_forward.6} parent=19 // pred_region
        %s244 = sadd.s32 %s20, 2
        %p245 = scmp.lt.s32.totalorder %s19, 1
        %s246 = scalar_select %p245, %s19, 1
        %p247 = scmp.lt.s32.totalorder %s244, 17
        %s248 = scalar_select %p247, %s244, 17
        %s249 = smul.addr %s248, 54
        %s250 = smul.addr %s246, 972
        %s251 = sadd.s32 %s249, %s250
        %s252 = smul.addr %s251, 4
        %s253 = scalar_lea.vmem %s2, %s252
        %s254 = sadd.s32 %s20, 2
      $region32: #{conv_block_forward.6} parent=19 // pred_fallthru
        _
    $region20: #{conv_block_forward.6} parent=5 // pred_fallthru
      _
    %p255 = scmp.le.s32.totalorder 1, %s12
    %p256 = scmp.lt.s32.totalorder %s12, 33
    %p257 = pnand %p255, %p256
    %p258 = pneg %p257
    // Predicated region
    $region33: #{conv_block_forward.6} parent=5 // pred_check
      _
    $region34: #{conv_block_forward.6} parent=5 // pred_check_branch
      %260 = sbr.rel (%p257) target = $region36
    $region35: #{conv_block_forward.6} parent=5 // pred_region
      %s261 = ssub.s32 %s12, 1
      %p262 = scmp.lt.s32.totalorder %s21, 1
      %s263 = scalar_select %p262, %s21, 1
      %p264 = scmp.lt.s32.totalorder %s22, 17
      %s265 = scalar_select %p264, %s22, 17
      %s266 = smul.addr %s265, 54
      %s267 = smul.addr %s263, 972
      %s268 = sadd.s32 %s266, %s267
      %s269 = smul.addr %s268, 4
      %s270 = scalar_lea.vmem %s0, %s269
      %p271 = pneg %p52
      %p272 = pneg %p49
      %s273 = sadd.s32 %s22, 1
      %p274 = scmp.lt.s32.totalorder %s21, 1
      %s275 = scalar_select %p274, %s21, 1
      %p276 = scmp.lt.s32.totalorder %s273, 17
      %s277 = scalar_select %p276, %s273, 17
      %s278 = smul.addr %s277, 54
      %s279 = smul.addr %s275, 972
      %s280 = sadd.s32 %s278, %s279
      %s281 = smul.addr %s280, 4
      %s282 = scalar_lea.vmem %s1, %s281
      %p283 = pneg %p82
      %p284 = pneg %p79
      %s285 = sadd.s32 %s22, 2
      %p286 = scmp.lt.s32.totalorder %s21, 1
      %s287 = scalar_select %p286, %s21, 1
      %p288 = scmp.lt.s32.totalorder %s285, 17
      %s289 = scalar_select %p288, %s285, 17
      %s290 = smul.addr %s289, 54
      %s291 = smul.addr %s287, 972
      %s292 = sadd.s32 %s290, %s291
      %s293 = smul.addr %s292, 4
      %s294 = scalar_lea.vmem %s2, %s293
      %p295 = pneg %p112
      %p296 = pneg %p109
      %p297 = pneg %p133
      %p298 = pneg %p130
      %p299 = pneg %p163
      %p300 = pneg %p160
      %s301 = smul.u32 %s21, 16
      %s302 = sadd.s32 %s301, %s22
      %s303 = smul.u32 32, %s302
      %p304 = scmp.lt.s32.totalorder %s303, 1023
      %s305 = scalar_select %p304, %s303, 1023
      %s306 = smul.addr %s305, 8
      %s307 = scalar_lea.vmem %s4, %s306
      %p308 = pneg %p193
      %p309 = pneg %p190
      %s310 = smul.u32 %s21, 16
      %s311 = sadd.s32 %s310, %s22
      %p312 = scmp.lt.s32.totalorder %s311, 31
      %s313 = scalar_select %p312, %s311, 31
      %s314 = smul.addr %s313, 2
      %s315 = scalar_lea.vmem %s5, %s314
      %p316 = scmp.lt.s32.totalorder %s21, 1
      %s317 = scalar_select %p316, %s21, 1
      %p318 = scmp.lt.s32.totalorder %s22, 17
      %s319 = scalar_select %p318, %s22, 17
      %s320 = smul.addr %s319, 54
      %s321 = smul.addr %s317, 972
      %s322 = sadd.s32 %s320, %s321
      %s323 = smul.addr %s322, 4
      %s324 = scalar_lea.vmem %s0, %s323
      %s325 = sadd.s32 %s22, 1
      %p326 = scmp.lt.s32.totalorder %s21, 1
      %s327 = scalar_select %p326, %s21, 1
      %p328 = scmp.lt.s32.totalorder %s325, 17
      %s329 = scalar_select %p328, %s325, 17
      %s330 = smul.addr %s329, 54
      %s331 = smul.addr %s327, 972
      %s332 = sadd.s32 %s330, %s331
      %s333 = smul.addr %s332, 4
      %s334 = scalar_lea.vmem %s1, %s333
      %s335 = sadd.s32 %s22, 1
      %s336 = sadd.s32 %s22, 2
      %p337 = scmp.lt.s32.totalorder %s21, 1
      %s338 = scalar_select %p337, %s21, 1
      %p339 = scmp.lt.s32.totalorder %s336, 17
      %s340 = scalar_select %p339, %s336, 17
      %s341 = smul.addr %s340, 54
      %s342 = smul.addr %s338, 972
      %s343 = sadd.s32 %s341, %s342
      %s344 = smul.addr %s343, 4
      %s345 = scalar_lea.vmem %s2, %s344
      %s346 = sadd.s32 %s22, 2
      %s347 = smul.u32 %s21, 16
      %s348 = sadd.s32 %s347, %s22
      %s349 = smul.u32 32, %s348
      %p350 = scmp.lt.s32.totalorder %s349, 1023
      %s351 = scalar_select %p350, %s349, 1023
      %s352 = smul.addr %s351, 8
      %s353 = scalar_lea.vmem %s4, %s352
      %s354 = smul.u32 %s21, 16
      %s355 = sadd.s32 %s354, %s22
      %s356 = smul.u32 32, %s355
      %s357 = smul.u32 %s21, 16
      %s358 = sadd.s32 %s357, %s22
      %p359 = scmp.lt.s32.totalorder %s358, 31
      %s360 = scalar_select %p359, %s358, 31
      %s361 = smul.addr %s360, 2
      %s362 = scalar_lea.vmem %s5, %s361
      %s363 = smul.u32 %s21, 16
      %s364 = sadd.s32 %s363, %s22
      %v366 = vld [vmem:[%s324] sm:$0xf]
      %v367 = vld [vmem:[%s324 + $0x4] sm:$0xf]
      %v368 = vld [vmem:[%s324 + $0x8] sm:$0x1]
      %v369 = vld [vmem:[%s324 + $0xc] sm:$0xf]
      %v370 = vld [vmem:[%s324 + $0x10] sm:$0xf]
      %v371 = vld [vmem:[%s324 + $0x14] sm:$0x1]
      %v372 = vld [vmem:[%s324 + $0x18] sm:$0xf]
      %v373 = vld [vmem:[%s324 + $0x1c] sm:$0xf]
      %v374 = vld [vmem:[%s324 + $0x20] sm:$0x1]
      %v375 = vld [vmem:[%s324 + $0x24] sm:$0xf]
      %v376 = vld [vmem:[%s324 + $0x28] sm:$0xf]
      %v377 = vld [vmem:[%s324 + $0x2c] sm:$0x1]
      %v378 = vld [vmem:[%s324 + $0x30] sm:$0xf]
      %v379 = vld [vmem:[%s324 + $0x34] sm:$0xf]
      %v380 = vld [vmem:[%s324 + $0x38] sm:$0x1]
      %v381 = vld [vmem:[%s324 + $0x3c] sm:$0xf]
      %v382 = vld [vmem:[%s324 + $0x40] sm:$0xf]
      %v383 = vld [vmem:[%s324 + $0x44] sm:$0x1]
      %v384 = vld [vmem:[%s324 + $0x48] sm:$0xf]
      %v385 = vld [vmem:[%s324 + $0x4c] sm:$0xf]
      %v386 = vld [vmem:[%s324 + $0x50] sm:$0x1]
      %v387 = vld [vmem:[%s324 + $0x54] sm:$0xf]
      %v388 = vld [vmem:[%s324 + $0x58] sm:$0xf]
      %v389 = vld [vmem:[%s324 + $0x5c] sm:$0x1]
      %v390 = vld [vmem:[%s324 + $0x60] sm:$0xf]
      %v391 = vld [vmem:[%s324 + $0x64] sm:$0xf]
      %v392 = vld [vmem:[%s324 + $0x68] sm:$0x1]
      %v393 = vld [vmem:[%s324 + $0x6c] sm:$0xf]
      %v394 = vld [vmem:[%s324 + $0x70] sm:$0xf]
      %v395 = vld [vmem:[%s324 + $0x74] sm:$0x1]
      %v396 = vld [vmem:[%s324 + $0x78] sm:$0xf]
      %v397 = vld [vmem:[%s324 + $0x7c] sm:$0xf]
      %v398 = vld [vmem:[%s324 + $0x80] sm:$0x1]
      %v399 = vld [vmem:[%s324 + $0x84] sm:$0xf]
      %v400 = vld [vmem:[%s324 + $0x88] sm:$0xf]
      %v401 = vld [vmem:[%s324 + $0x8c] sm:$0x1]
      %v402 = vld [vmem:[%s324 + $0x90] sm:$0xf]
      %v403 = vld [vmem:[%s324 + $0x94] sm:$0xf]
      %v404 = vld [vmem:[%s324 + $0x98] sm:$0x1]
      %v405 = vld [vmem:[%s324 + $0x9c] sm:$0xf]
      %v406 = vld [vmem:[%s324 + $0xa0] sm:$0xf]
      %v407 = vld [vmem:[%s324 + $0xa4] sm:$0x1]
      %v408 = vld [vmem:[%s324 + $0xa8] sm:$0xf]
      %v409 = vld [vmem:[%s324 + $0xac] sm:$0xf]
      %v410 = vld [vmem:[%s324 + $0xb0] sm:$0x1]
      %v411 = vld [vmem:[%s324 + $0xb4] sm:$0xf]
      %v412 = vld [vmem:[%s324 + $0xb8] sm:$0xf]
      %v413 = vld [vmem:[%s324 + $0xbc] sm:$0x1]
      %v414 = vld [vmem:[%s324 + $0xc0] sm:$0xf]
      %v415 = vld [vmem:[%s324 + $0xc4] sm:$0xf]
      %v416 = vld [vmem:[%s324 + $0xc8] sm:$0x1]
      %v417 = vld [vmem:[%s324 + $0xcc] sm:$0xf]
      %v418 = vld [vmem:[%s324 + $0xd0] sm:$0xf]
      %v419 = vld [vmem:[%s324 + $0xd4] sm:$0x1]
      %v452 = vunpack.c.l.b16 %v366
      %v453 = vunpack.c.l.b16 %v367
      %v454 = vunpack.c.l.b16 %v369
      %v455 = vunpack.c.l.b16 %v370
      %v456 = vunpack.c.l.b16 %v372
      %v457 = vunpack.c.l.b16 %v373
      %v458 = vunpack.c.l.b16 %v375
      %v459 = vunpack.c.l.b16 %v376
      %v460 = vunpack.c.l.b16 %v378
      %v461 = vunpack.c.l.b16 %v379
      %v462 = vunpack.c.l.b16 %v381
      %v463 = vunpack.c.l.b16 %v382
      %v464 = vunpack.c.l.b16 %v384
      %v465 = vunpack.c.l.b16 %v385
      %v466 = vunpack.c.l.b16 %v387
      %v467 = vunpack.c.l.b16 %v388
      %v468 = vunpack.c.l.b16 %v390
      %v469 = vunpack.c.l.b16 %v391
      %v470 = vunpack.c.l.b16 %v393
      %v471 = vunpack.c.l.b16 %v394
      %v472 = vunpack.c.l.b16 %v396
      %v473 = vunpack.c.l.b16 %v397
      %v474 = vunpack.c.l.b16 %v399
      %v475 = vunpack.c.l.b16 %v400
      %v476 = vunpack.c.l.b16 %v402
      %v477 = vunpack.c.l.b16 %v403
      %v478 = vunpack.c.l.b16 %v405
      %v479 = vunpack.c.l.b16 %v406
      %v480 = vunpack.c.l.b16 %v408
      %v481 = vunpack.c.l.b16 %v409
      %v482 = vunpack.c.l.b16 %v411
      %v483 = vunpack.c.l.b16 %v412
      %v484 = vpack.c.b16 %v453, %v452
      %v485 = vpack.c.b16 %v455, %v454
      %v486 = vpack.c.b16 %v457, %v456
      %v487 = vpack.c.b16 %v459, %v458
      %v488 = vpack.c.b16 %v461, %v460
      %v489 = vpack.c.b16 %v463, %v462
      %v490 = vpack.c.b16 %v465, %v464
      %v491 = vpack.c.b16 %v467, %v466
      %v492 = vpack.c.b16 %v469, %v468
      %v493 = vpack.c.b16 %v471, %v470
      %v494 = vpack.c.b16 %v473, %v472
      %v495 = vpack.c.b16 %v475, %v474
      %v496 = vpack.c.b16 %v477, %v476
      %v497 = vpack.c.b16 %v479, %v478
      %v498 = vpack.c.b16 %v481, %v480
      %v499 = vpack.c.b16 %v483, %v482
      %v516 = vunpack.c.l.b16 %v368
      %v517 = vunpack.c.l.b16 %v371
      %v518 = vunpack.c.l.b16 %v374
      %v519 = vunpack.c.l.b16 %v377
      %v520 = vunpack.c.l.b16 %v380
      %v521 = vunpack.c.l.b16 %v383
      %v522 = vunpack.c.l.b16 %v386
      %v523 = vunpack.c.l.b16 %v389
      %v524 = vunpack.c.l.b16 %v392
      %v525 = vunpack.c.l.b16 %v395
      %v526 = vunpack.c.l.b16 %v398
      %v527 = vunpack.c.l.b16 %v401
      %v528 = vunpack.c.l.b16 %v404
      %v529 = vunpack.c.l.b16 %v407
      %v530 = vunpack.c.l.b16 %v410
      %v531 = vunpack.c.l.b16 %v413
      %v532 = vpack.c.b16 %v516, %v516
      %v533 = vpack.c.b16 %v517, %v517
      %v534 = vpack.c.b16 %v518, %v518
      %v535 = vpack.c.b16 %v519, %v519
      %v536 = vpack.c.b16 %v520, %v520
      %v537 = vpack.c.b16 %v521, %v521
      %v538 = vpack.c.b16 %v522, %v522
      %v539 = vpack.c.b16 %v523, %v523
      %v540 = vpack.c.b16 %v524, %v524
      %v541 = vpack.c.b16 %v525, %v525
      %v542 = vpack.c.b16 %v526, %v526
      %v543 = vpack.c.b16 %v527, %v527
      %v544 = vpack.c.b16 %v528, %v528
      %v545 = vpack.c.b16 %v529, %v529
      %v546 = vpack.c.b16 %v530, %v530
      %v547 = vpack.c.b16 %v531, %v531
      %vm548 = vsmask.f32 7424
      %v550 = vshrl.u32 %v484, 16
      %v552 = vshll.u32 %v484, 16
      %v554 = vrot.slane %v552, 1
      %v555 = vor.u32 %v550, %v554
      %v557 = vshll.u32 %v532, 16
      %v559 = vrot.slane %v557, 1
      %v560 = vsel %vm548, %v555, %v559
      %v562 = vshrl.u32 %v485, 16
      %v564 = vshll.u32 %v485, 16
      %v566 = vrot.slane %v564, 1
      %v567 = vor.u32 %v562, %v566
      %v569 = vshll.u32 %v533, 16
      %v571 = vrot.slane %v569, 1
      %v572 = vsel %vm548, %v567, %v571
      %v574 = vshrl.u32 %v486, 16
      %v576 = vshll.u32 %v486, 16
      %v578 = vrot.slane %v576, 1
      %v579 = vor.u32 %v574, %v578
      %v581 = vshll.u32 %v534, 16
      %v583 = vrot.slane %v581, 1
      %v584 = vsel %vm548, %v579, %v583
      %v586 = vshrl.u32 %v487, 16
      %v588 = vshll.u32 %v487, 16
      %v590 = vrot.slane %v588, 1
      %v591 = vor.u32 %v586, %v590
      %v593 = vshll.u32 %v535, 16
      %v595 = vrot.slane %v593, 1
      %v596 = vsel %vm548, %v591, %v595
      %v598 = vshrl.u32 %v488, 16
      %v600 = vshll.u32 %v488, 16
      %v602 = vrot.slane %v600, 1
      %v603 = vor.u32 %v598, %v602
      %v605 = vshll.u32 %v536, 16
      %v607 = vrot.slane %v605, 1
      %v608 = vsel %vm548, %v603, %v607
      %v610 = vshrl.u32 %v489, 16
      %v612 = vshll.u32 %v489, 16
      %v614 = vrot.slane %v612, 1
      %v615 = vor.u32 %v610, %v614
      %v617 = vshll.u32 %v537, 16
      %v619 = vrot.slane %v617, 1
      %v620 = vsel %vm548, %v615, %v619
      %v622 = vshrl.u32 %v490, 16
      %v624 = vshll.u32 %v490, 16
      %v626 = vrot.slane %v624, 1
      %v627 = vor.u32 %v622, %v626
      %v629 = vshll.u32 %v538, 16
      %v631 = vrot.slane %v629, 1
      %v632 = vsel %vm548, %v627, %v631
      %v634 = vshrl.u32 %v491, 16
      %v636 = vshll.u32 %v491, 16
      %v638 = vrot.slane %v636, 1
      %v639 = vor.u32 %v634, %v638
      %v641 = vshll.u32 %v539, 16
      %v643 = vrot.slane %v641, 1
      %v644 = vsel %vm548, %v639, %v643
      %v646 = vshrl.u32 %v492, 16
      %v648 = vshll.u32 %v492, 16
      %v650 = vrot.slane %v648, 1
      %v651 = vor.u32 %v646, %v650
      %v653 = vshll.u32 %v540, 16
      %v655 = vrot.slane %v653, 1
      %v656 = vsel %vm548, %v651, %v655
      %v658 = vshrl.u32 %v493, 16
      %v660 = vshll.u32 %v493, 16
      %v662 = vrot.slane %v660, 1
      %v663 = vor.u32 %v658, %v662
      %v665 = vshll.u32 %v541, 16
      %v667 = vrot.slane %v665, 1
      %v668 = vsel %vm548, %v663, %v667
      %v670 = vshrl.u32 %v494, 16
      %v672 = vshll.u32 %v494, 16
      %v674 = vrot.slane %v672, 1
      %v675 = vor.u32 %v670, %v674
      %v677 = vshll.u32 %v542, 16
      %v679 = vrot.slane %v677, 1
      %v680 = vsel %vm548, %v675, %v679
      %v682 = vshrl.u32 %v495, 16
      %v684 = vshll.u32 %v495, 16
      %v686 = vrot.slane %v684, 1
      %v687 = vor.u32 %v682, %v686
      %v689 = vshll.u32 %v543, 16
      %v691 = vrot.slane %v689, 1
      %v692 = vsel %vm548, %v687, %v691
      %v694 = vshrl.u32 %v496, 16
      %v696 = vshll.u32 %v496, 16
      %v698 = vrot.slane %v696, 1
      %v699 = vor.u32 %v694, %v698
      %v701 = vshll.u32 %v544, 16
      %v703 = vrot.slane %v701, 1
      %v704 = vsel %vm548, %v699, %v703
      %v706 = vshrl.u32 %v497, 16
      %v708 = vshll.u32 %v497, 16
      %v710 = vrot.slane %v708, 1
      %v711 = vor.u32 %v706, %v710
      %v713 = vshll.u32 %v545, 16
      %v715 = vrot.slane %v713, 1
      %v716 = vsel %vm548, %v711, %v715
      %v718 = vshrl.u32 %v498, 16
      %v720 = vshll.u32 %v498, 16
      %v722 = vrot.slane %v720, 1
      %v723 = vor.u32 %v718, %v722
      %v725 = vshll.u32 %v546, 16
      %v727 = vrot.slane %v725, 1
      %v728 = vsel %vm548, %v723, %v727
      %v730 = vshrl.u32 %v499, 16
      %v732 = vshll.u32 %v499, 16
      %v734 = vrot.slane %v732, 1
      %v735 = vor.u32 %v730, %v734
      %v737 = vshll.u32 %v547, 16
      %v739 = vrot.slane %v737, 1
      %v740 = vsel %vm548, %v735, %v739
      %741 = vrot.lane.b32.xlu0 %v560, 8
      %v742 = vpop.permute.xlu0 %741
      %743 = vrot.lane.b32.xlu0 %v572, 8
      %v744 = vpop.permute.xlu0 %743
      %745 = vrot.lane.b32.xlu0 %v584, 8
      %v746 = vpop.permute.xlu0 %745
      %747 = vrot.lane.b32.xlu0 %v596, 8
      %v748 = vpop.permute.xlu0 %747
      %749 = vrot.lane.b32.xlu0 %v608, 8
      %v750 = vpop.permute.xlu0 %749
      %751 = vrot.lane.b32.xlu0 %v620, 8
      %v752 = vpop.permute.xlu0 %751
      %753 = vrot.lane.b32.xlu0 %v632, 8
      %v754 = vpop.permute.xlu0 %753
      %755 = vrot.lane.b32.xlu0 %v644, 8
      %v756 = vpop.permute.xlu0 %755
      %757 = vrot.lane.b32.xlu0 %v656, 8
      %v758 = vpop.permute.xlu0 %757
      %759 = vrot.lane.b32.xlu0 %v668, 8
      %v760 = vpop.permute.xlu0 %759
      %761 = vrot.lane.b32.xlu0 %v680, 8
      %v762 = vpop.permute.xlu0 %761
      %763 = vrot.lane.b32.xlu0 %v692, 8
      %v764 = vpop.permute.xlu0 %763
      %765 = vrot.lane.b32.xlu0 %v704, 8
      %v766 = vpop.permute.xlu0 %765
      %767 = vrot.lane.b32.xlu0 %v716, 8
      %v768 = vpop.permute.xlu0 %767
      %769 = vrot.lane.b32.xlu0 %v728, 8
      %v770 = vpop.permute.xlu0 %769
      %771 = vrot.lane.b32.xlu0 %v740, 8
      %v772 = vpop.permute.xlu0 %771
      %vm773 = vcmask 1046528
      %v774 = vrot.slane %v484, 1
      %v775 = vrot.slane %v532, 1
      %v776 = vsel %vm773, %v774, %v775
      %v777 = vrot.slane %v485, 1
      %v778 = vrot.slane %v533, 1
      %v779 = vsel %vm773, %v777, %v778
      %v780 = vrot.slane %v486, 1
      %v781 = vrot.slane %v534, 1
      %v782 = vsel %vm773, %v780, %v781
      %v783 = vrot.slane %v487, 1
      %v784 = vrot.slane %v535, 1
      %v785 = vsel %vm773, %v783, %v784
      %v786 = vrot.slane %v488, 1
      %v787 = vrot.slane %v536, 1
      %v788 = vsel %vm773, %v786, %v787
      %v789 = vrot.slane %v489, 1
      %v790 = vrot.slane %v537, 1
      %v791 = vsel %vm773, %v789, %v790
      %v792 = vrot.slane %v490, 1
      %v793 = vrot.slane %v538, 1
      %v794 = vsel %vm773, %v792, %v793
      %v795 = vrot.slane %v491, 1
      %v796 = vrot.slane %v539, 1
      %v797 = vsel %vm773, %v795, %v796
      %v798 = vrot.slane %v492, 1
      %v799 = vrot.slane %v540, 1
      %v800 = vsel %vm773, %v798, %v799
      %v801 = vrot.slane %v493, 1
      %v802 = vrot.slane %v541, 1
      %v803 = vsel %vm773, %v801, %v802
      %v804 = vrot.slane %v494, 1
      %v805 = vrot.slane %v542, 1
      %v806 = vsel %vm773, %v804, %v805
      %v807 = vrot.slane %v495, 1
      %v808 = vrot.slane %v543, 1
      %v809 = vsel %vm773, %v807, %v808
      %v810 = vrot.slane %v496, 1
      %v811 = vrot.slane %v544, 1
      %v812 = vsel %vm773, %v810, %v811
      %v813 = vrot.slane %v497, 1
      %v814 = vrot.slane %v545, 1
      %v815 = vsel %vm773, %v813, %v814
      %v816 = vrot.slane %v498, 1
      %v817 = vrot.slane %v546, 1
      %v818 = vsel %vm773, %v816, %v817
      %v819 = vrot.slane %v499, 1
      %v820 = vrot.slane %v547, 1
      %v821 = vsel %vm773, %v819, %v820
      %822 = vrot.lane.b32.xlu0 %v776, 16
      %v823 = vpop.permute.xlu0 %822
      %824 = vrot.lane.b32.xlu0 %v779, 16
      %v825 = vpop.permute.xlu0 %824
      %826 = vrot.lane.b32.xlu0 %v782, 16
      %v827 = vpop.permute.xlu0 %826
      %828 = vrot.lane.b32.xlu0 %v785, 16
      %v829 = vpop.permute.xlu0 %828
      %830 = vrot.lane.b32.xlu0 %v788, 16
      %v831 = vpop.permute.xlu0 %830
      %832 = vrot.lane.b32.xlu0 %v791, 16
      %v833 = vpop.permute.xlu0 %832
      %834 = vrot.lane.b32.xlu0 %v794, 16
      %v835 = vpop.permute.xlu0 %834
      %836 = vrot.lane.b32.xlu0 %v797, 16
      %v837 = vpop.permute.xlu0 %836
      %838 = vrot.lane.b32.xlu0 %v800, 16
      %v839 = vpop.permute.xlu0 %838
      %840 = vrot.lane.b32.xlu0 %v803, 16
      %v841 = vpop.permute.xlu0 %840
      %842 = vrot.lane.b32.xlu0 %v806, 16
      %v843 = vpop.permute.xlu0 %842
      %844 = vrot.lane.b32.xlu0 %v809, 16
      %v845 = vpop.permute.xlu0 %844
      %846 = vrot.lane.b32.xlu0 %v812, 16
      %v847 = vpop.permute.xlu0 %846
      %848 = vrot.lane.b32.xlu0 %v815, 16
      %v849 = vpop.permute.xlu0 %848
      %850 = vrot.lane.b32.xlu0 %v818, 16
      %v851 = vpop.permute.xlu0 %850
      %852 = vrot.lane.b32.xlu0 %v821, 16
      %v853 = vpop.permute.xlu0 %852
      %v856 = vunpack.c.l.b16 %v414
      %v857 = vunpack.c.l.b16 %v415
      %v858 = vpack.c.b16 %v857, %v856
      %859 = vrot.lane.b32.xlu0 %v485, 24
      %v860 = vpop.permute.xlu0 %859
      %861 = vrot.lane.b32.xlu0 %v486, 24
      %v862 = vpop.permute.xlu0 %861
      %863 = vrot.lane.b32.xlu0 %v487, 24
      %v864 = vpop.permute.xlu0 %863
      %865 = vrot.lane.b32.xlu0 %v488, 24
      %v866 = vpop.permute.xlu0 %865
      %867 = vrot.lane.b32.xlu0 %v489, 24
      %v868 = vpop.permute.xlu0 %867
      %869 = vrot.lane.b32.xlu0 %v490, 24
      %v870 = vpop.permute.xlu0 %869
      %871 = vrot.lane.b32.xlu0 %v491, 24
      %v872 = vpop.permute.xlu0 %871
      %873 = vrot.lane.b32.xlu0 %v492, 24
      %v874 = vpop.permute.xlu0 %873
      %875 = vrot.lane.b32.xlu0 %v493, 24
      %v876 = vpop.permute.xlu0 %875
      %877 = vrot.lane.b32.xlu0 %v494, 24
      %v878 = vpop.permute.xlu0 %877
      %879 = vrot.lane.b32.xlu0 %v495, 24
      %v880 = vpop.permute.xlu0 %879
      %881 = vrot.lane.b32.xlu0 %v496, 24
      %v882 = vpop.permute.xlu0 %881
      %883 = vrot.lane.b32.xlu0 %v497, 24
      %v884 = vpop.permute.xlu0 %883
      %885 = vrot.lane.b32.xlu0 %v498, 24
      %v886 = vpop.permute.xlu0 %885
      %887 = vrot.lane.b32.xlu0 %v499, 24
      %v888 = vpop.permute.xlu0 %887
      %889 = vrot.lane.b32.xlu0 %v858, 24
      %v890 = vpop.permute.xlu0 %889
      %v892 = vunpack.c.l.b16 %v416
      %v893 = vpack.c.b16 %v892, %v892
      %v895 = vshrl.u32 %v858, 16
      %v897 = vshll.u32 %v858, 16
      %v899 = vrot.slane %v897, 1
      %v900 = vor.u32 %v895, %v899
      %v902 = vshll.u32 %v893, 16
      %v904 = vrot.slane %v902, 1
      %v905 = vsel %vm548, %v900, %v904
      %906 = vrot.lane.b32.xlu0 %v572, 32
      %v907 = vpop.permute.xlu0 %906
      %908 = vrot.lane.b32.xlu0 %v584, 32
      %v909 = vpop.permute.xlu0 %908
      %910 = vrot.lane.b32.xlu0 %v596, 32
      %v911 = vpop.permute.xlu0 %910
      %912 = vrot.lane.b32.xlu0 %v608, 32
      %v913 = vpop.permute.xlu0 %912
      %914 = vrot.lane.b32.xlu0 %v620, 32
      %v915 = vpop.permute.xlu0 %914
      %916 = vrot.lane.b32.xlu0 %v632, 32
      %v917 = vpop.permute.xlu0 %916
      %918 = vrot.lane.b32.xlu0 %v644, 32
      %v919 = vpop.permute.xlu0 %918
      %920 = vrot.lane.b32.xlu0 %v656, 32
      %v921 = vpop.permute.xlu0 %920
      %922 = vrot.lane.b32.xlu0 %v668, 32
      %v923 = vpop.permute.xlu0 %922
      %924 = vrot.lane.b32.xlu0 %v680, 32
      %v925 = vpop.permute.xlu0 %924
      %926 = vrot.lane.b32.xlu0 %v692, 32
      %v927 = vpop.permute.xlu0 %926
      %928 = vrot.lane.b32.xlu0 %v704, 32
      %v929 = vpop.permute.xlu0 %928
      %930 = vrot.lane.b32.xlu0 %v716, 32
      %v931 = vpop.permute.xlu0 %930
      %932 = vrot.lane.b32.xlu0 %v728, 32
      %v933 = vpop.permute.xlu0 %932
      %934 = vrot.lane.b32.xlu0 %v740, 32
      %v935 = vpop.permute.xlu0 %934
      %936 = vrot.lane.b32.xlu0 %v905, 32
      %v937 = vpop.permute.xlu0 %936
      %v938 = vrot.slane %v858, 1
      %v939 = vrot.slane %v893, 1
      %v940 = vsel %vm773, %v938, %v939
      %941 = vrot.lane.b32.xlu0 %v779, 40
      %v942 = vpop.permute.xlu0 %941
      %943 = vrot.lane.b32.xlu0 %v782, 40
      %v944 = vpop.permute.xlu0 %943
      %945 = vrot.lane.b32.xlu0 %v785, 40
      %v946 = vpop.permute.xlu0 %945
      %947 = vrot.lane.b32.xlu0 %v788, 40
      %v948 = vpop.permute.xlu0 %947
      %949 = vrot.lane.b32.xlu0 %v791, 40
      %v950 = vpop.permute.xlu0 %949
      %951 = vrot.lane.b32.xlu0 %v794, 40
      %v952 = vpop.permute.xlu0 %951
      %953 = vrot.lane.b32.xlu0 %v797, 40
      %v954 = vpop.permute.xlu0 %953
      %955 = vrot.lane.b32.xlu0 %v800, 40
      %v956 = vpop.permute.xlu0 %955
      %957 = vrot.lane.b32.xlu0 %v803, 40
      %v958 = vpop.permute.xlu0 %957
      %959 = vrot.lane.b32.xlu0 %v806, 40
      %v960 = vpop.permute.xlu0 %959
      %961 = vrot.lane.b32.xlu0 %v809, 40
      %v962 = vpop.permute.xlu0 %961
      %963 = vrot.lane.b32.xlu0 %v812, 40
      %v964 = vpop.permute.xlu0 %963
      %965 = vrot.lane.b32.xlu0 %v815, 40
      %v966 = vpop.permute.xlu0 %965
      %967 = vrot.lane.b32.xlu0 %v818, 40
      %v968 = vpop.permute.xlu0 %967
      %969 = vrot.lane.b32.xlu0 %v821, 40
      %v970 = vpop.permute.xlu0 %969
      %971 = vrot.lane.b32.xlu0 %v940, 40
      %v972 = vpop.permute.xlu0 %971
      %v975 = vunpack.c.l.b16 %v417
      %v976 = vunpack.c.l.b16 %v418
      %v977 = vpack.c.b16 %v976, %v975
      %978 = vrot.lane.b32.xlu0 %v486, 48
      %v979 = vpop.permute.xlu0 %978
      %980 = vrot.lane.b32.xlu0 %v487, 48
      %v981 = vpop.permute.xlu0 %980
      %982 = vrot.lane.b32.xlu0 %v488, 48
      %v983 = vpop.permute.xlu0 %982
      %984 = vrot.lane.b32.xlu0 %v489, 48
      %v985 = vpop.permute.xlu0 %984
      %986 = vrot.lane.b32.xlu0 %v490, 48
      %v987 = vpop.permute.xlu0 %986
      %988 = vrot.lane.b32.xlu0 %v491, 48
      %v989 = vpop.permute.xlu0 %988
      %990 = vrot.lane.b32.xlu0 %v492, 48
      %v991 = vpop.permute.xlu0 %990
      %992 = vrot.lane.b32.xlu0 %v493, 48
      %v993 = vpop.permute.xlu0 %992
      %994 = vrot.lane.b32.xlu0 %v494, 48
      %v995 = vpop.permute.xlu0 %994
      %996 = vrot.lane.b32.xlu0 %v495, 48
      %v997 = vpop.permute.xlu0 %996
      %998 = vrot.lane.b32.xlu0 %v496, 48
      %v999 = vpop.permute.xlu0 %998
      %1000 = vrot.lane.b32.xlu0 %v497, 48
      %v1001 = vpop.permute.xlu0 %1000
      %1002 = vrot.lane.b32.xlu0 %v498, 48
      %v1003 = vpop.permute.xlu0 %1002
      %1004 = vrot.lane.b32.xlu0 %v499, 48
      %v1005 = vpop.permute.xlu0 %1004
      %1006 = vrot.lane.b32.xlu0 %v858, 48
      %v1007 = vpop.permute.xlu0 %1006
      %1008 = vrot.lane.b32.xlu0 %v977, 48
      %v1009 = vpop.permute.xlu0 %1008
      %v1011 = vunpack.c.l.b16 %v419
      %v1012 = vpack.c.b16 %v1011, %v1011
      %v1014 = vshrl.u32 %v977, 16
      %v1016 = vshll.u32 %v977, 16
      %v1018 = vrot.slane %v1016, 1
      %v1019 = vor.u32 %v1014, %v1018
      %v1021 = vshll.u32 %v1012, 16
      %v1023 = vrot.slane %v1021, 1
      %v1024 = vsel %vm548, %v1019, %v1023
      %1025 = vrot.lane.b32.xlu0 %v584, 56
      %v1026 = vpop.permute.xlu0 %1025
      %1027 = vrot.lane.b32.xlu0 %v596, 56
      %v1028 = vpop.permute.xlu0 %1027
      %1029 = vrot.lane.b32.xlu0 %v608, 56
      %v1030 = vpop.permute.xlu0 %1029
      %1031 = vrot.lane.b32.xlu0 %v620, 56
      %v1032 = vpop.permute.xlu0 %1031
      %1033 = vrot.lane.b32.xlu0 %v632, 56
      %v1034 = vpop.permute.xlu0 %1033
      %1035 = vrot.lane.b32.xlu0 %v644, 56
      %v1036 = vpop.permute.xlu0 %1035
      %1037 = vrot.lane.b32.xlu0 %v656, 56
      %v1038 = vpop.permute.xlu0 %1037
      %1039 = vrot.lane.b32.xlu0 %v668, 56
      %v1040 = vpop.permute.xlu0 %1039
      %1041 = vrot.lane.b32.xlu0 %v680, 56
      %v1042 = vpop.permute.xlu0 %1041
      %1043 = vrot.lane.b32.xlu0 %v692, 56
      %v1044 = vpop.permute.xlu0 %1043
      %1045 = vrot.lane.b32.xlu0 %v704, 56
      %v1046 = vpop.permute.xlu0 %1045
      %1047 = vrot.lane.b32.xlu0 %v716, 56
      %v1048 = vpop.permute.xlu0 %1047
      %1049 = vrot.lane.b32.xlu0 %v728, 56
      %v1050 = vpop.permute.xlu0 %1049
      %1051 = vrot.lane.b32.xlu0 %v740, 56
      %v1052 = vpop.permute.xlu0 %1051
      %1053 = vrot.lane.b32.xlu0 %v905, 56
      %v1054 = vpop.permute.xlu0 %1053
      %1055 = vrot.lane.b32.xlu0 %v1024, 56
      %v1056 = vpop.permute.xlu0 %1055
      %v1057 = vrot.slane %v977, 1
      %v1058 = vrot.slane %v1012, 1
      %v1059 = vsel %vm773, %v1057, %v1058
      %1060 = vrot.lane.b32.xlu0 %v782, 64
      %v1061 = vpop.permute.xlu0 %1060
      %1062 = vrot.lane.b32.xlu0 %v785, 64
      %v1063 = vpop.permute.xlu0 %1062
      %1064 = vrot.lane.b32.xlu0 %v788, 64
      %v1065 = vpop.permute.xlu0 %1064
      %1066 = vrot.lane.b32.xlu0 %v791, 64
      %v1067 = vpop.permute.xlu0 %1066
      %1068 = vrot.lane.b32.xlu0 %v794, 64
      %v1069 = vpop.permute.xlu0 %1068
      %1070 = vrot.lane.b32.xlu0 %v797, 64
      %v1071 = vpop.permute.xlu0 %1070
      %1072 = vrot.lane.b32.xlu0 %v800, 64
      %v1073 = vpop.permute.xlu0 %1072
      %1074 = vrot.lane.b32.xlu0 %v803, 64
      %v1075 = vpop.permute.xlu0 %1074
      %1076 = vrot.lane.b32.xlu0 %v806, 64
      %v1077 = vpop.permute.xlu0 %1076
      %1078 = vrot.lane.b32.xlu0 %v809, 64
      %v1079 = vpop.permute.xlu0 %1078
      %1080 = vrot.lane.b32.xlu0 %v812, 64
      %v1081 = vpop.permute.xlu0 %1080
      %1082 = vrot.lane.b32.xlu0 %v815, 64
      %v1083 = vpop.permute.xlu0 %1082
      %1084 = vrot.lane.b32.xlu0 %v818, 64
      %v1085 = vpop.permute.xlu0 %1084
      %1086 = vrot.lane.b32.xlu0 %v821, 64
      %v1087 = vpop.permute.xlu0 %1086
      %1088 = vrot.lane.b32.xlu0 %v940, 64
      %v1089 = vpop.permute.xlu0 %1088
      %1090 = vrot.lane.b32.xlu0 %v1059, 64
      %v1091 = vpop.permute.xlu0 %1090
      %vm1092 = vcmask 64512
      %v1094 = vsel %vm1092, %v484, %v742
      %v1096 = vsel %vm1092, %v485, %v744
      %v1098 = vsel %vm1092, %v486, %v746
      %v1100 = vsel %vm1092, %v487, %v748
      %v1102 = vsel %vm1092, %v488, %v750
      %v1104 = vsel %vm1092, %v489, %v752
      %v1106 = vsel %vm1092, %v490, %v754
      %v1108 = vsel %vm1092, %v491, %v756
      %v1110 = vsel %vm1092, %v492, %v758
      %v1112 = vsel %vm1092, %v493, %v760
      %v1114 = vsel %vm1092, %v494, %v762
      %v1116 = vsel %vm1092, %v495, %v764
      %v1118 = vsel %vm1092, %v496, %v766
      %v1120 = vsel %vm1092, %v497, %v768
      %v1122 = vsel %vm1092, %v498, %v770
      %v1124 = vsel %vm1092, %v499, %v772
      %vm1125 = vcmask 130048
      %v1127 = vsel %vm1125, %v1094, %v823
      %v1129 = vsel %vm1125, %v1096, %v825
      %v1131 = vsel %vm1125, %v1098, %v827
      %v1133 = vsel %vm1125, %v1100, %v829
      %v1135 = vsel %vm1125, %v1102, %v831
      %v1137 = vsel %vm1125, %v1104, %v833
      %v1139 = vsel %vm1125, %v1106, %v835
      %v1141 = vsel %vm1125, %v1108, %v837
      %v1143 = vsel %vm1125, %v1110, %v839
      %v1145 = vsel %vm1125, %v1112, %v841
      %v1147 = vsel %vm1125, %v1114, %v843
      %v1149 = vsel %vm1125, %v1116, %v845
      %v1151 = vsel %vm1125, %v1118, %v847
      %v1153 = vsel %vm1125, %v1120, %v849
      %v1155 = vsel %vm1125, %v1122, %v851
      %v1157 = vsel %vm1125, %v1124, %v853
      %vm1158 = vcmask 195584
      %v1160 = vsel %vm1158, %v1127, %v860
      %v1162 = vsel %vm1158, %v1129, %v862
      %v1164 = vsel %vm1158, %v1131, %v864
      %v1166 = vsel %vm1158, %v1133, %v866
      %v1168 = vsel %vm1158, %v1135, %v868
      %v1170 = vsel %vm1158, %v1137, %v870
      %v1172 = vsel %vm1158, %v1139, %v872
      %v1174 = vsel %vm1158, %v1141, %v874
      %v1176 = vsel %vm1158, %v1143, %v876
      %v1178 = vsel %vm1158, %v1145, %v878
      %v1180 = vsel %vm1158, %v1147, %v880
      %v1182 = vsel %vm1158, %v1149, %v882
      %v1184 = vsel %vm1158, %v1151, %v884
      %v1186 = vsel %vm1158, %v1153, %v886
      %v1188 = vsel %vm1158, %v1155, %v888
      %v1190 = vsel %vm1158, %v1157, %v890
      %vm1191 = vcmask 261120
      %v1193 = vsel %vm1191, %v1160, %v907
      %v1195 = vsel %vm1191, %v1162, %v909
      %v1197 = vsel %vm1191, %v1164, %v911
      %v1199 = vsel %vm1191, %v1166, %v913
      %v1201 = vsel %vm1191, %v1168, %v915
      %v1203 = vsel %vm1191, %v1170, %v917
      %v1205 = vsel %vm1191, %v1172, %v919
      %v1207 = vsel %vm1191, %v1174, %v921
      %v1209 = vsel %vm1191, %v1176, %v923
      %v1211 = vsel %vm1191, %v1178, %v925
      %v1213 = vsel %vm1191, %v1180, %v927
      %v1215 = vsel %vm1191, %v1182, %v929
      %v1217 = vsel %vm1191, %v1184, %v931
      %v1219 = vsel %vm1191, %v1186, %v933
      %v1221 = vsel %vm1191, %v1188, %v935
      %v1223 = vsel %vm1191, %v1190, %v937
      %vm1224 = vcmask 326656
      %v1226 = vsel %vm1224, %v1193, %v942
      %v1228 = vsel %vm1224, %v1195, %v944
      %v1230 = vsel %vm1224, %v1197, %v946
      %v1232 = vsel %vm1224, %v1199, %v948
      %v1234 = vsel %vm1224, %v1201, %v950
      %v1236 = vsel %vm1224, %v1203, %v952
      %v1238 = vsel %vm1224, %v1205, %v954
      %v1240 = vsel %vm1224, %v1207, %v956
      %v1242 = vsel %vm1224, %v1209, %v958
      %v1244 = vsel %vm1224, %v1211, %v960
      %v1246 = vsel %vm1224, %v1213, %v962
      %v1248 = vsel %vm1224, %v1215, %v964
      %v1250 = vsel %vm1224, %v1217, %v966
      %v1252 = vsel %vm1224, %v1219, %v968
      %v1254 = vsel %vm1224, %v1221, %v970
      %v1256 = vsel %vm1224, %v1223, %v972
      %vm1257 = vcmask 392192
      %v1259 = vsel %vm1257, %v1226, %v979
      %v1261 = vsel %vm1257, %v1228, %v981
      %v1263 = vsel %vm1257, %v1230, %v983
      %v1265 = vsel %vm1257, %v1232, %v985
      %v1267 = vsel %vm1257, %v1234, %v987
      %v1269 = vsel %vm1257, %v1236, %v989
      %v1271 = vsel %vm1257, %v1238, %v991
      %v1273 = vsel %vm1257, %v1240, %v993
      %v1275 = vsel %vm1257, %v1242, %v995
      %v1277 = vsel %vm1257, %v1244, %v997
      %v1279 = vsel %vm1257, %v1246, %v999
      %v1281 = vsel %vm1257, %v1248, %v1001
      %v1283 = vsel %vm1257, %v1250, %v1003
      %v1285 = vsel %vm1257, %v1252, %v1005
      %v1287 = vsel %vm1257, %v1254, %v1007
      %v1289 = vsel %vm1257, %v1256, %v1009
      %vm1290 = vcmask 457728
      %v1292 = vsel %vm1290, %v1259, %v1026
      %v1294 = vsel %vm1290, %v1261, %v1028
      %v1296 = vsel %vm1290, %v1263, %v1030
      %v1298 = vsel %vm1290, %v1265, %v1032
      %v1300 = vsel %vm1290, %v1267, %v1034
      %v1302 = vsel %vm1290, %v1269, %v1036
      %v1304 = vsel %vm1290, %v1271, %v1038
      %v1306 = vsel %vm1290, %v1273, %v1040
      %v1308 = vsel %vm1290, %v1275, %v1042
      %v1310 = vsel %vm1290, %v1277, %v1044
      %v1312 = vsel %vm1290, %v1279, %v1046
      %v1314 = vsel %vm1290, %v1281, %v1048
      %v1316 = vsel %vm1290, %v1283, %v1050
      %v1318 = vsel %vm1290, %v1285, %v1052
      %v1320 = vsel %vm1290, %v1287, %v1054
      %v1322 = vsel %vm1290, %v1289, %v1056
      %vm1323 = vcmask 523264
      %v1325 = vsel %vm1323, %v1292, %v1061
      %v1327 = vsel %vm1323, %v1294, %v1063
      %v1329 = vsel %vm1323, %v1296, %v1065
      %v1331 = vsel %vm1323, %v1298, %v1067
      %v1333 = vsel %vm1323, %v1300, %v1069
      %v1335 = vsel %vm1323, %v1302, %v1071
      %v1337 = vsel %vm1323, %v1304, %v1073
      %v1339 = vsel %vm1323, %v1306, %v1075
      %v1341 = vsel %vm1323, %v1308, %v1077
      %v1343 = vsel %vm1323, %v1310, %v1079
      %v1345 = vsel %vm1323, %v1312, %v1081
      %v1347 = vsel %vm1323, %v1314, %v1083
      %v1349 = vsel %vm1323, %v1316, %v1085
      %v1351 = vsel %vm1323, %v1318, %v1087
      %v1353 = vsel %vm1323, %v1320, %v1089
      %v1355 = vsel %vm1323, %v1322, %v1091
      %v1356 = vld [vmem:[%s3] sm:$0xf]
      %v1357 = vld [vmem:[%s3 + $0x4] sm:$0xf]
      %v1358 = vld [vmem:[%s3 + $0x8] sm:$0xf]
      %v1359 = vld [vmem:[%s3 + $0xc] sm:$0xf]
      %v1360 = vld [vmem:[%s3 + $0x10] sm:$0xf]
      %v1361 = vld [vmem:[%s3 + $0x14] sm:$0xf]
      %v1362 = vld [vmem:[%s3 + $0x18] sm:$0xf]
      %v1363 = vld [vmem:[%s3 + $0x1c] sm:$0xf]
      %v1364 = vld [vmem:[%s3 + $0x20] sm:$0xf]
      %v1365 = vld [vmem:[%s334] sm:$0xf]
      %v1366 = vld [vmem:[%s334 + $0x4] sm:$0xf]
      %v1367 = vld [vmem:[%s334 + $0x8] sm:$0x1]
      %v1368 = vld [vmem:[%s334 + $0xc] sm:$0xf]
      %v1369 = vld [vmem:[%s334 + $0x10] sm:$0xf]
      %v1370 = vld [vmem:[%s334 + $0x14] sm:$0x1]
      %v1371 = vld [vmem:[%s334 + $0x18] sm:$0xf]
      %v1372 = vld [vmem:[%s334 + $0x1c] sm:$0xf]
      %v1373 = vld [vmem:[%s334 + $0x20] sm:$0x1]
      %v1374 = vld [vmem:[%s334 + $0x24] sm:$0xf]
      %v1375 = vld [vmem:[%s334 + $0x28] sm:$0xf]
      %v1376 = vld [vmem:[%s334 + $0x2c] sm:$0x1]
      %v1377 = vld [vmem:[%s334 + $0x30] sm:$0xf]
      %v1378 = vld [vmem:[%s334 + $0x34] sm:$0xf]
      %v1379 = vld [vmem:[%s334 + $0x38] sm:$0x1]
      %v1380 = vld [vmem:[%s334 + $0x3c] sm:$0xf]
      %v1381 = vld [vmem:[%s334 + $0x40] sm:$0xf]
      %v1382 = vld [vmem:[%s334 + $0x44] sm:$0x1]
      %v1383 = vld [vmem:[%s334 + $0x48] sm:$0xf]
      %v1384 = vld [vmem:[%s334 + $0x4c] sm:$0xf]
      %v1385 = vld [vmem:[%s334 + $0x50] sm:$0x1]
      %v1386 = vld [vmem:[%s334 + $0x54] sm:$0xf]
      %v1387 = vld [vmem:[%s334 + $0x58] sm:$0xf]
      %v1388 = vld [vmem:[%s334 + $0x5c] sm:$0x1]
      %v1389 = vld [vmem:[%s334 + $0x60] sm:$0xf]
      %v1390 = vld [vmem:[%s334 + $0x64] sm:$0xf]
      %v1391 = vld [vmem:[%s334 + $0x68] sm:$0x1]
      %v1392 = vld [vmem:[%s334 + $0x6c] sm:$0xf]
      %v1393 = vld [vmem:[%s334 + $0x70] sm:$0xf]
      %v1394 = vld [vmem:[%s334 + $0x74] sm:$0x1]
      %v1395 = vld [vmem:[%s334 + $0x78] sm:$0xf]
      %v1396 = vld [vmem:[%s334 + $0x7c] sm:$0xf]
      %v1397 = vld [vmem:[%s334 + $0x80] sm:$0x1]
      %v1398 = vld [vmem:[%s334 + $0x84] sm:$0xf]
      %v1399 = vld [vmem:[%s334 + $0x88] sm:$0xf]
      %v1400 = vld [vmem:[%s334 + $0x8c] sm:$0x1]
      %v1401 = vld [vmem:[%s334 + $0x90] sm:$0xf]
      %v1402 = vld [vmem:[%s334 + $0x94] sm:$0xf]
      %v1403 = vld [vmem:[%s334 + $0x98] sm:$0x1]
      %v1404 = vld [vmem:[%s334 + $0x9c] sm:$0xf]
      %v1405 = vld [vmem:[%s334 + $0xa0] sm:$0xf]
      %v1406 = vld [vmem:[%s334 + $0xa4] sm:$0x1]
      %v1407 = vld [vmem:[%s334 + $0xa8] sm:$0xf]
      %v1408 = vld [vmem:[%s334 + $0xac] sm:$0xf]
      %v1409 = vld [vmem:[%s334 + $0xb0] sm:$0x1]
      %v1410 = vld [vmem:[%s334 + $0xb4] sm:$0xf]
      %v1411 = vld [vmem:[%s334 + $0xb8] sm:$0xf]
      %v1412 = vld [vmem:[%s334 + $0xbc] sm:$0x1]
      %v1413 = vld [vmem:[%s334 + $0xc0] sm:$0xf]
      %v1414 = vld [vmem:[%s334 + $0xc4] sm:$0xf]
      %v1415 = vld [vmem:[%s334 + $0xc8] sm:$0x1]
      %v1416 = vld [vmem:[%s334 + $0xcc] sm:$0xf]
      %v1417 = vld [vmem:[%s334 + $0xd0] sm:$0xf]
      %v1418 = vld [vmem:[%s334 + $0xd4] sm:$0x1]
      %v1451 = vunpack.c.l.b16 %v1365
      %v1452 = vunpack.c.l.b16 %v1366
      %v1453 = vunpack.c.l.b16 %v1368
      %v1454 = vunpack.c.l.b16 %v1369
      %v1455 = vunpack.c.l.b16 %v1371
      %v1456 = vunpack.c.l.b16 %v1372
      %v1457 = vunpack.c.l.b16 %v1374
      %v1458 = vunpack.c.l.b16 %v1375
      %v1459 = vunpack.c.l.b16 %v1377
      %v1460 = vunpack.c.l.b16 %v1378
      %v1461 = vunpack.c.l.b16 %v1380
      %v1462 = vunpack.c.l.b16 %v1381
      %v1463 = vunpack.c.l.b16 %v1383
      %v1464 = vunpack.c.l.b16 %v1384
      %v1465 = vunpack.c.l.b16 %v1386
      %v1466 = vunpack.c.l.b16 %v1387
      %v1467 = vunpack.c.l.b16 %v1389
      %v1468 = vunpack.c.l.b16 %v1390
      %v1469 = vunpack.c.l.b16 %v1392
      %v1470 = vunpack.c.l.b16 %v1393
      %v1471 = vunpack.c.l.b16 %v1395
      %v1472 = vunpack.c.l.b16 %v1396
      %v1473 = vunpack.c.l.b16 %v1398
      %v1474 = vunpack.c.l.b16 %v1399
      %v1475 = vunpack.c.l.b16 %v1401
      %v1476 = vunpack.c.l.b16 %v1402
      %v1477 = vunpack.c.l.b16 %v1404
      %v1478 = vunpack.c.l.b16 %v1405
      %v1479 = vunpack.c.l.b16 %v1407
      %v1480 = vunpack.c.l.b16 %v1408
      %v1481 = vunpack.c.l.b16 %v1410
      %v1482 = vunpack.c.l.b16 %v1411
      %v1483 = vpack.c.b16 %v1452, %v1451
      %v1484 = vpack.c.b16 %v1454, %v1453
      %v1485 = vpack.c.b16 %v1456, %v1455
      %v1486 = vpack.c.b16 %v1458, %v1457
      %v1487 = vpack.c.b16 %v1460, %v1459
      %v1488 = vpack.c.b16 %v1462, %v1461
      %v1489 = vpack.c.b16 %v1464, %v1463
      %v1490 = vpack.c.b16 %v1466, %v1465
      %v1491 = vpack.c.b16 %v1468, %v1467
      %v1492 = vpack.c.b16 %v1470, %v1469
      %v1493 = vpack.c.b16 %v1472, %v1471
      %v1494 = vpack.c.b16 %v1474, %v1473
      %v1495 = vpack.c.b16 %v1476, %v1475
      %v1496 = vpack.c.b16 %v1478, %v1477
      %v1497 = vpack.c.b16 %v1480, %v1479
      %v1498 = vpack.c.b16 %v1482, %v1481
      %v1515 = vunpack.c.l.b16 %v1367
      %v1516 = vunpack.c.l.b16 %v1370
      %v1517 = vunpack.c.l.b16 %v1373
      %v1518 = vunpack.c.l.b16 %v1376
      %v1519 = vunpack.c.l.b16 %v1379
      %v1520 = vunpack.c.l.b16 %v1382
      %v1521 = vunpack.c.l.b16 %v1385
      %v1522 = vunpack.c.l.b16 %v1388
      %v1523 = vunpack.c.l.b16 %v1391
      %v1524 = vunpack.c.l.b16 %v1394
      %v1525 = vunpack.c.l.b16 %v1397
      %v1526 = vunpack.c.l.b16 %v1400
      %v1527 = vunpack.c.l.b16 %v1403
      %v1528 = vunpack.c.l.b16 %v1406
      %v1529 = vunpack.c.l.b16 %v1409
      %v1530 = vunpack.c.l.b16 %v1412
      %v1531 = vpack.c.b16 %v1515, %v1515
      %v1532 = vpack.c.b16 %v1516, %v1516
      %v1533 = vpack.c.b16 %v1517, %v1517
      %v1534 = vpack.c.b16 %v1518, %v1518
      %v1535 = vpack.c.b16 %v1519, %v1519
      %v1536 = vpack.c.b16 %v1520, %v1520
      %v1537 = vpack.c.b16 %v1521, %v1521
      %v1538 = vpack.c.b16 %v1522, %v1522
      %v1539 = vpack.c.b16 %v1523, %v1523
      %v1540 = vpack.c.b16 %v1524, %v1524
      %v1541 = vpack.c.b16 %v1525, %v1525
      %v1542 = vpack.c.b16 %v1526, %v1526
      %v1543 = vpack.c.b16 %v1527, %v1527
      %v1544 = vpack.c.b16 %v1528, %v1528
      %v1545 = vpack.c.b16 %v1529, %v1529
      %v1546 = vpack.c.b16 %v1530, %v1530
      %v1548 = vshrl.u32 %v1483, 16
      %v1550 = vshll.u32 %v1483, 16
      %v1552 = vrot.slane %v1550, 1
      %v1553 = vor.u32 %v1548, %v1552
      %v1555 = vshll.u32 %v1531, 16
      %v1557 = vrot.slane %v1555, 1
      %v1558 = vsel %vm548, %v1553, %v1557
      %v1560 = vshrl.u32 %v1484, 16
      %v1562 = vshll.u32 %v1484, 16
      %v1564 = vrot.slane %v1562, 1
      %v1565 = vor.u32 %v1560, %v1564
      %v1567 = vshll.u32 %v1532, 16
      %v1569 = vrot.slane %v1567, 1
      %v1570 = vsel %vm548, %v1565, %v1569
      %v1572 = vshrl.u32 %v1485, 16
      %v1574 = vshll.u32 %v1485, 16
      %v1576 = vrot.slane %v1574, 1
      %v1577 = vor.u32 %v1572, %v1576
      %v1579 = vshll.u32 %v1533, 16
      %v1581 = vrot.slane %v1579, 1
      %v1582 = vsel %vm548, %v1577, %v1581
      %v1584 = vshrl.u32 %v1486, 16
      %v1586 = vshll.u32 %v1486, 16
      %v1588 = vrot.slane %v1586, 1
      %v1589 = vor.u32 %v1584, %v1588
      %v1591 = vshll.u32 %v1534, 16
      %v1593 = vrot.slane %v1591, 1
      %v1594 = vsel %vm548, %v1589, %v1593
      %v1596 = vshrl.u32 %v1487, 16
      %v1598 = vshll.u32 %v1487, 16
      %v1600 = vrot.slane %v1598, 1
      %v1601 = vor.u32 %v1596, %v1600
      %v1603 = vshll.u32 %v1535, 16
      %v1605 = vrot.slane %v1603, 1
      %v1606 = vsel %vm548, %v1601, %v1605
      %v1608 = vshrl.u32 %v1488, 16
      %v1610 = vshll.u32 %v1488, 16
      %v1612 = vrot.slane %v1610, 1
      %v1613 = vor.u32 %v1608, %v1612
      %v1615 = vshll.u32 %v1536, 16
      %v1617 = vrot.slane %v1615, 1
      %v1618 = vsel %vm548, %v1613, %v1617
      %v1620 = vshrl.u32 %v1489, 16
      %v1622 = vshll.u32 %v1489, 16
      %v1624 = vrot.slane %v1622, 1
      %v1625 = vor.u32 %v1620, %v1624
      %v1627 = vshll.u32 %v1537, 16
      %v1629 = vrot.slane %v1627, 1
      %v1630 = vsel %vm548, %v1625, %v1629
      %v1632 = vshrl.u32 %v1490, 16
      %v1634 = vshll.u32 %v1490, 16
      %v1636 = vrot.slane %v1634, 1
      %v1637 = vor.u32 %v1632, %v1636
      %v1639 = vshll.u32 %v1538, 16
      %v1641 = vrot.slane %v1639, 1
      %v1642 = vsel %vm548, %v1637, %v1641
      %v1644 = vshrl.u32 %v1491, 16
      %v1646 = vshll.u32 %v1491, 16
      %v1648 = vrot.slane %v1646, 1
      %v1649 = vor.u32 %v1644, %v1648
      %v1651 = vshll.u32 %v1539, 16
      %v1653 = vrot.slane %v1651, 1
      %v1654 = vsel %vm548, %v1649, %v1653
      %v1656 = vshrl.u32 %v1492, 16
      %v1658 = vshll.u32 %v1492, 16
      %v1660 = vrot.slane %v1658, 1
      %v1661 = vor.u32 %v1656, %v1660
      %v1663 = vshll.u32 %v1540, 16
      %v1665 = vrot.slane %v1663, 1
      %v1666 = vsel %vm548, %v1661, %v1665
      %v1668 = vshrl.u32 %v1493, 16
      %v1670 = vshll.u32 %v1493, 16
      %v1672 = vrot.slane %v1670, 1
      %v1673 = vor.u32 %v1668, %v1672
      %v1675 = vshll.u32 %v1541, 16
      %v1677 = vrot.slane %v1675, 1
      %v1678 = vsel %vm548, %v1673, %v1677
      %v1680 = vshrl.u32 %v1494, 16
      %v1682 = vshll.u32 %v1494, 16
      %v1684 = vrot.slane %v1682, 1
      %v1685 = vor.u32 %v1680, %v1684
      %v1687 = vshll.u32 %v1542, 16
      %v1689 = vrot.slane %v1687, 1
      %v1690 = vsel %vm548, %v1685, %v1689
      %v1692 = vshrl.u32 %v1495, 16
      %v1694 = vshll.u32 %v1495, 16
      %v1696 = vrot.slane %v1694, 1
      %v1697 = vor.u32 %v1692, %v1696
      %v1699 = vshll.u32 %v1543, 16
      %v1701 = vrot.slane %v1699, 1
      %v1702 = vsel %vm548, %v1697, %v1701
      %v1704 = vshrl.u32 %v1496, 16
      %v1706 = vshll.u32 %v1496, 16
      %v1708 = vrot.slane %v1706, 1
      %v1709 = vor.u32 %v1704, %v1708
      %v1711 = vshll.u32 %v1544, 16
      %v1713 = vrot.slane %v1711, 1
      %v1714 = vsel %vm548, %v1709, %v1713
      %v1716 = vshrl.u32 %v1497, 16
      %v1718 = vshll.u32 %v1497, 16
      %v1720 = vrot.slane %v1718, 1
      %v1721 = vor.u32 %v1716, %v1720
      %v1723 = vshll.u32 %v1545, 16
      %v1725 = vrot.slane %v1723, 1
      %v1726 = vsel %vm548, %v1721, %v1725
      %v1728 = vshrl.u32 %v1498, 16
      %v1730 = vshll.u32 %v1498, 16
      %v1732 = vrot.slane %v1730, 1
      %v1733 = vor.u32 %v1728, %v1732
      %v1735 = vshll.u32 %v1546, 16
      %v1737 = vrot.slane %v1735, 1
      %v1738 = vsel %vm548, %v1733, %v1737
      %1739 = vrot.lane.b32.xlu0 %v1558, 8
      %v1740 = vpop.permute.xlu0 %1739
      %1741 = vrot.lane.b32.xlu0 %v1570, 8
      %v1742 = vpop.permute.xlu0 %1741
      %1743 = vrot.lane.b32.xlu0 %v1582, 8
      %v1744 = vpop.permute.xlu0 %1743
      %1745 = vrot.lane.b32.xlu0 %v1594, 8
      %v1746 = vpop.permute.xlu0 %1745
      %1747 = vrot.lane.b32.xlu0 %v1606, 8
      %v1748 = vpop.permute.xlu0 %1747
      %1749 = vrot.lane.b32.xlu0 %v1618, 8
      %v1750 = vpop.permute.xlu0 %1749
      %1751 = vrot.lane.b32.xlu0 %v1630, 8
      %v1752 = vpop.permute.xlu0 %1751
      %1753 = vrot.lane.b32.xlu0 %v1642, 8
      %v1754 = vpop.permute.xlu0 %1753
      %1755 = vrot.lane.b32.xlu0 %v1654, 8
      %v1756 = vpop.permute.xlu0 %1755
      %1757 = vrot.lane.b32.xlu0 %v1666, 8
      %v1758 = vpop.permute.xlu0 %1757
      %1759 = vrot.lane.b32.xlu0 %v1678, 8
      %v1760 = vpop.permute.xlu0 %1759
      %1761 = vrot.lane.b32.xlu0 %v1690, 8
      %v1762 = vpop.permute.xlu0 %1761
      %1763 = vrot.lane.b32.xlu0 %v1702, 8
      %v1764 = vpop.permute.xlu0 %1763
      %1765 = vrot.lane.b32.xlu0 %v1714, 8
      %v1766 = vpop.permute.xlu0 %1765
      %1767 = vrot.lane.b32.xlu0 %v1726, 8
      %v1768 = vpop.permute.xlu0 %1767
      %1769 = vrot.lane.b32.xlu0 %v1738, 8
      %v1770 = vpop.permute.xlu0 %1769
      %v1771 = vrot.slane %v1483, 1
      %v1772 = vrot.slane %v1531, 1
      %v1773 = vsel %vm773, %v1771, %v1772
      %v1774 = vrot.slane %v1484, 1
      %v1775 = vrot.slane %v1532, 1
      %v1776 = vsel %vm773, %v1774, %v1775
      %v1777 = vrot.slane %v1485, 1
      %v1778 = vrot.slane %v1533, 1
      %v1779 = vsel %vm773, %v1777, %v1778
      %v1780 = vrot.slane %v1486, 1
      %v1781 = vrot.slane %v1534, 1
      %v1782 = vsel %vm773, %v1780, %v1781
      %v1783 = vrot.slane %v1487, 1
      %v1784 = vrot.slane %v1535, 1
      %v1785 = vsel %vm773, %v1783, %v1784
      %v1786 = vrot.slane %v1488, 1
      %v1787 = vrot.slane %v1536, 1
      %v1788 = vsel %vm773, %v1786, %v1787
      %v1789 = vrot.slane %v1489, 1
      %v1790 = vrot.slane %v1537, 1
      %v1791 = vsel %vm773, %v1789, %v1790
      %v1792 = vrot.slane %v1490, 1
      %v1793 = vrot.slane %v1538, 1
      %v1794 = vsel %vm773, %v1792, %v1793
      %v1795 = vrot.slane %v1491, 1
      %v1796 = vrot.slane %v1539, 1
      %v1797 = vsel %vm773, %v1795, %v1796
      %v1798 = vrot.slane %v1492, 1
      %v1799 = vrot.slane %v1540, 1
      %v1800 = vsel %vm773, %v1798, %v1799
      %v1801 = vrot.slane %v1493, 1
      %v1802 = vrot.slane %v1541, 1
      %v1803 = vsel %vm773, %v1801, %v1802
      %v1804 = vrot.slane %v1494, 1
      %v1805 = vrot.slane %v1542, 1
      %v1806 = vsel %vm773, %v1804, %v1805
      %v1807 = vrot.slane %v1495, 1
      %v1808 = vrot.slane %v1543, 1
      %v1809 = vsel %vm773, %v1807, %v1808
      %v1810 = vrot.slane %v1496, 1
      %v1811 = vrot.slane %v1544, 1
      %v1812 = vsel %vm773, %v1810, %v1811
      %v1813 = vrot.slane %v1497, 1
      %v1814 = vrot.slane %v1545, 1
      %v1815 = vsel %vm773, %v1813, %v1814
      %v1816 = vrot.slane %v1498, 1
      %v1817 = vrot.slane %v1546, 1
      %v1818 = vsel %vm773, %v1816, %v1817
      %1819 = vrot.lane.b32.xlu0 %v1773, 16
      %v1820 = vpop.permute.xlu0 %1819
      %1821 = vrot.lane.b32.xlu0 %v1776, 16
      %v1822 = vpop.permute.xlu0 %1821
      %1823 = vrot.lane.b32.xlu0 %v1779, 16
      %v1824 = vpop.permute.xlu0 %1823
      %1825 = vrot.lane.b32.xlu0 %v1782, 16
      %v1826 = vpop.permute.xlu0 %1825
      %1827 = vrot.lane.b32.xlu0 %v1785, 16
      %v1828 = vpop.permute.xlu0 %1827
      %1829 = vrot.lane.b32.xlu0 %v1788, 16
      %v1830 = vpop.permute.xlu0 %1829
      %1831 = vrot.lane.b32.xlu0 %v1791, 16
      %v1832 = vpop.permute.xlu0 %1831
      %1833 = vrot.lane.b32.xlu0 %v1794, 16
      %v1834 = vpop.permute.xlu0 %1833
      %1835 = vrot.lane.b32.xlu0 %v1797, 16
      %v1836 = vpop.permute.xlu0 %1835
      %1837 = vrot.lane.b32.xlu0 %v1800, 16
      %v1838 = vpop.permute.xlu0 %1837
      %1839 = vrot.lane.b32.xlu0 %v1803, 16
      %v1840 = vpop.permute.xlu0 %1839
      %1841 = vrot.lane.b32.xlu0 %v1806, 16
      %v1842 = vpop.permute.xlu0 %1841
      %1843 = vrot.lane.b32.xlu0 %v1809, 16
      %v1844 = vpop.permute.xlu0 %1843
      %1845 = vrot.lane.b32.xlu0 %v1812, 16
      %v1846 = vpop.permute.xlu0 %1845
      %1847 = vrot.lane.b32.xlu0 %v1815, 16
      %v1848 = vpop.permute.xlu0 %1847
      %1849 = vrot.lane.b32.xlu0 %v1818, 16
      %v1850 = vpop.permute.xlu0 %1849
      %v1853 = vunpack.c.l.b16 %v1413
      %v1854 = vunpack.c.l.b16 %v1414
      %v1855 = vpack.c.b16 %v1854, %v1853
      %1856 = vrot.lane.b32.xlu0 %v1484, 24
      %v1857 = vpop.permute.xlu0 %1856
      %1858 = vrot.lane.b32.xlu0 %v1485, 24
      %v1859 = vpop.permute.xlu0 %1858
      %1860 = vrot.lane.b32.xlu0 %v1486, 24
      %v1861 = vpop.permute.xlu0 %1860
      %1862 = vrot.lane.b32.xlu0 %v1487, 24
      %v1863 = vpop.permute.xlu0 %1862
      %1864 = vrot.lane.b32.xlu0 %v1488, 24
      %v1865 = vpop.permute.xlu0 %1864
      %1866 = vrot.lane.b32.xlu0 %v1489, 24
      %v1867 = vpop.permute.xlu0 %1866
      %1868 = vrot.lane.b32.xlu0 %v1490, 24
      %v1869 = vpop.permute.xlu0 %1868
      %1870 = vrot.lane.b32.xlu0 %v1491, 24
      %v1871 = vpop.permute.xlu0 %1870
      %1872 = vrot.lane.b32.xlu0 %v1492, 24
      %v1873 = vpop.permute.xlu0 %1872
      %1874 = vrot.lane.b32.xlu0 %v1493, 24
      %v1875 = vpop.permute.xlu0 %1874
      %1876 = vrot.lane.b32.xlu0 %v1494, 24
      %v1877 = vpop.permute.xlu0 %1876
      %1878 = vrot.lane.b32.xlu0 %v1495, 24
      %v1879 = vpop.permute.xlu0 %1878
      %1880 = vrot.lane.b32.xlu0 %v1496, 24
      %v1881 = vpop.permute.xlu0 %1880
      %1882 = vrot.lane.b32.xlu0 %v1497, 24
      %v1883 = vpop.permute.xlu0 %1882
      %1884 = vrot.lane.b32.xlu0 %v1498, 24
      %v1885 = vpop.permute.xlu0 %1884
      %1886 = vrot.lane.b32.xlu0 %v1855, 24
      %v1887 = vpop.permute.xlu0 %1886
      %v1889 = vunpack.c.l.b16 %v1415
      %v1890 = vpack.c.b16 %v1889, %v1889
      %v1892 = vshrl.u32 %v1855, 16
      %v1894 = vshll.u32 %v1855, 16
      %v1896 = vrot.slane %v1894, 1
      %v1897 = vor.u32 %v1892, %v1896
      %v1899 = vshll.u32 %v1890, 16
      %v1901 = vrot.slane %v1899, 1
      %v1902 = vsel %vm548, %v1897, %v1901
      %1903 = vrot.lane.b32.xlu0 %v1570, 32
      %v1904 = vpop.permute.xlu0 %1903
      %1905 = vrot.lane.b32.xlu0 %v1582, 32
      %v1906 = vpop.permute.xlu0 %1905
      %1907 = vrot.lane.b32.xlu0 %v1594, 32
      %v1908 = vpop.permute.xlu0 %1907
      %1909 = vrot.lane.b32.xlu0 %v1606, 32
      %v1910 = vpop.permute.xlu0 %1909
      %1911 = vrot.lane.b32.xlu0 %v1618, 32
      %v1912 = vpop.permute.xlu0 %1911
      %1913 = vrot.lane.b32.xlu0 %v1630, 32
      %v1914 = vpop.permute.xlu0 %1913
      %1915 = vrot.lane.b32.xlu0 %v1642, 32
      %v1916 = vpop.permute.xlu0 %1915
      %1917 = vrot.lane.b32.xlu0 %v1654, 32
      %v1918 = vpop.permute.xlu0 %1917
      %1919 = vrot.lane.b32.xlu0 %v1666, 32
      %v1920 = vpop.permute.xlu0 %1919
      %1921 = vrot.lane.b32.xlu0 %v1678, 32
      %v1922 = vpop.permute.xlu0 %1921
      %1923 = vrot.lane.b32.xlu0 %v1690, 32
      %v1924 = vpop.permute.xlu0 %1923
      %1925 = vrot.lane.b32.xlu0 %v1702, 32
      %v1926 = vpop.permute.xlu0 %1925
      %1927 = vrot.lane.b32.xlu0 %v1714, 32
      %v1928 = vpop.permute.xlu0 %1927
      %1929 = vrot.lane.b32.xlu0 %v1726, 32
      %v1930 = vpop.permute.xlu0 %1929
      %1931 = vrot.lane.b32.xlu0 %v1738, 32
      %v1932 = vpop.permute.xlu0 %1931
      %1933 = vrot.lane.b32.xlu0 %v1902, 32
      %v1934 = vpop.permute.xlu0 %1933
      %v1935 = vrot.slane %v1855, 1
      %v1936 = vrot.slane %v1890, 1
      %v1937 = vsel %vm773, %v1935, %v1936
      %1938 = vrot.lane.b32.xlu0 %v1776, 40
      %v1939 = vpop.permute.xlu0 %1938
      %1940 = vrot.lane.b32.xlu0 %v1779, 40
      %v1941 = vpop.permute.xlu0 %1940
      %1942 = vrot.lane.b32.xlu0 %v1782, 40
      %v1943 = vpop.permute.xlu0 %1942
      %1944 = vrot.lane.b32.xlu0 %v1785, 40
      %v1945 = vpop.permute.xlu0 %1944
      %1946 = vrot.lane.b32.xlu0 %v1788, 40
      %v1947 = vpop.permute.xlu0 %1946
      %1948 = vrot.lane.b32.xlu0 %v1791, 40
      %v1949 = vpop.permute.xlu0 %1948
      %1950 = vrot.lane.b32.xlu0 %v1794, 40
      %v1951 = vpop.permute.xlu0 %1950
      %1952 = vrot.lane.b32.xlu0 %v1797, 40
      %v1953 = vpop.permute.xlu0 %1952
      %1954 = vrot.lane.b32.xlu0 %v1800, 40
      %v1955 = vpop.permute.xlu0 %1954
      %1956 = vrot.lane.b32.xlu0 %v1803, 40
      %v1957 = vpop.permute.xlu0 %1956
      %1958 = vrot.lane.b32.xlu0 %v1806, 40
      %v1959 = vpop.permute.xlu0 %1958
      %1960 = vrot.lane.b32.xlu0 %v1809, 40
      %v1961 = vpop.permute.xlu0 %1960
      %1962 = vrot.lane.b32.xlu0 %v1812, 40
      %v1963 = vpop.permute.xlu0 %1962
      %1964 = vrot.lane.b32.xlu0 %v1815, 40
      %v1965 = vpop.permute.xlu0 %1964
      %1966 = vrot.lane.b32.xlu0 %v1818, 40
      %v1967 = vpop.permute.xlu0 %1966
      %1968 = vrot.lane.b32.xlu0 %v1937, 40
      %v1969 = vpop.permute.xlu0 %1968
      %v1972 = vunpack.c.l.b16 %v1416
      %v1973 = vunpack.c.l.b16 %v1417
      %v1974 = vpack.c.b16 %v1973, %v1972
      %1975 = vrot.lane.b32.xlu0 %v1485, 48
      %v1976 = vpop.permute.xlu0 %1975
      %1977 = vrot.lane.b32.xlu0 %v1486, 48
      %v1978 = vpop.permute.xlu0 %1977
      %1979 = vrot.lane.b32.xlu0 %v1487, 48
      %v1980 = vpop.permute.xlu0 %1979
      %1981 = vrot.lane.b32.xlu0 %v1488, 48
      %v1982 = vpop.permute.xlu0 %1981
      %1983 = vrot.lane.b32.xlu0 %v1489, 48
      %v1984 = vpop.permute.xlu0 %1983
      %1985 = vrot.lane.b32.xlu0 %v1490, 48
      %v1986 = vpop.permute.xlu0 %1985
      %1987 = vrot.lane.b32.xlu0 %v1491, 48
      %v1988 = vpop.permute.xlu0 %1987
      %1989 = vrot.lane.b32.xlu0 %v1492, 48
      %v1990 = vpop.permute.xlu0 %1989
      %1991 = vrot.lane.b32.xlu0 %v1493, 48
      %v1992 = vpop.permute.xlu0 %1991
      %1993 = vrot.lane.b32.xlu0 %v1494, 48
      %v1994 = vpop.permute.xlu0 %1993
      %1995 = vrot.lane.b32.xlu0 %v1495, 48
      %v1996 = vpop.permute.xlu0 %1995
      %1997 = vrot.lane.b32.xlu0 %v1496, 48
      %v1998 = vpop.permute.xlu0 %1997
      %1999 = vrot.lane.b32.xlu0 %v1497, 48
      %v2000 = vpop.permute.xlu0 %1999
      %2001 = vrot.lane.b32.xlu0 %v1498, 48
      %v2002 = vpop.permute.xlu0 %2001
      %2003 = vrot.lane.b32.xlu0 %v1855, 48
      %v2004 = vpop.permute.xlu0 %2003
      %2005 = vrot.lane.b32.xlu0 %v1974, 48
      %v2006 = vpop.permute.xlu0 %2005
      %v2008 = vunpack.c.l.b16 %v1418
      %v2009 = vpack.c.b16 %v2008, %v2008
      %v2011 = vshrl.u32 %v1974, 16
      %v2013 = vshll.u32 %v1974, 16
      %v2015 = vrot.slane %v2013, 1
      %v2016 = vor.u32 %v2011, %v2015
      %v2018 = vshll.u32 %v2009, 16
      %v2020 = vrot.slane %v2018, 1
      %v2021 = vsel %vm548, %v2016, %v2020
      %2022 = vrot.lane.b32.xlu0 %v1582, 56
      %v2023 = vpop.permute.xlu0 %2022
      %2024 = vrot.lane.b32.xlu0 %v1594, 56
      %v2025 = vpop.permute.xlu0 %2024
      %2026 = vrot.lane.b32.xlu0 %v1606, 56
      %v2027 = vpop.permute.xlu0 %2026
      %2028 = vrot.lane.b32.xlu0 %v1618, 56
      %v2029 = vpop.permute.xlu0 %2028
      %2030 = vrot.lane.b32.xlu0 %v1630, 56
      %v2031 = vpop.permute.xlu0 %2030
      %2032 = vrot.lane.b32.xlu0 %v1642, 56
      %v2033 = vpop.permute.xlu0 %2032
      %2034 = vrot.lane.b32.xlu0 %v1654, 56
      %v2035 = vpop.permute.xlu0 %2034
      %2036 = vrot.lane.b32.xlu0 %v1666, 56
      %v2037 = vpop.permute.xlu0 %2036
      %2038 = vrot.lane.b32.xlu0 %v1678, 56
      %v2039 = vpop.permute.xlu0 %2038
      %2040 = vrot.lane.b32.xlu0 %v1690, 56
      %v2041 = vpop.permute.xlu0 %2040
      %2042 = vrot.lane.b32.xlu0 %v1702, 56
      %v2043 = vpop.permute.xlu0 %2042
      %2044 = vrot.lane.b32.xlu0 %v1714, 56
      %v2045 = vpop.permute.xlu0 %2044
      %2046 = vrot.lane.b32.xlu0 %v1726, 56
      %v2047 = vpop.permute.xlu0 %2046
      %2048 = vrot.lane.b32.xlu0 %v1738, 56
      %v2049 = vpop.permute.xlu0 %2048
      %2050 = vrot.lane.b32.xlu0 %v1902, 56
      %v2051 = vpop.permute.xlu0 %2050
      %2052 = vrot.lane.b32.xlu0 %v2021, 56
      %v2053 = vpop.permute.xlu0 %2052
      %v2054 = vrot.slane %v1974, 1
      %v2055 = vrot.slane %v2009, 1
      %v2056 = vsel %vm773, %v2054, %v2055
      %2057 = vrot.lane.b32.xlu0 %v1779, 64
      %v2058 = vpop.permute.xlu0 %2057
      %2059 = vrot.lane.b32.xlu0 %v1782, 64
      %v2060 = vpop.permute.xlu0 %2059
      %2061 = vrot.lane.b32.xlu0 %v1785, 64
      %v2062 = vpop.permute.xlu0 %2061
      %2063 = vrot.lane.b32.xlu0 %v1788, 64
      %v2064 = vpop.permute.xlu0 %2063
      %2065 = vrot.lane.b32.xlu0 %v1791, 64
      %v2066 = vpop.permute.xlu0 %2065
      %2067 = vrot.lane.b32.xlu0 %v1794, 64
      %v2068 = vpop.permute.xlu0 %2067
      %2069 = vrot.lane.b32.xlu0 %v1797, 64
      %v2070 = vpop.permute.xlu0 %2069
      %2071 = vrot.lane.b32.xlu0 %v1800, 64
      %v2072 = vpop.permute.xlu0 %2071
      %2073 = vrot.lane.b32.xlu0 %v1803, 64
      %v2074 = vpop.permute.xlu0 %2073
      %2075 = vrot.lane.b32.xlu0 %v1806, 64
      %v2076 = vpop.permute.xlu0 %2075
      %2077 = vrot.lane.b32.xlu0 %v1809, 64
      %v2078 = vpop.permute.xlu0 %2077
      %2079 = vrot.lane.b32.xlu0 %v1812, 64
      %v2080 = vpop.permute.xlu0 %2079
      %2081 = vrot.lane.b32.xlu0 %v1815, 64
      %v2082 = vpop.permute.xlu0 %2081
      %2083 = vrot.lane.b32.xlu0 %v1818, 64
      %v2084 = vpop.permute.xlu0 %2083
      %2085 = vrot.lane.b32.xlu0 %v1937, 64
      %v2086 = vpop.permute.xlu0 %2085
      %2087 = vrot.lane.b32.xlu0 %v2056, 64
      %v2088 = vpop.permute.xlu0 %2087
      %v2090 = vsel %vm1092, %v1483, %v1740
      %v2092 = vsel %vm1092, %v1484, %v1742
      %v2094 = vsel %vm1092, %v1485, %v1744
      %v2096 = vsel %vm1092, %v1486, %v1746
      %v2098 = vsel %vm1092, %v1487, %v1748
      %v2100 = vsel %vm1092, %v1488, %v1750
      %v2102 = vsel %vm1092, %v1489, %v1752
      %v2104 = vsel %vm1092, %v1490, %v1754
      %v2106 = vsel %vm1092, %v1491, %v1756
      %v2108 = vsel %vm1092, %v1492, %v1758
      %v2110 = vsel %vm1092, %v1493, %v1760
      %v2112 = vsel %vm1092, %v1494, %v1762
      %v2114 = vsel %vm1092, %v1495, %v1764
      %v2116 = vsel %vm1092, %v1496, %v1766
      %v2118 = vsel %vm1092, %v1497, %v1768
      %v2120 = vsel %vm1092, %v1498, %v1770
      %v2122 = vsel %vm1125, %v2090, %v1820
      %v2124 = vsel %vm1125, %v2092, %v1822
      %v2126 = vsel %vm1125, %v2094, %v1824
      %v2128 = vsel %vm1125, %v2096, %v1826
      %v2130 = vsel %vm1125, %v2098, %v1828
      %v2132 = vsel %vm1125, %v2100, %v1830
      %v2134 = vsel %vm1125, %v2102, %v1832
      %v2136 = vsel %vm1125, %v2104, %v1834
      %v2138 = vsel %vm1125, %v2106, %v1836
      %v2140 = vsel %vm1125, %v2108, %v1838
      %v2142 = vsel %vm1125, %v2110, %v1840
      %v2144 = vsel %vm1125, %v2112, %v1842
      %v2146 = vsel %vm1125, %v2114, %v1844
      %v2148 = vsel %vm1125, %v2116, %v1846
      %v2150 = vsel %vm1125, %v2118, %v1848
      %v2152 = vsel %vm1125, %v2120, %v1850
      %v2154 = vsel %vm1158, %v2122, %v1857
      %v2156 = vsel %vm1158, %v2124, %v1859
      %v2158 = vsel %vm1158, %v2126, %v1861
      %v2160 = vsel %vm1158, %v2128, %v1863
      %v2162 = vsel %vm1158, %v2130, %v1865
      %v2164 = vsel %vm1158, %v2132, %v1867
      %v2166 = vsel %vm1158, %v2134, %v1869
      %v2168 = vsel %vm1158, %v2136, %v1871
      %v2170 = vsel %vm1158, %v2138, %v1873
      %v2172 = vsel %vm1158, %v2140, %v1875
      %v2174 = vsel %vm1158, %v2142, %v1877
      %v2176 = vsel %vm1158, %v2144, %v1879
      %v2178 = vsel %vm1158, %v2146, %v1881
      %v2180 = vsel %vm1158, %v2148, %v1883
      %v2182 = vsel %vm1158, %v2150, %v1885
      %v2184 = vsel %vm1158, %v2152, %v1887
      %v2186 = vsel %vm1191, %v2154, %v1904
      %v2188 = vsel %vm1191, %v2156, %v1906
      %v2190 = vsel %vm1191, %v2158, %v1908
      %v2192 = vsel %vm1191, %v2160, %v1910
      %v2194 = vsel %vm1191, %v2162, %v1912
      %v2196 = vsel %vm1191, %v2164, %v1914
      %v2198 = vsel %vm1191, %v2166, %v1916
      %v2200 = vsel %vm1191, %v2168, %v1918
      %v2202 = vsel %vm1191, %v2170, %v1920
      %v2204 = vsel %vm1191, %v2172, %v1922
      %v2206 = vsel %vm1191, %v2174, %v1924
      %v2208 = vsel %vm1191, %v2176, %v1926
      %v2210 = vsel %vm1191, %v2178, %v1928
      %v2212 = vsel %vm1191, %v2180, %v1930
      %v2214 = vsel %vm1191, %v2182, %v1932
      %v2216 = vsel %vm1191, %v2184, %v1934
      %v2218 = vsel %vm1224, %v2186, %v1939
      %v2220 = vsel %vm1224, %v2188, %v1941
      %v2222 = vsel %vm1224, %v2190, %v1943
      %v2224 = vsel %vm1224, %v2192, %v1945
      %v2226 = vsel %vm1224, %v2194, %v1947
      %v2228 = vsel %vm1224, %v2196, %v1949
      %v2230 = vsel %vm1224, %v2198, %v1951
      %v2232 = vsel %vm1224, %v2200, %v1953
      %v2234 = vsel %vm1224, %v2202, %v1955
      %v2236 = vsel %vm1224, %v2204, %v1957
      %v2238 = vsel %vm1224, %v2206, %v1959
      %v2240 = vsel %vm1224, %v2208, %v1961
      %v2242 = vsel %vm1224, %v2210, %v1963
      %v2244 = vsel %vm1224, %v2212, %v1965
      %v2246 = vsel %vm1224, %v2214, %v1967
      %v2248 = vsel %vm1224, %v2216, %v1969
      %v2250 = vsel %vm1257, %v2218, %v1976
      %v2252 = vsel %vm1257, %v2220, %v1978
      %v2254 = vsel %vm1257, %v2222, %v1980
      %v2256 = vsel %vm1257, %v2224, %v1982
      %v2258 = vsel %vm1257, %v2226, %v1984
      %v2260 = vsel %vm1257, %v2228, %v1986
      %v2262 = vsel %vm1257, %v2230, %v1988
      %v2264 = vsel %vm1257, %v2232, %v1990
      %v2266 = vsel %vm1257, %v2234, %v1992
      %v2268 = vsel %vm1257, %v2236, %v1994
      %v2270 = vsel %vm1257, %v2238, %v1996
      %v2272 = vsel %vm1257, %v2240, %v1998
      %v2274 = vsel %vm1257, %v2242, %v2000
      %v2276 = vsel %vm1257, %v2244, %v2002
      %v2278 = vsel %vm1257, %v2246, %v2004
      %v2280 = vsel %vm1257, %v2248, %v2006
      %v2282 = vsel %vm1290, %v2250, %v2023
      %v2284 = vsel %vm1290, %v2252, %v2025
      %v2286 = vsel %vm1290, %v2254, %v2027
      %v2288 = vsel %vm1290, %v2256, %v2029
      %v2290 = vsel %vm1290, %v2258, %v2031
      %v2292 = vsel %vm1290, %v2260, %v2033
      %v2294 = vsel %vm1290, %v2262, %v2035
      %v2296 = vsel %vm1290, %v2264, %v2037
      %v2298 = vsel %vm1290, %v2266, %v2039
      %v2300 = vsel %vm1290, %v2268, %v2041
      %v2302 = vsel %vm1290, %v2270, %v2043
      %v2304 = vsel %vm1290, %v2272, %v2045
      %v2306 = vsel %vm1290, %v2274, %v2047
      %v2308 = vsel %vm1290, %v2276, %v2049
      %v2310 = vsel %vm1290, %v2278, %v2051
      %v2312 = vsel %vm1290, %v2280, %v2053
      %v2314 = vsel %vm1323, %v2282, %v2058
      %v2316 = vsel %vm1323, %v2284, %v2060
      %v2318 = vsel %vm1323, %v2286, %v2062
      %v2320 = vsel %vm1323, %v2288, %v2064
      %v2322 = vsel %vm1323, %v2290, %v2066
      %v2324 = vsel %vm1323, %v2292, %v2068
      %v2326 = vsel %vm1323, %v2294, %v2070
      %v2328 = vsel %vm1323, %v2296, %v2072
      %v2330 = vsel %vm1323, %v2298, %v2074
      %v2332 = vsel %vm1323, %v2300, %v2076
      %v2334 = vsel %vm1323, %v2302, %v2078
      %v2336 = vsel %vm1323, %v2304, %v2080
      %v2338 = vsel %vm1323, %v2306, %v2082
      %v2340 = vsel %vm1323, %v2308, %v2084
      %v2342 = vsel %vm1323, %v2310, %v2086
      %v2344 = vsel %vm1323, %v2312, %v2088
      %s2345 = scalar_lea.vmem %s3, 36
      %v2346 = vld [vmem:[%s2345] sm:$0xf]
      %v2347 = vld [vmem:[%s2345 + $0x4] sm:$0xf]
      %v2348 = vld [vmem:[%s2345 + $0x8] sm:$0xf]
      %v2349 = vld [vmem:[%s2345 + $0xc] sm:$0xf]
      %v2350 = vld [vmem:[%s2345 + $0x10] sm:$0xf]
      %v2351 = vld [vmem:[%s2345 + $0x14] sm:$0xf]
      %v2352 = vld [vmem:[%s2345 + $0x18] sm:$0xf]
      %v2353 = vld [vmem:[%s2345 + $0x1c] sm:$0xf]
      %v2354 = vld [vmem:[%s2345 + $0x20] sm:$0xf]
      %v2364 = vunpack.c.l.b16 %v2346
      %v2365 = vunpack.c.l.b16 %v2347
      %v2366 = vunpack.c.l.b16 %v2348
      %v2367 = vunpack.c.l.b16 %v2349
      %v2368 = vunpack.c.l.b16 %v2350
      %v2369 = vunpack.c.l.b16 %v2351
      %v2370 = vunpack.c.l.b16 %v2352
      %v2371 = vunpack.c.l.b16 %v2353
      %v2372 = vunpack.c.l.b16 %v2354
      %v2373 = vpack.c.b16 %v2365, %v2364
      %v2374 = vpack.c.b16 %v2367, %v2366
      %v2375 = vpack.c.b16 %v2369, %v2368
      %v2376 = vpack.c.b16 %v2371, %v2370
      %v2377 = vpack.c.b16 %v2372, %v2372
      %vm2382 = vcmask 588800
      %v2383 = vsel %vm2382, %v2314, 0
      %v2385 = vsel %vm2382, %v2316, 0
      %v2387 = vsel %vm2382, %v2318, 0
      %v2389 = vsel %vm2382, %v2320, 0
      %v2391 = vsel %vm2382, %v2322, 0
      %v2393 = vsel %vm2382, %v2324, 0
      %v2395 = vsel %vm2382, %v2326, 0
      %v2397 = vsel %vm2382, %v2328, 0
      %v2399 = vsel %vm2382, %v2330, 0
      %v2401 = vsel %vm2382, %v2332, 0
      %v2403 = vsel %vm2382, %v2334, 0
      %v2405 = vsel %vm2382, %v2336, 0
      %v2407 = vsel %vm2382, %v2338, 0
      %v2409 = vsel %vm2382, %v2340, 0
      %v2411 = vsel %vm2382, %v2342, 0
      %v2413 = vsel %vm2382, %v2344, 0
      %vm2415 = vcmask 1043456
      %v2417 = vsel %vm2415, %v2377, 0
      %2419 = vmatpush.bf16.msra.mxu0 0
      %2420 = vmatpush.bf16.msra.mxu0 0
      %2421 = vmatpush.bf16.msra.mxu0 0
      %2422 = vmatpush.bf16.msra.mxu0 %v2417
      %2423 = vmatpush.bf16.msra.mxu0 %v2376
      %2424 = vmatpush.bf16.msra.mxu0 %v2375
      %2425 = vmatpush.bf16.msra.mxu0 %v2374
      %2426 = vmatpush.bf16.msra.mxu0 %v2373
      %2427 = vmatmul.bf16.gmra.mxu0 %v2383
      %v2428 = vpop.f32.mrf.mxu0
      %v2429 = vadd.f32 0.0, %v2428
      %v2430 = vpop.f32.mrf.mxu0
      %v2431 = vadd.f32 0.0, %v2430
      %2432 = vmatmul.bf16.gmra.mxu0 %v2385
      %v2433 = vpop.f32.mrf.mxu0
      %v2434 = vadd.f32 0.0, %v2433
      %v2435 = vpop.f32.mrf.mxu0
      %v2436 = vadd.f32 0.0, %v2435
      %2437 = vmatmul.bf16.gmra.mxu0 %v2387
      %v2438 = vpop.f32.mrf.mxu0
      %v2439 = vadd.f32 0.0, %v2438
      %v2440 = vpop.f32.mrf.mxu0
      %v2441 = vadd.f32 0.0, %v2440
      %2442 = vmatmul.bf16.gmra.mxu0 %v2389
      %v2443 = vpop.f32.mrf.mxu0
      %v2444 = vadd.f32 0.0, %v2443
      %v2445 = vpop.f32.mrf.mxu0
      %v2446 = vadd.f32 0.0, %v2445
      %2447 = vmatmul.bf16.gmra.mxu0 %v2391
      %v2448 = vpop.f32.mrf.mxu0
      %v2449 = vadd.f32 0.0, %v2448
      %v2450 = vpop.f32.mrf.mxu0
      %v2451 = vadd.f32 0.0, %v2450
      %2452 = vmatmul.bf16.gmra.mxu0 %v2393
      %v2453 = vpop.f32.mrf.mxu0
      %v2454 = vadd.f32 0.0, %v2453
      %v2455 = vpop.f32.mrf.mxu0
      %v2456 = vadd.f32 0.0, %v2455
      %2457 = vmatmul.bf16.gmra.mxu0 %v2395
      %v2458 = vpop.f32.mrf.mxu0
      %v2459 = vadd.f32 0.0, %v2458
      %v2460 = vpop.f32.mrf.mxu0
      %v2461 = vadd.f32 0.0, %v2460
      %2462 = vmatmul.bf16.gmra.mxu0 %v2397
      %v2463 = vpop.f32.mrf.mxu0
      %v2464 = vadd.f32 0.0, %v2463
      %v2465 = vpop.f32.mrf.mxu0
      %v2466 = vadd.f32 0.0, %v2465
      %2467 = vmatmul.bf16.gmra.mxu0 %v2399
      %v2468 = vpop.f32.mrf.mxu0
      %v2469 = vadd.f32 0.0, %v2468
      %v2470 = vpop.f32.mrf.mxu0
      %v2471 = vadd.f32 0.0, %v2470
      %2472 = vmatmul.bf16.gmra.mxu0 %v2401
      %v2473 = vpop.f32.mrf.mxu0
      %v2474 = vadd.f32 0.0, %v2473
      %v2475 = vpop.f32.mrf.mxu0
      %v2476 = vadd.f32 0.0, %v2475
      %2477 = vmatmul.bf16.gmra.mxu0 %v2403
      %v2478 = vpop.f32.mrf.mxu0
      %v2479 = vadd.f32 0.0, %v2478
      %v2480 = vpop.f32.mrf.mxu0
      %v2481 = vadd.f32 0.0, %v2480
      %2482 = vmatmul.bf16.gmra.mxu0 %v2405
      %v2483 = vpop.f32.mrf.mxu0
      %v2484 = vadd.f32 0.0, %v2483
      %v2485 = vpop.f32.mrf.mxu0
      %v2486 = vadd.f32 0.0, %v2485
      %2487 = vmatmul.bf16.gmra.mxu0 %v2407
      %v2488 = vpop.f32.mrf.mxu0
      %v2489 = vadd.f32 0.0, %v2488
      %v2490 = vpop.f32.mrf.mxu0
      %v2491 = vadd.f32 0.0, %v2490
      %2492 = vmatmul.bf16.gmra.mxu0 %v2409
      %v2493 = vpop.f32.mrf.mxu0
      %v2494 = vadd.f32 0.0, %v2493
      %v2495 = vpop.f32.mrf.mxu0
      %v2496 = vadd.f32 0.0, %v2495
      %2497 = vmatmul.bf16.gmra.mxu0 %v2411
      %v2498 = vpop.f32.mrf.mxu0
      %v2499 = vadd.f32 0.0, %v2498
      %v2500 = vpop.f32.mrf.mxu0
      %v2501 = vadd.f32 0.0, %v2500
      %2502 = vmatmul.bf16.gmra.mxu0 %v2413
      %v2503 = vpop.f32.mrf.mxu0
      %v2504 = vadd.f32 0.0, %v2503
      %v2505 = vpop.f32.mrf.mxu0
      %v2506 = vadd.f32 0.0, %v2505
      %2507 = vdwg.mxu0
      %v2517 = vunpack.c.l.b16 %v1356
      %v2518 = vunpack.c.l.b16 %v1357
      %v2519 = vunpack.c.l.b16 %v1358
      %v2520 = vunpack.c.l.b16 %v1359
      %v2521 = vunpack.c.l.b16 %v1360
      %v2522 = vunpack.c.l.b16 %v1361
      %v2523 = vunpack.c.l.b16 %v1362
      %v2524 = vunpack.c.l.b16 %v1363
      %v2525 = vunpack.c.l.b16 %v1364
      %v2526 = vpack.c.b16 %v2518, %v2517
      %v2527 = vpack.c.b16 %v2520, %v2519
      %v2528 = vpack.c.b16 %v2522, %v2521
      %v2529 = vpack.c.b16 %v2524, %v2523
      %v2530 = vpack.c.b16 %v2525, %v2525
      %v2535 = vsel %vm2382, %v1325, 0
      %v2537 = vsel %vm2382, %v1327, 0
      %v2539 = vsel %vm2382, %v1329, 0
      %v2541 = vsel %vm2382, %v1331, 0
      %v2543 = vsel %vm2382, %v1333, 0
      %v2545 = vsel %vm2382, %v1335, 0
      %v2547 = vsel %vm2382, %v1337, 0
      %v2549 = vsel %vm2382, %v1339, 0
      %v2551 = vsel %vm2382, %v1341, 0
      %v2553 = vsel %vm2382, %v1343, 0
      %v2555 = vsel %vm2382, %v1345, 0
      %v2557 = vsel %vm2382, %v1347, 0
      %v2559 = vsel %vm2382, %v1349, 0
      %v2561 = vsel %vm2382, %v1351, 0
      %v2563 = vsel %vm2382, %v1353, 0
      %v2565 = vsel %vm2382, %v1355, 0
      %v2568 = vsel %vm2415, %v2530, 0
      %2570 = vmatpush.bf16.msra.mxu0 0
      %2571 = vmatpush.bf16.msra.mxu0 0
      %2572 = vmatpush.bf16.msra.mxu0 0
      %2573 = vmatpush.bf16.msra.mxu0 %v2568
      %2574 = vmatpush.bf16.msra.mxu0 %v2529
      %2575 = vmatpush.bf16.msra.mxu0 %v2528
      %2576 = vmatpush.bf16.msra.mxu0 %v2527
      %2577 = vmatpush.bf16.msra.mxu0 %v2526
      %2578 = vmatmul.bf16.gmra.mxu0 %v2535
      %v2579 = vpop.f32.mrf.mxu0
      %v2580 = vadd.f32 %v2429, %v2579
      %v2581 = vpop.f32.mrf.mxu0
      %v2582 = vadd.f32 %v2431, %v2581
      %2583 = vmatmul.bf16.gmra.mxu0 %v2537
      %v2584 = vpop.f32.mrf.mxu0
      %v2585 = vadd.f32 %v2434, %v2584
      %v2586 = vpop.f32.mrf.mxu0
      %v2587 = vadd.f32 %v2436, %v2586
      %2588 = vmatmul.bf16.gmra.mxu0 %v2539
      %v2589 = vpop.f32.mrf.mxu0
      %v2590 = vadd.f32 %v2439, %v2589
      %v2591 = vpop.f32.mrf.mxu0
      %v2592 = vadd.f32 %v2441, %v2591
      %2593 = vmatmul.bf16.gmra.mxu0 %v2541
      %v2594 = vpop.f32.mrf.mxu0
      %v2595 = vadd.f32 %v2444, %v2594
      %v2596 = vpop.f32.mrf.mxu0
      %v2597 = vadd.f32 %v2446, %v2596
      %2598 = vmatmul.bf16.gmra.mxu0 %v2543
      %v2599 = vpop.f32.mrf.mxu0
      %v2600 = vadd.f32 %v2449, %v2599
      %v2601 = vpop.f32.mrf.mxu0
      %v2602 = vadd.f32 %v2451, %v2601
      %2603 = vmatmul.bf16.gmra.mxu0 %v2545
      %v2604 = vpop.f32.mrf.mxu0
      %v2605 = vadd.f32 %v2454, %v2604
      %v2606 = vpop.f32.mrf.mxu0
      %v2607 = vadd.f32 %v2456, %v2606
      %2608 = vmatmul.bf16.gmra.mxu0 %v2547
      %v2609 = vpop.f32.mrf.mxu0
      %v2610 = vadd.f32 %v2459, %v2609
      %v2611 = vpop.f32.mrf.mxu0
      %v2612 = vadd.f32 %v2461, %v2611
      %2613 = vmatmul.bf16.gmra.mxu0 %v2549
      %v2614 = vpop.f32.mrf.mxu0
      %v2615 = vadd.f32 %v2464, %v2614
      %v2616 = vpop.f32.mrf.mxu0
      %v2617 = vadd.f32 %v2466, %v2616
      %2618 = vmatmul.bf16.gmra.mxu0 %v2551
      %v2619 = vpop.f32.mrf.mxu0
      %v2620 = vadd.f32 %v2469, %v2619
      %v2621 = vpop.f32.mrf.mxu0
      %v2622 = vadd.f32 %v2471, %v2621
      %2623 = vmatmul.bf16.gmra.mxu0 %v2553
      %v2624 = vpop.f32.mrf.mxu0
      %v2625 = vadd.f32 %v2474, %v2624
      %v2626 = vpop.f32.mrf.mxu0
      %v2627 = vadd.f32 %v2476, %v2626
      %2628 = vmatmul.bf16.gmra.mxu0 %v2555
      %v2629 = vpop.f32.mrf.mxu0
      %v2630 = vadd.f32 %v2479, %v2629
      %v2631 = vpop.f32.mrf.mxu0
      %v2632 = vadd.f32 %v2481, %v2631
      %2633 = vmatmul.bf16.gmra.mxu0 %v2557
      %v2634 = vpop.f32.mrf.mxu0
      %v2635 = vadd.f32 %v2484, %v2634
      %v2636 = vpop.f32.mrf.mxu0
      %v2637 = vadd.f32 %v2486, %v2636
      %2638 = vmatmul.bf16.gmra.mxu0 %v2559
      %v2639 = vpop.f32.mrf.mxu0
      %v2640 = vadd.f32 %v2489, %v2639
      %v2641 = vpop.f32.mrf.mxu0
      %v2642 = vadd.f32 %v2491, %v2641
      %2643 = vmatmul.bf16.gmra.mxu0 %v2561
      %v2644 = vpop.f32.mrf.mxu0
      %v2645 = vadd.f32 %v2494, %v2644
      %v2646 = vpop.f32.mrf.mxu0
      %v2647 = vadd.f32 %v2496, %v2646
      %2648 = vmatmul.bf16.gmra.mxu0 %v2563
      %v2649 = vpop.f32.mrf.mxu0
      %v2650 = vadd.f32 %v2499, %v2649
      %v2651 = vpop.f32.mrf.mxu0
      %v2652 = vadd.f32 %v2501, %v2651
      %2653 = vmatmul.bf16.gmra.mxu0 %v2565
      %v2654 = vpop.f32.mrf.mxu0
      %v2655 = vadd.f32 %v2504, %v2654
      %v2656 = vpop.f32.mrf.mxu0
      %v2657 = vadd.f32 %v2506, %v2656
      %2658 = vdwg.mxu0
      %v2659 = vld [vmem:[%s345] sm:$0xf]
      %v2660 = vld [vmem:[%s345 + $0x4] sm:$0xf]
      %v2661 = vld [vmem:[%s345 + $0x8] sm:$0x1]
      %v2662 = vld [vmem:[%s345 + $0xc] sm:$0xf]
      %v2663 = vld [vmem:[%s345 + $0x10] sm:$0xf]
      %v2664 = vld [vmem:[%s345 + $0x14] sm:$0x1]
      %v2665 = vld [vmem:[%s345 + $0x18] sm:$0xf]
      %v2666 = vld [vmem:[%s345 + $0x1c] sm:$0xf]
      %v2667 = vld [vmem:[%s345 + $0x20] sm:$0x1]
      %v2668 = vld [vmem:[%s345 + $0x24] sm:$0xf]
      %v2669 = vld [vmem:[%s345 + $0x28] sm:$0xf]
      %v2670 = vld [vmem:[%s345 + $0x2c] sm:$0x1]
      %v2671 = vld [vmem:[%s345 + $0x30] sm:$0xf]
      %v2672 = vld [vmem:[%s345 + $0x34] sm:$0xf]
      %v2673 = vld [vmem:[%s345 + $0x38] sm:$0x1]
      %v2674 = vld [vmem:[%s345 + $0x3c] sm:$0xf]
      %v2675 = vld [vmem:[%s345 + $0x40] sm:$0xf]
      %v2676 = vld [vmem:[%s345 + $0x44] sm:$0x1]
      %v2677 = vld [vmem:[%s345 + $0x48] sm:$0xf]
      %v2678 = vld [vmem:[%s345 + $0x4c] sm:$0xf]
      %v2679 = vld [vmem:[%s345 + $0x50] sm:$0x1]
      %v2680 = vld [vmem:[%s345 + $0x54] sm:$0xf]
      %v2681 = vld [vmem:[%s345 + $0x58] sm:$0xf]
      %v2682 = vld [vmem:[%s345 + $0x5c] sm:$0x1]
      %v2683 = vld [vmem:[%s345 + $0x60] sm:$0xf]
      %v2684 = vld [vmem:[%s345 + $0x64] sm:$0xf]
      %v2685 = vld [vmem:[%s345 + $0x68] sm:$0x1]
      %v2686 = vld [vmem:[%s345 + $0x6c] sm:$0xf]
      %v2687 = vld [vmem:[%s345 + $0x70] sm:$0xf]
      %v2688 = vld [vmem:[%s345 + $0x74] sm:$0x1]
      %v2689 = vld [vmem:[%s345 + $0x78] sm:$0xf]
      %v2690 = vld [vmem:[%s345 + $0x7c] sm:$0xf]
      %v2691 = vld [vmem:[%s345 + $0x80] sm:$0x1]
      %v2692 = vld [vmem:[%s345 + $0x84] sm:$0xf]
      %v2693 = vld [vmem:[%s345 + $0x88] sm:$0xf]
      %v2694 = vld [vmem:[%s345 + $0x8c] sm:$0x1]
      %v2695 = vld [vmem:[%s345 + $0x90] sm:$0xf]
      %v2696 = vld [vmem:[%s345 + $0x94] sm:$0xf]
      %v2697 = vld [vmem:[%s345 + $0x98] sm:$0x1]
      %v2698 = vld [vmem:[%s345 + $0x9c] sm:$0xf]
      %v2699 = vld [vmem:[%s345 + $0xa0] sm:$0xf]
      %v2700 = vld [vmem:[%s345 + $0xa4] sm:$0x1]
      %v2701 = vld [vmem:[%s345 + $0xa8] sm:$0xf]
      %v2702 = vld [vmem:[%s345 + $0xac] sm:$0xf]
      %v2703 = vld [vmem:[%s345 + $0xb0] sm:$0x1]
      %v2704 = vld [vmem:[%s345 + $0xb4] sm:$0xf]
      %v2705 = vld [vmem:[%s345 + $0xb8] sm:$0xf]
      %v2706 = vld [vmem:[%s345 + $0xbc] sm:$0x1]
      %v2707 = vld [vmem:[%s345 + $0xc0] sm:$0xf]
      %v2708 = vld [vmem:[%s345 + $0xc4] sm:$0xf]
      %v2709 = vld [vmem:[%s345 + $0xc8] sm:$0x1]
      %v2710 = vld [vmem:[%s345 + $0xcc] sm:$0xf]
      %v2711 = vld [vmem:[%s345 + $0xd0] sm:$0xf]
      %v2712 = vld [vmem:[%s345 + $0xd4] sm:$0x1]
      %v2745 = vunpack.c.l.b16 %v2659
      %v2746 = vunpack.c.l.b16 %v2660
      %v2747 = vunpack.c.l.b16 %v2662
      %v2748 = vunpack.c.l.b16 %v2663
      %v2749 = vunpack.c.l.b16 %v2665
      %v2750 = vunpack.c.l.b16 %v2666
      %v2751 = vunpack.c.l.b16 %v2668
      %v2752 = vunpack.c.l.b16 %v2669
      %v2753 = vunpack.c.l.b16 %v2671
      %v2754 = vunpack.c.l.b16 %v2672
      %v2755 = vunpack.c.l.b16 %v2674
      %v2756 = vunpack.c.l.b16 %v2675
      %v2757 = vunpack.c.l.b16 %v2677
      %v2758 = vunpack.c.l.b16 %v2678
      %v2759 = vunpack.c.l.b16 %v2680
      %v2760 = vunpack.c.l.b16 %v2681
      %v2761 = vunpack.c.l.b16 %v2683
      %v2762 = vunpack.c.l.b16 %v2684
      %v2763 = vunpack.c.l.b16 %v2686
      %v2764 = vunpack.c.l.b16 %v2687
      %v2765 = vunpack.c.l.b16 %v2689
      %v2766 = vunpack.c.l.b16 %v2690
      %v2767 = vunpack.c.l.b16 %v2692
      %v2768 = vunpack.c.l.b16 %v2693
      %v2769 = vunpack.c.l.b16 %v2695
      %v2770 = vunpack.c.l.b16 %v2696
      %v2771 = vunpack.c.l.b16 %v2698
      %v2772 = vunpack.c.l.b16 %v2699
      %v2773 = vunpack.c.l.b16 %v2701
      %v2774 = vunpack.c.l.b16 %v2702
      %v2775 = vunpack.c.l.b16 %v2704
      %v2776 = vunpack.c.l.b16 %v2705
      %v2777 = vpack.c.b16 %v2746, %v2745
      %v2778 = vpack.c.b16 %v2748, %v2747
      %v2779 = vpack.c.b16 %v2750, %v2749
      %v2780 = vpack.c.b16 %v2752, %v2751
      %v2781 = vpack.c.b16 %v2754, %v2753
      %v2782 = vpack.c.b16 %v2756, %v2755
      %v2783 = vpack.c.b16 %v2758, %v2757
      %v2784 = vpack.c.b16 %v2760, %v2759
      %v2785 = vpack.c.b16 %v2762, %v2761
      %v2786 = vpack.c.b16 %v2764, %v2763
      %v2787 = vpack.c.b16 %v2766, %v2765
      %v2788 = vpack.c.b16 %v2768, %v2767
      %v2789 = vpack.c.b16 %v2770, %v2769
      %v2790 = vpack.c.b16 %v2772, %v2771
      %v2791 = vpack.c.b16 %v2774, %v2773
      %v2792 = vpack.c.b16 %v2776, %v2775
      %v2809 = vunpack.c.l.b16 %v2661
      %v2810 = vunpack.c.l.b16 %v2664
      %v2811 = vunpack.c.l.b16 %v2667
      %v2812 = vunpack.c.l.b16 %v2670
      %v2813 = vunpack.c.l.b16 %v2673
      %v2814 = vunpack.c.l.b16 %v2676
      %v2815 = vunpack.c.l.b16 %v2679
      %v2816 = vunpack.c.l.b16 %v2682
      %v2817 = vunpack.c.l.b16 %v2685
      %v2818 = vunpack.c.l.b16 %v2688
      %v2819 = vunpack.c.l.b16 %v2691
      %v2820 = vunpack.c.l.b16 %v2694
      %v2821 = vunpack.c.l.b16 %v2697
      %v2822 = vunpack.c.l.b16 %v2700
      %v2823 = vunpack.c.l.b16 %v2703
      %v2824 = vunpack.c.l.b16 %v2706
      %v2825 = vpack.c.b16 %v2809, %v2809
      %v2826 = vpack.c.b16 %v2810, %v2810
      %v2827 = vpack.c.b16 %v2811, %v2811
      %v2828 = vpack.c.b16 %v2812, %v2812
      %v2829 = vpack.c.b16 %v2813, %v2813
      %v2830 = vpack.c.b16 %v2814, %v2814
      %v2831 = vpack.c.b16 %v2815, %v2815
      %v2832 = vpack.c.b16 %v2816, %v2816
      %v2833 = vpack.c.b16 %v2817, %v2817
      %v2834 = vpack.c.b16 %v2818, %v2818
      %v2835 = vpack.c.b16 %v2819, %v2819
      %v2836 = vpack.c.b16 %v2820, %v2820
      %v2837 = vpack.c.b16 %v2821, %v2821
      %v2838 = vpack.c.b16 %v2822, %v2822
      %v2839 = vpack.c.b16 %v2823, %v2823
      %v2840 = vpack.c.b16 %v2824, %v2824
      %v2842 = vshrl.u32 %v2777, 16
      %v2844 = vshll.u32 %v2777, 16
      %v2846 = vrot.slane %v2844, 1
      %v2847 = vor.u32 %v2842, %v2846
      %v2849 = vshll.u32 %v2825, 16
      %v2851 = vrot.slane %v2849, 1
      %v2852 = vsel %vm548, %v2847, %v2851
      %v2854 = vshrl.u32 %v2778, 16
      %v2856 = vshll.u32 %v2778, 16
      %v2858 = vrot.slane %v2856, 1
      %v2859 = vor.u32 %v2854, %v2858
      %v2861 = vshll.u32 %v2826, 16
      %v2863 = vrot.slane %v2861, 1
      %v2864 = vsel %vm548, %v2859, %v2863
      %v2866 = vshrl.u32 %v2779, 16
      %v2868 = vshll.u32 %v2779, 16
      %v2870 = vrot.slane %v2868, 1
      %v2871 = vor.u32 %v2866, %v2870
      %v2873 = vshll.u32 %v2827, 16
      %v2875 = vrot.slane %v2873, 1
      %v2876 = vsel %vm548, %v2871, %v2875
      %v2878 = vshrl.u32 %v2780, 16
      %v2880 = vshll.u32 %v2780, 16
      %v2882 = vrot.slane %v2880, 1
      %v2883 = vor.u32 %v2878, %v2882
      %v2885 = vshll.u32 %v2828, 16
      %v2887 = vrot.slane %v2885, 1
      %v2888 = vsel %vm548, %v2883, %v2887
      %v2890 = vshrl.u32 %v2781, 16
      %v2892 = vshll.u32 %v2781, 16
      %v2894 = vrot.slane %v2892, 1
      %v2895 = vor.u32 %v2890, %v2894
      %v2897 = vshll.u32 %v2829, 16
      %v2899 = vrot.slane %v2897, 1
      %v2900 = vsel %vm548, %v2895, %v2899
      %v2902 = vshrl.u32 %v2782, 16
      %v2904 = vshll.u32 %v2782, 16
      %v2906 = vrot.slane %v2904, 1
      %v2907 = vor.u32 %v2902, %v2906
      %v2909 = vshll.u32 %v2830, 16
      %v2911 = vrot.slane %v2909, 1
      %v2912 = vsel %vm548, %v2907, %v2911
      %v2914 = vshrl.u32 %v2783, 16
      %v2916 = vshll.u32 %v2783, 16
      %v2918 = vrot.slane %v2916, 1
      %v2919 = vor.u32 %v2914, %v2918
      %v2921 = vshll.u32 %v2831, 16
      %v2923 = vrot.slane %v2921, 1
      %v2924 = vsel %vm548, %v2919, %v2923
      %v2926 = vshrl.u32 %v2784, 16
      %v2928 = vshll.u32 %v2784, 16
      %v2930 = vrot.slane %v2928, 1
      %v2931 = vor.u32 %v2926, %v2930
      %v2933 = vshll.u32 %v2832, 16
      %v2935 = vrot.slane %v2933, 1
      %v2936 = vsel %vm548, %v2931, %v2935
      %v2938 = vshrl.u32 %v2785, 16
      %v2940 = vshll.u32 %v2785, 16
      %v2942 = vrot.slane %v2940, 1
      %v2943 = vor.u32 %v2938, %v2942
      %v2945 = vshll.u32 %v2833, 16
      %v2947 = vrot.slane %v2945, 1
      %v2948 = vsel %vm548, %v2943, %v2947
      %v2950 = vshrl.u32 %v2786, 16
      %v2952 = vshll.u32 %v2786, 16
      %v2954 = vrot.slane %v2952, 1
      %v2955 = vor.u32 %v2950, %v2954
      %v2957 = vshll.u32 %v2834, 16
      %v2959 = vrot.slane %v2957, 1
      %v2960 = vsel %vm548, %v2955, %v2959
      %v2962 = vshrl.u32 %v2787, 16
      %v2964 = vshll.u32 %v2787, 16
      %v2966 = vrot.slane %v2964, 1
      %v2967 = vor.u32 %v2962, %v2966
      %v2969 = vshll.u32 %v2835, 16
      %v2971 = vrot.slane %v2969, 1
      %v2972 = vsel %vm548, %v2967, %v2971
      %v2974 = vshrl.u32 %v2788, 16
      %v2976 = vshll.u32 %v2788, 16
      %v2978 = vrot.slane %v2976, 1
      %v2979 = vor.u32 %v2974, %v2978
      %v2981 = vshll.u32 %v2836, 16
      %v2983 = vrot.slane %v2981, 1
      %v2984 = vsel %vm548, %v2979, %v2983
      %v2986 = vshrl.u32 %v2789, 16
      %v2988 = vshll.u32 %v2789, 16
      %v2990 = vrot.slane %v2988, 1
      %v2991 = vor.u32 %v2986, %v2990
      %v2993 = vshll.u32 %v2837, 16
      %v2995 = vrot.slane %v2993, 1
      %v2996 = vsel %vm548, %v2991, %v2995
      %v2998 = vshrl.u32 %v2790, 16
      %v3000 = vshll.u32 %v2790, 16
      %v3002 = vrot.slane %v3000, 1
      %v3003 = vor.u32 %v2998, %v3002
      %v3005 = vshll.u32 %v2838, 16
      %v3007 = vrot.slane %v3005, 1
      %v3008 = vsel %vm548, %v3003, %v3007
      %v3010 = vshrl.u32 %v2791, 16
      %v3012 = vshll.u32 %v2791, 16
      %v3014 = vrot.slane %v3012, 1
      %v3015 = vor.u32 %v3010, %v3014
      %v3017 = vshll.u32 %v2839, 16
      %v3019 = vrot.slane %v3017, 1
      %v3020 = vsel %vm548, %v3015, %v3019
      %v3022 = vshrl.u32 %v2792, 16
      %v3024 = vshll.u32 %v2792, 16
      %v3026 = vrot.slane %v3024, 1
      %v3027 = vor.u32 %v3022, %v3026
      %v3029 = vshll.u32 %v2840, 16
      %v3031 = vrot.slane %v3029, 1
      %v3032 = vsel %vm548, %v3027, %v3031
      %3033 = vrot.lane.b32.xlu0 %v2852, 8
      %v3034 = vpop.permute.xlu0 %3033
      %3035 = vrot.lane.b32.xlu0 %v2864, 8
      %v3036 = vpop.permute.xlu0 %3035
      %3037 = vrot.lane.b32.xlu0 %v2876, 8
      %v3038 = vpop.permute.xlu0 %3037
      %3039 = vrot.lane.b32.xlu0 %v2888, 8
      %v3040 = vpop.permute.xlu0 %3039
      %3041 = vrot.lane.b32.xlu0 %v2900, 8
      %v3042 = vpop.permute.xlu0 %3041
      %3043 = vrot.lane.b32.xlu0 %v2912, 8
      %v3044 = vpop.permute.xlu0 %3043
      %3045 = vrot.lane.b32.xlu0 %v2924, 8
      %v3046 = vpop.permute.xlu0 %3045
      %3047 = vrot.lane.b32.xlu0 %v2936, 8
      %v3048 = vpop.permute.xlu0 %3047
      %3049 = vrot.lane.b32.xlu0 %v2948, 8
      %v3050 = vpop.permute.xlu0 %3049
      %3051 = vrot.lane.b32.xlu0 %v2960, 8
      %v3052 = vpop.permute.xlu0 %3051
      %3053 = vrot.lane.b32.xlu0 %v2972, 8
      %v3054 = vpop.permute.xlu0 %3053
      %3055 = vrot.lane.b32.xlu0 %v2984, 8
      %v3056 = vpop.permute.xlu0 %3055
      %3057 = vrot.lane.b32.xlu0 %v2996, 8
      %v3058 = vpop.permute.xlu0 %3057
      %3059 = vrot.lane.b32.xlu0 %v3008, 8
      %v3060 = vpop.permute.xlu0 %3059
      %3061 = vrot.lane.b32.xlu0 %v3020, 8
      %v3062 = vpop.permute.xlu0 %3061
      %3063 = vrot.lane.b32.xlu0 %v3032, 8
      %v3064 = vpop.permute.xlu0 %3063
      %v3065 = vrot.slane %v2777, 1
      %v3066 = vrot.slane %v2825, 1
      %v3067 = vsel %vm773, %v3065, %v3066
      %v3068 = vrot.slane %v2778, 1
      %v3069 = vrot.slane %v2826, 1
      %v3070 = vsel %vm773, %v3068, %v3069
      %v3071 = vrot.slane %v2779, 1
      %v3072 = vrot.slane %v2827, 1
      %v3073 = vsel %vm773, %v3071, %v3072
      %v3074 = vrot.slane %v2780, 1
      %v3075 = vrot.slane %v2828, 1
      %v3076 = vsel %vm773, %v3074, %v3075
      %v3077 = vrot.slane %v2781, 1
      %v3078 = vrot.slane %v2829, 1
      %v3079 = vsel %vm773, %v3077, %v3078
      %v3080 = vrot.slane %v2782, 1
      %v3081 = vrot.slane %v2830, 1
      %v3082 = vsel %vm773, %v3080, %v3081
      %v3083 = vrot.slane %v2783, 1
      %v3084 = vrot.slane %v2831, 1
      %v3085 = vsel %vm773, %v3083, %v3084
      %v3086 = vrot.slane %v2784, 1
      %v3087 = vrot.slane %v2832, 1
      %v3088 = vsel %vm773, %v3086, %v3087
      %v3089 = vrot.slane %v2785, 1
      %v3090 = vrot.slane %v2833, 1
      %v3091 = vsel %vm773, %v3089, %v3090
      %v3092 = vrot.slane %v2786, 1
      %v3093 = vrot.slane %v2834, 1
      %v3094 = vsel %vm773, %v3092, %v3093
      %v3095 = vrot.slane %v2787, 1
      %v3096 = vrot.slane %v2835, 1
      %v3097 = vsel %vm773, %v3095, %v3096
      %v3098 = vrot.slane %v2788, 1
      %v3099 = vrot.slane %v2836, 1
      %v3100 = vsel %vm773, %v3098, %v3099
      %v3101 = vrot.slane %v2789, 1
      %v3102 = vrot.slane %v2837, 1
      %v3103 = vsel %vm773, %v3101, %v3102
      %v3104 = vrot.slane %v2790, 1
      %v3105 = vrot.slane %v2838, 1
      %v3106 = vsel %vm773, %v3104, %v3105
      %v3107 = vrot.slane %v2791, 1
      %v3108 = vrot.slane %v2839, 1
      %v3109 = vsel %vm773, %v3107, %v3108
      %v3110 = vrot.slane %v2792, 1
      %v3111 = vrot.slane %v2840, 1
      %v3112 = vsel %vm773, %v3110, %v3111
      %3113 = vrot.lane.b32.xlu0 %v3067, 16
      %v3114 = vpop.permute.xlu0 %3113
      %3115 = vrot.lane.b32.xlu0 %v3070, 16
      %v3116 = vpop.permute.xlu0 %3115
      %3117 = vrot.lane.b32.xlu0 %v3073, 16
      %v3118 = vpop.permute.xlu0 %3117
      %3119 = vrot.lane.b32.xlu0 %v3076, 16
      %v3120 = vpop.permute.xlu0 %3119
      %3121 = vrot.lane.b32.xlu0 %v3079, 16
      %v3122 = vpop.permute.xlu0 %3121
      %3123 = vrot.lane.b32.xlu0 %v3082, 16
      %v3124 = vpop.permute.xlu0 %3123
      %3125 = vrot.lane.b32.xlu0 %v3085, 16
      %v3126 = vpop.permute.xlu0 %3125
      %3127 = vrot.lane.b32.xlu0 %v3088, 16
      %v3128 = vpop.permute.xlu0 %3127
      %3129 = vrot.lane.b32.xlu0 %v3091, 16
      %v3130 = vpop.permute.xlu0 %3129
      %3131 = vrot.lane.b32.xlu0 %v3094, 16
      %v3132 = vpop.permute.xlu0 %3131
      %3133 = vrot.lane.b32.xlu0 %v3097, 16
      %v3134 = vpop.permute.xlu0 %3133
      %3135 = vrot.lane.b32.xlu0 %v3100, 16
      %v3136 = vpop.permute.xlu0 %3135
      %3137 = vrot.lane.b32.xlu0 %v3103, 16
      %v3138 = vpop.permute.xlu0 %3137
      %3139 = vrot.lane.b32.xlu0 %v3106, 16
      %v3140 = vpop.permute.xlu0 %3139
      %3141 = vrot.lane.b32.xlu0 %v3109, 16
      %v3142 = vpop.permute.xlu0 %3141
      %3143 = vrot.lane.b32.xlu0 %v3112, 16
      %v3144 = vpop.permute.xlu0 %3143
      %v3147 = vunpack.c.l.b16 %v2707
      %v3148 = vunpack.c.l.b16 %v2708
      %v3149 = vpack.c.b16 %v3148, %v3147
      %3150 = vrot.lane.b32.xlu0 %v2778, 24
      %v3151 = vpop.permute.xlu0 %3150
      %3152 = vrot.lane.b32.xlu0 %v2779, 24
      %v3153 = vpop.permute.xlu0 %3152
      %3154 = vrot.lane.b32.xlu0 %v2780, 24
      %v3155 = vpop.permute.xlu0 %3154
      %3156 = vrot.lane.b32.xlu0 %v2781, 24
      %v3157 = vpop.permute.xlu0 %3156
      %3158 = vrot.lane.b32.xlu0 %v2782, 24
      %v3159 = vpop.permute.xlu0 %3158
      %3160 = vrot.lane.b32.xlu0 %v2783, 24
      %v3161 = vpop.permute.xlu0 %3160
      %3162 = vrot.lane.b32.xlu0 %v2784, 24
      %v3163 = vpop.permute.xlu0 %3162
      %3164 = vrot.lane.b32.xlu0 %v2785, 24
      %v3165 = vpop.permute.xlu0 %3164
      %3166 = vrot.lane.b32.xlu0 %v2786, 24
      %v3167 = vpop.permute.xlu0 %3166
      %3168 = vrot.lane.b32.xlu0 %v2787, 24
      %v3169 = vpop.permute.xlu0 %3168
      %3170 = vrot.lane.b32.xlu0 %v2788, 24
      %v3171 = vpop.permute.xlu0 %3170
      %3172 = vrot.lane.b32.xlu0 %v2789, 24
      %v3173 = vpop.permute.xlu0 %3172
      %3174 = vrot.lane.b32.xlu0 %v2790, 24
      %v3175 = vpop.permute.xlu0 %3174
      %3176 = vrot.lane.b32.xlu0 %v2791, 24
      %v3177 = vpop.permute.xlu0 %3176
      %3178 = vrot.lane.b32.xlu0 %v2792, 24
      %v3179 = vpop.permute.xlu0 %3178
      %3180 = vrot.lane.b32.xlu0 %v3149, 24
      %v3181 = vpop.permute.xlu0 %3180
      %v3183 = vunpack.c.l.b16 %v2709
      %v3184 = vpack.c.b16 %v3183, %v3183
      %v3186 = vshrl.u32 %v3149, 16
      %v3188 = vshll.u32 %v3149, 16
      %v3190 = vrot.slane %v3188, 1
      %v3191 = vor.u32 %v3186, %v3190
      %v3193 = vshll.u32 %v3184, 16
      %v3195 = vrot.slane %v3193, 1
      %v3196 = vsel %vm548, %v3191, %v3195
      %3197 = vrot.lane.b32.xlu0 %v2864, 32
      %v3198 = vpop.permute.xlu0 %3197
      %3199 = vrot.lane.b32.xlu0 %v2876, 32
      %v3200 = vpop.permute.xlu0 %3199
      %3201 = vrot.lane.b32.xlu0 %v2888, 32
      %v3202 = vpop.permute.xlu0 %3201
      %3203 = vrot.lane.b32.xlu0 %v2900, 32
      %v3204 = vpop.permute.xlu0 %3203
      %3205 = vrot.lane.b32.xlu0 %v2912, 32
      %v3206 = vpop.permute.xlu0 %3205
      %3207 = vrot.lane.b32.xlu0 %v2924, 32
      %v3208 = vpop.permute.xlu0 %3207
      %3209 = vrot.lane.b32.xlu0 %v2936, 32
      %v3210 = vpop.permute.xlu0 %3209
      %3211 = vrot.lane.b32.xlu0 %v2948, 32
      %v3212 = vpop.permute.xlu0 %3211
      %3213 = vrot.lane.b32.xlu0 %v2960, 32
      %v3214 = vpop.permute.xlu0 %3213
      %3215 = vrot.lane.b32.xlu0 %v2972, 32
      %v3216 = vpop.permute.xlu0 %3215
      %3217 = vrot.lane.b32.xlu0 %v2984, 32
      %v3218 = vpop.permute.xlu0 %3217
      %3219 = vrot.lane.b32.xlu0 %v2996, 32
      %v3220 = vpop.permute.xlu0 %3219
      %3221 = vrot.lane.b32.xlu0 %v3008, 32
      %v3222 = vpop.permute.xlu0 %3221
      %3223 = vrot.lane.b32.xlu0 %v3020, 32
      %v3224 = vpop.permute.xlu0 %3223
      %3225 = vrot.lane.b32.xlu0 %v3032, 32
      %v3226 = vpop.permute.xlu0 %3225
      %3227 = vrot.lane.b32.xlu0 %v3196, 32
      %v3228 = vpop.permute.xlu0 %3227
      %v3229 = vrot.slane %v3149, 1
      %v3230 = vrot.slane %v3184, 1
      %v3231 = vsel %vm773, %v3229, %v3230
      %3232 = vrot.lane.b32.xlu0 %v3070, 40
      %v3233 = vpop.permute.xlu0 %3232
      %3234 = vrot.lane.b32.xlu0 %v3073, 40
      %v3235 = vpop.permute.xlu0 %3234
      %3236 = vrot.lane.b32.xlu0 %v3076, 40
      %v3237 = vpop.permute.xlu0 %3236
      %3238 = vrot.lane.b32.xlu0 %v3079, 40
      %v3239 = vpop.permute.xlu0 %3238
      %3240 = vrot.lane.b32.xlu0 %v3082, 40
      %v3241 = vpop.permute.xlu0 %3240
      %3242 = vrot.lane.b32.xlu0 %v3085, 40
      %v3243 = vpop.permute.xlu0 %3242
      %3244 = vrot.lane.b32.xlu0 %v3088, 40
      %v3245 = vpop.permute.xlu0 %3244
      %3246 = vrot.lane.b32.xlu0 %v3091, 40
      %v3247 = vpop.permute.xlu0 %3246
      %3248 = vrot.lane.b32.xlu0 %v3094, 40
      %v3249 = vpop.permute.xlu0 %3248
      %3250 = vrot.lane.b32.xlu0 %v3097, 40
      %v3251 = vpop.permute.xlu0 %3250
      %3252 = vrot.lane.b32.xlu0 %v3100, 40
      %v3253 = vpop.permute.xlu0 %3252
      %3254 = vrot.lane.b32.xlu0 %v3103, 40
      %v3255 = vpop.permute.xlu0 %3254
      %3256 = vrot.lane.b32.xlu0 %v3106, 40
      %v3257 = vpop.permute.xlu0 %3256
      %3258 = vrot.lane.b32.xlu0 %v3109, 40
      %v3259 = vpop.permute.xlu0 %3258
      %3260 = vrot.lane.b32.xlu0 %v3112, 40
      %v3261 = vpop.permute.xlu0 %3260
      %3262 = vrot.lane.b32.xlu0 %v3231, 40
      %v3263 = vpop.permute.xlu0 %3262
      %v3266 = vunpack.c.l.b16 %v2710
      %v3267 = vunpack.c.l.b16 %v2711
      %v3268 = vpack.c.b16 %v3267, %v3266
      %3269 = vrot.lane.b32.xlu0 %v2779, 48
      %v3270 = vpop.permute.xlu0 %3269
      %3271 = vrot.lane.b32.xlu0 %v2780, 48
      %v3272 = vpop.permute.xlu0 %3271
      %3273 = vrot.lane.b32.xlu0 %v2781, 48
      %v3274 = vpop.permute.xlu0 %3273
      %3275 = vrot.lane.b32.xlu0 %v2782, 48
      %v3276 = vpop.permute.xlu0 %3275
      %3277 = vrot.lane.b32.xlu0 %v2783, 48
      %v3278 = vpop.permute.xlu0 %3277
      %3279 = vrot.lane.b32.xlu0 %v2784, 48
      %v3280 = vpop.permute.xlu0 %3279
      %3281 = vrot.lane.b32.xlu0 %v2785, 48
      %v3282 = vpop.permute.xlu0 %3281
      %3283 = vrot.lane.b32.xlu0 %v2786, 48
      %v3284 = vpop.permute.xlu0 %3283
      %3285 = vrot.lane.b32.xlu0 %v2787, 48
      %v3286 = vpop.permute.xlu0 %3285
      %3287 = vrot.lane.b32.xlu0 %v2788, 48
      %v3288 = vpop.permute.xlu0 %3287
      %3289 = vrot.lane.b32.xlu0 %v2789, 48
      %v3290 = vpop.permute.xlu0 %3289
      %3291 = vrot.lane.b32.xlu0 %v2790, 48
      %v3292 = vpop.permute.xlu0 %3291
      %3293 = vrot.lane.b32.xlu0 %v2791, 48
      %v3294 = vpop.permute.xlu0 %3293
      %3295 = vrot.lane.b32.xlu0 %v2792, 48
      %v3296 = vpop.permute.xlu0 %3295
      %3297 = vrot.lane.b32.xlu0 %v3149, 48
      %v3298 = vpop.permute.xlu0 %3297
      %3299 = vrot.lane.b32.xlu0 %v3268, 48
      %v3300 = vpop.permute.xlu0 %3299
      %v3302 = vunpack.c.l.b16 %v2712
      %v3303 = vpack.c.b16 %v3302, %v3302
      %v3305 = vshrl.u32 %v3268, 16
      %v3307 = vshll.u32 %v3268, 16
      %v3309 = vrot.slane %v3307, 1
      %v3310 = vor.u32 %v3305, %v3309
      %v3312 = vshll.u32 %v3303, 16
      %v3314 = vrot.slane %v3312, 1
      %v3315 = vsel %vm548, %v3310, %v3314
      %3316 = vrot.lane.b32.xlu0 %v2876, 56
      %v3317 = vpop.permute.xlu0 %3316
      %3318 = vrot.lane.b32.xlu0 %v2888, 56
      %v3319 = vpop.permute.xlu0 %3318
      %3320 = vrot.lane.b32.xlu0 %v2900, 56
      %v3321 = vpop.permute.xlu0 %3320
      %3322 = vrot.lane.b32.xlu0 %v2912, 56
      %v3323 = vpop.permute.xlu0 %3322
      %3324 = vrot.lane.b32.xlu0 %v2924, 56
      %v3325 = vpop.permute.xlu0 %3324
      %3326 = vrot.lane.b32.xlu0 %v2936, 56
      %v3327 = vpop.permute.xlu0 %3326
      %3328 = vrot.lane.b32.xlu0 %v2948, 56
      %v3329 = vpop.permute.xlu0 %3328
      %3330 = vrot.lane.b32.xlu0 %v2960, 56
      %v3331 = vpop.permute.xlu0 %3330
      %3332 = vrot.lane.b32.xlu0 %v2972, 56
      %v3333 = vpop.permute.xlu0 %3332
      %3334 = vrot.lane.b32.xlu0 %v2984, 56
      %v3335 = vpop.permute.xlu0 %3334
      %3336 = vrot.lane.b32.xlu0 %v2996, 56
      %v3337 = vpop.permute.xlu0 %3336
      %3338 = vrot.lane.b32.xlu0 %v3008, 56
      %v3339 = vpop.permute.xlu0 %3338
      %3340 = vrot.lane.b32.xlu0 %v3020, 56
      %v3341 = vpop.permute.xlu0 %3340
      %3342 = vrot.lane.b32.xlu0 %v3032, 56
      %v3343 = vpop.permute.xlu0 %3342
      %3344 = vrot.lane.b32.xlu0 %v3196, 56
      %v3345 = vpop.permute.xlu0 %3344
      %3346 = vrot.lane.b32.xlu0 %v3315, 56
      %v3347 = vpop.permute.xlu0 %3346
      %v3348 = vrot.slane %v3268, 1
      %v3349 = vrot.slane %v3303, 1
      %v3350 = vsel %vm773, %v3348, %v3349
      %3351 = vrot.lane.b32.xlu0 %v3073, 64
      %v3352 = vpop.permute.xlu0 %3351
      %3353 = vrot.lane.b32.xlu0 %v3076, 64
      %v3354 = vpop.permute.xlu0 %3353
      %3355 = vrot.lane.b32.xlu0 %v3079, 64
      %v3356 = vpop.permute.xlu0 %3355
      %3357 = vrot.lane.b32.xlu0 %v3082, 64
      %v3358 = vpop.permute.xlu0 %3357
      %3359 = vrot.lane.b32.xlu0 %v3085, 64
      %v3360 = vpop.permute.xlu0 %3359
      %3361 = vrot.lane.b32.xlu0 %v3088, 64
      %v3362 = vpop.permute.xlu0 %3361
      %3363 = vrot.lane.b32.xlu0 %v3091, 64
      %v3364 = vpop.permute.xlu0 %3363
      %3365 = vrot.lane.b32.xlu0 %v3094, 64
      %v3366 = vpop.permute.xlu0 %3365
      %3367 = vrot.lane.b32.xlu0 %v3097, 64
      %v3368 = vpop.permute.xlu0 %3367
      %3369 = vrot.lane.b32.xlu0 %v3100, 64
      %v3370 = vpop.permute.xlu0 %3369
      %3371 = vrot.lane.b32.xlu0 %v3103, 64
      %v3372 = vpop.permute.xlu0 %3371
      %3373 = vrot.lane.b32.xlu0 %v3106, 64
      %v3374 = vpop.permute.xlu0 %3373
      %3375 = vrot.lane.b32.xlu0 %v3109, 64
      %v3376 = vpop.permute.xlu0 %3375
      %3377 = vrot.lane.b32.xlu0 %v3112, 64
      %v3378 = vpop.permute.xlu0 %3377
      %3379 = vrot.lane.b32.xlu0 %v3231, 64
      %v3380 = vpop.permute.xlu0 %3379
      %3381 = vrot.lane.b32.xlu0 %v3350, 64
      %v3382 = vpop.permute.xlu0 %3381
      %v3384 = vsel %vm1092, %v2777, %v3034
      %v3386 = vsel %vm1092, %v2778, %v3036
      %v3388 = vsel %vm1092, %v2779, %v3038
      %v3390 = vsel %vm1092, %v2780, %v3040
      %v3392 = vsel %vm1092, %v2781, %v3042
      %v3394 = vsel %vm1092, %v2782, %v3044
      %v3396 = vsel %vm1092, %v2783, %v3046
      %v3398 = vsel %vm1092, %v2784, %v3048
      %v3400 = vsel %vm1092, %v2785, %v3050
      %v3402 = vsel %vm1092, %v2786, %v3052
      %v3404 = vsel %vm1092, %v2787, %v3054
      %v3406 = vsel %vm1092, %v2788, %v3056
      %v3408 = vsel %vm1092, %v2789, %v3058
      %v3410 = vsel %vm1092, %v2790, %v3060
      %v3412 = vsel %vm1092, %v2791, %v3062
      %v3414 = vsel %vm1092, %v2792, %v3064
      %v3416 = vsel %vm1125, %v3384, %v3114
      %v3418 = vsel %vm1125, %v3386, %v3116
      %v3420 = vsel %vm1125, %v3388, %v3118
      %v3422 = vsel %vm1125, %v3390, %v3120
      %v3424 = vsel %vm1125, %v3392, %v3122
      %v3426 = vsel %vm1125, %v3394, %v3124
      %v3428 = vsel %vm1125, %v3396, %v3126
      %v3430 = vsel %vm1125, %v3398, %v3128
      %v3432 = vsel %vm1125, %v3400, %v3130
      %v3434 = vsel %vm1125, %v3402, %v3132
      %v3436 = vsel %vm1125, %v3404, %v3134
      %v3438 = vsel %vm1125, %v3406, %v3136
      %v3440 = vsel %vm1125, %v3408, %v3138
      %v3442 = vsel %vm1125, %v3410, %v3140
      %v3444 = vsel %vm1125, %v3412, %v3142
      %v3446 = vsel %vm1125, %v3414, %v3144
      %v3448 = vsel %vm1158, %v3416, %v3151
      %v3450 = vsel %vm1158, %v3418, %v3153
      %v3452 = vsel %vm1158, %v3420, %v3155
      %v3454 = vsel %vm1158, %v3422, %v3157
      %v3456 = vsel %vm1158, %v3424, %v3159
      %v3458 = vsel %vm1158, %v3426, %v3161
      %v3460 = vsel %vm1158, %v3428, %v3163
      %v3462 = vsel %vm1158, %v3430, %v3165
      %v3464 = vsel %vm1158, %v3432, %v3167
      %v3466 = vsel %vm1158, %v3434, %v3169
      %v3468 = vsel %vm1158, %v3436, %v3171
      %v3470 = vsel %vm1158, %v3438, %v3173
      %v3472 = vsel %vm1158, %v3440, %v3175
      %v3474 = vsel %vm1158, %v3442, %v3177
      %v3476 = vsel %vm1158, %v3444, %v3179
      %v3478 = vsel %vm1158, %v3446, %v3181
      %v3480 = vsel %vm1191, %v3448, %v3198
      %v3482 = vsel %vm1191, %v3450, %v3200
      %v3484 = vsel %vm1191, %v3452, %v3202
      %v3486 = vsel %vm1191, %v3454, %v3204
      %v3488 = vsel %vm1191, %v3456, %v3206
      %v3490 = vsel %vm1191, %v3458, %v3208
      %v3492 = vsel %vm1191, %v3460, %v3210
      %v3494 = vsel %vm1191, %v3462, %v3212
      %v3496 = vsel %vm1191, %v3464, %v3214
      %v3498 = vsel %vm1191, %v3466, %v3216
      %v3500 = vsel %vm1191, %v3468, %v3218
      %v3502 = vsel %vm1191, %v3470, %v3220
      %v3504 = vsel %vm1191, %v3472, %v3222
      %v3506 = vsel %vm1191, %v3474, %v3224
      %v3508 = vsel %vm1191, %v3476, %v3226
      %v3510 = vsel %vm1191, %v3478, %v3228
      %v3512 = vsel %vm1224, %v3480, %v3233
      %v3514 = vsel %vm1224, %v3482, %v3235
      %v3516 = vsel %vm1224, %v3484, %v3237
      %v3518 = vsel %vm1224, %v3486, %v3239
      %v3520 = vsel %vm1224, %v3488, %v3241
      %v3522 = vsel %vm1224, %v3490, %v3243
      %v3524 = vsel %vm1224, %v3492, %v3245
      %v3526 = vsel %vm1224, %v3494, %v3247
      %v3528 = vsel %vm1224, %v3496, %v3249
      %v3530 = vsel %vm1224, %v3498, %v3251
      %v3532 = vsel %vm1224, %v3500, %v3253
      %v3534 = vsel %vm1224, %v3502, %v3255
      %v3536 = vsel %vm1224, %v3504, %v3257
      %v3538 = vsel %vm1224, %v3506, %v3259
      %v3540 = vsel %vm1224, %v3508, %v3261
      %v3542 = vsel %vm1224, %v3510, %v3263
      %v3544 = vsel %vm1257, %v3512, %v3270
      %v3546 = vsel %vm1257, %v3514, %v3272
      %v3548 = vsel %vm1257, %v3516, %v3274
      %v3550 = vsel %vm1257, %v3518, %v3276
      %v3552 = vsel %vm1257, %v3520, %v3278
      %v3554 = vsel %vm1257, %v3522, %v3280
      %v3556 = vsel %vm1257, %v3524, %v3282
      %v3558 = vsel %vm1257, %v3526, %v3284
      %v3560 = vsel %vm1257, %v3528, %v3286
      %v3562 = vsel %vm1257, %v3530, %v3288
      %v3564 = vsel %vm1257, %v3532, %v3290
      %v3566 = vsel %vm1257, %v3534, %v3292
      %v3568 = vsel %vm1257, %v3536, %v3294
      %v3570 = vsel %vm1257, %v3538, %v3296
      %v3572 = vsel %vm1257, %v3540, %v3298
      %v3574 = vsel %vm1257, %v3542, %v3300
      %v3576 = vsel %vm1290, %v3544, %v3317
      %v3578 = vsel %vm1290, %v3546, %v3319
      %v3580 = vsel %vm1290, %v3548, %v3321
      %v3582 = vsel %vm1290, %v3550, %v3323
      %v3584 = vsel %vm1290, %v3552, %v3325
      %v3586 = vsel %vm1290, %v3554, %v3327
      %v3588 = vsel %vm1290, %v3556, %v3329
      %v3590 = vsel %vm1290, %v3558, %v3331
      %v3592 = vsel %vm1290, %v3560, %v3333
      %v3594 = vsel %vm1290, %v3562, %v3335
      %v3596 = vsel %vm1290, %v3564, %v3337
      %v3598 = vsel %vm1290, %v3566, %v3339
      %v3600 = vsel %vm1290, %v3568, %v3341
      %v3602 = vsel %vm1290, %v3570, %v3343
      %v3604 = vsel %vm1290, %v3572, %v3345
      %v3606 = vsel %vm1290, %v3574, %v3347
      %v3608 = vsel %vm1323, %v3576, %v3352
      %v3610 = vsel %vm1323, %v3578, %v3354
      %v3612 = vsel %vm1323, %v3580, %v3356
      %v3614 = vsel %vm1323, %v3582, %v3358
      %v3616 = vsel %vm1323, %v3584, %v3360
      %v3618 = vsel %vm1323, %v3586, %v3362
      %v3620 = vsel %vm1323, %v3588, %v3364
      %v3622 = vsel %vm1323, %v3590, %v3366
      %v3624 = vsel %vm1323, %v3592, %v3368
      %v3626 = vsel %vm1323, %v3594, %v3370
      %v3628 = vsel %vm1323, %v3596, %v3372
      %v3630 = vsel %vm1323, %v3598, %v3374
      %v3632 = vsel %vm1323, %v3600, %v3376
      %v3634 = vsel %vm1323, %v3602, %v3378
      %v3636 = vsel %vm1323, %v3604, %v3380
      %v3638 = vsel %vm1323, %v3606, %v3382
      %s3639 = scalar_lea.vmem %s3, 72
      %v3640 = vld [vmem:[%s3639] sm:$0xf]
      %v3641 = vld [vmem:[%s3639 + $0x4] sm:$0xf]
      %v3642 = vld [vmem:[%s3639 + $0x8] sm:$0xf]
      %v3643 = vld [vmem:[%s3639 + $0xc] sm:$0xf]
      %v3644 = vld [vmem:[%s3639 + $0x10] sm:$0xf]
      %v3645 = vld [vmem:[%s3639 + $0x14] sm:$0xf]
      %v3646 = vld [vmem:[%s3639 + $0x18] sm:$0xf]
      %v3647 = vld [vmem:[%s3639 + $0x1c] sm:$0xf]
      %v3648 = vld [vmem:[%s3639 + $0x20] sm:$0xf]
      %v3658 = vunpack.c.l.b16 %v3640
      %v3659 = vunpack.c.l.b16 %v3641
      %v3660 = vunpack.c.l.b16 %v3642
      %v3661 = vunpack.c.l.b16 %v3643
      %v3662 = vunpack.c.l.b16 %v3644
      %v3663 = vunpack.c.l.b16 %v3645
      %v3664 = vunpack.c.l.b16 %v3646
      %v3665 = vunpack.c.l.b16 %v3647
      %v3666 = vunpack.c.l.b16 %v3648
      %v3667 = vpack.c.b16 %v3659, %v3658
      %v3668 = vpack.c.b16 %v3661, %v3660
      %v3669 = vpack.c.b16 %v3663, %v3662
      %v3670 = vpack.c.b16 %v3665, %v3664
      %v3671 = vpack.c.b16 %v3666, %v3666
      %v3676 = vsel %vm2382, %v3608, 0
      %v3678 = vsel %vm2382, %v3610, 0
      %v3680 = vsel %vm2382, %v3612, 0
      %v3682 = vsel %vm2382, %v3614, 0
      %v3684 = vsel %vm2382, %v3616, 0
      %v3686 = vsel %vm2382, %v3618, 0
      %v3688 = vsel %vm2382, %v3620, 0
      %v3690 = vsel %vm2382, %v3622, 0
      %v3692 = vsel %vm2382, %v3624, 0
      %v3694 = vsel %vm2382, %v3626, 0
      %v3696 = vsel %vm2382, %v3628, 0
      %v3698 = vsel %vm2382, %v3630, 0
      %v3700 = vsel %vm2382, %v3632, 0
      %v3702 = vsel %vm2382, %v3634, 0
      %v3704 = vsel %vm2382, %v3636, 0
      %v3706 = vsel %vm2382, %v3638, 0
      %v3709 = vsel %vm2415, %v3671, 0
      %3711 = vmatpush.bf16.msra.mxu0 0
      %3712 = vmatpush.bf16.msra.mxu0 0
      %3713 = vmatpush.bf16.msra.mxu0 0
      %3714 = vmatpush.bf16.msra.mxu0 %v3709
      %3715 = vmatpush.bf16.msra.mxu0 %v3670
      %3716 = vmatpush.bf16.msra.mxu0 %v3669
      %3717 = vmatpush.bf16.msra.mxu0 %v3668
      %3718 = vmatpush.bf16.msra.mxu0 %v3667
      %3719 = vmatmul.bf16.gmra.mxu0 %v3676
      %v3720 = vpop.f32.mrf.mxu0
      %v3721 = vadd.f32 0.0, %v3720
      %v3722 = vpop.f32.mrf.mxu0
      %v3723 = vadd.f32 0.0, %v3722
      %3724 = vmatmul.bf16.gmra.mxu0 %v3678
      %v3725 = vpop.f32.mrf.mxu0
      %v3726 = vadd.f32 0.0, %v3725
      %v3727 = vpop.f32.mrf.mxu0
      %v3728 = vadd.f32 0.0, %v3727
      %3729 = vmatmul.bf16.gmra.mxu0 %v3680
      %v3730 = vpop.f32.mrf.mxu0
      %v3731 = vadd.f32 0.0, %v3730
      %v3732 = vpop.f32.mrf.mxu0
      %v3733 = vadd.f32 0.0, %v3732
      %3734 = vmatmul.bf16.gmra.mxu0 %v3682
      %v3735 = vpop.f32.mrf.mxu0
      %v3736 = vadd.f32 0.0, %v3735
      %v3737 = vpop.f32.mrf.mxu0
      %v3738 = vadd.f32 0.0, %v3737
      %3739 = vmatmul.bf16.gmra.mxu0 %v3684
      %v3740 = vpop.f32.mrf.mxu0
      %v3741 = vadd.f32 0.0, %v3740
      %v3742 = vpop.f32.mrf.mxu0
      %v3743 = vadd.f32 0.0, %v3742
      %3744 = vmatmul.bf16.gmra.mxu0 %v3686
      %v3745 = vpop.f32.mrf.mxu0
      %v3746 = vadd.f32 0.0, %v3745
      %v3747 = vpop.f32.mrf.mxu0
      %v3748 = vadd.f32 0.0, %v3747
      %3749 = vmatmul.bf16.gmra.mxu0 %v3688
      %v3750 = vpop.f32.mrf.mxu0
      %v3751 = vadd.f32 0.0, %v3750
      %v3752 = vpop.f32.mrf.mxu0
      %v3753 = vadd.f32 0.0, %v3752
      %3754 = vmatmul.bf16.gmra.mxu0 %v3690
      %v3755 = vpop.f32.mrf.mxu0
      %v3756 = vadd.f32 0.0, %v3755
      %v3757 = vpop.f32.mrf.mxu0
      %v3758 = vadd.f32 0.0, %v3757
      %3759 = vmatmul.bf16.gmra.mxu0 %v3692
      %v3760 = vpop.f32.mrf.mxu0
      %v3761 = vadd.f32 0.0, %v3760
      %v3762 = vpop.f32.mrf.mxu0
      %v3763 = vadd.f32 0.0, %v3762
      %3764 = vmatmul.bf16.gmra.mxu0 %v3694
      %v3765 = vpop.f32.mrf.mxu0
      %v3766 = vadd.f32 0.0, %v3765
      %v3767 = vpop.f32.mrf.mxu0
      %v3768 = vadd.f32 0.0, %v3767
      %3769 = vmatmul.bf16.gmra.mxu0 %v3696
      %v3770 = vpop.f32.mrf.mxu0
      %v3771 = vadd.f32 0.0, %v3770
      %v3772 = vpop.f32.mrf.mxu0
      %v3773 = vadd.f32 0.0, %v3772
      %3774 = vmatmul.bf16.gmra.mxu0 %v3698
      %v3775 = vpop.f32.mrf.mxu0
      %v3776 = vadd.f32 0.0, %v3775
      %v3777 = vpop.f32.mrf.mxu0
      %v3778 = vadd.f32 0.0, %v3777
      %3779 = vmatmul.bf16.gmra.mxu0 %v3700
      %v3780 = vpop.f32.mrf.mxu0
      %v3781 = vadd.f32 0.0, %v3780
      %v3782 = vpop.f32.mrf.mxu0
      %v3783 = vadd.f32 0.0, %v3782
      %3784 = vmatmul.bf16.gmra.mxu0 %v3702
      %v3785 = vpop.f32.mrf.mxu0
      %v3786 = vadd.f32 0.0, %v3785
      %v3787 = vpop.f32.mrf.mxu0
      %v3788 = vadd.f32 0.0, %v3787
      %3789 = vmatmul.bf16.gmra.mxu0 %v3704
      %v3790 = vpop.f32.mrf.mxu0
      %v3791 = vadd.f32 0.0, %v3790
      %v3792 = vpop.f32.mrf.mxu0
      %v3793 = vadd.f32 0.0, %v3792
      %3794 = vmatmul.bf16.gmra.mxu0 %v3706
      %v3795 = vpop.f32.mrf.mxu0
      %v3796 = vadd.f32 0.0, %v3795
      %v3797 = vpop.f32.mrf.mxu0
      %v3798 = vadd.f32 0.0, %v3797
      %3799 = vdwg.mxu0
      %v3800 = vadd.f32 %v2580, %v3721
      %v3801 = vadd.f32 %v2582, %v3723
      %v3802 = vadd.f32 %v2585, %v3726
      %v3803 = vadd.f32 %v2587, %v3728
      %v3804 = vadd.f32 %v2590, %v3731
      %v3805 = vadd.f32 %v2592, %v3733
      %v3806 = vadd.f32 %v2595, %v3736
      %v3807 = vadd.f32 %v2597, %v3738
      %v3808 = vadd.f32 %v2600, %v3741
      %v3809 = vadd.f32 %v2602, %v3743
      %v3810 = vadd.f32 %v2605, %v3746
      %v3811 = vadd.f32 %v2607, %v3748
      %v3812 = vadd.f32 %v2610, %v3751
      %v3813 = vadd.f32 %v2612, %v3753
      %v3814 = vadd.f32 %v2615, %v3756
      %v3815 = vadd.f32 %v2617, %v3758
      %v3816 = vadd.f32 %v2620, %v3761
      %v3817 = vadd.f32 %v2622, %v3763
      %v3818 = vadd.f32 %v2625, %v3766
      %v3819 = vadd.f32 %v2627, %v3768
      %v3820 = vadd.f32 %v2630, %v3771
      %v3821 = vadd.f32 %v2632, %v3773
      %v3822 = vadd.f32 %v2635, %v3776
      %v3823 = vadd.f32 %v2637, %v3778
      %v3824 = vadd.f32 %v2640, %v3781
      %v3825 = vadd.f32 %v2642, %v3783
      %v3826 = vadd.f32 %v2645, %v3786
      %v3827 = vadd.f32 %v2647, %v3788
      %v3828 = vadd.f32 %v2650, %v3791
      %v3829 = vadd.f32 %v2652, %v3793
      %v3830 = vadd.f32 %v2655, %v3796
      %v3831 = vadd.f32 %v2657, %v3798
      %3832 = vst [vmem:[%s353] sm:$0xff] %v3800
      %3833 = vst [vmem:[%s353 + $0x8] sm:$0xff] %v3801
      %3834 = vst [vmem:[%s353 + $0x10] sm:$0xff] %v3802
      %3835 = vst [vmem:[%s353 + $0x18] sm:$0xff] %v3803
      %3836 = vst [vmem:[%s353 + $0x20] sm:$0xff] %v3804
      %3837 = vst [vmem:[%s353 + $0x28] sm:$0xff] %v3805
      %3838 = vst [vmem:[%s353 + $0x30] sm:$0xff] %v3806
      %3839 = vst [vmem:[%s353 + $0x38] sm:$0xff] %v3807
      %3840 = vst [vmem:[%s353 + $0x40] sm:$0xff] %v3808
      %3841 = vst [vmem:[%s353 + $0x48] sm:$0xff] %v3809
      %3842 = vst [vmem:[%s353 + $0x50] sm:$0xff] %v3810
      %3843 = vst [vmem:[%s353 + $0x58] sm:$0xff] %v3811
      %3844 = vst [vmem:[%s353 + $0x60] sm:$0xff] %v3812
      %3845 = vst [vmem:[%s353 + $0x68] sm:$0xff] %v3813
      %3846 = vst [vmem:[%s353 + $0x70] sm:$0xff] %v3814
      %3847 = vst [vmem:[%s353 + $0x78] sm:$0xff] %v3815
      %3848 = vst [vmem:[%s353 + $0x80] sm:$0xff] %v3816
      %3849 = vst [vmem:[%s353 + $0x88] sm:$0xff] %v3817
      %3850 = vst [vmem:[%s353 + $0x90] sm:$0xff] %v3818
      %3851 = vst [vmem:[%s353 + $0x98] sm:$0xff] %v3819
      %3852 = vst [vmem:[%s353 + $0xa0] sm:$0xff] %v3820
      %3853 = vst [vmem:[%s353 + $0xa8] sm:$0xff] %v3821
      %3854 = vst [vmem:[%s353 + $0xb0] sm:$0xff] %v3822
      %3855 = vst [vmem:[%s353 + $0xb8] sm:$0xff] %v3823
      %3856 = vst [vmem:[%s353 + $0xc0] sm:$0xff] %v3824
      %3857 = vst [vmem:[%s353 + $0xc8] sm:$0xff] %v3825
      %3858 = vst [vmem:[%s353 + $0xd0] sm:$0xff] %v3826
      %3859 = vst [vmem:[%s353 + $0xd8] sm:$0xff] %v3827
      %3860 = vst [vmem:[%s353 + $0xe0] sm:$0xff] %v3828
      %3861 = vst [vmem:[%s353 + $0xe8] sm:$0xff] %v3829
      %3862 = vst [vmem:[%s353 + $0xf0] sm:$0xff] %v3830
      %3863 = vst [vmem:[%s353 + $0xf8] sm:$0xff] %v3831
      %v3864 = vadd.f32 %v3800, %v3801
      %v3865 = vadd.f32 %v3864, %v3802
      %v3866 = vadd.f32 %v3865, %v3803
      %v3867 = vadd.f32 %v3866, %v3804
      %v3868 = vadd.f32 %v3867, %v3805
      %v3869 = vadd.f32 %v3868, %v3806
      %v3870 = vadd.f32 %v3869, %v3807
      %v3871 = vadd.f32 %v3870, %v3808
      %v3872 = vadd.f32 %v3871, %v3809
      %v3873 = vadd.f32 %v3872, %v3810
      %v3874 = vadd.f32 %v3873, %v3811
      %v3875 = vadd.f32 %v3874, %v3812
      %v3876 = vadd.f32 %v3875, %v3813
      %v3877 = vadd.f32 %v3876, %v3814
      %v3878 = vadd.f32 %v3877, %v3815
      %v3879 = vadd.f32 %v3878, %v3816
      %v3880 = vadd.f32 %v3879, %v3817
      %v3881 = vadd.f32 %v3880, %v3818
      %v3882 = vadd.f32 %v3881, %v3819
      %v3883 = vadd.f32 %v3882, %v3820
      %v3884 = vadd.f32 %v3883, %v3821
      %v3885 = vadd.f32 %v3884, %v3822
      %v3886 = vadd.f32 %v3885, %v3823
      %v3887 = vadd.f32 %v3886, %v3824
      %v3888 = vadd.f32 %v3887, %v3825
      %v3889 = vadd.f32 %v3888, %v3826
      %v3890 = vadd.f32 %v3889, %v3827
      %v3891 = vadd.f32 %v3890, %v3828
      %v3892 = vadd.f32 %v3891, %v3829
      %v3893 = vadd.f32 %v3892, %v3830
      %v3894 = vadd.f32 %v3893, %v3831
      %v3895 = vrot.slane %v3894, 4
      %v3896 = vadd.f32 %v3894, %v3895
      %v3897 = vrot.slane %v3896, 2
      %v3898 = vadd.f32 %v3896, %v3897
      %v3899 = vrot.slane %v3898, 1
      %v3900 = vadd.f32 %v3898, %v3899
      %v3901 = vmul.f32 %v3900, 0.00390625
      %v3902 = vsub.f32 %v3800, %v3901
      %v3903 = vsub.f32 %v3801, %v3901
      %v3904 = vsub.f32 %v3802, %v3901
      %v3905 = vsub.f32 %v3803, %v3901
      %v3906 = vsub.f32 %v3804, %v3901
      %v3907 = vsub.f32 %v3805, %v3901
      %v3908 = vsub.f32 %v3806, %v3901
      %v3909 = vsub.f32 %v3807, %v3901
      %v3910 = vsub.f32 %v3808, %v3901
      %v3911 = vsub.f32 %v3809, %v3901
      %v3912 = vsub.f32 %v3810, %v3901
      %v3913 = vsub.f32 %v3811, %v3901
      %v3914 = vsub.f32 %v3812, %v3901
      %v3915 = vsub.f32 %v3813, %v3901
      %v3916 = vsub.f32 %v3814, %v3901
      %v3917 = vsub.f32 %v3815, %v3901
      %v3918 = vsub.f32 %v3816, %v3901
      %v3919 = vsub.f32 %v3817, %v3901
      %v3920 = vsub.f32 %v3818, %v3901
      %v3921 = vsub.f32 %v3819, %v3901
      %v3922 = vsub.f32 %v3820, %v3901
      %v3923 = vsub.f32 %v3821, %v3901
      %v3924 = vsub.f32 %v3822, %v3901
      %v3925 = vsub.f32 %v3823, %v3901
      %v3926 = vsub.f32 %v3824, %v3901
      %v3927 = vsub.f32 %v3825, %v3901
      %v3928 = vsub.f32 %v3826, %v3901
      %v3929 = vsub.f32 %v3827, %v3901
      %v3930 = vsub.f32 %v3828, %v3901
      %v3931 = vsub.f32 %v3829, %v3901
      %v3932 = vsub.f32 %v3830, %v3901
      %v3933 = vsub.f32 %v3831, %v3901
      %v3934 = vmul.f32 %v3902, %v3902
      %v3935 = vmul.f32 %v3903, %v3903
      %v3936 = vmul.f32 %v3904, %v3904
      %v3937 = vmul.f32 %v3905, %v3905
      %v3938 = vmul.f32 %v3906, %v3906
      %v3939 = vmul.f32 %v3907, %v3907
      %v3940 = vmul.f32 %v3908, %v3908
      %v3941 = vmul.f32 %v3909, %v3909
      %v3942 = vmul.f32 %v3910, %v3910
      %v3943 = vmul.f32 %v3911, %v3911
      %v3944 = vmul.f32 %v3912, %v3912
      %v3945 = vmul.f32 %v3913, %v3913
      %v3946 = vmul.f32 %v3914, %v3914
      %v3947 = vmul.f32 %v3915, %v3915
      %v3948 = vmul.f32 %v3916, %v3916
      %v3949 = vmul.f32 %v3917, %v3917
      %v3950 = vmul.f32 %v3918, %v3918
      %v3951 = vmul.f32 %v3919, %v3919
      %v3952 = vmul.f32 %v3920, %v3920
      %v3953 = vmul.f32 %v3921, %v3921
      %v3954 = vmul.f32 %v3922, %v3922
      %v3955 = vmul.f32 %v3923, %v3923
      %v3956 = vmul.f32 %v3924, %v3924
      %v3957 = vmul.f32 %v3925, %v3925
      %v3958 = vmul.f32 %v3926, %v3926
      %v3959 = vmul.f32 %v3927, %v3927
      %v3960 = vmul.f32 %v3928, %v3928
      %v3961 = vmul.f32 %v3929, %v3929
      %v3962 = vmul.f32 %v3930, %v3930
      %v3963 = vmul.f32 %v3931, %v3931
      %v3964 = vmul.f32 %v3932, %v3932
      %v3965 = vmul.f32 %v3933, %v3933
      %v3966 = vadd.f32 %v3934, %v3935
      %v3967 = vadd.f32 %v3966, %v3936
      %v3968 = vadd.f32 %v3967, %v3937
      %v3969 = vadd.f32 %v3968, %v3938
      %v3970 = vadd.f32 %v3969, %v3939
      %v3971 = vadd.f32 %v3970, %v3940
      %v3972 = vadd.f32 %v3971, %v3941
      %v3973 = vadd.f32 %v3972, %v3942
      %v3974 = vadd.f32 %v3973, %v3943
      %v3975 = vadd.f32 %v3974, %v3944
      %v3976 = vadd.f32 %v3975, %v3945
      %v3977 = vadd.f32 %v3976, %v3946
      %v3978 = vadd.f32 %v3977, %v3947
      %v3979 = vadd.f32 %v3978, %v3948
      %v3980 = vadd.f32 %v3979, %v3949
      %v3981 = vadd.f32 %v3980, %v3950
      %v3982 = vadd.f32 %v3981, %v3951
      %v3983 = vadd.f32 %v3982, %v3952
      %v3984 = vadd.f32 %v3983, %v3953
      %v3985 = vadd.f32 %v3984, %v3954
      %v3986 = vadd.f32 %v3985, %v3955
      %v3987 = vadd.f32 %v3986, %v3956
      %v3988 = vadd.f32 %v3987, %v3957
      %v3989 = vadd.f32 %v3988, %v3958
      %v3990 = vadd.f32 %v3989, %v3959
      %v3991 = vadd.f32 %v3990, %v3960
      %v3992 = vadd.f32 %v3991, %v3961
      %v3993 = vadd.f32 %v3992, %v3962
      %v3994 = vadd.f32 %v3993, %v3963
      %v3995 = vadd.f32 %v3994, %v3964
      %v3996 = vadd.f32 %v3995, %v3965
      %v3997 = vrot.slane %v3996, 4
      %v3998 = vadd.f32 %v3996, %v3997
      %v3999 = vrot.slane %v3998, 2
      %v4000 = vadd.f32 %v3998, %v3999
      %v4001 = vrot.slane %v4000, 1
      %v4002 = vadd.f32 %v4000, %v4001
      %vm4003 = vcmask 1040384
      %v4004 = vsel %vm4003, %v3900, %v4002
      %4005 = vst [vmem:[%s362] sm:$0x3] %v4004
      %s4006 = smul.u32 %s21, 16
      %s4007 = sadd.s32 %s4006, %s22
      %s4008 = smul.u32 32, %s4007
      %p4009 = scmp.lt.s32.totalorder %s4008, 1023
      %s4010 = scalar_select %p4009, %s4008, 1023
      %s4011 = smul.addr %s4010, 8
      %s4012 = scalar_lea.vmem %s4, %s4011
      %s4013 = smul.u32 %s21, 16
      %s4014 = sadd.s32 %s4013, %s22
      %p4015 = scmp.lt.s32.totalorder %s4014, 31
      %s4016 = scalar_select %p4015, %s4014, 31
      %s4017 = smul.addr %s4016, 2
      %s4018 = scalar_lea.vmem %s5, %s4017
      // Predicated region
      $region37: #{conv_block_forward.6} parent=35 // pred_check
        %p4019 = pneg %p160
      $region38: #{conv_block_forward.6} parent=35 // pred_check_branch
        %4021 = sbr.rel (%p4019) target = $region40
      $region39: #{conv_block_forward.6} parent=35 // pred_region
        %s4022 = smul.u32 %s21, 16
        %s4023 = sadd.s32 %s4022, %s22
        %s4024 = smul.u32 32, %s4023
      $region40: #{conv_block_forward.6} parent=35 // pred_fallthru
        _
      // Predicated region
      $region41: #{conv_block_forward.6} parent=35 // pred_check
        %p4025 = pneg %p190
      $region42: #{conv_block_forward.6} parent=35 // pred_check_branch
        %4027 = sbr.rel (%p4025) target = $region44
      $region43: #{conv_block_forward.6} parent=35 // pred_region
        %s4028 = smul.u32 %s21, 16
        %s4029 = sadd.s32 %s4028, %s22
      $region44: #{conv_block_forward.6} parent=35 // pred_fallthru
        _
    $region36: #{conv_block_forward.6} parent=5 // pred_fallthru
      _
    %p4030 = scmp.le.s32.totalorder 2, %s12
    // Predicated region
    $region45: #{conv_block_forward.6} parent=5 // pred_check
      %p4031 = pneg %p4030
    $region46: #{conv_block_forward.6} parent=5 // pred_check_branch
      %4033 = sbr.rel (%p4031) target = $region48
    $region47: #{conv_block_forward.6} parent=5 // pred_region
      %s4034 = ssub.s32 %s12, 2
      // Predicated region
      $region49: #{conv_block_forward.6} parent=47 // pred_check
        %p4035 = pneg %p166
      $region50: #{conv_block_forward.6} parent=47 // pred_check_branch
        %4037 = sbr.rel (%p4035) target = $region52
      $region51: #{conv_block_forward.6} parent=47 // pred_region
        %s4038 = smul.u32 %s23, 16
        %s4039 = sadd.s32 %s4038, %s24
        %s4040 = smul.u32 32, %s4039
        %p4041 = scmp.lt.s32.totalorder %s4040, 1023
        %s4042 = scalar_select %p4041, %s4040, 1023
        %s4043 = smul.addr %s4042, 8
        %s4044 = scalar_lea.vmem %s4, %s4043
      $region52: #{conv_block_forward.6} parent=47 // pred_fallthru
        _
      // Predicated region
      $region53: #{conv_block_forward.6} parent=47 // pred_check
        %p4045 = pneg %p196
      $region54: #{conv_block_forward.6} parent=47 // pred_check_branch
        %4047 = sbr.rel (%p4045) target = $region56
      $region55: #{conv_block_forward.6} parent=47 // pred_region
        %s4048 = smul.u32 %s23, 16
        %s4049 = sadd.s32 %s4048, %s24
        %p4050 = scmp.lt.s32.totalorder %s4049, 31
        %s4051 = scalar_select %p4050, %s4049, 31
        %s4052 = smul.addr %s4051, 2
        %s4053 = scalar_lea.vmem %s5, %s4052
      $region56: #{conv_block_forward.6} parent=47 // pred_fallthru
        _
    $region48: #{conv_block_forward.6} parent=5 // pred_fallthru
      _
  $region6: #{conv_block_forward.6} parent=0 // loop_footer
    %s16 = sadd.s32 1, %s12
  $region7: #{conv_block_forward.6} parent=0 // loop_footer_branch
    %11 = sbr.rel target = $region3
  $region8: #{conv_block_forward.6} parent=0 // loop_exit
    _

</llo_original>
